<compile_context>
chip_gen: v7x
topology: tpu7x:2x2x1
jax: 0.10.0
libtpu: 0.0.40
codegen_flags: <defaults>
</compile_context>

<pallas_src>
import math

import numpy as np
import jax
import jax.numpy as jnp
from jax.experimental import pallas as pl
from jax.experimental.pallas import tpu as pltpu

SYS_DIM = 1
CTRL_DIM = 1
HIDDEN = [3]
GRID = 5
K = 5

IN_DIM = 2 * SYS_DIM + CTRL_DIM            # 3
WIDTH = [IN_DIM] + HIDDEN + [SYS_DIM]      # [3, 3, 1]
N_BASIS = GRID + K                         # 10 basis functions per edge
N_GRID_PTS = GRID + 2 * K + 1              # 16 extended knots
N_INTERVALS = N_GRID_PTS - 1               # 15 level-0 intervals

FORCE_LEN = 200                            # synthetic stand-in for duffing_data.mat force
SUBLANES = 8
LANES = 128
TILE = SUBLANES * LANES                    # 1024 batch states per grid step

# ---- SMEM parameter-vector layout (all true scalars) --------------------------------
SPLINE_OFF = 2                                                   # [t0, 1/h] first
N_SPLINE = sum(2 * (N_GRID_PTS - p) for p in range(1, K + 1))    # 130 (slope, offset)
COEF1_OFF = SPLINE_OFF + N_SPLINE                                # 132
N_COEF1 = WIDTH[0] * WIDTH[1] * (1 + N_BASIS)                    # 99
COEF2_OFF = COEF1_OFF + N_COEF1                                  # 231
N_COEF2 = WIDTH[1] * WIDTH[2] * (1 + N_BASIS)                    # 33
N_PARAMS = COEF2_OFF + N_COEF2                                   # 264


# ---------------------------------------------------------------------------
# Pallas kernel: full 2-layer KAN forward ([3] -> [3] -> [1]) on (8,128) tiles
# ---------------------------------------------------------------------------
def _kan_layer(feats, t0, inv_h, spl, p_ref, coef_off, n_in, n_out):
    """One KAN layer. feats: list of n_in (8,128) activations; returns n_out arrays."""
    acc = [None] * n_out
    coff = coef_off
    for i in range(n_in):
        x = feats[i]

        # level-0 indicators: one floor + one equality per interval (uniform knots)
        cell = jnp.floor((x - t0) * inv_h)
        b = [(cell == float(c)).astype(jnp.float32) for c in range(N_INTERVALS)]

        # Cox-de Boor recursion; w_r(c) == 1 - w_l(c+1) (exact), weights are
        # x*slope + offset with host-precomputed constants (no divisions),
        # basis list updated in place, only two weight vregs live at a time.
        col = 0
        for p in range(1, K + 1):
            nc = N_INTERVALS - p
            w_prev = x * spl[col] + spl[col + 1]
            col += 2
            for c in range(nc):
                w_next = x * spl[col] + spl[col + 1]
                col += 2
                b[c] = w_prev * b[c] + (1.0 - w_next) * b[c + 1]
                w_prev = w_next
            del b[nc:]                                    # len(b) == N_BASIS after p == K

        # SiLU base branch + spline branch, contracted with SMEM scalar coefficients
        silu = x * (1.0 / (1.0 + jnp.exp(-x)))
        for o in range(n_out):
            s = p_ref[coff] * silu
            coff += 1
            for c in range(N_BASIS):
                s = s + p_ref[coff] * b[c]
                coff += 1
            acc[o] = s if acc[o] is None else acc[o] + s
    return acc


def kanode_kernel(params_ref, zin_ref, out_ref):
    t0 = params_ref[0]
    inv_h = params_ref[1]
    spl = [params_ref[k] for k in range(SPLINE_OFF, COEF1_OFF)]   # shared knot constants

    feats = [zin_ref[0, f] for f in range(IN_DIM)]                # x, v, u : (8,128) each
    h = _kan_layer(feats, t0, inv_h, spl, params_ref, COEF1_OFF, WIDTH[0], WIDTH[1])
    y = _kan_layer(h, t0, inv_h, spl, params_ref, COEF2_OFF, WIDTH[1], WIDTH[2])

    out_ref[0, 0] = feats[1]                                      # dx = v (pass-through)
    out_ref[0, 1] = y[0]                                          # dv = KAN([x, v, u])


# ---------------------------------------------------------------------------
# host-side wrapper
# ---------------------------------------------------------------------------
def input_force_interp(t, force, freq):
    """Vectorized input_force_func: linear interp of force at freq*t, 0 out of range."""
    tf = freq * t
    n = force.shape[0]
    valid = (tf >= 0.0) & (tf <= n - 1)
    t1 = jnp.clip(jnp.floor(tf), 0.0, n - 2.0)
    idx = t1.astype(jnp.int32)
    delta = tf - t1
    val = force[idx] + delta * (force[idx + 1] - force[idx])
    return jnp.where(valid, val, 0.0)


def kanode_forward_batch(t_batch, z_batch, params, force, freq):
    """Batched RHS: t (B,), z (B, 2) -> (B, 2) derivatives [dx, dv]."""
    B = t_batch.shape[0]
    t_batch = t_batch.astype(jnp.float32)
    u = input_force_interp(t_batch, force, freq)          # force interp outside kernel
    x = z_batch[:, 0].astype(jnp.float32)
    v = z_batch[:, 1].astype(jnp.float32)
    feats = jnp.stack([x, v, u], axis=0)                  # (3, B)

    num_tiles = max(1, (B + TILE - 1) // TILE)
    B_pad = num_tiles * TILE
    if B_pad != B:
        feats = jnp.pad(feats, ((0, 0), (0, B_pad - B)))
    # (num_tiles, 3, 8, 128): each feature slice of a tile is one full (8,128) vreg
    zin = feats.reshape(IN_DIM, num_tiles, SUBLANES, LANES).transpose(1, 0, 2, 3)

    out = pl.pallas_call(
        kanode_kernel,
        out_shape=jax.ShapeDtypeStruct((num_tiles, 2, SUBLANES, LANES), jnp.float32),
        grid=(num_tiles,),
        in_specs=[
            pl.BlockSpec(memory_space=pltpu.MemorySpace.SMEM),     # packed scalar params
            pl.BlockSpec((1, IN_DIM, SUBLANES, LANES), lambda i: (i, 0, 0, 0)),
        ],
        out_specs=pl.BlockSpec((1, 2, SUBLANES, LANES), lambda i: (i, 0, 0, 0)),
        compiler_params=pltpu.CompilerParams(
            dimension_semantics=("parallel",)),            # >=2 tiles -> both TCs on v7x
    )(params, zin)

    out = out.transpose(1, 0, 2, 3).reshape(2, B_pad)[:, :B]
    return out.T                                           # (B, 2)


def kanode_forward(t, z, params, force, freq):
    """Single-call semantics of KANODEfunc.forward(t, z): returns (2,) = cat(v, dv)."""
    t_b = jnp.reshape(jnp.asarray(t, jnp.float32), (1,))
    z_b = jnp.reshape(jnp.asarray(z, jnp.float32), (1, 2 * SYS_DIM))
    return kanode_forward_batch(t_b, z_b, params, force, freq)[0]


# ---------------------------------------------------------------------------
# parameter synthesis + host-side packing into the SMEM scalar vector
# ---------------------------------------------------------------------------
def init_raw_params(key):
    h = 2.0 / GRID
    base_grid = jnp.arange(-K, GRID + K + 1, dtype=jnp.float32) * h - 1.0   # 16 knots in [-3, 3]
    keys = jax.random.split(key, len(WIDTH) - 1)
    raw = []
    for li, (n_in, n_out) in enumerate(zip(WIDTH[:-1], WIDTH[1:])):
        kc, kb = jax.random.split(keys[li])
        grid = jnp.tile(base_grid[None, :], (n_in, 1))                      # (n_in, 16)
        coef = 0.1 * jax.random.normal(kc, (n_in, n_out, N_BASIS), jnp.float32)
        scale_sp = jnp.full((n_in, n_out), 1.0 / math.sqrt(n_in), jnp.float32)
        coef = coef * scale_sp[:, :, None]                                  # fold scale_sp
        scale_base = (1.0 / math.sqrt(n_in)) * jax.random.normal(kb, (n_in, n_out), jnp.float32)
        raw.append((grid, coef, scale_base))
    return raw


def pack_params(raw):
    """Knot-derived Cox-de Boor constants + all coefficients -> one 1-D f32 vector."""
    g = np.asarray(raw[0][0][0], dtype=np.float64)        # shared (uniform) knot vector
    vals = [g[0], 1.0 / (g[1] - g[0])]                    # t0, 1/h  for level-0 cell index
    for p in range(1, K + 1):
        for c in range(N_GRID_PTS - p):
            den = g[c + p] - g[c]
            vals.append(1.0 / den)                        # slope of left weight w_l(c, p)
            vals.append(-g[c] / den)                      # offset of left weight w_l(c, p)
    for grid, coef, scale_base in raw:
        coef = np.asarray(coef)
        scale_base = np.asarray(scale_base)
        n_in, n_out, _ = coef.shape
        for i in range(n_in):
            for o in range(n_out):
                vals.append(scale_base[i, o])
                for c in range(N_BASIS):
                    vals.append(coef[i, o, c])
    params = np.asarray(vals, dtype=np.float32)
    assert params.shape == (N_PARAMS,), params.shape
    return jnp.asarray(params)


# ---------------------------------------------------------------------------
# pure-JAX reference (original parameterization)
# ---------------------------------------------------------------------------
def _bspline(x_col, grid, k):
    n_pts = grid.shape[1]
    b = ((x_col >= grid[:, :-1]) & (x_col < grid[:, 1:])).astype(jnp.float32)
    for p in range(1, k + 1):
        num_l = x_col - grid[:, : n_pts - (p + 1)]
        den_l = grid[:, p : n_pts - 1] - grid[:, : n_pts - (p + 1)]
        num_r = grid[:, p + 1 :] - x_col
        den_r = grid[:, p + 1 :] - grid[:, 1 : n_pts - p]
        b = (num_l / den_l) * b[:, :-1] + (num_r / den_r) * b[:, 1:]
    return b


def kan_ref(z_col, raw):
    def layer(x_col, grid, coef, scale_base):
        x_row = x_col.T
        silu = x_row * (1.0 / (1.0 + jnp.exp(-x_row)))
        out = jnp.sum(scale_base.T * silu, axis=1, keepdims=True)
        bas = _bspline(x_col, grid, K)
        return out + jnp.einsum("ioc,ic->o", coef, bas)[:, None]
    h = layer(z_col, *raw[0])
    return layer(h, *raw[1])


def kanode_ref(t, z, raw, force, freq):
    cutoff = z.shape[0] // 2
    x, v = z[:cutoff], z[cutoff:]
    u = input_force_interp(t, force, freq)
    z_col = jnp.concatenate([x, v, jnp.reshape(u, (1,))]).reshape(IN_DIM, 1)
    out = kan_ref(z_col, raw)
    return jnp.concatenate([v, out[:, 0]])


if __name__ == "__main__":
    key = jax.random.PRNGKey(0)
    kp, kz, kt = jax.random.split(key, 3)

    raw = init_raw_params(kp)
    params = pack_params(raw)
    freq = jnp.float32(50.0)

    # synthetic stand-in for data['force'] from duffing_data.mat
    tt = jnp.linspace(0.0, 2.0 * jnp.pi, FORCE_LEN)
    force = jnp.sin(3.0 * tt).astype(jnp.float32)

    # --- batched RHS evaluation: 2048 (t, z) pairs -> two 1024-state grid steps --------
    B = 2 * TILE
    t_batch = jax.random.uniform(kt, (B,), jnp.float32, -0.1, 4.1)   # includes out-of-range t
    z_batch = 0.5 * jax.random.normal(kz, (B, 2 * SYS_DIM), jnp.float32)

    fwd_batch = jax.jit(kanode_forward_batch)
    dz_batch = jax.block_until_ready(fwd_batch(t_batch, z_batch, params, force, freq))

    ref_batch = jax.vmap(lambda t, z: kanode_ref(t, z, raw, force, freq))(t_batch, z_batch)
    assert dz_batch.shape == (B, 2), dz_batch.shape
    assert bool(jnp.allclose(dz_batch, ref_batch, atol=1e-5, rtol=1e-5))

    # --- single-call path, same semantics as KANODEfunc.forward(t, z) ------------------
    t0 = jnp.float32(0.37)
    z0 = 0.5 * jax.random.normal(jax.random.PRNGKey(7), (2 * SYS_DIM,), jnp.float32)
    dz0 = jax.block_until_ready(jax.jit(kanode_forward)(t0, z0, params, force, freq))
    ref0 = kanode_ref(t0, z0, raw, force, freq)
    assert dz0.shape == (2,), dz0.shape
    assert bool(jnp.allclose(dz0, ref0, atol=1e-5, rtol=1e-5)), (dz0, ref0)

    print("KERNEL_OK")
</pallas_src>

<mosaic_0001>
module attributes {stable_mosaic.version = 11 : i64} {
  func.func @kanode_kernel(%arg0: i32, %arg1: memref<264xf32, #tpu.memory_space<smem>>, %arg2: memref<1x3x8x128xf32, #tpu.memory_space<vmem>>, %arg3: memref<1x2x8x128xf32, #tpu.memory_space<vmem>>) attributes {dimension_semantics = [#tpu.dimension_semantics<parallel>], iteration_bounds = array<i64: 2>, scalar_prefetch = 0 : i64, scratch_operands = 0 : i64, tpu.core_type = #tpu.core_type<tc>, window_params = [{transform_indices = @transform_0, window_bounds = array<i64: 264>}, {transform_indices = @transform_1, window_bounds = array<i64: 1, 3, 8, 128>}, {transform_indices = @transform_2, window_bounds = array<i64: 1, 2, 8, 128>}]} {
    %c0 = arith.constant 0 : index
    %0 = memref.load %arg1[%c0] : memref<264xf32, #tpu.memory_space<smem>>
    %c1 = arith.constant 1 : index
    %1 = memref.load %arg1[%c1] : memref<264xf32, #tpu.memory_space<smem>>
    %c2 = arith.constant 2 : index
    %2 = memref.load %arg1[%c2] : memref<264xf32, #tpu.memory_space<smem>>
    %c3 = arith.constant 3 : index
    %3 = memref.load %arg1[%c3] : memref<264xf32, #tpu.memory_space<smem>>
    %c4 = arith.constant 4 : index
    %4 = memref.load %arg1[%c4] : memref<264xf32, #tpu.memory_space<smem>>
    %c5 = arith.constant 5 : index
    %5 = memref.load %arg1[%c5] : memref<264xf32, #tpu.memory_space<smem>>
    %c6 = arith.constant 6 : index
    %6 = memref.load %arg1[%c6] : memref<264xf32, #tpu.memory_space<smem>>
    %c7 = arith.constant 7 : index
    %7 = memref.load %arg1[%c7] : memref<264xf32, #tpu.memory_space<smem>>
    %c8 = arith.constant 8 : index
    %8 = memref.load %arg1[%c8] : memref<264xf32, #tpu.memory_space<smem>>
    %c9 = arith.constant 9 : index
    %9 = memref.load %arg1[%c9] : memref<264xf32, #tpu.memory_space<smem>>
    %c10 = arith.constant 10 : index
    %10 = memref.load %arg1[%c10] : memref<264xf32, #tpu.memory_space<smem>>
    %c11 = arith.constant 11 : index
    %11 = memref.load %arg1[%c11] : memref<264xf32, #tpu.memory_space<smem>>
    %c12 = arith.constant 12 : index
    %12 = memref.load %arg1[%c12] : memref<264xf32, #tpu.memory_space<smem>>
    %c13 = arith.constant 13 : index
    %13 = memref.load %arg1[%c13] : memref<264xf32, #tpu.memory_space<smem>>
    %c14 = arith.constant 14 : index
    %14 = memref.load %arg1[%c14] : memref<264xf32, #tpu.memory_space<smem>>
    %c15 = arith.constant 15 : index
    %15 = memref.load %arg1[%c15] : memref<264xf32, #tpu.memory_space<smem>>
    %c16 = arith.constant 16 : index
    %16 = memref.load %arg1[%c16] : memref<264xf32, #tpu.memory_space<smem>>
    %c17 = arith.constant 17 : index
    %17 = memref.load %arg1[%c17] : memref<264xf32, #tpu.memory_space<smem>>
    %c18 = arith.constant 18 : index
    %18 = memref.load %arg1[%c18] : memref<264xf32, #tpu.memory_space<smem>>
    %c19 = arith.constant 19 : index
    %19 = memref.load %arg1[%c19] : memref<264xf32, #tpu.memory_space<smem>>
    %c20 = arith.constant 20 : index
    %20 = memref.load %arg1[%c20] : memref<264xf32, #tpu.memory_space<smem>>
    %c21 = arith.constant 21 : index
    %21 = memref.load %arg1[%c21] : memref<264xf32, #tpu.memory_space<smem>>
    %c22 = arith.constant 22 : index
    %22 = memref.load %arg1[%c22] : memref<264xf32, #tpu.memory_space<smem>>
    %c23 = arith.constant 23 : index
    %23 = memref.load %arg1[%c23] : memref<264xf32, #tpu.memory_space<smem>>
    %c24 = arith.constant 24 : index
    %24 = memref.load %arg1[%c24] : memref<264xf32, #tpu.memory_space<smem>>
    %c25 = arith.constant 25 : index
    %25 = memref.load %arg1[%c25] : memref<264xf32, #tpu.memory_space<smem>>
    %c26 = arith.constant 26 : index
    %26 = memref.load %arg1[%c26] : memref<264xf32, #tpu.memory_space<smem>>
    %c27 = arith.constant 27 : index
    %27 = memref.load %arg1[%c27] : memref<264xf32, #tpu.memory_space<smem>>
    %c28 = arith.constant 28 : index
    %28 = memref.load %arg1[%c28] : memref<264xf32, #tpu.memory_space<smem>>
    %c29 = arith.constant 29 : index
    %29 = memref.load %arg1[%c29] : memref<264xf32, #tpu.memory_space<smem>>
    %c30 = arith.constant 30 : index
    %30 = memref.load %arg1[%c30] : memref<264xf32, #tpu.memory_space<smem>>
    %c31 = arith.constant 31 : index
    %31 = memref.load %arg1[%c31] : memref<264xf32, #tpu.memory_space<smem>>
    %c32 = arith.constant 32 : index
    %32 = memref.load %arg1[%c32] : memref<264xf32, #tpu.memory_space<smem>>
    %c33 = arith.constant 33 : index
    %33 = memref.load %arg1[%c33] : memref<264xf32, #tpu.memory_space<smem>>
    %c34 = arith.constant 34 : index
    %34 = memref.load %arg1[%c34] : memref<264xf32, #tpu.memory_space<smem>>
    %c35 = arith.constant 35 : index
    %35 = memref.load %arg1[%c35] : memref<264xf32, #tpu.memory_space<smem>>
    %c36 = arith.constant 36 : index
    %36 = memref.load %arg1[%c36] : memref<264xf32, #tpu.memory_space<smem>>
    %c37 = arith.constant 37 : index
    %37 = memref.load %arg1[%c37] : memref<264xf32, #tpu.memory_space<smem>>
    %c38 = arith.constant 38 : index
    %38 = memref.load %arg1[%c38] : memref<264xf32, #tpu.memory_space<smem>>
    %c39 = arith.constant 39 : index
    %39 = memref.load %arg1[%c39] : memref<264xf32, #tpu.memory_space<smem>>
    %c40 = arith.constant 40 : index
    %40 = memref.load %arg1[%c40] : memref<264xf32, #tpu.memory_space<smem>>
    %c41 = arith.constant 41 : index
    %41 = memref.load %arg1[%c41] : memref<264xf32, #tpu.memory_space<smem>>
    %c42 = arith.constant 42 : index
    %42 = memref.load %arg1[%c42] : memref<264xf32, #tpu.memory_space<smem>>
    %c43 = arith.constant 43 : index
    %43 = memref.load %arg1[%c43] : memref<264xf32, #tpu.memory_space<smem>>
    %c44 = arith.constant 44 : index
    %44 = memref.load %arg1[%c44] : memref<264xf32, #tpu.memory_space<smem>>
    %c45 = arith.constant 45 : index
    %45 = memref.load %arg1[%c45] : memref<264xf32, #tpu.memory_space<smem>>
    %c46 = arith.constant 46 : index
    %46 = memref.load %arg1[%c46] : memref<264xf32, #tpu.memory_space<smem>>
    %c47 = arith.constant 47 : index
    %47 = memref.load %arg1[%c47] : memref<264xf32, #tpu.memory_space<smem>>
    %c48 = arith.constant 48 : index
    %48 = memref.load %arg1[%c48] : memref<264xf32, #tpu.memory_space<smem>>
    %c49 = arith.constant 49 : index
    %49 = memref.load %arg1[%c49] : memref<264xf32, #tpu.memory_space<smem>>
    %c50 = arith.constant 50 : index
    %50 = memref.load %arg1[%c50] : memref<264xf32, #tpu.memory_space<smem>>
    %c51 = arith.constant 51 : index
    %51 = memref.load %arg1[%c51] : memref<264xf32, #tpu.memory_space<smem>>
    %c52 = arith.constant 52 : index
    %52 = memref.load %arg1[%c52] : memref<264xf32, #tpu.memory_space<smem>>
    %c53 = arith.constant 53 : index
    %53 = memref.load %arg1[%c53] : memref<264xf32, #tpu.memory_space<smem>>
    %c54 = arith.constant 54 : index
    %54 = memref.load %arg1[%c54] : memref<264xf32, #tpu.memory_space<smem>>
    %c55 = arith.constant 55 : index
    %55 = memref.load %arg1[%c55] : memref<264xf32, #tpu.memory_space<smem>>
    %c56 = arith.constant 56 : index
    %56 = memref.load %arg1[%c56] : memref<264xf32, #tpu.memory_space<smem>>
    %c57 = arith.constant 57 : index
    %57 = memref.load %arg1[%c57] : memref<264xf32, #tpu.memory_space<smem>>
    %c58 = arith.constant 58 : index
    %58 = memref.load %arg1[%c58] : memref<264xf32, #tpu.memory_space<smem>>
    %c59 = arith.constant 59 : index
    %59 = memref.load %arg1[%c59] : memref<264xf32, #tpu.memory_space<smem>>
    %c60 = arith.constant 60 : index
    %60 = memref.load %arg1[%c60] : memref<264xf32, #tpu.memory_space<smem>>
    %c61 = arith.constant 61 : index
    %61 = memref.load %arg1[%c61] : memref<264xf32, #tpu.memory_space<smem>>
    %c62 = arith.constant 62 : index
    %62 = memref.load %arg1[%c62] : memref<264xf32, #tpu.memory_space<smem>>
    %c63 = arith.constant 63 : index
    %63 = memref.load %arg1[%c63] : memref<264xf32, #tpu.memory_space<smem>>
    %c64 = arith.constant 64 : index
    %64 = memref.load %arg1[%c64] : memref<264xf32, #tpu.memory_space<smem>>
    %c65 = arith.constant 65 : index
    %65 = memref.load %arg1[%c65] : memref<264xf32, #tpu.memory_space<smem>>
    %c66 = arith.constant 66 : index
    %66 = memref.load %arg1[%c66] : memref<264xf32, #tpu.memory_space<smem>>
    %c67 = arith.constant 67 : index
    %67 = memref.load %arg1[%c67] : memref<264xf32, #tpu.memory_space<smem>>
    %c68 = arith.constant 68 : index
    %68 = memref.load %arg1[%c68] : memref<264xf32, #tpu.memory_space<smem>>
    %c69 = arith.constant 69 : index
    %69 = memref.load %arg1[%c69] : memref<264xf32, #tpu.memory_space<smem>>
    %c70 = arith.constant 70 : index
    %70 = memref.load %arg1[%c70] : memref<264xf32, #tpu.memory_space<smem>>
    %c71 = arith.constant 71 : index
    %71 = memref.load %arg1[%c71] : memref<264xf32, #tpu.memory_space<smem>>
    %c72 = arith.constant 72 : index
    %72 = memref.load %arg1[%c72] : memref<264xf32, #tpu.memory_space<smem>>
    %c73 = arith.constant 73 : index
    %73 = memref.load %arg1[%c73] : memref<264xf32, #tpu.memory_space<smem>>
    %c74 = arith.constant 74 : index
    %74 = memref.load %arg1[%c74] : memref<264xf32, #tpu.memory_space<smem>>
    %c75 = arith.constant 75 : index
    %75 = memref.load %arg1[%c75] : memref<264xf32, #tpu.memory_space<smem>>
    %c76 = arith.constant 76 : index
    %76 = memref.load %arg1[%c76] : memref<264xf32, #tpu.memory_space<smem>>
    %c77 = arith.constant 77 : index
    %77 = memref.load %arg1[%c77] : memref<264xf32, #tpu.memory_space<smem>>
    %c78 = arith.constant 78 : index
    %78 = memref.load %arg1[%c78] : memref<264xf32, #tpu.memory_space<smem>>
    %c79 = arith.constant 79 : index
    %79 = memref.load %arg1[%c79] : memref<264xf32, #tpu.memory_space<smem>>
    %c80 = arith.constant 80 : index
    %80 = memref.load %arg1[%c80] : memref<264xf32, #tpu.memory_space<smem>>
    %c81 = arith.constant 81 : index
    %81 = memref.load %arg1[%c81] : memref<264xf32, #tpu.memory_space<smem>>
    %c82 = arith.constant 82 : index
    %82 = memref.load %arg1[%c82] : memref<264xf32, #tpu.memory_space<smem>>
    %c83 = arith.constant 83 : index
    %83 = memref.load %arg1[%c83] : memref<264xf32, #tpu.memory_space<smem>>
    %c84 = arith.constant 84 : index
    %84 = memref.load %arg1[%c84] : memref<264xf32, #tpu.memory_space<smem>>
    %c85 = arith.constant 85 : index
    %85 = memref.load %arg1[%c85] : memref<264xf32, #tpu.memory_space<smem>>
    %c86 = arith.constant 86 : index
    %86 = memref.load %arg1[%c86] : memref<264xf32, #tpu.memory_space<smem>>
    %c87 = arith.constant 87 : index
    %87 = memref.load %arg1[%c87] : memref<264xf32, #tpu.memory_space<smem>>
    %c88 = arith.constant 88 : index
    %88 = memref.load %arg1[%c88] : memref<264xf32, #tpu.memory_space<smem>>
    %c89 = arith.constant 89 : index
    %89 = memref.load %arg1[%c89] : memref<264xf32, #tpu.memory_space<smem>>
    %c90 = arith.constant 90 : index
    %90 = memref.load %arg1[%c90] : memref<264xf32, #tpu.memory_space<smem>>
    %c91 = arith.constant 91 : index
    %91 = memref.load %arg1[%c91] : memref<264xf32, #tpu.memory_space<smem>>
    %c92 = arith.constant 92 : index
    %92 = memref.load %arg1[%c92] : memref<264xf32, #tpu.memory_space<smem>>
    %c93 = arith.constant 93 : index
    %93 = memref.load %arg1[%c93] : memref<264xf32, #tpu.memory_space<smem>>
    %c94 = arith.constant 94 : index
    %94 = memref.load %arg1[%c94] : memref<264xf32, #tpu.memory_space<smem>>
    %c95 = arith.constant 95 : index
    %95 = memref.load %arg1[%c95] : memref<264xf32, #tpu.memory_space<smem>>
    %c96 = arith.constant 96 : index
    %96 = memref.load %arg1[%c96] : memref<264xf32, #tpu.memory_space<smem>>
    %c97 = arith.constant 97 : index
    %97 = memref.load %arg1[%c97] : memref<264xf32, #tpu.memory_space<smem>>
    %c98 = arith.constant 98 : index
    %98 = memref.load %arg1[%c98] : memref<264xf32, #tpu.memory_space<smem>>
    %c99 = arith.constant 99 : index
    %99 = memref.load %arg1[%c99] : memref<264xf32, #tpu.memory_space<smem>>
    %c100 = arith.constant 100 : index
    %100 = memref.load %arg1[%c100] : memref<264xf32, #tpu.memory_space<smem>>
    %c101 = arith.constant 101 : index
    %101 = memref.load %arg1[%c101] : memref<264xf32, #tpu.memory_space<smem>>
    %c102 = arith.constant 102 : index
    %102 = memref.load %arg1[%c102] : memref<264xf32, #tpu.memory_space<smem>>
    %c103 = arith.constant 103 : index
    %103 = memref.load %arg1[%c103] : memref<264xf32, #tpu.memory_space<smem>>
    %c104 = arith.constant 104 : index
    %104 = memref.load %arg1[%c104] : memref<264xf32, #tpu.memory_space<smem>>
    %c105 = arith.constant 105 : index
    %105 = memref.load %arg1[%c105] : memref<264xf32, #tpu.memory_space<smem>>
    %c106 = arith.constant 106 : index
    %106 = memref.load %arg1[%c106] : memref<264xf32, #tpu.memory_space<smem>>
    %c107 = arith.constant 107 : index
    %107 = memref.load %arg1[%c107] : memref<264xf32, #tpu.memory_space<smem>>
    %c108 = arith.constant 108 : index
    %108 = memref.load %arg1[%c108] : memref<264xf32, #tpu.memory_space<smem>>
    %c109 = arith.constant 109 : index
    %109 = memref.load %arg1[%c109] : memref<264xf32, #tpu.memory_space<smem>>
    %c110 = arith.constant 110 : index
    %110 = memref.load %arg1[%c110] : memref<264xf32, #tpu.memory_space<smem>>
    %c111 = arith.constant 111 : index
    %111 = memref.load %arg1[%c111] : memref<264xf32, #tpu.memory_space<smem>>
    %c112 = arith.constant 112 : index
    %112 = memref.load %arg1[%c112] : memref<264xf32, #tpu.memory_space<smem>>
    %c113 = arith.constant 113 : index
    %113 = memref.load %arg1[%c113] : memref<264xf32, #tpu.memory_space<smem>>
    %c114 = arith.constant 114 : index
    %114 = memref.load %arg1[%c114] : memref<264xf32, #tpu.memory_space<smem>>
    %c115 = arith.constant 115 : index
    %115 = memref.load %arg1[%c115] : memref<264xf32, #tpu.memory_space<smem>>
    %c116 = arith.constant 116 : index
    %116 = memref.load %arg1[%c116] : memref<264xf32, #tpu.memory_space<smem>>
    %c117 = arith.constant 117 : index
    %117 = memref.load %arg1[%c117] : memref<264xf32, #tpu.memory_space<smem>>
    %c118 = arith.constant 118 : index
    %118 = memref.load %arg1[%c118] : memref<264xf32, #tpu.memory_space<smem>>
    %c119 = arith.constant 119 : index
    %119 = memref.load %arg1[%c119] : memref<264xf32, #tpu.memory_space<smem>>
    %c120 = arith.constant 120 : index
    %120 = memref.load %arg1[%c120] : memref<264xf32, #tpu.memory_space<smem>>
    %c121 = arith.constant 121 : index
    %121 = memref.load %arg1[%c121] : memref<264xf32, #tpu.memory_space<smem>>
    %c122 = arith.constant 122 : index
    %122 = memref.load %arg1[%c122] : memref<264xf32, #tpu.memory_space<smem>>
    %c123 = arith.constant 123 : index
    %123 = memref.load %arg1[%c123] : memref<264xf32, #tpu.memory_space<smem>>
    %c124 = arith.constant 124 : index
    %124 = memref.load %arg1[%c124] : memref<264xf32, #tpu.memory_space<smem>>
    %c125 = arith.constant 125 : index
    %125 = memref.load %arg1[%c125] : memref<264xf32, #tpu.memory_space<smem>>
    %c126 = arith.constant 126 : index
    %126 = memref.load %arg1[%c126] : memref<264xf32, #tpu.memory_space<smem>>
    %c127 = arith.constant 127 : index
    %127 = memref.load %arg1[%c127] : memref<264xf32, #tpu.memory_space<smem>>
    %c128 = arith.constant 128 : index
    %128 = memref.load %arg1[%c128] : memref<264xf32, #tpu.memory_space<smem>>
    %c129 = arith.constant 129 : index
    %129 = memref.load %arg1[%c129] : memref<264xf32, #tpu.memory_space<smem>>
    %c130 = arith.constant 130 : index
    %130 = memref.load %arg1[%c130] : memref<264xf32, #tpu.memory_space<smem>>
    %c131 = arith.constant 131 : index
    %131 = memref.load %arg1[%c131] : memref<264xf32, #tpu.memory_space<smem>>
    %c0_0 = arith.constant 0 : index
    %c0_1 = arith.constant 0 : index
    %c0_2 = arith.constant 0 : index
    %c0_3 = arith.constant 0 : index
    %132 = vector.load %arg2[%c0_0, %c0_1, %c0_2, %c0_3] : memref<1x3x8x128xf32, #tpu.memory_space<vmem>>, vector<1x1x8x128xf32>
    %133 = vector.shape_cast %132 : vector<1x1x8x128xf32> to vector<8x128xf32>
    %c0_4 = arith.constant 0 : index
    %c1_5 = arith.constant 1 : index
    %c0_6 = arith.constant 0 : index
    %c0_7 = arith.constant 0 : index
    %134 = vector.load %arg2[%c0_4, %c1_5, %c0_6, %c0_7] : memref<1x3x8x128xf32, #tpu.memory_space<vmem>>, vector<1x1x8x128xf32>
    %135 = vector.shape_cast %134 : vector<1x1x8x128xf32> to vector<8x128xf32>
    %c0_8 = arith.constant 0 : index
    %c2_9 = arith.constant 2 : index
    %c0_10 = arith.constant 0 : index
    %c0_11 = arith.constant 0 : index
    %136 = vector.load %arg2[%c0_8, %c2_9, %c0_10, %c0_11] : memref<1x3x8x128xf32, #tpu.memory_space<vmem>>, vector<1x1x8x128xf32>
    %137 = vector.shape_cast %136 : vector<1x1x8x128xf32> to vector<8x128xf32>
    %138 = vector.broadcast %0 : f32 to vector<8x128xf32>
    %139 = arith.subf %133, %138 : vector<8x128xf32>
    %140 = vector.broadcast %1 : f32 to vector<8x128xf32>
    %141 = arith.mulf %139, %140 : vector<8x128xf32>
    %142 = math.floor %141 : vector<8x128xf32>
    %cst = arith.constant 0.000000e+00 : f32
    %143 = vector.broadcast %cst : f32 to vector<8x128xf32>
    %144 = arith.cmpf oeq, %142, %143 : vector<8x128xf32>
    %145 = arith.extui %144 : vector<8x128xi1> to vector<8x128xi32>
    %146 = arith.sitofp %145 : vector<8x128xi32> to vector<8x128xf32>
    %cst_12 = arith.constant 1.000000e+00 : f32
    %147 = vector.broadcast %cst_12 : f32 to vector<8x128xf32>
    %148 = arith.cmpf oeq, %142, %147 : vector<8x128xf32>
    %149 = arith.extui %148 : vector<8x128xi1> to vector<8x128xi32>
    %150 = arith.sitofp %149 : vector<8x128xi32> to vector<8x128xf32>
    %cst_13 = arith.constant 2.000000e+00 : f32
    %151 = vector.broadcast %cst_13 : f32 to vector<8x128xf32>
    %152 = arith.cmpf oeq, %142, %151 : vector<8x128xf32>
    %153 = arith.extui %152 : vector<8x128xi1> to vector<8x128xi32>
    %154 = arith.sitofp %153 : vector<8x128xi32> to vector<8x128xf32>
    %cst_14 = arith.constant 3.000000e+00 : f32
    %155 = vector.broadcast %cst_14 : f32 to vector<8x128xf32>
    %156 = arith.cmpf oeq, %142, %155 : vector<8x128xf32>
    %157 = arith.extui %156 : vector<8x128xi1> to vector<8x128xi32>
    %158 = arith.sitofp %157 : vector<8x128xi32> to vector<8x128xf32>
    %cst_15 = arith.constant 4.000000e+00 : f32
    %159 = vector.broadcast %cst_15 : f32 to vector<8x128xf32>
    %160 = arith.cmpf oeq, %142, %159 : vector<8x128xf32>
    %161 = arith.extui %160 : vector<8x128xi1> to vector<8x128xi32>
    %162 = arith.sitofp %161 : vector<8x128xi32> to vector<8x128xf32>
    %cst_16 = arith.constant 5.000000e+00 : f32
    %163 = vector.broadcast %cst_16 : f32 to vector<8x128xf32>
    %164 = arith.cmpf oeq, %142, %163 : vector<8x128xf32>
    %165 = arith.extui %164 : vector<8x128xi1> to vector<8x128xi32>
    %166 = arith.sitofp %165 : vector<8x128xi32> to vector<8x128xf32>
    %cst_17 = arith.constant 6.000000e+00 : f32
    %167 = vector.broadcast %cst_17 : f32 to vector<8x128xf32>
    %168 = arith.cmpf oeq, %142, %167 : vector<8x128xf32>
    %169 = arith.extui %168 : vector<8x128xi1> to vector<8x128xi32>
    %170 = arith.sitofp %169 : vector<8x128xi32> to vector<8x128xf32>
    %cst_18 = arith.constant 7.000000e+00 : f32
    %171 = vector.broadcast %cst_18 : f32 to vector<8x128xf32>
    %172 = arith.cmpf oeq, %142, %171 : vector<8x128xf32>
    %173 = arith.extui %172 : vector<8x128xi1> to vector<8x128xi32>
    %174 = arith.sitofp %173 : vector<8x128xi32> to vector<8x128xf32>
    %cst_19 = arith.constant 8.000000e+00 : f32
    %175 = vector.broadcast %cst_19 : f32 to vector<8x128xf32>
    %176 = arith.cmpf oeq, %142, %175 : vector<8x128xf32>
    %177 = arith.extui %176 : vector<8x128xi1> to vector<8x128xi32>
    %178 = arith.sitofp %177 : vector<8x128xi32> to vector<8x128xf32>
    %cst_20 = arith.constant 9.000000e+00 : f32
    %179 = vector.broadcast %cst_20 : f32 to vector<8x128xf32>
    %180 = arith.cmpf oeq, %142, %179 : vector<8x128xf32>
    %181 = arith.extui %180 : vector<8x128xi1> to vector<8x128xi32>
    %182 = arith.sitofp %181 : vector<8x128xi32> to vector<8x128xf32>
    %cst_21 = arith.constant 1.000000e+01 : f32
    %183 = vector.broadcast %cst_21 : f32 to vector<8x128xf32>
    %184 = arith.cmpf oeq, %142, %183 : vector<8x128xf32>
    %185 = arith.extui %184 : vector<8x128xi1> to vector<8x128xi32>
    %186 = arith.sitofp %185 : vector<8x128xi32> to vector<8x128xf32>
    %cst_22 = arith.constant 1.100000e+01 : f32
    %187 = vector.broadcast %cst_22 : f32 to vector<8x128xf32>
    %188 = arith.cmpf oeq, %142, %187 : vector<8x128xf32>
    %189 = arith.extui %188 : vector<8x128xi1> to vector<8x128xi32>
    %190 = arith.sitofp %189 : vector<8x128xi32> to vector<8x128xf32>
    %cst_23 = arith.constant 1.200000e+01 : f32
    %191 = vector.broadcast %cst_23 : f32 to vector<8x128xf32>
    %192 = arith.cmpf oeq, %142, %191 : vector<8x128xf32>
    %193 = arith.extui %192 : vector<8x128xi1> to vector<8x128xi32>
    %194 = arith.sitofp %193 : vector<8x128xi32> to vector<8x128xf32>
    %cst_24 = arith.constant 1.300000e+01 : f32
    %195 = vector.broadcast %cst_24 : f32 to vector<8x128xf32>
    %196 = arith.cmpf oeq, %142, %195 : vector<8x128xf32>
    %197 = arith.extui %196 : vector<8x128xi1> to vector<8x128xi32>
    %198 = arith.sitofp %197 : vector<8x128xi32> to vector<8x128xf32>
    %cst_25 = arith.constant 1.400000e+01 : f32
    %199 = vector.broadcast %cst_25 : f32 to vector<8x128xf32>
    %200 = arith.cmpf oeq, %142, %199 : vector<8x128xf32>
    %201 = arith.extui %200 : vector<8x128xi1> to vector<8x128xi32>
    %202 = arith.sitofp %201 : vector<8x128xi32> to vector<8x128xf32>
    %203 = vector.broadcast %2 : f32 to vector<8x128xf32>
    %204 = arith.mulf %133, %203 : vector<8x128xf32>
    %205 = vector.broadcast %3 : f32 to vector<8x128xf32>
    %206 = arith.addf %204, %205 : vector<8x128xf32>
    %207 = vector.broadcast %4 : f32 to vector<8x128xf32>
    %208 = arith.mulf %133, %207 : vector<8x128xf32>
    %209 = vector.broadcast %5 : f32 to vector<8x128xf32>
    %210 = arith.addf %208, %209 : vector<8x128xf32>
    %211 = arith.mulf %206, %146 : vector<8x128xf32>
    %cst_26 = arith.constant 1.000000e+00 : f32
    %212 = vector.broadcast %cst_26 : f32 to vector<8x128xf32>
    %213 = arith.subf %212, %210 : vector<8x128xf32>
    %214 = arith.mulf %213, %150 : vector<8x128xf32>
    %215 = arith.addf %211, %214 : vector<8x128xf32>
    %216 = vector.broadcast %6 : f32 to vector<8x128xf32>
    %217 = arith.mulf %133, %216 : vector<8x128xf32>
    %218 = vector.broadcast %7 : f32 to vector<8x128xf32>
    %219 = arith.addf %217, %218 : vector<8x128xf32>
    %220 = arith.mulf %210, %150 : vector<8x128xf32>
    %cst_27 = arith.constant 1.000000e+00 : f32
    %221 = vector.broadcast %cst_27 : f32 to vector<8x128xf32>
    %222 = arith.subf %221, %219 : vector<8x128xf32>
    %223 = arith.mulf %222, %154 : vector<8x128xf32>
    %224 = arith.addf %220, %223 : vector<8x128xf32>
    %225 = vector.broadcast %8 : f32 to vector<8x128xf32>
    %226 = arith.mulf %133, %225 : vector<8x128xf32>
    %227 = vector.broadcast %9 : f32 to vector<8x128xf32>
    %228 = arith.addf %226, %227 : vector<8x128xf32>
    %229 = arith.mulf %219, %154 : vector<8x128xf32>
    %cst_28 = arith.constant 1.000000e+00 : f32
    %230 = vector.broadcast %cst_28 : f32 to vector<8x128xf32>
    %231 = arith.subf %230, %228 : vector<8x128xf32>
    %232 = arith.mulf %231, %158 : vector<8x128xf32>
    %233 = arith.addf %229, %232 : vector<8x128xf32>
    %234 = vector.broadcast %10 : f32 to vector<8x128xf32>
    %235 = arith.mulf %133, %234 : vector<8x128xf32>
    %236 = vector.broadcast %11 : f32 to vector<8x128xf32>
    %237 = arith.addf %235, %236 : vector<8x128xf32>
    %238 = arith.mulf %228, %158 : vector<8x128xf32>
    %cst_29 = arith.constant 1.000000e+00 : f32
    %239 = vector.broadcast %cst_29 : f32 to vector<8x128xf32>
    %240 = arith.subf %239, %237 : vector<8x128xf32>
    %241 = arith.mulf %240, %162 : vector<8x128xf32>
    %242 = arith.addf %238, %241 : vector<8x128xf32>
    %243 = vector.broadcast %12 : f32 to vector<8x128xf32>
    %244 = arith.mulf %133, %243 : vector<8x128xf32>
    %245 = vector.broadcast %13 : f32 to vector<8x128xf32>
    %246 = arith.addf %244, %245 : vector<8x128xf32>
    %247 = arith.mulf %237, %162 : vector<8x128xf32>
    %cst_30 = arith.constant 1.000000e+00 : f32
    %248 = vector.broadcast %cst_30 : f32 to vector<8x128xf32>
    %249 = arith.subf %248, %246 : vector<8x128xf32>
    %250 = arith.mulf %249, %166 : vector<8x128xf32>
    %251 = arith.addf %247, %250 : vector<8x128xf32>
    %252 = vector.broadcast %14 : f32 to vector<8x128xf32>
    %253 = arith.mulf %133, %252 : vector<8x128xf32>
    %254 = vector.broadcast %15 : f32 to vector<8x128xf32>
    %255 = arith.addf %253, %254 : vector<8x128xf32>
    %256 = arith.mulf %246, %166 : vector<8x128xf32>
    %cst_31 = arith.constant 1.000000e+00 : f32
    %257 = vector.broadcast %cst_31 : f32 to vector<8x128xf32>
    %258 = arith.subf %257, %255 : vector<8x128xf32>
    %259 = arith.mulf %258, %170 : vector<8x128xf32>
    %260 = arith.addf %256, %259 : vector<8x128xf32>
    %261 = vector.broadcast %16 : f32 to vector<8x128xf32>
    %262 = arith.mulf %133, %261 : vector<8x128xf32>
    %263 = vector.broadcast %17 : f32 to vector<8x128xf32>
    %264 = arith.addf %262, %263 : vector<8x128xf32>
    %265 = arith.mulf %255, %170 : vector<8x128xf32>
    %cst_32 = arith.constant 1.000000e+00 : f32
    %266 = vector.broadcast %cst_32 : f32 to vector<8x128xf32>
    %267 = arith.subf %266, %264 : vector<8x128xf32>
    %268 = arith.mulf %267, %174 : vector<8x128xf32>
    %269 = arith.addf %265, %268 : vector<8x128xf32>
    %270 = vector.broadcast %18 : f32 to vector<8x128xf32>
    %271 = arith.mulf %133, %270 : vector<8x128xf32>
    %272 = vector.broadcast %19 : f32 to vector<8x128xf32>
    %273 = arith.addf %271, %272 : vector<8x128xf32>
    %274 = arith.mulf %264, %174 : vector<8x128xf32>
    %cst_33 = arith.constant 1.000000e+00 : f32
    %275 = vector.broadcast %cst_33 : f32 to vector<8x128xf32>
    %276 = arith.subf %275, %273 : vector<8x128xf32>
    %277 = arith.mulf %276, %178 : vector<8x128xf32>
    %278 = arith.addf %274, %277 : vector<8x128xf32>
    %279 = vector.broadcast %20 : f32 to vector<8x128xf32>
    %280 = arith.mulf %133, %279 : vector<8x128xf32>
    %281 = vector.broadcast %21 : f32 to vector<8x128xf32>
    %282 = arith.addf %280, %281 : vector<8x128xf32>
    %283 = arith.mulf %273, %178 : vector<8x128xf32>
    %cst_34 = arith.constant 1.000000e+00 : f32
    %284 = vector.broadcast %cst_34 : f32 to vector<8x128xf32>
    %285 = arith.subf %284, %282 : vector<8x128xf32>
    %286 = arith.mulf %285, %182 : vector<8x128xf32>
    %287 = arith.addf %283, %286 : vector<8x128xf32>
    %288 = vector.broadcast %22 : f32 to vector<8x128xf32>
    %289 = arith.mulf %133, %288 : vector<8x128xf32>
    %290 = vector.broadcast %23 : f32 to vector<8x128xf32>
    %291 = arith.addf %289, %290 : vector<8x128xf32>
    %292 = arith.mulf %282, %182 : vector<8x128xf32>
    %cst_35 = arith.constant 1.000000e+00 : f32
    %293 = vector.broadcast %cst_35 : f32 to vector<8x128xf32>
    %294 = arith.subf %293, %291 : vector<8x128xf32>
    %295 = arith.mulf %294, %186 : vector<8x128xf32>
    %296 = arith.addf %292, %295 : vector<8x128xf32>
    %297 = vector.broadcast %24 : f32 to vector<8x128xf32>
    %298 = arith.mulf %133, %297 : vector<8x128xf32>
    %299 = vector.broadcast %25 : f32 to vector<8x128xf32>
    %300 = arith.addf %298, %299 : vector<8x128xf32>
    %301 = arith.mulf %291, %186 : vector<8x128xf32>
    %cst_36 = arith.constant 1.000000e+00 : f32
    %302 = vector.broadcast %cst_36 : f32 to vector<8x128xf32>
    %303 = arith.subf %302, %300 : vector<8x128xf32>
    %304 = arith.mulf %303, %190 : vector<8x128xf32>
    %305 = arith.addf %301, %304 : vector<8x128xf32>
    %306 = vector.broadcast %26 : f32 to vector<8x128xf32>
    %307 = arith.mulf %133, %306 : vector<8x128xf32>
    %308 = vector.broadcast %27 : f32 to vector<8x128xf32>
    %309 = arith.addf %307, %308 : vector<8x128xf32>
    %310 = arith.mulf %300, %190 : vector<8x128xf32>
    %cst_37 = arith.constant 1.000000e+00 : f32
    %311 = vector.broadcast %cst_37 : f32 to vector<8x128xf32>
    %312 = arith.subf %311, %309 : vector<8x128xf32>
    %313 = arith.mulf %312, %194 : vector<8x128xf32>
    %314 = arith.addf %310, %313 : vector<8x128xf32>
    %315 = vector.broadcast %28 : f32 to vector<8x128xf32>
    %316 = arith.mulf %133, %315 : vector<8x128xf32>
    %317 = vector.broadcast %29 : f32 to vector<8x128xf32>
    %318 = arith.addf %316, %317 : vector<8x128xf32>
    %319 = arith.mulf %309, %194 : vector<8x128xf32>
    %cst_38 = arith.constant 1.000000e+00 : f32
    %320 = vector.broadcast %cst_38 : f32 to vector<8x128xf32>
    %321 = arith.subf %320, %318 : vector<8x128xf32>
    %322 = arith.mulf %321, %198 : vector<8x128xf32>
    %323 = arith.addf %319, %322 : vector<8x128xf32>
    %324 = vector.broadcast %30 : f32 to vector<8x128xf32>
    %325 = arith.mulf %133, %324 : vector<8x128xf32>
    %326 = vector.broadcast %31 : f32 to vector<8x128xf32>
    %327 = arith.addf %325, %326 : vector<8x128xf32>
    %328 = arith.mulf %318, %198 : vector<8x128xf32>
    %cst_39 = arith.constant 1.000000e+00 : f32
    %329 = vector.broadcast %cst_39 : f32 to vector<8x128xf32>
    %330 = arith.subf %329, %327 : vector<8x128xf32>
    %331 = arith.mulf %330, %202 : vector<8x128xf32>
    %332 = arith.addf %328, %331 : vector<8x128xf32>
    %333 = vector.broadcast %32 : f32 to vector<8x128xf32>
    %334 = arith.mulf %133, %333 : vector<8x128xf32>
    %335 = vector.broadcast %33 : f32 to vector<8x128xf32>
    %336 = arith.addf %334, %335 : vector<8x128xf32>
    %337 = vector.broadcast %34 : f32 to vector<8x128xf32>
    %338 = arith.mulf %133, %337 : vector<8x128xf32>
    %339 = vector.broadcast %35 : f32 to vector<8x128xf32>
    %340 = arith.addf %338, %339 : vector<8x128xf32>
    %341 = arith.mulf %336, %215 : vector<8x128xf32>
    %cst_40 = arith.constant 1.000000e+00 : f32
    %342 = vector.broadcast %cst_40 : f32 to vector<8x128xf32>
    %343 = arith.subf %342, %340 : vector<8x128xf32>
    %344 = arith.mulf %343, %224 : vector<8x128xf32>
    %345 = arith.addf %341, %344 : vector<8x128xf32>
    %346 = vector.broadcast %36 : f32 to vector<8x128xf32>
    %347 = arith.mulf %133, %346 : vector<8x128xf32>
    %348 = vector.broadcast %37 : f32 to vector<8x128xf32>
    %349 = arith.addf %347, %348 : vector<8x128xf32>
    %350 = arith.mulf %340, %224 : vector<8x128xf32>
    %cst_41 = arith.constant 1.000000e+00 : f32
    %351 = vector.broadcast %cst_41 : f32 to vector<8x128xf32>
    %352 = arith.subf %351, %349 : vector<8x128xf32>
    %353 = arith.mulf %352, %233 : vector<8x128xf32>
    %354 = arith.addf %350, %353 : vector<8x128xf32>
    %355 = vector.broadcast %38 : f32 to vector<8x128xf32>
    %356 = arith.mulf %133, %355 : vector<8x128xf32>
    %357 = vector.broadcast %39 : f32 to vector<8x128xf32>
    %358 = arith.addf %356, %357 : vector<8x128xf32>
    %359 = arith.mulf %349, %233 : vector<8x128xf32>
    %cst_42 = arith.constant 1.000000e+00 : f32
    %360 = vector.broadcast %cst_42 : f32 to vector<8x128xf32>
    %361 = arith.subf %360, %358 : vector<8x128xf32>
    %362 = arith.mulf %361, %242 : vector<8x128xf32>
    %363 = arith.addf %359, %362 : vector<8x128xf32>
    %364 = vector.broadcast %40 : f32 to vector<8x128xf32>
    %365 = arith.mulf %133, %364 : vector<8x128xf32>
    %366 = vector.broadcast %41 : f32 to vector<8x128xf32>
    %367 = arith.addf %365, %366 : vector<8x128xf32>
    %368 = arith.mulf %358, %242 : vector<8x128xf32>
    %cst_43 = arith.constant 1.000000e+00 : f32
    %369 = vector.broadcast %cst_43 : f32 to vector<8x128xf32>
    %370 = arith.subf %369, %367 : vector<8x128xf32>
    %371 = arith.mulf %370, %251 : vector<8x128xf32>
    %372 = arith.addf %368, %371 : vector<8x128xf32>
    %373 = vector.broadcast %42 : f32 to vector<8x128xf32>
    %374 = arith.mulf %133, %373 : vector<8x128xf32>
    %375 = vector.broadcast %43 : f32 to vector<8x128xf32>
    %376 = arith.addf %374, %375 : vector<8x128xf32>
    %377 = arith.mulf %367, %251 : vector<8x128xf32>
    %cst_44 = arith.constant 1.000000e+00 : f32
    %378 = vector.broadcast %cst_44 : f32 to vector<8x128xf32>
    %379 = arith.subf %378, %376 : vector<8x128xf32>
    %380 = arith.mulf %379, %260 : vector<8x128xf32>
    %381 = arith.addf %377, %380 : vector<8x128xf32>
    %382 = vector.broadcast %44 : f32 to vector<8x128xf32>
    %383 = arith.mulf %133, %382 : vector<8x128xf32>
    %384 = vector.broadcast %45 : f32 to vector<8x128xf32>
    %385 = arith.addf %383, %384 : vector<8x128xf32>
    %386 = arith.mulf %376, %260 : vector<8x128xf32>
    %cst_45 = arith.constant 1.000000e+00 : f32
    %387 = vector.broadcast %cst_45 : f32 to vector<8x128xf32>
    %388 = arith.subf %387, %385 : vector<8x128xf32>
    %389 = arith.mulf %388, %269 : vector<8x128xf32>
    %390 = arith.addf %386, %389 : vector<8x128xf32>
    %391 = vector.broadcast %46 : f32 to vector<8x128xf32>
    %392 = arith.mulf %133, %391 : vector<8x128xf32>
    %393 = vector.broadcast %47 : f32 to vector<8x128xf32>
    %394 = arith.addf %392, %393 : vector<8x128xf32>
    %395 = arith.mulf %385, %269 : vector<8x128xf32>
    %cst_46 = arith.constant 1.000000e+00 : f32
    %396 = vector.broadcast %cst_46 : f32 to vector<8x128xf32>
    %397 = arith.subf %396, %394 : vector<8x128xf32>
    %398 = arith.mulf %397, %278 : vector<8x128xf32>
    %399 = arith.addf %395, %398 : vector<8x128xf32>
    %400 = vector.broadcast %48 : f32 to vector<8x128xf32>
    %401 = arith.mulf %133, %400 : vector<8x128xf32>
    %402 = vector.broadcast %49 : f32 to vector<8x128xf32>
    %403 = arith.addf %401, %402 : vector<8x128xf32>
    %404 = arith.mulf %394, %278 : vector<8x128xf32>
    %cst_47 = arith.constant 1.000000e+00 : f32
    %405 = vector.broadcast %cst_47 : f32 to vector<8x128xf32>
    %406 = arith.subf %405, %403 : vector<8x128xf32>
    %407 = arith.mulf %406, %287 : vector<8x128xf32>
    %408 = arith.addf %404, %407 : vector<8x128xf32>
    %409 = vector.broadcast %50 : f32 to vector<8x128xf32>
    %410 = arith.mulf %133, %409 : vector<8x128xf32>
    %411 = vector.broadcast %51 : f32 to vector<8x128xf32>
    %412 = arith.addf %410, %411 : vector<8x128xf32>
    %413 = arith.mulf %403, %287 : vector<8x128xf32>
    %cst_48 = arith.constant 1.000000e+00 : f32
    %414 = vector.broadcast %cst_48 : f32 to vector<8x128xf32>
    %415 = arith.subf %414, %412 : vector<8x128xf32>
    %416 = arith.mulf %415, %296 : vector<8x128xf32>
    %417 = arith.addf %413, %416 : vector<8x128xf32>
    %418 = vector.broadcast %52 : f32 to vector<8x128xf32>
    %419 = arith.mulf %133, %418 : vector<8x128xf32>
    %420 = vector.broadcast %53 : f32 to vector<8x128xf32>
    %421 = arith.addf %419, %420 : vector<8x128xf32>
    %422 = arith.mulf %412, %296 : vector<8x128xf32>
    %cst_49 = arith.constant 1.000000e+00 : f32
    %423 = vector.broadcast %cst_49 : f32 to vector<8x128xf32>
    %424 = arith.subf %423, %421 : vector<8x128xf32>
    %425 = arith.mulf %424, %305 : vector<8x128xf32>
    %426 = arith.addf %422, %425 : vector<8x128xf32>
    %427 = vector.broadcast %54 : f32 to vector<8x128xf32>
    %428 = arith.mulf %133, %427 : vector<8x128xf32>
    %429 = vector.broadcast %55 : f32 to vector<8x128xf32>
    %430 = arith.addf %428, %429 : vector<8x128xf32>
    %431 = arith.mulf %421, %305 : vector<8x128xf32>
    %cst_50 = arith.constant 1.000000e+00 : f32
    %432 = vector.broadcast %cst_50 : f32 to vector<8x128xf32>
    %433 = arith.subf %432, %430 : vector<8x128xf32>
    %434 = arith.mulf %433, %314 : vector<8x128xf32>
    %435 = arith.addf %431, %434 : vector<8x128xf32>
    %436 = vector.broadcast %56 : f32 to vector<8x128xf32>
    %437 = arith.mulf %133, %436 : vector<8x128xf32>
    %438 = vector.broadcast %57 : f32 to vector<8x128xf32>
    %439 = arith.addf %437, %438 : vector<8x128xf32>
    %440 = arith.mulf %430, %314 : vector<8x128xf32>
    %cst_51 = arith.constant 1.000000e+00 : f32
    %441 = vector.broadcast %cst_51 : f32 to vector<8x128xf32>
    %442 = arith.subf %441, %439 : vector<8x128xf32>
    %443 = arith.mulf %442, %323 : vector<8x128xf32>
    %444 = arith.addf %440, %443 : vector<8x128xf32>
    %445 = vector.broadcast %58 : f32 to vector<8x128xf32>
    %446 = arith.mulf %133, %445 : vector<8x128xf32>
    %447 = vector.broadcast %59 : f32 to vector<8x128xf32>
    %448 = arith.addf %446, %447 : vector<8x128xf32>
    %449 = arith.mulf %439, %323 : vector<8x128xf32>
    %cst_52 = arith.constant 1.000000e+00 : f32
    %450 = vector.broadcast %cst_52 : f32 to vector<8x128xf32>
    %451 = arith.subf %450, %448 : vector<8x128xf32>
    %452 = arith.mulf %451, %332 : vector<8x128xf32>
    %453 = arith.addf %449, %452 : vector<8x128xf32>
    %454 = vector.broadcast %60 : f32 to vector<8x128xf32>
    %455 = arith.mulf %133, %454 : vector<8x128xf32>
    %456 = vector.broadcast %61 : f32 to vector<8x128xf32>
    %457 = arith.addf %455, %456 : vector<8x128xf32>
    %458 = vector.broadcast %62 : f32 to vector<8x128xf32>
    %459 = arith.mulf %133, %458 : vector<8x128xf32>
    %460 = vector.broadcast %63 : f32 to vector<8x128xf32>
    %461 = arith.addf %459, %460 : vector<8x128xf32>
    %462 = arith.mulf %457, %345 : vector<8x128xf32>
    %cst_53 = arith.constant 1.000000e+00 : f32
    %463 = vector.broadcast %cst_53 : f32 to vector<8x128xf32>
    %464 = arith.subf %463, %461 : vector<8x128xf32>
    %465 = arith.mulf %464, %354 : vector<8x128xf32>
    %466 = arith.addf %462, %465 : vector<8x128xf32>
    %467 = vector.broadcast %64 : f32 to vector<8x128xf32>
    %468 = arith.mulf %133, %467 : vector<8x128xf32>
    %469 = vector.broadcast %65 : f32 to vector<8x128xf32>
    %470 = arith.addf %468, %469 : vector<8x128xf32>
    %471 = arith.mulf %461, %354 : vector<8x128xf32>
    %cst_54 = arith.constant 1.000000e+00 : f32
    %472 = vector.broadcast %cst_54 : f32 to vector<8x128xf32>
    %473 = arith.subf %472, %470 : vector<8x128xf32>
    %474 = arith.mulf %473, %363 : vector<8x128xf32>
    %475 = arith.addf %471, %474 : vector<8x128xf32>
    %476 = vector.broadcast %66 : f32 to vector<8x128xf32>
    %477 = arith.mulf %133, %476 : vector<8x128xf32>
    %478 = vector.broadcast %67 : f32 to vector<8x128xf32>
    %479 = arith.addf %477, %478 : vector<8x128xf32>
    %480 = arith.mulf %470, %363 : vector<8x128xf32>
    %cst_55 = arith.constant 1.000000e+00 : f32
    %481 = vector.broadcast %cst_55 : f32 to vector<8x128xf32>
    %482 = arith.subf %481, %479 : vector<8x128xf32>
    %483 = arith.mulf %482, %372 : vector<8x128xf32>
    %484 = arith.addf %480, %483 : vector<8x128xf32>
    %485 = vector.broadcast %68 : f32 to vector<8x128xf32>
    %486 = arith.mulf %133, %485 : vector<8x128xf32>
    %487 = vector.broadcast %69 : f32 to vector<8x128xf32>
    %488 = arith.addf %486, %487 : vector<8x128xf32>
    %489 = arith.mulf %479, %372 : vector<8x128xf32>
    %cst_56 = arith.constant 1.000000e+00 : f32
    %490 = vector.broadcast %cst_56 : f32 to vector<8x128xf32>
    %491 = arith.subf %490, %488 : vector<8x128xf32>
    %492 = arith.mulf %491, %381 : vector<8x128xf32>
    %493 = arith.addf %489, %492 : vector<8x128xf32>
    %494 = vector.broadcast %70 : f32 to vector<8x128xf32>
    %495 = arith.mulf %133, %494 : vector<8x128xf32>
    %496 = vector.broadcast %71 : f32 to vector<8x128xf32>
    %497 = arith.addf %495, %496 : vector<8x128xf32>
    %498 = arith.mulf %488, %381 : vector<8x128xf32>
    %cst_57 = arith.constant 1.000000e+00 : f32
    %499 = vector.broadcast %cst_57 : f32 to vector<8x128xf32>
    %500 = arith.subf %499, %497 : vector<8x128xf32>
    %501 = arith.mulf %500, %390 : vector<8x128xf32>
    %502 = arith.addf %498, %501 : vector<8x128xf32>
    %503 = vector.broadcast %72 : f32 to vector<8x128xf32>
    %504 = arith.mulf %133, %503 : vector<8x128xf32>
    %505 = vector.broadcast %73 : f32 to vector<8x128xf32>
    %506 = arith.addf %504, %505 : vector<8x128xf32>
    %507 = arith.mulf %497, %390 : vector<8x128xf32>
    %cst_58 = arith.constant 1.000000e+00 : f32
    %508 = vector.broadcast %cst_58 : f32 to vector<8x128xf32>
    %509 = arith.subf %508, %506 : vector<8x128xf32>
    %510 = arith.mulf %509, %399 : vector<8x128xf32>
    %511 = arith.addf %507, %510 : vector<8x128xf32>
    %512 = vector.broadcast %74 : f32 to vector<8x128xf32>
    %513 = arith.mulf %133, %512 : vector<8x128xf32>
    %514 = vector.broadcast %75 : f32 to vector<8x128xf32>
    %515 = arith.addf %513, %514 : vector<8x128xf32>
    %516 = arith.mulf %506, %399 : vector<8x128xf32>
    %cst_59 = arith.constant 1.000000e+00 : f32
    %517 = vector.broadcast %cst_59 : f32 to vector<8x128xf32>
    %518 = arith.subf %517, %515 : vector<8x128xf32>
    %519 = arith.mulf %518, %408 : vector<8x128xf32>
    %520 = arith.addf %516, %519 : vector<8x128xf32>
    %521 = vector.broadcast %76 : f32 to vector<8x128xf32>
    %522 = arith.mulf %133, %521 : vector<8x128xf32>
    %523 = vector.broadcast %77 : f32 to vector<8x128xf32>
    %524 = arith.addf %522, %523 : vector<8x128xf32>
    %525 = arith.mulf %515, %408 : vector<8x128xf32>
    %cst_60 = arith.constant 1.000000e+00 : f32
    %526 = vector.broadcast %cst_60 : f32 to vector<8x128xf32>
    %527 = arith.subf %526, %524 : vector<8x128xf32>
    %528 = arith.mulf %527, %417 : vector<8x128xf32>
    %529 = arith.addf %525, %528 : vector<8x128xf32>
    %530 = vector.broadcast %78 : f32 to vector<8x128xf32>
    %531 = arith.mulf %133, %530 : vector<8x128xf32>
    %532 = vector.broadcast %79 : f32 to vector<8x128xf32>
    %533 = arith.addf %531, %532 : vector<8x128xf32>
    %534 = arith.mulf %524, %417 : vector<8x128xf32>
    %cst_61 = arith.constant 1.000000e+00 : f32
    %535 = vector.broadcast %cst_61 : f32 to vector<8x128xf32>
    %536 = arith.subf %535, %533 : vector<8x128xf32>
    %537 = arith.mulf %536, %426 : vector<8x128xf32>
    %538 = arith.addf %534, %537 : vector<8x128xf32>
    %539 = vector.broadcast %80 : f32 to vector<8x128xf32>
    %540 = arith.mulf %133, %539 : vector<8x128xf32>
    %541 = vector.broadcast %81 : f32 to vector<8x128xf32>
    %542 = arith.addf %540, %541 : vector<8x128xf32>
    %543 = arith.mulf %533, %426 : vector<8x128xf32>
    %cst_62 = arith.constant 1.000000e+00 : f32
    %544 = vector.broadcast %cst_62 : f32 to vector<8x128xf32>
    %545 = arith.subf %544, %542 : vector<8x128xf32>
    %546 = arith.mulf %545, %435 : vector<8x128xf32>
    %547 = arith.addf %543, %546 : vector<8x128xf32>
    %548 = vector.broadcast %82 : f32 to vector<8x128xf32>
    %549 = arith.mulf %133, %548 : vector<8x128xf32>
    %550 = vector.broadcast %83 : f32 to vector<8x128xf32>
    %551 = arith.addf %549, %550 : vector<8x128xf32>
    %552 = arith.mulf %542, %435 : vector<8x128xf32>
    %cst_63 = arith.constant 1.000000e+00 : f32
    %553 = vector.broadcast %cst_63 : f32 to vector<8x128xf32>
    %554 = arith.subf %553, %551 : vector<8x128xf32>
    %555 = arith.mulf %554, %444 : vector<8x128xf32>
    %556 = arith.addf %552, %555 : vector<8x128xf32>
    %557 = vector.broadcast %84 : f32 to vector<8x128xf32>
    %558 = arith.mulf %133, %557 : vector<8x128xf32>
    %559 = vector.broadcast %85 : f32 to vector<8x128xf32>
    %560 = arith.addf %558, %559 : vector<8x128xf32>
    %561 = arith.mulf %551, %444 : vector<8x128xf32>
    %cst_64 = arith.constant 1.000000e+00 : f32
    %562 = vector.broadcast %cst_64 : f32 to vector<8x128xf32>
    %563 = arith.subf %562, %560 : vector<8x128xf32>
    %564 = arith.mulf %563, %453 : vector<8x128xf32>
    %565 = arith.addf %561, %564 : vector<8x128xf32>
    %566 = vector.broadcast %86 : f32 to vector<8x128xf32>
    %567 = arith.mulf %133, %566 : vector<8x128xf32>
    %568 = vector.broadcast %87 : f32 to vector<8x128xf32>
    %569 = arith.addf %567, %568 : vector<8x128xf32>
    %570 = vector.broadcast %88 : f32 to vector<8x128xf32>
    %571 = arith.mulf %133, %570 : vector<8x128xf32>
    %572 = vector.broadcast %89 : f32 to vector<8x128xf32>
    %573 = arith.addf %571, %572 : vector<8x128xf32>
    %574 = arith.mulf %569, %466 : vector<8x128xf32>
    %cst_65 = arith.constant 1.000000e+00 : f32
    %575 = vector.broadcast %cst_65 : f32 to vector<8x128xf32>
    %576 = arith.subf %575, %573 : vector<8x128xf32>
    %577 = arith.mulf %576, %475 : vector<8x128xf32>
    %578 = arith.addf %574, %577 : vector<8x128xf32>
    %579 = vector.broadcast %90 : f32 to vector<8x128xf32>
    %580 = arith.mulf %133, %579 : vector<8x128xf32>
    %581 = vector.broadcast %91 : f32 to vector<8x128xf32>
    %582 = arith.addf %580, %581 : vector<8x128xf32>
    %583 = arith.mulf %573, %475 : vector<8x128xf32>
    %cst_66 = arith.constant 1.000000e+00 : f32
    %584 = vector.broadcast %cst_66 : f32 to vector<8x128xf32>
    %585 = arith.subf %584, %582 : vector<8x128xf32>
    %586 = arith.mulf %585, %484 : vector<8x128xf32>
    %587 = arith.addf %583, %586 : vector<8x128xf32>
    %588 = vector.broadcast %92 : f32 to vector<8x128xf32>
    %589 = arith.mulf %133, %588 : vector<8x128xf32>
    %590 = vector.broadcast %93 : f32 to vector<8x128xf32>
    %591 = arith.addf %589, %590 : vector<8x128xf32>
    %592 = arith.mulf %582, %484 : vector<8x128xf32>
    %cst_67 = arith.constant 1.000000e+00 : f32
    %593 = vector.broadcast %cst_67 : f32 to vector<8x128xf32>
    %594 = arith.subf %593, %591 : vector<8x128xf32>
    %595 = arith.mulf %594, %493 : vector<8x128xf32>
    %596 = arith.addf %592, %595 : vector<8x128xf32>
    %597 = vector.broadcast %94 : f32 to vector<8x128xf32>
    %598 = arith.mulf %133, %597 : vector<8x128xf32>
    %599 = vector.broadcast %95 : f32 to vector<8x128xf32>
    %600 = arith.addf %598, %599 : vector<8x128xf32>
    %601 = arith.mulf %591, %493 : vector<8x128xf32>
    %cst_68 = arith.constant 1.000000e+00 : f32
    %602 = vector.broadcast %cst_68 : f32 to vector<8x128xf32>
    %603 = arith.subf %602, %600 : vector<8x128xf32>
    %604 = arith.mulf %603, %502 : vector<8x128xf32>
    %605 = arith.addf %601, %604 : vector<8x128xf32>
    %606 = vector.broadcast %96 : f32 to vector<8x128xf32>
    %607 = arith.mulf %133, %606 : vector<8x128xf32>
    %608 = vector.broadcast %97 : f32 to vector<8x128xf32>
    %609 = arith.addf %607, %608 : vector<8x128xf32>
    %610 = arith.mulf %600, %502 : vector<8x128xf32>
    %cst_69 = arith.constant 1.000000e+00 : f32
    %611 = vector.broadcast %cst_69 : f32 to vector<8x128xf32>
    %612 = arith.subf %611, %609 : vector<8x128xf32>
    %613 = arith.mulf %612, %511 : vector<8x128xf32>
    %614 = arith.addf %610, %613 : vector<8x128xf32>
    %615 = vector.broadcast %98 : f32 to vector<8x128xf32>
    %616 = arith.mulf %133, %615 : vector<8x128xf32>
    %617 = vector.broadcast %99 : f32 to vector<8x128xf32>
    %618 = arith.addf %616, %617 : vector<8x128xf32>
    %619 = arith.mulf %609, %511 : vector<8x128xf32>
    %cst_70 = arith.constant 1.000000e+00 : f32
    %620 = vector.broadcast %cst_70 : f32 to vector<8x128xf32>
    %621 = arith.subf %620, %618 : vector<8x128xf32>
    %622 = arith.mulf %621, %520 : vector<8x128xf32>
    %623 = arith.addf %619, %622 : vector<8x128xf32>
    %624 = vector.broadcast %100 : f32 to vector<8x128xf32>
    %625 = arith.mulf %133, %624 : vector<8x128xf32>
    %626 = vector.broadcast %101 : f32 to vector<8x128xf32>
    %627 = arith.addf %625, %626 : vector<8x128xf32>
    %628 = arith.mulf %618, %520 : vector<8x128xf32>
    %cst_71 = arith.constant 1.000000e+00 : f32
    %629 = vector.broadcast %cst_71 : f32 to vector<8x128xf32>
    %630 = arith.subf %629, %627 : vector<8x128xf32>
    %631 = arith.mulf %630, %529 : vector<8x128xf32>
    %632 = arith.addf %628, %631 : vector<8x128xf32>
    %633 = vector.broadcast %102 : f32 to vector<8x128xf32>
    %634 = arith.mulf %133, %633 : vector<8x128xf32>
    %635 = vector.broadcast %103 : f32 to vector<8x128xf32>
    %636 = arith.addf %634, %635 : vector<8x128xf32>
    %637 = arith.mulf %627, %529 : vector<8x128xf32>
    %cst_72 = arith.constant 1.000000e+00 : f32
    %638 = vector.broadcast %cst_72 : f32 to vector<8x128xf32>
    %639 = arith.subf %638, %636 : vector<8x128xf32>
    %640 = arith.mulf %639, %538 : vector<8x128xf32>
    %641 = arith.addf %637, %640 : vector<8x128xf32>
    %642 = vector.broadcast %104 : f32 to vector<8x128xf32>
    %643 = arith.mulf %133, %642 : vector<8x128xf32>
    %644 = vector.broadcast %105 : f32 to vector<8x128xf32>
    %645 = arith.addf %643, %644 : vector<8x128xf32>
    %646 = arith.mulf %636, %538 : vector<8x128xf32>
    %cst_73 = arith.constant 1.000000e+00 : f32
    %647 = vector.broadcast %cst_73 : f32 to vector<8x128xf32>
    %648 = arith.subf %647, %645 : vector<8x128xf32>
    %649 = arith.mulf %648, %547 : vector<8x128xf32>
    %650 = arith.addf %646, %649 : vector<8x128xf32>
    %651 = vector.broadcast %106 : f32 to vector<8x128xf32>
    %652 = arith.mulf %133, %651 : vector<8x128xf32>
    %653 = vector.broadcast %107 : f32 to vector<8x128xf32>
    %654 = arith.addf %652, %653 : vector<8x128xf32>
    %655 = arith.mulf %645, %547 : vector<8x128xf32>
    %cst_74 = arith.constant 1.000000e+00 : f32
    %656 = vector.broadcast %cst_74 : f32 to vector<8x128xf32>
    %657 = arith.subf %656, %654 : vector<8x128xf32>
    %658 = arith.mulf %657, %556 : vector<8x128xf32>
    %659 = arith.addf %655, %658 : vector<8x128xf32>
    %660 = vector.broadcast %108 : f32 to vector<8x128xf32>
    %661 = arith.mulf %133, %660 : vector<8x128xf32>
    %662 = vector.broadcast %109 : f32 to vector<8x128xf32>
    %663 = arith.addf %661, %662 : vector<8x128xf32>
    %664 = arith.mulf %654, %556 : vector<8x128xf32>
    %cst_75 = arith.constant 1.000000e+00 : f32
    %665 = vector.broadcast %cst_75 : f32 to vector<8x128xf32>
    %666 = arith.subf %665, %663 : vector<8x128xf32>
    %667 = arith.mulf %666, %565 : vector<8x128xf32>
    %668 = arith.addf %664, %667 : vector<8x128xf32>
    %669 = vector.broadcast %110 : f32 to vector<8x128xf32>
    %670 = arith.mulf %133, %669 : vector<8x128xf32>
    %671 = vector.broadcast %111 : f32 to vector<8x128xf32>
    %672 = arith.addf %670, %671 : vector<8x128xf32>
    %673 = vector.broadcast %112 : f32 to vector<8x128xf32>
    %674 = arith.mulf %133, %673 : vector<8x128xf32>
    %675 = vector.broadcast %113 : f32 to vector<8x128xf32>
    %676 = arith.addf %674, %675 : vector<8x128xf32>
    %677 = arith.mulf %672, %578 : vector<8x128xf32>
    %cst_76 = arith.constant 1.000000e+00 : f32
    %678 = vector.broadcast %cst_76 : f32 to vector<8x128xf32>
    %679 = arith.subf %678, %676 : vector<8x128xf32>
    %680 = arith.mulf %679, %587 : vector<8x128xf32>
    %681 = arith.addf %677, %680 : vector<8x128xf32>
    %682 = vector.broadcast %114 : f32 to vector<8x128xf32>
    %683 = arith.mulf %133, %682 : vector<8x128xf32>
    %684 = vector.broadcast %115 : f32 to vector<8x128xf32>
    %685 = arith.addf %683, %684 : vector<8x128xf32>
    %686 = arith.mulf %676, %587 : vector<8x128xf32>
    %cst_77 = arith.constant 1.000000e+00 : f32
    %687 = vector.broadcast %cst_77 : f32 to vector<8x128xf32>
    %688 = arith.subf %687, %685 : vector<8x128xf32>
    %689 = arith.mulf %688, %596 : vector<8x128xf32>
    %690 = arith.addf %686, %689 : vector<8x128xf32>
    %691 = vector.broadcast %116 : f32 to vector<8x128xf32>
    %692 = arith.mulf %133, %691 : vector<8x128xf32>
    %693 = vector.broadcast %117 : f32 to vector<8x128xf32>
    %694 = arith.addf %692, %693 : vector<8x128xf32>
    %695 = arith.mulf %685, %596 : vector<8x128xf32>
    %cst_78 = arith.constant 1.000000e+00 : f32
    %696 = vector.broadcast %cst_78 : f32 to vector<8x128xf32>
    %697 = arith.subf %696, %694 : vector<8x128xf32>
    %698 = arith.mulf %697, %605 : vector<8x128xf32>
    %699 = arith.addf %695, %698 : vector<8x128xf32>
    %700 = vector.broadcast %118 : f32 to vector<8x128xf32>
    %701 = arith.mulf %133, %700 : vector<8x128xf32>
    %702 = vector.broadcast %119 : f32 to vector<8x128xf32>
    %703 = arith.addf %701, %702 : vector<8x128xf32>
    %704 = arith.mulf %694, %605 : vector<8x128xf32>
    %cst_79 = arith.constant 1.000000e+00 : f32
    %705 = vector.broadcast %cst_79 : f32 to vector<8x128xf32>
    %706 = arith.subf %705, %703 : vector<8x128xf32>
    %707 = arith.mulf %706, %614 : vector<8x128xf32>
    %708 = arith.addf %704, %707 : vector<8x128xf32>
    %709 = vector.broadcast %120 : f32 to vector<8x128xf32>
    %710 = arith.mulf %133, %709 : vector<8x128xf32>
    %711 = vector.broadcast %121 : f32 to vector<8x128xf32>
    %712 = arith.addf %710, %711 : vector<8x128xf32>
    %713 = arith.mulf %703, %614 : vector<8x128xf32>
    %cst_80 = arith.constant 1.000000e+00 : f32
    %714 = vector.broadcast %cst_80 : f32 to vector<8x128xf32>
    %715 = arith.subf %714, %712 : vector<8x128xf32>
    %716 = arith.mulf %715, %623 : vector<8x128xf32>
    %717 = arith.addf %713, %716 : vector<8x128xf32>
    %718 = vector.broadcast %122 : f32 to vector<8x128xf32>
    %719 = arith.mulf %133, %718 : vector<8x128xf32>
    %720 = vector.broadcast %123 : f32 to vector<8x128xf32>
    %721 = arith.addf %719, %720 : vector<8x128xf32>
    %722 = arith.mulf %712, %623 : vector<8x128xf32>
    %cst_81 = arith.constant 1.000000e+00 : f32
    %723 = vector.broadcast %cst_81 : f32 to vector<8x128xf32>
    %724 = arith.subf %723, %721 : vector<8x128xf32>
    %725 = arith.mulf %724, %632 : vector<8x128xf32>
    %726 = arith.addf %722, %725 : vector<8x128xf32>
    %727 = vector.broadcast %124 : f32 to vector<8x128xf32>
    %728 = arith.mulf %133, %727 : vector<8x128xf32>
    %729 = vector.broadcast %125 : f32 to vector<8x128xf32>
    %730 = arith.addf %728, %729 : vector<8x128xf32>
    %731 = arith.mulf %721, %632 : vector<8x128xf32>
    %cst_82 = arith.constant 1.000000e+00 : f32
    %732 = vector.broadcast %cst_82 : f32 to vector<8x128xf32>
    %733 = arith.subf %732, %730 : vector<8x128xf32>
    %734 = arith.mulf %733, %641 : vector<8x128xf32>
    %735 = arith.addf %731, %734 : vector<8x128xf32>
    %736 = vector.broadcast %126 : f32 to vector<8x128xf32>
    %737 = arith.mulf %133, %736 : vector<8x128xf32>
    %738 = vector.broadcast %127 : f32 to vector<8x128xf32>
    %739 = arith.addf %737, %738 : vector<8x128xf32>
    %740 = arith.mulf %730, %641 : vector<8x128xf32>
    %cst_83 = arith.constant 1.000000e+00 : f32
    %741 = vector.broadcast %cst_83 : f32 to vector<8x128xf32>
    %742 = arith.subf %741, %739 : vector<8x128xf32>
    %743 = arith.mulf %742, %650 : vector<8x128xf32>
    %744 = arith.addf %740, %743 : vector<8x128xf32>
    %745 = vector.broadcast %128 : f32 to vector<8x128xf32>
    %746 = arith.mulf %133, %745 : vector<8x128xf32>
    %747 = vector.broadcast %129 : f32 to vector<8x128xf32>
    %748 = arith.addf %746, %747 : vector<8x128xf32>
    %749 = arith.mulf %739, %650 : vector<8x128xf32>
    %cst_84 = arith.constant 1.000000e+00 : f32
    %750 = vector.broadcast %cst_84 : f32 to vector<8x128xf32>
    %751 = arith.subf %750, %748 : vector<8x128xf32>
    %752 = arith.mulf %751, %659 : vector<8x128xf32>
    %753 = arith.addf %749, %752 : vector<8x128xf32>
    %754 = vector.broadcast %130 : f32 to vector<8x128xf32>
    %755 = arith.mulf %133, %754 : vector<8x128xf32>
    %756 = vector.broadcast %131 : f32 to vector<8x128xf32>
    %757 = arith.addf %755, %756 : vector<8x128xf32>
    %758 = arith.mulf %748, %659 : vector<8x128xf32>
    %cst_85 = arith.constant 1.000000e+00 : f32
    %759 = vector.broadcast %cst_85 : f32 to vector<8x128xf32>
    %760 = arith.subf %759, %757 : vector<8x128xf32>
    %761 = arith.mulf %760, %668 : vector<8x128xf32>
    %762 = arith.addf %758, %761 : vector<8x128xf32>
    %cst_86 = arith.constant 0.000000e+00 : f32
    %763 = vector.broadcast %cst_86 : f32 to vector<8x128xf32>
    %764 = arith.subf %763, %133 : vector<8x128xf32>
    %765 = math.exp %764 : vector<8x128xf32>
    %cst_87 = arith.constant 1.000000e+00 : f32
    %766 = vector.broadcast %cst_87 : f32 to vector<8x128xf32>
    %767 = arith.addf %766, %765 : vector<8x128xf32>
    %cst_88 = arith.constant 1.000000e+00 : f32
    %768 = vector.broadcast %cst_88 : f32 to vector<8x128xf32>
    %769 = arith.divf %768, %767 : vector<8x128xf32>
    %770 = arith.mulf %133, %769 : vector<8x128xf32>
    %c132 = arith.constant 132 : index
    %771 = memref.load %arg1[%c132] : memref<264xf32, #tpu.memory_space<smem>>
    %772 = vector.broadcast %771 : f32 to vector<8x128xf32>
    %773 = arith.mulf %772, %770 : vector<8x128xf32>
    %c133 = arith.constant 133 : index
    %774 = memref.load %arg1[%c133] : memref<264xf32, #tpu.memory_space<smem>>
    %775 = vector.broadcast %774 : f32 to vector<8x128xf32>
    %776 = arith.mulf %775, %681 : vector<8x128xf32>
    %777 = arith.addf %773, %776 : vector<8x128xf32>
    %c134 = arith.constant 134 : index
    %778 = memref.load %arg1[%c134] : memref<264xf32, #tpu.memory_space<smem>>
    %779 = vector.broadcast %778 : f32 to vector<8x128xf32>
    %780 = arith.mulf %779, %690 : vector<8x128xf32>
    %781 = arith.addf %777, %780 : vector<8x128xf32>
    %c135 = arith.constant 135 : index
    %782 = memref.load %arg1[%c135] : memref<264xf32, #tpu.memory_space<smem>>
    %783 = vector.broadcast %782 : f32 to vector<8x128xf32>
    %784 = arith.mulf %783, %699 : vector<8x128xf32>
    %785 = arith.addf %781, %784 : vector<8x128xf32>
    %c136 = arith.constant 136 : index
    %786 = memref.load %arg1[%c136] : memref<264xf32, #tpu.memory_space<smem>>
    %787 = vector.broadcast %786 : f32 to vector<8x128xf32>
    %788 = arith.mulf %787, %708 : vector<8x128xf32>
    %789 = arith.addf %785, %788 : vector<8x128xf32>
    %c137 = arith.constant 137 : index
    %790 = memref.load %arg1[%c137] : memref<264xf32, #tpu.memory_space<smem>>
    %791 = vector.broadcast %790 : f32 to vector<8x128xf32>
    %792 = arith.mulf %791, %717 : vector<8x128xf32>
    %793 = arith.addf %789, %792 : vector<8x128xf32>
    %c138 = arith.constant 138 : index
    %794 = memref.load %arg1[%c138] : memref<264xf32, #tpu.memory_space<smem>>
    %795 = vector.broadcast %794 : f32 to vector<8x128xf32>
    %796 = arith.mulf %795, %726 : vector<8x128xf32>
    %797 = arith.addf %793, %796 : vector<8x128xf32>
    %c139 = arith.constant 139 : index
    %798 = memref.load %arg1[%c139] : memref<264xf32, #tpu.memory_space<smem>>
    %799 = vector.broadcast %798 : f32 to vector<8x128xf32>
    %800 = arith.mulf %799, %735 : vector<8x128xf32>
    %801 = arith.addf %797, %800 : vector<8x128xf32>
    %c140 = arith.constant 140 : index
    %802 = memref.load %arg1[%c140] : memref<264xf32, #tpu.memory_space<smem>>
    %803 = vector.broadcast %802 : f32 to vector<8x128xf32>
    %804 = arith.mulf %803, %744 : vector<8x128xf32>
    %805 = arith.addf %801, %804 : vector<8x128xf32>
    %c141 = arith.constant 141 : index
    %806 = memref.load %arg1[%c141] : memref<264xf32, #tpu.memory_space<smem>>
    %807 = vector.broadcast %806 : f32 to vector<8x128xf32>
    %808 = arith.mulf %807, %753 : vector<8x128xf32>
    %809 = arith.addf %805, %808 : vector<8x128xf32>
    %c142 = arith.constant 142 : index
    %810 = memref.load %arg1[%c142] : memref<264xf32, #tpu.memory_space<smem>>
    %811 = vector.broadcast %810 : f32 to vector<8x128xf32>
    %812 = arith.mulf %811, %762 : vector<8x128xf32>
    %813 = arith.addf %809, %812 : vector<8x128xf32>
    %c143 = arith.constant 143 : index
    %814 = memref.load %arg1[%c143] : memref<264xf32, #tpu.memory_space<smem>>
    %815 = vector.broadcast %814 : f32 to vector<8x128xf32>
    %816 = arith.mulf %815, %770 : vector<8x128xf32>
    %c144 = arith.constant 144 : index
    %817 = memref.load %arg1[%c144] : memref<264xf32, #tpu.memory_space<smem>>
    %818 = vector.broadcast %817 : f32 to vector<8x128xf32>
    %819 = arith.mulf %818, %681 : vector<8x128xf32>
    %820 = arith.addf %816, %819 : vector<8x128xf32>
    %c145 = arith.constant 145 : index
    %821 = memref.load %arg1[%c145] : memref<264xf32, #tpu.memory_space<smem>>
    %822 = vector.broadcast %821 : f32 to vector<8x128xf32>
    %823 = arith.mulf %822, %690 : vector<8x128xf32>
    %824 = arith.addf %820, %823 : vector<8x128xf32>
    %c146 = arith.constant 146 : index
    %825 = memref.load %arg1[%c146] : memref<264xf32, #tpu.memory_space<smem>>
    %826 = vector.broadcast %825 : f32 to vector<8x128xf32>
    %827 = arith.mulf %826, %699 : vector<8x128xf32>
    %828 = arith.addf %824, %827 : vector<8x128xf32>
    %c147 = arith.constant 147 : index
    %829 = memref.load %arg1[%c147] : memref<264xf32, #tpu.memory_space<smem>>
    %830 = vector.broadcast %829 : f32 to vector<8x128xf32>
    %831 = arith.mulf %830, %708 : vector<8x128xf32>
    %832 = arith.addf %828, %831 : vector<8x128xf32>
    %c148 = arith.constant 148 : index
    %833 = memref.load %arg1[%c148] : memref<264xf32, #tpu.memory_space<smem>>
    %834 = vector.broadcast %833 : f32 to vector<8x128xf32>
    %835 = arith.mulf %834, %717 : vector<8x128xf32>
    %836 = arith.addf %832, %835 : vector<8x128xf32>
    %c149 = arith.constant 149 : index
    %837 = memref.load %arg1[%c149] : memref<264xf32, #tpu.memory_space<smem>>
    %838 = vector.broadcast %837 : f32 to vector<8x128xf32>
    %839 = arith.mulf %838, %726 : vector<8x128xf32>
    %840 = arith.addf %836, %839 : vector<8x128xf32>
    %c150 = arith.constant 150 : index
    %841 = memref.load %arg1[%c150] : memref<264xf32, #tpu.memory_space<smem>>
    %842 = vector.broadcast %841 : f32 to vector<8x128xf32>
    %843 = arith.mulf %842, %735 : vector<8x128xf32>
    %844 = arith.addf %840, %843 : vector<8x128xf32>
    %c151 = arith.constant 151 : index
    %845 = memref.load %arg1[%c151] : memref<264xf32, #tpu.memory_space<smem>>
    %846 = vector.broadcast %845 : f32 to vector<8x128xf32>
    %847 = arith.mulf %846, %744 : vector<8x128xf32>
    %848 = arith.addf %844, %847 : vector<8x128xf32>
    %c152 = arith.constant 152 : index
    %849 = memref.load %arg1[%c152] : memref<264xf32, #tpu.memory_space<smem>>
    %850 = vector.broadcast %849 : f32 to vector<8x128xf32>
    %851 = arith.mulf %850, %753 : vector<8x128xf32>
    %852 = arith.addf %848, %851 : vector<8x128xf32>
    %c153 = arith.constant 153 : index
    %853 = memref.load %arg1[%c153] : memref<264xf32, #tpu.memory_space<smem>>
    %854 = vector.broadcast %853 : f32 to vector<8x128xf32>
    %855 = arith.mulf %854, %762 : vector<8x128xf32>
    %856 = arith.addf %852, %855 : vector<8x128xf32>
    %c154 = arith.constant 154 : index
    %857 = memref.load %arg1[%c154] : memref<264xf32, #tpu.memory_space<smem>>
    %858 = vector.broadcast %857 : f32 to vector<8x128xf32>
    %859 = arith.mulf %858, %770 : vector<8x128xf32>
    %c155 = arith.constant 155 : index
    %860 = memref.load %arg1[%c155] : memref<264xf32, #tpu.memory_space<smem>>
    %861 = vector.broadcast %860 : f32 to vector<8x128xf32>
    %862 = arith.mulf %861, %681 : vector<8x128xf32>
    %863 = arith.addf %859, %862 : vector<8x128xf32>
    %c156 = arith.constant 156 : index
    %864 = memref.load %arg1[%c156] : memref<264xf32, #tpu.memory_space<smem>>
    %865 = vector.broadcast %864 : f32 to vector<8x128xf32>
    %866 = arith.mulf %865, %690 : vector<8x128xf32>
    %867 = arith.addf %863, %866 : vector<8x128xf32>
    %c157 = arith.constant 157 : index
    %868 = memref.load %arg1[%c157] : memref<264xf32, #tpu.memory_space<smem>>
    %869 = vector.broadcast %868 : f32 to vector<8x128xf32>
    %870 = arith.mulf %869, %699 : vector<8x128xf32>
    %871 = arith.addf %867, %870 : vector<8x128xf32>
    %c158 = arith.constant 158 : index
    %872 = memref.load %arg1[%c158] : memref<264xf32, #tpu.memory_space<smem>>
    %873 = vector.broadcast %872 : f32 to vector<8x128xf32>
    %874 = arith.mulf %873, %708 : vector<8x128xf32>
    %875 = arith.addf %871, %874 : vector<8x128xf32>
    %c159 = arith.constant 159 : index
    %876 = memref.load %arg1[%c159] : memref<264xf32, #tpu.memory_space<smem>>
    %877 = vector.broadcast %876 : f32 to vector<8x128xf32>
    %878 = arith.mulf %877, %717 : vector<8x128xf32>
    %879 = arith.addf %875, %878 : vector<8x128xf32>
    %c160 = arith.constant 160 : index
    %880 = memref.load %arg1[%c160] : memref<264xf32, #tpu.memory_space<smem>>
    %881 = vector.broadcast %880 : f32 to vector<8x128xf32>
    %882 = arith.mulf %881, %726 : vector<8x128xf32>
    %883 = arith.addf %879, %882 : vector<8x128xf32>
    %c161 = arith.constant 161 : index
    %884 = memref.load %arg1[%c161] : memref<264xf32, #tpu.memory_space<smem>>
    %885 = vector.broadcast %884 : f32 to vector<8x128xf32>
    %886 = arith.mulf %885, %735 : vector<8x128xf32>
    %887 = arith.addf %883, %886 : vector<8x128xf32>
    %c162 = arith.constant 162 : index
    %888 = memref.load %arg1[%c162] : memref<264xf32, #tpu.memory_space<smem>>
    %889 = vector.broadcast %888 : f32 to vector<8x128xf32>
    %890 = arith.mulf %889, %744 : vector<8x128xf32>
    %891 = arith.addf %887, %890 : vector<8x128xf32>
    %c163 = arith.constant 163 : index
    %892 = memref.load %arg1[%c163] : memref<264xf32, #tpu.memory_space<smem>>
    %893 = vector.broadcast %892 : f32 to vector<8x128xf32>
    %894 = arith.mulf %893, %753 : vector<8x128xf32>
    %895 = arith.addf %891, %894 : vector<8x128xf32>
    %c164 = arith.constant 164 : index
    %896 = memref.load %arg1[%c164] : memref<264xf32, #tpu.memory_space<smem>>
    %897 = vector.broadcast %896 : f32 to vector<8x128xf32>
    %898 = arith.mulf %897, %762 : vector<8x128xf32>
    %899 = arith.addf %895, %898 : vector<8x128xf32>
    %900 = vector.broadcast %0 : f32 to vector<8x128xf32>
    %901 = arith.subf %135, %900 : vector<8x128xf32>
    %902 = vector.broadcast %1 : f32 to vector<8x128xf32>
    %903 = arith.mulf %901, %902 : vector<8x128xf32>
    %904 = math.floor %903 : vector<8x128xf32>
    %cst_89 = arith.constant 0.000000e+00 : f32
    %905 = vector.broadcast %cst_89 : f32 to vector<8x128xf32>
    %906 = arith.cmpf oeq, %904, %905 : vector<8x128xf32>
    %907 = arith.extui %906 : vector<8x128xi1> to vector<8x128xi32>
    %908 = arith.sitofp %907 : vector<8x128xi32> to vector<8x128xf32>
    %cst_90 = arith.constant 1.000000e+00 : f32
    %909 = vector.broadcast %cst_90 : f32 to vector<8x128xf32>
    %910 = arith.cmpf oeq, %904, %909 : vector<8x128xf32>
    %911 = arith.extui %910 : vector<8x128xi1> to vector<8x128xi32>
    %912 = arith.sitofp %911 : vector<8x128xi32> to vector<8x128xf32>
    %cst_91 = arith.constant 2.000000e+00 : f32
    %913 = vector.broadcast %cst_91 : f32 to vector<8x128xf32>
    %914 = arith.cmpf oeq, %904, %913 : vector<8x128xf32>
    %915 = arith.extui %914 : vector<8x128xi1> to vector<8x128xi32>
    %916 = arith.sitofp %915 : vector<8x128xi32> to vector<8x128xf32>
    %cst_92 = arith.constant 3.000000e+00 : f32
    %917 = vector.broadcast %cst_92 : f32 to vector<8x128xf32>
    %918 = arith.cmpf oeq, %904, %917 : vector<8x128xf32>
    %919 = arith.extui %918 : vector<8x128xi1> to vector<8x128xi32>
    %920 = arith.sitofp %919 : vector<8x128xi32> to vector<8x128xf32>
    %cst_93 = arith.constant 4.000000e+00 : f32
    %921 = vector.broadcast %cst_93 : f32 to vector<8x128xf32>
    %922 = arith.cmpf oeq, %904, %921 : vector<8x128xf32>
    %923 = arith.extui %922 : vector<8x128xi1> to vector<8x128xi32>
    %924 = arith.sitofp %923 : vector<8x128xi32> to vector<8x128xf32>
    %cst_94 = arith.constant 5.000000e+00 : f32
    %925 = vector.broadcast %cst_94 : f32 to vector<8x128xf32>
    %926 = arith.cmpf oeq, %904, %925 : vector<8x128xf32>
    %927 = arith.extui %926 : vector<8x128xi1> to vector<8x128xi32>
    %928 = arith.sitofp %927 : vector<8x128xi32> to vector<8x128xf32>
    %cst_95 = arith.constant 6.000000e+00 : f32
    %929 = vector.broadcast %cst_95 : f32 to vector<8x128xf32>
    %930 = arith.cmpf oeq, %904, %929 : vector<8x128xf32>
    %931 = arith.extui %930 : vector<8x128xi1> to vector<8x128xi32>
    %932 = arith.sitofp %931 : vector<8x128xi32> to vector<8x128xf32>
    %cst_96 = arith.constant 7.000000e+00 : f32
    %933 = vector.broadcast %cst_96 : f32 to vector<8x128xf32>
    %934 = arith.cmpf oeq, %904, %933 : vector<8x128xf32>
    %935 = arith.extui %934 : vector<8x128xi1> to vector<8x128xi32>
    %936 = arith.sitofp %935 : vector<8x128xi32> to vector<8x128xf32>
    %cst_97 = arith.constant 8.000000e+00 : f32
    %937 = vector.broadcast %cst_97 : f32 to vector<8x128xf32>
    %938 = arith.cmpf oeq, %904, %937 : vector<8x128xf32>
    %939 = arith.extui %938 : vector<8x128xi1> to vector<8x128xi32>
    %940 = arith.sitofp %939 : vector<8x128xi32> to vector<8x128xf32>
    %cst_98 = arith.constant 9.000000e+00 : f32
    %941 = vector.broadcast %cst_98 : f32 to vector<8x128xf32>
    %942 = arith.cmpf oeq, %904, %941 : vector<8x128xf32>
    %943 = arith.extui %942 : vector<8x128xi1> to vector<8x128xi32>
    %944 = arith.sitofp %943 : vector<8x128xi32> to vector<8x128xf32>
    %cst_99 = arith.constant 1.000000e+01 : f32
    %945 = vector.broadcast %cst_99 : f32 to vector<8x128xf32>
    %946 = arith.cmpf oeq, %904, %945 : vector<8x128xf32>
    %947 = arith.extui %946 : vector<8x128xi1> to vector<8x128xi32>
    %948 = arith.sitofp %947 : vector<8x128xi32> to vector<8x128xf32>
    %cst_100 = arith.constant 1.100000e+01 : f32
    %949 = vector.broadcast %cst_100 : f32 to vector<8x128xf32>
    %950 = arith.cmpf oeq, %904, %949 : vector<8x128xf32>
    %951 = arith.extui %950 : vector<8x128xi1> to vector<8x128xi32>
    %952 = arith.sitofp %951 : vector<8x128xi32> to vector<8x128xf32>
    %cst_101 = arith.constant 1.200000e+01 : f32
    %953 = vector.broadcast %cst_101 : f32 to vector<8x128xf32>
    %954 = arith.cmpf oeq, %904, %953 : vector<8x128xf32>
    %955 = arith.extui %954 : vector<8x128xi1> to vector<8x128xi32>
    %956 = arith.sitofp %955 : vector<8x128xi32> to vector<8x128xf32>
    %cst_102 = arith.constant 1.300000e+01 : f32
    %957 = vector.broadcast %cst_102 : f32 to vector<8x128xf32>
    %958 = arith.cmpf oeq, %904, %957 : vector<8x128xf32>
    %959 = arith.extui %958 : vector<8x128xi1> to vector<8x128xi32>
    %960 = arith.sitofp %959 : vector<8x128xi32> to vector<8x128xf32>
    %cst_103 = arith.constant 1.400000e+01 : f32
    %961 = vector.broadcast %cst_103 : f32 to vector<8x128xf32>
    %962 = arith.cmpf oeq, %904, %961 : vector<8x128xf32>
    %963 = arith.extui %962 : vector<8x128xi1> to vector<8x128xi32>
    %964 = arith.sitofp %963 : vector<8x128xi32> to vector<8x128xf32>
    %965 = vector.broadcast %2 : f32 to vector<8x128xf32>
    %966 = arith.mulf %135, %965 : vector<8x128xf32>
    %967 = vector.broadcast %3 : f32 to vector<8x128xf32>
    %968 = arith.addf %966, %967 : vector<8x128xf32>
    %969 = vector.broadcast %4 : f32 to vector<8x128xf32>
    %970 = arith.mulf %135, %969 : vector<8x128xf32>
    %971 = vector.broadcast %5 : f32 to vector<8x128xf32>
    %972 = arith.addf %970, %971 : vector<8x128xf32>
    %973 = arith.mulf %968, %908 : vector<8x128xf32>
    %cst_104 = arith.constant 1.000000e+00 : f32
    %974 = vector.broadcast %cst_104 : f32 to vector<8x128xf32>
    %975 = arith.subf %974, %972 : vector<8x128xf32>
    %976 = arith.mulf %975, %912 : vector<8x128xf32>
    %977 = arith.addf %973, %976 : vector<8x128xf32>
    %978 = vector.broadcast %6 : f32 to vector<8x128xf32>
    %979 = arith.mulf %135, %978 : vector<8x128xf32>
    %980 = vector.broadcast %7 : f32 to vector<8x128xf32>
    %981 = arith.addf %979, %980 : vector<8x128xf32>
    %982 = arith.mulf %972, %912 : vector<8x128xf32>
    %cst_105 = arith.constant 1.000000e+00 : f32
    %983 = vector.broadcast %cst_105 : f32 to vector<8x128xf32>
    %984 = arith.subf %983, %981 : vector<8x128xf32>
    %985 = arith.mulf %984, %916 : vector<8x128xf32>
    %986 = arith.addf %982, %985 : vector<8x128xf32>
    %987 = vector.broadcast %8 : f32 to vector<8x128xf32>
    %988 = arith.mulf %135, %987 : vector<8x128xf32>
    %989 = vector.broadcast %9 : f32 to vector<8x128xf32>
    %990 = arith.addf %988, %989 : vector<8x128xf32>
    %991 = arith.mulf %981, %916 : vector<8x128xf32>
    %cst_106 = arith.constant 1.000000e+00 : f32
    %992 = vector.broadcast %cst_106 : f32 to vector<8x128xf32>
    %993 = arith.subf %992, %990 : vector<8x128xf32>
    %994 = arith.mulf %993, %920 : vector<8x128xf32>
    %995 = arith.addf %991, %994 : vector<8x128xf32>
    %996 = vector.broadcast %10 : f32 to vector<8x128xf32>
    %997 = arith.mulf %135, %996 : vector<8x128xf32>
    %998 = vector.broadcast %11 : f32 to vector<8x128xf32>
    %999 = arith.addf %997, %998 : vector<8x128xf32>
    %1000 = arith.mulf %990, %920 : vector<8x128xf32>
    %cst_107 = arith.constant 1.000000e+00 : f32
    %1001 = vector.broadcast %cst_107 : f32 to vector<8x128xf32>
    %1002 = arith.subf %1001, %999 : vector<8x128xf32>
    %1003 = arith.mulf %1002, %924 : vector<8x128xf32>
    %1004 = arith.addf %1000, %1003 : vector<8x128xf32>
    %1005 = vector.broadcast %12 : f32 to vector<8x128xf32>
    %1006 = arith.mulf %135, %1005 : vector<8x128xf32>
    %1007 = vector.broadcast %13 : f32 to vector<8x128xf32>
    %1008 = arith.addf %1006, %1007 : vector<8x128xf32>
    %1009 = arith.mulf %999, %924 : vector<8x128xf32>
    %cst_108 = arith.constant 1.000000e+00 : f32
    %1010 = vector.broadcast %cst_108 : f32 to vector<8x128xf32>
    %1011 = arith.subf %1010, %1008 : vector<8x128xf32>
    %1012 = arith.mulf %1011, %928 : vector<8x128xf32>
    %1013 = arith.addf %1009, %1012 : vector<8x128xf32>
    %1014 = vector.broadcast %14 : f32 to vector<8x128xf32>
    %1015 = arith.mulf %135, %1014 : vector<8x128xf32>
    %1016 = vector.broadcast %15 : f32 to vector<8x128xf32>
    %1017 = arith.addf %1015, %1016 : vector<8x128xf32>
    %1018 = arith.mulf %1008, %928 : vector<8x128xf32>
    %cst_109 = arith.constant 1.000000e+00 : f32
    %1019 = vector.broadcast %cst_109 : f32 to vector<8x128xf32>
    %1020 = arith.subf %1019, %1017 : vector<8x128xf32>
    %1021 = arith.mulf %1020, %932 : vector<8x128xf32>
    %1022 = arith.addf %1018, %1021 : vector<8x128xf32>
    %1023 = vector.broadcast %16 : f32 to vector<8x128xf32>
    %1024 = arith.mulf %135, %1023 : vector<8x128xf32>
    %1025 = vector.broadcast %17 : f32 to vector<8x128xf32>
    %1026 = arith.addf %1024, %1025 : vector<8x128xf32>
    %1027 = arith.mulf %1017, %932 : vector<8x128xf32>
    %cst_110 = arith.constant 1.000000e+00 : f32
    %1028 = vector.broadcast %cst_110 : f32 to vector<8x128xf32>
    %1029 = arith.subf %1028, %1026 : vector<8x128xf32>
    %1030 = arith.mulf %1029, %936 : vector<8x128xf32>
    %1031 = arith.addf %1027, %1030 : vector<8x128xf32>
    %1032 = vector.broadcast %18 : f32 to vector<8x128xf32>
    %1033 = arith.mulf %135, %1032 : vector<8x128xf32>
    %1034 = vector.broadcast %19 : f32 to vector<8x128xf32>
    %1035 = arith.addf %1033, %1034 : vector<8x128xf32>
    %1036 = arith.mulf %1026, %936 : vector<8x128xf32>
    %cst_111 = arith.constant 1.000000e+00 : f32
    %1037 = vector.broadcast %cst_111 : f32 to vector<8x128xf32>
    %1038 = arith.subf %1037, %1035 : vector<8x128xf32>
    %1039 = arith.mulf %1038, %940 : vector<8x128xf32>
    %1040 = arith.addf %1036, %1039 : vector<8x128xf32>
    %1041 = vector.broadcast %20 : f32 to vector<8x128xf32>
    %1042 = arith.mulf %135, %1041 : vector<8x128xf32>
    %1043 = vector.broadcast %21 : f32 to vector<8x128xf32>
    %1044 = arith.addf %1042, %1043 : vector<8x128xf32>
    %1045 = arith.mulf %1035, %940 : vector<8x128xf32>
    %cst_112 = arith.constant 1.000000e+00 : f32
    %1046 = vector.broadcast %cst_112 : f32 to vector<8x128xf32>
    %1047 = arith.subf %1046, %1044 : vector<8x128xf32>
    %1048 = arith.mulf %1047, %944 : vector<8x128xf32>
    %1049 = arith.addf %1045, %1048 : vector<8x128xf32>
    %1050 = vector.broadcast %22 : f32 to vector<8x128xf32>
    %1051 = arith.mulf %135, %1050 : vector<8x128xf32>
    %1052 = vector.broadcast %23 : f32 to vector<8x128xf32>
    %1053 = arith.addf %1051, %1052 : vector<8x128xf32>
    %1054 = arith.mulf %1044, %944 : vector<8x128xf32>
    %cst_113 = arith.constant 1.000000e+00 : f32
    %1055 = vector.broadcast %cst_113 : f32 to vector<8x128xf32>
    %1056 = arith.subf %1055, %1053 : vector<8x128xf32>
    %1057 = arith.mulf %1056, %948 : vector<8x128xf32>
    %1058 = arith.addf %1054, %1057 : vector<8x128xf32>
    %1059 = vector.broadcast %24 : f32 to vector<8x128xf32>
    %1060 = arith.mulf %135, %1059 : vector<8x128xf32>
    %1061 = vector.broadcast %25 : f32 to vector<8x128xf32>
    %1062 = arith.addf %1060, %1061 : vector<8x128xf32>
    %1063 = arith.mulf %1053, %948 : vector<8x128xf32>
    %cst_114 = arith.constant 1.000000e+00 : f32
    %1064 = vector.broadcast %cst_114 : f32 to vector<8x128xf32>
    %1065 = arith.subf %1064, %1062 : vector<8x128xf32>
    %1066 = arith.mulf %1065, %952 : vector<8x128xf32>
    %1067 = arith.addf %1063, %1066 : vector<8x128xf32>
    %1068 = vector.broadcast %26 : f32 to vector<8x128xf32>
    %1069 = arith.mulf %135, %1068 : vector<8x128xf32>
    %1070 = vector.broadcast %27 : f32 to vector<8x128xf32>
    %1071 = arith.addf %1069, %1070 : vector<8x128xf32>
    %1072 = arith.mulf %1062, %952 : vector<8x128xf32>
    %cst_115 = arith.constant 1.000000e+00 : f32
    %1073 = vector.broadcast %cst_115 : f32 to vector<8x128xf32>
    %1074 = arith.subf %1073, %1071 : vector<8x128xf32>
    %1075 = arith.mulf %1074, %956 : vector<8x128xf32>
    %1076 = arith.addf %1072, %1075 : vector<8x128xf32>
    %1077 = vector.broadcast %28 : f32 to vector<8x128xf32>
    %1078 = arith.mulf %135, %1077 : vector<8x128xf32>
    %1079 = vector.broadcast %29 : f32 to vector<8x128xf32>
    %1080 = arith.addf %1078, %1079 : vector<8x128xf32>
    %1081 = arith.mulf %1071, %956 : vector<8x128xf32>
    %cst_116 = arith.constant 1.000000e+00 : f32
    %1082 = vector.broadcast %cst_116 : f32 to vector<8x128xf32>
    %1083 = arith.subf %1082, %1080 : vector<8x128xf32>
    %1084 = arith.mulf %1083, %960 : vector<8x128xf32>
    %1085 = arith.addf %1081, %1084 : vector<8x128xf32>
    %1086 = vector.broadcast %30 : f32 to vector<8x128xf32>
    %1087 = arith.mulf %135, %1086 : vector<8x128xf32>
    %1088 = vector.broadcast %31 : f32 to vector<8x128xf32>
    %1089 = arith.addf %1087, %1088 : vector<8x128xf32>
    %1090 = arith.mulf %1080, %960 : vector<8x128xf32>
    %cst_117 = arith.constant 1.000000e+00 : f32
    %1091 = vector.broadcast %cst_117 : f32 to vector<8x128xf32>
    %1092 = arith.subf %1091, %1089 : vector<8x128xf32>
    %1093 = arith.mulf %1092, %964 : vector<8x128xf32>
    %1094 = arith.addf %1090, %1093 : vector<8x128xf32>
    %1095 = vector.broadcast %32 : f32 to vector<8x128xf32>
    %1096 = arith.mulf %135, %1095 : vector<8x128xf32>
    %1097 = vector.broadcast %33 : f32 to vector<8x128xf32>
    %1098 = arith.addf %1096, %1097 : vector<8x128xf32>
    %1099 = vector.broadcast %34 : f32 to vector<8x128xf32>
    %1100 = arith.mulf %135, %1099 : vector<8x128xf32>
    %1101 = vector.broadcast %35 : f32 to vector<8x128xf32>
    %1102 = arith.addf %1100, %1101 : vector<8x128xf32>
    %1103 = arith.mulf %1098, %977 : vector<8x128xf32>
    %cst_118 = arith.constant 1.000000e+00 : f32
    %1104 = vector.broadcast %cst_118 : f32 to vector<8x128xf32>
    %1105 = arith.subf %1104, %1102 : vector<8x128xf32>
    %1106 = arith.mulf %1105, %986 : vector<8x128xf32>
    %1107 = arith.addf %1103, %1106 : vector<8x128xf32>
    %1108 = vector.broadcast %36 : f32 to vector<8x128xf32>
    %1109 = arith.mulf %135, %1108 : vector<8x128xf32>
    %1110 = vector.broadcast %37 : f32 to vector<8x128xf32>
    %1111 = arith.addf %1109, %1110 : vector<8x128xf32>
    %1112 = arith.mulf %1102, %986 : vector<8x128xf32>
    %cst_119 = arith.constant 1.000000e+00 : f32
    %1113 = vector.broadcast %cst_119 : f32 to vector<8x128xf32>
    %1114 = arith.subf %1113, %1111 : vector<8x128xf32>
    %1115 = arith.mulf %1114, %995 : vector<8x128xf32>
    %1116 = arith.addf %1112, %1115 : vector<8x128xf32>
    %1117 = vector.broadcast %38 : f32 to vector<8x128xf32>
    %1118 = arith.mulf %135, %1117 : vector<8x128xf32>
    %1119 = vector.broadcast %39 : f32 to vector<8x128xf32>
    %1120 = arith.addf %1118, %1119 : vector<8x128xf32>
    %1121 = arith.mulf %1111, %995 : vector<8x128xf32>
    %cst_120 = arith.constant 1.000000e+00 : f32
    %1122 = vector.broadcast %cst_120 : f32 to vector<8x128xf32>
    %1123 = arith.subf %1122, %1120 : vector<8x128xf32>
    %1124 = arith.mulf %1123, %1004 : vector<8x128xf32>
    %1125 = arith.addf %1121, %1124 : vector<8x128xf32>
    %1126 = vector.broadcast %40 : f32 to vector<8x128xf32>
    %1127 = arith.mulf %135, %1126 : vector<8x128xf32>
    %1128 = vector.broadcast %41 : f32 to vector<8x128xf32>
    %1129 = arith.addf %1127, %1128 : vector<8x128xf32>
    %1130 = arith.mulf %1120, %1004 : vector<8x128xf32>
    %cst_121 = arith.constant 1.000000e+00 : f32
    %1131 = vector.broadcast %cst_121 : f32 to vector<8x128xf32>
    %1132 = arith.subf %1131, %1129 : vector<8x128xf32>
    %1133 = arith.mulf %1132, %1013 : vector<8x128xf32>
    %1134 = arith.addf %1130, %1133 : vector<8x128xf32>
    %1135 = vector.broadcast %42 : f32 to vector<8x128xf32>
    %1136 = arith.mulf %135, %1135 : vector<8x128xf32>
    %1137 = vector.broadcast %43 : f32 to vector<8x128xf32>
    %1138 = arith.addf %1136, %1137 : vector<8x128xf32>
    %1139 = arith.mulf %1129, %1013 : vector<8x128xf32>
    %cst_122 = arith.constant 1.000000e+00 : f32
    %1140 = vector.broadcast %cst_122 : f32 to vector<8x128xf32>
    %1141 = arith.subf %1140, %1138 : vector<8x128xf32>
    %1142 = arith.mulf %1141, %1022 : vector<8x128xf32>
    %1143 = arith.addf %1139, %1142 : vector<8x128xf32>
    %1144 = vector.broadcast %44 : f32 to vector<8x128xf32>
    %1145 = arith.mulf %135, %1144 : vector<8x128xf32>
    %1146 = vector.broadcast %45 : f32 to vector<8x128xf32>
    %1147 = arith.addf %1145, %1146 : vector<8x128xf32>
    %1148 = arith.mulf %1138, %1022 : vector<8x128xf32>
    %cst_123 = arith.constant 1.000000e+00 : f32
    %1149 = vector.broadcast %cst_123 : f32 to vector<8x128xf32>
    %1150 = arith.subf %1149, %1147 : vector<8x128xf32>
    %1151 = arith.mulf %1150, %1031 : vector<8x128xf32>
    %1152 = arith.addf %1148, %1151 : vector<8x128xf32>
    %1153 = vector.broadcast %46 : f32 to vector<8x128xf32>
    %1154 = arith.mulf %135, %1153 : vector<8x128xf32>
    %1155 = vector.broadcast %47 : f32 to vector<8x128xf32>
    %1156 = arith.addf %1154, %1155 : vector<8x128xf32>
    %1157 = arith.mulf %1147, %1031 : vector<8x128xf32>
    %cst_124 = arith.constant 1.000000e+00 : f32
    %1158 = vector.broadcast %cst_124 : f32 to vector<8x128xf32>
    %1159 = arith.subf %1158, %1156 : vector<8x128xf32>
    %1160 = arith.mulf %1159, %1040 : vector<8x128xf32>
    %1161 = arith.addf %1157, %1160 : vector<8x128xf32>
    %1162 = vector.broadcast %48 : f32 to vector<8x128xf32>
    %1163 = arith.mulf %135, %1162 : vector<8x128xf32>
    %1164 = vector.broadcast %49 : f32 to vector<8x128xf32>
    %1165 = arith.addf %1163, %1164 : vector<8x128xf32>
    %1166 = arith.mulf %1156, %1040 : vector<8x128xf32>
    %cst_125 = arith.constant 1.000000e+00 : f32
    %1167 = vector.broadcast %cst_125 : f32 to vector<8x128xf32>
    %1168 = arith.subf %1167, %1165 : vector<8x128xf32>
    %1169 = arith.mulf %1168, %1049 : vector<8x128xf32>
    %1170 = arith.addf %1166, %1169 : vector<8x128xf32>
    %1171 = vector.broadcast %50 : f32 to vector<8x128xf32>
    %1172 = arith.mulf %135, %1171 : vector<8x128xf32>
    %1173 = vector.broadcast %51 : f32 to vector<8x128xf32>
    %1174 = arith.addf %1172, %1173 : vector<8x128xf32>
    %1175 = arith.mulf %1165, %1049 : vector<8x128xf32>
    %cst_126 = arith.constant 1.000000e+00 : f32
    %1176 = vector.broadcast %cst_126 : f32 to vector<8x128xf32>
    %1177 = arith.subf %1176, %1174 : vector<8x128xf32>
    %1178 = arith.mulf %1177, %1058 : vector<8x128xf32>
    %1179 = arith.addf %1175, %1178 : vector<8x128xf32>
    %1180 = vector.broadcast %52 : f32 to vector<8x128xf32>
    %1181 = arith.mulf %135, %1180 : vector<8x128xf32>
    %1182 = vector.broadcast %53 : f32 to vector<8x128xf32>
    %1183 = arith.addf %1181, %1182 : vector<8x128xf32>
    %1184 = arith.mulf %1174, %1058 : vector<8x128xf32>
    %cst_127 = arith.constant 1.000000e+00 : f32
    %1185 = vector.broadcast %cst_127 : f32 to vector<8x128xf32>
    %1186 = arith.subf %1185, %1183 : vector<8x128xf32>
    %1187 = arith.mulf %1186, %1067 : vector<8x128xf32>
    %1188 = arith.addf %1184, %1187 : vector<8x128xf32>
    %1189 = vector.broadcast %54 : f32 to vector<8x128xf32>
    %1190 = arith.mulf %135, %1189 : vector<8x128xf32>
    %1191 = vector.broadcast %55 : f32 to vector<8x128xf32>
    %1192 = arith.addf %1190, %1191 : vector<8x128xf32>
    %1193 = arith.mulf %1183, %1067 : vector<8x128xf32>
    %cst_128 = arith.constant 1.000000e+00 : f32
    %1194 = vector.broadcast %cst_128 : f32 to vector<8x128xf32>
    %1195 = arith.subf %1194, %1192 : vector<8x128xf32>
    %1196 = arith.mulf %1195, %1076 : vector<8x128xf32>
    %1197 = arith.addf %1193, %1196 : vector<8x128xf32>
    %1198 = vector.broadcast %56 : f32 to vector<8x128xf32>
    %1199 = arith.mulf %135, %1198 : vector<8x128xf32>
    %1200 = vector.broadcast %57 : f32 to vector<8x128xf32>
    %1201 = arith.addf %1199, %1200 : vector<8x128xf32>
    %1202 = arith.mulf %1192, %1076 : vector<8x128xf32>
    %cst_129 = arith.constant 1.000000e+00 : f32
    %1203 = vector.broadcast %cst_129 : f32 to vector<8x128xf32>
    %1204 = arith.subf %1203, %1201 : vector<8x128xf32>
    %1205 = arith.mulf %1204, %1085 : vector<8x128xf32>
    %1206 = arith.addf %1202, %1205 : vector<8x128xf32>
    %1207 = vector.broadcast %58 : f32 to vector<8x128xf32>
    %1208 = arith.mulf %135, %1207 : vector<8x128xf32>
    %1209 = vector.broadcast %59 : f32 to vector<8x128xf32>
    %1210 = arith.addf %1208, %1209 : vector<8x128xf32>
    %1211 = arith.mulf %1201, %1085 : vector<8x128xf32>
    %cst_130 = arith.constant 1.000000e+00 : f32
    %1212 = vector.broadcast %cst_130 : f32 to vector<8x128xf32>
    %1213 = arith.subf %1212, %1210 : vector<8x128xf32>
    %1214 = arith.mulf %1213, %1094 : vector<8x128xf32>
    %1215 = arith.addf %1211, %1214 : vector<8x128xf32>
    %1216 = vector.broadcast %60 : f32 to vector<8x128xf32>
    %1217 = arith.mulf %135, %1216 : vector<8x128xf32>
    %1218 = vector.broadcast %61 : f32 to vector<8x128xf32>
    %1219 = arith.addf %1217, %1218 : vector<8x128xf32>
    %1220 = vector.broadcast %62 : f32 to vector<8x128xf32>
    %1221 = arith.mulf %135, %1220 : vector<8x128xf32>
    %1222 = vector.broadcast %63 : f32 to vector<8x128xf32>
    %1223 = arith.addf %1221, %1222 : vector<8x128xf32>
    %1224 = arith.mulf %1219, %1107 : vector<8x128xf32>
    %cst_131 = arith.constant 1.000000e+00 : f32
    %1225 = vector.broadcast %cst_131 : f32 to vector<8x128xf32>
    %1226 = arith.subf %1225, %1223 : vector<8x128xf32>
    %1227 = arith.mulf %1226, %1116 : vector<8x128xf32>
    %1228 = arith.addf %1224, %1227 : vector<8x128xf32>
    %1229 = vector.broadcast %64 : f32 to vector<8x128xf32>
    %1230 = arith.mulf %135, %1229 : vector<8x128xf32>
    %1231 = vector.broadcast %65 : f32 to vector<8x128xf32>
    %1232 = arith.addf %1230, %1231 : vector<8x128xf32>
    %1233 = arith.mulf %1223, %1116 : vector<8x128xf32>
    %cst_132 = arith.constant 1.000000e+00 : f32
    %1234 = vector.broadcast %cst_132 : f32 to vector<8x128xf32>
    %1235 = arith.subf %1234, %1232 : vector<8x128xf32>
    %1236 = arith.mulf %1235, %1125 : vector<8x128xf32>
    %1237 = arith.addf %1233, %1236 : vector<8x128xf32>
    %1238 = vector.broadcast %66 : f32 to vector<8x128xf32>
    %1239 = arith.mulf %135, %1238 : vector<8x128xf32>
    %1240 = vector.broadcast %67 : f32 to vector<8x128xf32>
    %1241 = arith.addf %1239, %1240 : vector<8x128xf32>
    %1242 = arith.mulf %1232, %1125 : vector<8x128xf32>
    %cst_133 = arith.constant 1.000000e+00 : f32
    %1243 = vector.broadcast %cst_133 : f32 to vector<8x128xf32>
    %1244 = arith.subf %1243, %1241 : vector<8x128xf32>
    %1245 = arith.mulf %1244, %1134 : vector<8x128xf32>
    %1246 = arith.addf %1242, %1245 : vector<8x128xf32>
    %1247 = vector.broadcast %68 : f32 to vector<8x128xf32>
    %1248 = arith.mulf %135, %1247 : vector<8x128xf32>
    %1249 = vector.broadcast %69 : f32 to vector<8x128xf32>
    %1250 = arith.addf %1248, %1249 : vector<8x128xf32>
    %1251 = arith.mulf %1241, %1134 : vector<8x128xf32>
    %cst_134 = arith.constant 1.000000e+00 : f32
    %1252 = vector.broadcast %cst_134 : f32 to vector<8x128xf32>
    %1253 = arith.subf %1252, %1250 : vector<8x128xf32>
    %1254 = arith.mulf %1253, %1143 : vector<8x128xf32>
    %1255 = arith.addf %1251, %1254 : vector<8x128xf32>
    %1256 = vector.broadcast %70 : f32 to vector<8x128xf32>
    %1257 = arith.mulf %135, %1256 : vector<8x128xf32>
    %1258 = vector.broadcast %71 : f32 to vector<8x128xf32>
    %1259 = arith.addf %1257, %1258 : vector<8x128xf32>
    %1260 = arith.mulf %1250, %1143 : vector<8x128xf32>
    %cst_135 = arith.constant 1.000000e+00 : f32
    %1261 = vector.broadcast %cst_135 : f32 to vector<8x128xf32>
    %1262 = arith.subf %1261, %1259 : vector<8x128xf32>
    %1263 = arith.mulf %1262, %1152 : vector<8x128xf32>
    %1264 = arith.addf %1260, %1263 : vector<8x128xf32>
    %1265 = vector.broadcast %72 : f32 to vector<8x128xf32>
    %1266 = arith.mulf %135, %1265 : vector<8x128xf32>
    %1267 = vector.broadcast %73 : f32 to vector<8x128xf32>
    %1268 = arith.addf %1266, %1267 : vector<8x128xf32>
    %1269 = arith.mulf %1259, %1152 : vector<8x128xf32>
    %cst_136 = arith.constant 1.000000e+00 : f32
    %1270 = vector.broadcast %cst_136 : f32 to vector<8x128xf32>
    %1271 = arith.subf %1270, %1268 : vector<8x128xf32>
    %1272 = arith.mulf %1271, %1161 : vector<8x128xf32>
    %1273 = arith.addf %1269, %1272 : vector<8x128xf32>
    %1274 = vector.broadcast %74 : f32 to vector<8x128xf32>
    %1275 = arith.mulf %135, %1274 : vector<8x128xf32>
    %1276 = vector.broadcast %75 : f32 to vector<8x128xf32>
    %1277 = arith.addf %1275, %1276 : vector<8x128xf32>
    %1278 = arith.mulf %1268, %1161 : vector<8x128xf32>
    %cst_137 = arith.constant 1.000000e+00 : f32
    %1279 = vector.broadcast %cst_137 : f32 to vector<8x128xf32>
    %1280 = arith.subf %1279, %1277 : vector<8x128xf32>
    %1281 = arith.mulf %1280, %1170 : vector<8x128xf32>
    %1282 = arith.addf %1278, %1281 : vector<8x128xf32>
    %1283 = vector.broadcast %76 : f32 to vector<8x128xf32>
    %1284 = arith.mulf %135, %1283 : vector<8x128xf32>
    %1285 = vector.broadcast %77 : f32 to vector<8x128xf32>
    %1286 = arith.addf %1284, %1285 : vector<8x128xf32>
    %1287 = arith.mulf %1277, %1170 : vector<8x128xf32>
    %cst_138 = arith.constant 1.000000e+00 : f32
    %1288 = vector.broadcast %cst_138 : f32 to vector<8x128xf32>
    %1289 = arith.subf %1288, %1286 : vector<8x128xf32>
    %1290 = arith.mulf %1289, %1179 : vector<8x128xf32>
    %1291 = arith.addf %1287, %1290 : vector<8x128xf32>
    %1292 = vector.broadcast %78 : f32 to vector<8x128xf32>
    %1293 = arith.mulf %135, %1292 : vector<8x128xf32>
    %1294 = vector.broadcast %79 : f32 to vector<8x128xf32>
    %1295 = arith.addf %1293, %1294 : vector<8x128xf32>
    %1296 = arith.mulf %1286, %1179 : vector<8x128xf32>
    %cst_139 = arith.constant 1.000000e+00 : f32
    %1297 = vector.broadcast %cst_139 : f32 to vector<8x128xf32>
    %1298 = arith.subf %1297, %1295 : vector<8x128xf32>
    %1299 = arith.mulf %1298, %1188 : vector<8x128xf32>
    %1300 = arith.addf %1296, %1299 : vector<8x128xf32>
    %1301 = vector.broadcast %80 : f32 to vector<8x128xf32>
    %1302 = arith.mulf %135, %1301 : vector<8x128xf32>
    %1303 = vector.broadcast %81 : f32 to vector<8x128xf32>
    %1304 = arith.addf %1302, %1303 : vector<8x128xf32>
    %1305 = arith.mulf %1295, %1188 : vector<8x128xf32>
    %cst_140 = arith.constant 1.000000e+00 : f32
    %1306 = vector.broadcast %cst_140 : f32 to vector<8x128xf32>
    %1307 = arith.subf %1306, %1304 : vector<8x128xf32>
    %1308 = arith.mulf %1307, %1197 : vector<8x128xf32>
    %1309 = arith.addf %1305, %1308 : vector<8x128xf32>
    %1310 = vector.broadcast %82 : f32 to vector<8x128xf32>
    %1311 = arith.mulf %135, %1310 : vector<8x128xf32>
    %1312 = vector.broadcast %83 : f32 to vector<8x128xf32>
    %1313 = arith.addf %1311, %1312 : vector<8x128xf32>
    %1314 = arith.mulf %1304, %1197 : vector<8x128xf32>
    %cst_141 = arith.constant 1.000000e+00 : f32
    %1315 = vector.broadcast %cst_141 : f32 to vector<8x128xf32>
    %1316 = arith.subf %1315, %1313 : vector<8x128xf32>
    %1317 = arith.mulf %1316, %1206 : vector<8x128xf32>
    %1318 = arith.addf %1314, %1317 : vector<8x128xf32>
    %1319 = vector.broadcast %84 : f32 to vector<8x128xf32>
    %1320 = arith.mulf %135, %1319 : vector<8x128xf32>
    %1321 = vector.broadcast %85 : f32 to vector<8x128xf32>
    %1322 = arith.addf %1320, %1321 : vector<8x128xf32>
    %1323 = arith.mulf %1313, %1206 : vector<8x128xf32>
    %cst_142 = arith.constant 1.000000e+00 : f32
    %1324 = vector.broadcast %cst_142 : f32 to vector<8x128xf32>
    %1325 = arith.subf %1324, %1322 : vector<8x128xf32>
    %1326 = arith.mulf %1325, %1215 : vector<8x128xf32>
    %1327 = arith.addf %1323, %1326 : vector<8x128xf32>
    %1328 = vector.broadcast %86 : f32 to vector<8x128xf32>
    %1329 = arith.mulf %135, %1328 : vector<8x128xf32>
    %1330 = vector.broadcast %87 : f32 to vector<8x128xf32>
    %1331 = arith.addf %1329, %1330 : vector<8x128xf32>
    %1332 = vector.broadcast %88 : f32 to vector<8x128xf32>
    %1333 = arith.mulf %135, %1332 : vector<8x128xf32>
    %1334 = vector.broadcast %89 : f32 to vector<8x128xf32>
    %1335 = arith.addf %1333, %1334 : vector<8x128xf32>
    %1336 = arith.mulf %1331, %1228 : vector<8x128xf32>
    %cst_143 = arith.constant 1.000000e+00 : f32
    %1337 = vector.broadcast %cst_143 : f32 to vector<8x128xf32>
    %1338 = arith.subf %1337, %1335 : vector<8x128xf32>
    %1339 = arith.mulf %1338, %1237 : vector<8x128xf32>
    %1340 = arith.addf %1336, %1339 : vector<8x128xf32>
    %1341 = vector.broadcast %90 : f32 to vector<8x128xf32>
    %1342 = arith.mulf %135, %1341 : vector<8x128xf32>
    %1343 = vector.broadcast %91 : f32 to vector<8x128xf32>
    %1344 = arith.addf %1342, %1343 : vector<8x128xf32>
    %1345 = arith.mulf %1335, %1237 : vector<8x128xf32>
    %cst_144 = arith.constant 1.000000e+00 : f32
    %1346 = vector.broadcast %cst_144 : f32 to vector<8x128xf32>
    %1347 = arith.subf %1346, %1344 : vector<8x128xf32>
    %1348 = arith.mulf %1347, %1246 : vector<8x128xf32>
    %1349 = arith.addf %1345, %1348 : vector<8x128xf32>
    %1350 = vector.broadcast %92 : f32 to vector<8x128xf32>
    %1351 = arith.mulf %135, %1350 : vector<8x128xf32>
    %1352 = vector.broadcast %93 : f32 to vector<8x128xf32>
    %1353 = arith.addf %1351, %1352 : vector<8x128xf32>
    %1354 = arith.mulf %1344, %1246 : vector<8x128xf32>
    %cst_145 = arith.constant 1.000000e+00 : f32
    %1355 = vector.broadcast %cst_145 : f32 to vector<8x128xf32>
    %1356 = arith.subf %1355, %1353 : vector<8x128xf32>
    %1357 = arith.mulf %1356, %1255 : vector<8x128xf32>
    %1358 = arith.addf %1354, %1357 : vector<8x128xf32>
    %1359 = vector.broadcast %94 : f32 to vector<8x128xf32>
    %1360 = arith.mulf %135, %1359 : vector<8x128xf32>
    %1361 = vector.broadcast %95 : f32 to vector<8x128xf32>
    %1362 = arith.addf %1360, %1361 : vector<8x128xf32>
    %1363 = arith.mulf %1353, %1255 : vector<8x128xf32>
    %cst_146 = arith.constant 1.000000e+00 : f32
    %1364 = vector.broadcast %cst_146 : f32 to vector<8x128xf32>
    %1365 = arith.subf %1364, %1362 : vector<8x128xf32>
    %1366 = arith.mulf %1365, %1264 : vector<8x128xf32>
    %1367 = arith.addf %1363, %1366 : vector<8x128xf32>
    %1368 = vector.broadcast %96 : f32 to vector<8x128xf32>
    %1369 = arith.mulf %135, %1368 : vector<8x128xf32>
    %1370 = vector.broadcast %97 : f32 to vector<8x128xf32>
    %1371 = arith.addf %1369, %1370 : vector<8x128xf32>
    %1372 = arith.mulf %1362, %1264 : vector<8x128xf32>
    %cst_147 = arith.constant 1.000000e+00 : f32
    %1373 = vector.broadcast %cst_147 : f32 to vector<8x128xf32>
    %1374 = arith.subf %1373, %1371 : vector<8x128xf32>
    %1375 = arith.mulf %1374, %1273 : vector<8x128xf32>
    %1376 = arith.addf %1372, %1375 : vector<8x128xf32>
    %1377 = vector.broadcast %98 : f32 to vector<8x128xf32>
    %1378 = arith.mulf %135, %1377 : vector<8x128xf32>
    %1379 = vector.broadcast %99 : f32 to vector<8x128xf32>
    %1380 = arith.addf %1378, %1379 : vector<8x128xf32>
    %1381 = arith.mulf %1371, %1273 : vector<8x128xf32>
    %cst_148 = arith.constant 1.000000e+00 : f32
    %1382 = vector.broadcast %cst_148 : f32 to vector<8x128xf32>
    %1383 = arith.subf %1382, %1380 : vector<8x128xf32>
    %1384 = arith.mulf %1383, %1282 : vector<8x128xf32>
    %1385 = arith.addf %1381, %1384 : vector<8x128xf32>
    %1386 = vector.broadcast %100 : f32 to vector<8x128xf32>
    %1387 = arith.mulf %135, %1386 : vector<8x128xf32>
    %1388 = vector.broadcast %101 : f32 to vector<8x128xf32>
    %1389 = arith.addf %1387, %1388 : vector<8x128xf32>
    %1390 = arith.mulf %1380, %1282 : vector<8x128xf32>
    %cst_149 = arith.constant 1.000000e+00 : f32
    %1391 = vector.broadcast %cst_149 : f32 to vector<8x128xf32>
    %1392 = arith.subf %1391, %1389 : vector<8x128xf32>
    %1393 = arith.mulf %1392, %1291 : vector<8x128xf32>
    %1394 = arith.addf %1390, %1393 : vector<8x128xf32>
    %1395 = vector.broadcast %102 : f32 to vector<8x128xf32>
    %1396 = arith.mulf %135, %1395 : vector<8x128xf32>
    %1397 = vector.broadcast %103 : f32 to vector<8x128xf32>
    %1398 = arith.addf %1396, %1397 : vector<8x128xf32>
    %1399 = arith.mulf %1389, %1291 : vector<8x128xf32>
    %cst_150 = arith.constant 1.000000e+00 : f32
    %1400 = vector.broadcast %cst_150 : f32 to vector<8x128xf32>
    %1401 = arith.subf %1400, %1398 : vector<8x128xf32>
    %1402 = arith.mulf %1401, %1300 : vector<8x128xf32>
    %1403 = arith.addf %1399, %1402 : vector<8x128xf32>
    %1404 = vector.broadcast %104 : f32 to vector<8x128xf32>
    %1405 = arith.mulf %135, %1404 : vector<8x128xf32>
    %1406 = vector.broadcast %105 : f32 to vector<8x128xf32>
    %1407 = arith.addf %1405, %1406 : vector<8x128xf32>
    %1408 = arith.mulf %1398, %1300 : vector<8x128xf32>
    %cst_151 = arith.constant 1.000000e+00 : f32
    %1409 = vector.broadcast %cst_151 : f32 to vector<8x128xf32>
    %1410 = arith.subf %1409, %1407 : vector<8x128xf32>
    %1411 = arith.mulf %1410, %1309 : vector<8x128xf32>
    %1412 = arith.addf %1408, %1411 : vector<8x128xf32>
    %1413 = vector.broadcast %106 : f32 to vector<8x128xf32>
    %1414 = arith.mulf %135, %1413 : vector<8x128xf32>
    %1415 = vector.broadcast %107 : f32 to vector<8x128xf32>
    %1416 = arith.addf %1414, %1415 : vector<8x128xf32>
    %1417 = arith.mulf %1407, %1309 : vector<8x128xf32>
    %cst_152 = arith.constant 1.000000e+00 : f32
    %1418 = vector.broadcast %cst_152 : f32 to vector<8x128xf32>
    %1419 = arith.subf %1418, %1416 : vector<8x128xf32>
    %1420 = arith.mulf %1419, %1318 : vector<8x128xf32>
    %1421 = arith.addf %1417, %1420 : vector<8x128xf32>
    %1422 = vector.broadcast %108 : f32 to vector<8x128xf32>
    %1423 = arith.mulf %135, %1422 : vector<8x128xf32>
    %1424 = vector.broadcast %109 : f32 to vector<8x128xf32>
    %1425 = arith.addf %1423, %1424 : vector<8x128xf32>
    %1426 = arith.mulf %1416, %1318 : vector<8x128xf32>
    %cst_153 = arith.constant 1.000000e+00 : f32
    %1427 = vector.broadcast %cst_153 : f32 to vector<8x128xf32>
    %1428 = arith.subf %1427, %1425 : vector<8x128xf32>
    %1429 = arith.mulf %1428, %1327 : vector<8x128xf32>
    %1430 = arith.addf %1426, %1429 : vector<8x128xf32>
    %1431 = vector.broadcast %110 : f32 to vector<8x128xf32>
    %1432 = arith.mulf %135, %1431 : vector<8x128xf32>
    %1433 = vector.broadcast %111 : f32 to vector<8x128xf32>
    %1434 = arith.addf %1432, %1433 : vector<8x128xf32>
    %1435 = vector.broadcast %112 : f32 to vector<8x128xf32>
    %1436 = arith.mulf %135, %1435 : vector<8x128xf32>
    %1437 = vector.broadcast %113 : f32 to vector<8x128xf32>
    %1438 = arith.addf %1436, %1437 : vector<8x128xf32>
    %1439 = arith.mulf %1434, %1340 : vector<8x128xf32>
    %cst_154 = arith.constant 1.000000e+00 : f32
    %1440 = vector.broadcast %cst_154 : f32 to vector<8x128xf32>
    %1441 = arith.subf %1440, %1438 : vector<8x128xf32>
    %1442 = arith.mulf %1441, %1349 : vector<8x128xf32>
    %1443 = arith.addf %1439, %1442 : vector<8x128xf32>
    %1444 = vector.broadcast %114 : f32 to vector<8x128xf32>
    %1445 = arith.mulf %135, %1444 : vector<8x128xf32>
    %1446 = vector.broadcast %115 : f32 to vector<8x128xf32>
    %1447 = arith.addf %1445, %1446 : vector<8x128xf32>
    %1448 = arith.mulf %1438, %1349 : vector<8x128xf32>
    %cst_155 = arith.constant 1.000000e+00 : f32
    %1449 = vector.broadcast %cst_155 : f32 to vector<8x128xf32>
    %1450 = arith.subf %1449, %1447 : vector<8x128xf32>
    %1451 = arith.mulf %1450, %1358 : vector<8x128xf32>
    %1452 = arith.addf %1448, %1451 : vector<8x128xf32>
    %1453 = vector.broadcast %116 : f32 to vector<8x128xf32>
    %1454 = arith.mulf %135, %1453 : vector<8x128xf32>
    %1455 = vector.broadcast %117 : f32 to vector<8x128xf32>
    %1456 = arith.addf %1454, %1455 : vector<8x128xf32>
    %1457 = arith.mulf %1447, %1358 : vector<8x128xf32>
    %cst_156 = arith.constant 1.000000e+00 : f32
    %1458 = vector.broadcast %cst_156 : f32 to vector<8x128xf32>
    %1459 = arith.subf %1458, %1456 : vector<8x128xf32>
    %1460 = arith.mulf %1459, %1367 : vector<8x128xf32>
    %1461 = arith.addf %1457, %1460 : vector<8x128xf32>
    %1462 = vector.broadcast %118 : f32 to vector<8x128xf32>
    %1463 = arith.mulf %135, %1462 : vector<8x128xf32>
    %1464 = vector.broadcast %119 : f32 to vector<8x128xf32>
    %1465 = arith.addf %1463, %1464 : vector<8x128xf32>
    %1466 = arith.mulf %1456, %1367 : vector<8x128xf32>
    %cst_157 = arith.constant 1.000000e+00 : f32
    %1467 = vector.broadcast %cst_157 : f32 to vector<8x128xf32>
    %1468 = arith.subf %1467, %1465 : vector<8x128xf32>
    %1469 = arith.mulf %1468, %1376 : vector<8x128xf32>
    %1470 = arith.addf %1466, %1469 : vector<8x128xf32>
    %1471 = vector.broadcast %120 : f32 to vector<8x128xf32>
    %1472 = arith.mulf %135, %1471 : vector<8x128xf32>
    %1473 = vector.broadcast %121 : f32 to vector<8x128xf32>
    %1474 = arith.addf %1472, %1473 : vector<8x128xf32>
    %1475 = arith.mulf %1465, %1376 : vector<8x128xf32>
    %cst_158 = arith.constant 1.000000e+00 : f32
    %1476 = vector.broadcast %cst_158 : f32 to vector<8x128xf32>
    %1477 = arith.subf %1476, %1474 : vector<8x128xf32>
    %1478 = arith.mulf %1477, %1385 : vector<8x128xf32>
    %1479 = arith.addf %1475, %1478 : vector<8x128xf32>
    %1480 = vector.broadcast %122 : f32 to vector<8x128xf32>
    %1481 = arith.mulf %135, %1480 : vector<8x128xf32>
    %1482 = vector.broadcast %123 : f32 to vector<8x128xf32>
    %1483 = arith.addf %1481, %1482 : vector<8x128xf32>
    %1484 = arith.mulf %1474, %1385 : vector<8x128xf32>
    %cst_159 = arith.constant 1.000000e+00 : f32
    %1485 = vector.broadcast %cst_159 : f32 to vector<8x128xf32>
    %1486 = arith.subf %1485, %1483 : vector<8x128xf32>
    %1487 = arith.mulf %1486, %1394 : vector<8x128xf32>
    %1488 = arith.addf %1484, %1487 : vector<8x128xf32>
    %1489 = vector.broadcast %124 : f32 to vector<8x128xf32>
    %1490 = arith.mulf %135, %1489 : vector<8x128xf32>
    %1491 = vector.broadcast %125 : f32 to vector<8x128xf32>
    %1492 = arith.addf %1490, %1491 : vector<8x128xf32>
    %1493 = arith.mulf %1483, %1394 : vector<8x128xf32>
    %cst_160 = arith.constant 1.000000e+00 : f32
    %1494 = vector.broadcast %cst_160 : f32 to vector<8x128xf32>
    %1495 = arith.subf %1494, %1492 : vector<8x128xf32>
    %1496 = arith.mulf %1495, %1403 : vector<8x128xf32>
    %1497 = arith.addf %1493, %1496 : vector<8x128xf32>
    %1498 = vector.broadcast %126 : f32 to vector<8x128xf32>
    %1499 = arith.mulf %135, %1498 : vector<8x128xf32>
    %1500 = vector.broadcast %127 : f32 to vector<8x128xf32>
    %1501 = arith.addf %1499, %1500 : vector<8x128xf32>
    %1502 = arith.mulf %1492, %1403 : vector<8x128xf32>
    %cst_161 = arith.constant 1.000000e+00 : f32
    %1503 = vector.broadcast %cst_161 : f32 to vector<8x128xf32>
    %1504 = arith.subf %1503, %1501 : vector<8x128xf32>
    %1505 = arith.mulf %1504, %1412 : vector<8x128xf32>
    %1506 = arith.addf %1502, %1505 : vector<8x128xf32>
    %1507 = vector.broadcast %128 : f32 to vector<8x128xf32>
    %1508 = arith.mulf %135, %1507 : vector<8x128xf32>
    %1509 = vector.broadcast %129 : f32 to vector<8x128xf32>
    %1510 = arith.addf %1508, %1509 : vector<8x128xf32>
    %1511 = arith.mulf %1501, %1412 : vector<8x128xf32>
    %cst_162 = arith.constant 1.000000e+00 : f32
    %1512 = vector.broadcast %cst_162 : f32 to vector<8x128xf32>
    %1513 = arith.subf %1512, %1510 : vector<8x128xf32>
    %1514 = arith.mulf %1513, %1421 : vector<8x128xf32>
    %1515 = arith.addf %1511, %1514 : vector<8x128xf32>
    %1516 = vector.broadcast %130 : f32 to vector<8x128xf32>
    %1517 = arith.mulf %135, %1516 : vector<8x128xf32>
    %1518 = vector.broadcast %131 : f32 to vector<8x128xf32>
    %1519 = arith.addf %1517, %1518 : vector<8x128xf32>
    %1520 = arith.mulf %1510, %1421 : vector<8x128xf32>
    %cst_163 = arith.constant 1.000000e+00 : f32
    %1521 = vector.broadcast %cst_163 : f32 to vector<8x128xf32>
    %1522 = arith.subf %1521, %1519 : vector<8x128xf32>
    %1523 = arith.mulf %1522, %1430 : vector<8x128xf32>
    %1524 = arith.addf %1520, %1523 : vector<8x128xf32>
    %cst_164 = arith.constant 0.000000e+00 : f32
    %1525 = vector.broadcast %cst_164 : f32 to vector<8x128xf32>
    %1526 = arith.subf %1525, %135 : vector<8x128xf32>
    %1527 = math.exp %1526 : vector<8x128xf32>
    %cst_165 = arith.constant 1.000000e+00 : f32
    %1528 = vector.broadcast %cst_165 : f32 to vector<8x128xf32>
    %1529 = arith.addf %1528, %1527 : vector<8x128xf32>
    %cst_166 = arith.constant 1.000000e+00 : f32
    %1530 = vector.broadcast %cst_166 : f32 to vector<8x128xf32>
    %1531 = arith.divf %1530, %1529 : vector<8x128xf32>
    %1532 = arith.mulf %135, %1531 : vector<8x128xf32>
    %c165 = arith.constant 165 : index
    %1533 = memref.load %arg1[%c165] : memref<264xf32, #tpu.memory_space<smem>>
    %1534 = vector.broadcast %1533 : f32 to vector<8x128xf32>
    %1535 = arith.mulf %1534, %1532 : vector<8x128xf32>
    %c166 = arith.constant 166 : index
    %1536 = memref.load %arg1[%c166] : memref<264xf32, #tpu.memory_space<smem>>
    %1537 = vector.broadcast %1536 : f32 to vector<8x128xf32>
    %1538 = arith.mulf %1537, %1443 : vector<8x128xf32>
    %1539 = arith.addf %1535, %1538 : vector<8x128xf32>
    %c167 = arith.constant 167 : index
    %1540 = memref.load %arg1[%c167] : memref<264xf32, #tpu.memory_space<smem>>
    %1541 = vector.broadcast %1540 : f32 to vector<8x128xf32>
    %1542 = arith.mulf %1541, %1452 : vector<8x128xf32>
    %1543 = arith.addf %1539, %1542 : vector<8x128xf32>
    %c168 = arith.constant 168 : index
    %1544 = memref.load %arg1[%c168] : memref<264xf32, #tpu.memory_space<smem>>
    %1545 = vector.broadcast %1544 : f32 to vector<8x128xf32>
    %1546 = arith.mulf %1545, %1461 : vector<8x128xf32>
    %1547 = arith.addf %1543, %1546 : vector<8x128xf32>
    %c169 = arith.constant 169 : index
    %1548 = memref.load %arg1[%c169] : memref<264xf32, #tpu.memory_space<smem>>
    %1549 = vector.broadcast %1548 : f32 to vector<8x128xf32>
    %1550 = arith.mulf %1549, %1470 : vector<8x128xf32>
    %1551 = arith.addf %1547, %1550 : vector<8x128xf32>
    %c170 = arith.constant 170 : index
    %1552 = memref.load %arg1[%c170] : memref<264xf32, #tpu.memory_space<smem>>
    %1553 = vector.broadcast %1552 : f32 to vector<8x128xf32>
    %1554 = arith.mulf %1553, %1479 : vector<8x128xf32>
    %1555 = arith.addf %1551, %1554 : vector<8x128xf32>
    %c171 = arith.constant 171 : index
    %1556 = memref.load %arg1[%c171] : memref<264xf32, #tpu.memory_space<smem>>
    %1557 = vector.broadcast %1556 : f32 to vector<8x128xf32>
    %1558 = arith.mulf %1557, %1488 : vector<8x128xf32>
    %1559 = arith.addf %1555, %1558 : vector<8x128xf32>
    %c172 = arith.constant 172 : index
    %1560 = memref.load %arg1[%c172] : memref<264xf32, #tpu.memory_space<smem>>
    %1561 = vector.broadcast %1560 : f32 to vector<8x128xf32>
    %1562 = arith.mulf %1561, %1497 : vector<8x128xf32>
    %1563 = arith.addf %1559, %1562 : vector<8x128xf32>
    %c173 = arith.constant 173 : index
    %1564 = memref.load %arg1[%c173] : memref<264xf32, #tpu.memory_space<smem>>
    %1565 = vector.broadcast %1564 : f32 to vector<8x128xf32>
    %1566 = arith.mulf %1565, %1506 : vector<8x128xf32>
    %1567 = arith.addf %1563, %1566 : vector<8x128xf32>
    %c174 = arith.constant 174 : index
    %1568 = memref.load %arg1[%c174] : memref<264xf32, #tpu.memory_space<smem>>
    %1569 = vector.broadcast %1568 : f32 to vector<8x128xf32>
    %1570 = arith.mulf %1569, %1515 : vector<8x128xf32>
    %1571 = arith.addf %1567, %1570 : vector<8x128xf32>
    %c175 = arith.constant 175 : index
    %1572 = memref.load %arg1[%c175] : memref<264xf32, #tpu.memory_space<smem>>
    %1573 = vector.broadcast %1572 : f32 to vector<8x128xf32>
    %1574 = arith.mulf %1573, %1524 : vector<8x128xf32>
    %1575 = arith.addf %1571, %1574 : vector<8x128xf32>
    %1576 = arith.addf %813, %1575 : vector<8x128xf32>
    %c176 = arith.constant 176 : index
    %1577 = memref.load %arg1[%c176] : memref<264xf32, #tpu.memory_space<smem>>
    %1578 = vector.broadcast %1577 : f32 to vector<8x128xf32>
    %1579 = arith.mulf %1578, %1532 : vector<8x128xf32>
    %c177 = arith.constant 177 : index
    %1580 = memref.load %arg1[%c177] : memref<264xf32, #tpu.memory_space<smem>>
    %1581 = vector.broadcast %1580 : f32 to vector<8x128xf32>
    %1582 = arith.mulf %1581, %1443 : vector<8x128xf32>
    %1583 = arith.addf %1579, %1582 : vector<8x128xf32>
    %c178 = arith.constant 178 : index
    %1584 = memref.load %arg1[%c178] : memref<264xf32, #tpu.memory_space<smem>>
    %1585 = vector.broadcast %1584 : f32 to vector<8x128xf32>
    %1586 = arith.mulf %1585, %1452 : vector<8x128xf32>
    %1587 = arith.addf %1583, %1586 : vector<8x128xf32>
    %c179 = arith.constant 179 : index
    %1588 = memref.load %arg1[%c179] : memref<264xf32, #tpu.memory_space<smem>>
    %1589 = vector.broadcast %1588 : f32 to vector<8x128xf32>
    %1590 = arith.mulf %1589, %1461 : vector<8x128xf32>
    %1591 = arith.addf %1587, %1590 : vector<8x128xf32>
    %c180 = arith.constant 180 : index
    %1592 = memref.load %arg1[%c180] : memref<264xf32, #tpu.memory_space<smem>>
    %1593 = vector.broadcast %1592 : f32 to vector<8x128xf32>
    %1594 = arith.mulf %1593, %1470 : vector<8x128xf32>
    %1595 = arith.addf %1591, %1594 : vector<8x128xf32>
    %c181 = arith.constant 181 : index
    %1596 = memref.load %arg1[%c181] : memref<264xf32, #tpu.memory_space<smem>>
    %1597 = vector.broadcast %1596 : f32 to vector<8x128xf32>
    %1598 = arith.mulf %1597, %1479 : vector<8x128xf32>
    %1599 = arith.addf %1595, %1598 : vector<8x128xf32>
    %c182 = arith.constant 182 : index
    %1600 = memref.load %arg1[%c182] : memref<264xf32, #tpu.memory_space<smem>>
    %1601 = vector.broadcast %1600 : f32 to vector<8x128xf32>
    %1602 = arith.mulf %1601, %1488 : vector<8x128xf32>
    %1603 = arith.addf %1599, %1602 : vector<8x128xf32>
    %c183 = arith.constant 183 : index
    %1604 = memref.load %arg1[%c183] : memref<264xf32, #tpu.memory_space<smem>>
    %1605 = vector.broadcast %1604 : f32 to vector<8x128xf32>
    %1606 = arith.mulf %1605, %1497 : vector<8x128xf32>
    %1607 = arith.addf %1603, %1606 : vector<8x128xf32>
    %c184 = arith.constant 184 : index
    %1608 = memref.load %arg1[%c184] : memref<264xf32, #tpu.memory_space<smem>>
    %1609 = vector.broadcast %1608 : f32 to vector<8x128xf32>
    %1610 = arith.mulf %1609, %1506 : vector<8x128xf32>
    %1611 = arith.addf %1607, %1610 : vector<8x128xf32>
    %c185 = arith.constant 185 : index
    %1612 = memref.load %arg1[%c185] : memref<264xf32, #tpu.memory_space<smem>>
    %1613 = vector.broadcast %1612 : f32 to vector<8x128xf32>
    %1614 = arith.mulf %1613, %1515 : vector<8x128xf32>
    %1615 = arith.addf %1611, %1614 : vector<8x128xf32>
    %c186 = arith.constant 186 : index
    %1616 = memref.load %arg1[%c186] : memref<264xf32, #tpu.memory_space<smem>>
    %1617 = vector.broadcast %1616 : f32 to vector<8x128xf32>
    %1618 = arith.mulf %1617, %1524 : vector<8x128xf32>
    %1619 = arith.addf %1615, %1618 : vector<8x128xf32>
    %1620 = arith.addf %856, %1619 : vector<8x128xf32>
    %c187 = arith.constant 187 : index
    %1621 = memref.load %arg1[%c187] : memref<264xf32, #tpu.memory_space<smem>>
    %1622 = vector.broadcast %1621 : f32 to vector<8x128xf32>
    %1623 = arith.mulf %1622, %1532 : vector<8x128xf32>
    %c188 = arith.constant 188 : index
    %1624 = memref.load %arg1[%c188] : memref<264xf32, #tpu.memory_space<smem>>
    %1625 = vector.broadcast %1624 : f32 to vector<8x128xf32>
    %1626 = arith.mulf %1625, %1443 : vector<8x128xf32>
    %1627 = arith.addf %1623, %1626 : vector<8x128xf32>
    %c189 = arith.constant 189 : index
    %1628 = memref.load %arg1[%c189] : memref<264xf32, #tpu.memory_space<smem>>
    %1629 = vector.broadcast %1628 : f32 to vector<8x128xf32>
    %1630 = arith.mulf %1629, %1452 : vector<8x128xf32>
    %1631 = arith.addf %1627, %1630 : vector<8x128xf32>
    %c190 = arith.constant 190 : index
    %1632 = memref.load %arg1[%c190] : memref<264xf32, #tpu.memory_space<smem>>
    %1633 = vector.broadcast %1632 : f32 to vector<8x128xf32>
    %1634 = arith.mulf %1633, %1461 : vector<8x128xf32>
    %1635 = arith.addf %1631, %1634 : vector<8x128xf32>
    %c191 = arith.constant 191 : index
    %1636 = memref.load %arg1[%c191] : memref<264xf32, #tpu.memory_space<smem>>
    %1637 = vector.broadcast %1636 : f32 to vector<8x128xf32>
    %1638 = arith.mulf %1637, %1470 : vector<8x128xf32>
    %1639 = arith.addf %1635, %1638 : vector<8x128xf32>
    %c192 = arith.constant 192 : index
    %1640 = memref.load %arg1[%c192] : memref<264xf32, #tpu.memory_space<smem>>
    %1641 = vector.broadcast %1640 : f32 to vector<8x128xf32>
    %1642 = arith.mulf %1641, %1479 : vector<8x128xf32>
    %1643 = arith.addf %1639, %1642 : vector<8x128xf32>
    %c193 = arith.constant 193 : index
    %1644 = memref.load %arg1[%c193] : memref<264xf32, #tpu.memory_space<smem>>
    %1645 = vector.broadcast %1644 : f32 to vector<8x128xf32>
    %1646 = arith.mulf %1645, %1488 : vector<8x128xf32>
    %1647 = arith.addf %1643, %1646 : vector<8x128xf32>
    %c194 = arith.constant 194 : index
    %1648 = memref.load %arg1[%c194] : memref<264xf32, #tpu.memory_space<smem>>
    %1649 = vector.broadcast %1648 : f32 to vector<8x128xf32>
    %1650 = arith.mulf %1649, %1497 : vector<8x128xf32>
    %1651 = arith.addf %1647, %1650 : vector<8x128xf32>
    %c195 = arith.constant 195 : index
    %1652 = memref.load %arg1[%c195] : memref<264xf32, #tpu.memory_space<smem>>
    %1653 = vector.broadcast %1652 : f32 to vector<8x128xf32>
    %1654 = arith.mulf %1653, %1506 : vector<8x128xf32>
    %1655 = arith.addf %1651, %1654 : vector<8x128xf32>
    %c196 = arith.constant 196 : index
    %1656 = memref.load %arg1[%c196] : memref<264xf32, #tpu.memory_space<smem>>
    %1657 = vector.broadcast %1656 : f32 to vector<8x128xf32>
    %1658 = arith.mulf %1657, %1515 : vector<8x128xf32>
    %1659 = arith.addf %1655, %1658 : vector<8x128xf32>
    %c197 = arith.constant 197 : index
    %1660 = memref.load %arg1[%c197] : memref<264xf32, #tpu.memory_space<smem>>
    %1661 = vector.broadcast %1660 : f32 to vector<8x128xf32>
    %1662 = arith.mulf %1661, %1524 : vector<8x128xf32>
    %1663 = arith.addf %1659, %1662 : vector<8x128xf32>
    %1664 = arith.addf %899, %1663 : vector<8x128xf32>
    %1665 = vector.broadcast %0 : f32 to vector<8x128xf32>
    %1666 = arith.subf %137, %1665 : vector<8x128xf32>
    %1667 = vector.broadcast %1 : f32 to vector<8x128xf32>
    %1668 = arith.mulf %1666, %1667 : vector<8x128xf32>
    %1669 = math.floor %1668 : vector<8x128xf32>
    %cst_167 = arith.constant 0.000000e+00 : f32
    %1670 = vector.broadcast %cst_167 : f32 to vector<8x128xf32>
    %1671 = arith.cmpf oeq, %1669, %1670 : vector<8x128xf32>
    %1672 = arith.extui %1671 : vector<8x128xi1> to vector<8x128xi32>
    %1673 = arith.sitofp %1672 : vector<8x128xi32> to vector<8x128xf32>
    %cst_168 = arith.constant 1.000000e+00 : f32
    %1674 = vector.broadcast %cst_168 : f32 to vector<8x128xf32>
    %1675 = arith.cmpf oeq, %1669, %1674 : vector<8x128xf32>
    %1676 = arith.extui %1675 : vector<8x128xi1> to vector<8x128xi32>
    %1677 = arith.sitofp %1676 : vector<8x128xi32> to vector<8x128xf32>
    %cst_169 = arith.constant 2.000000e+00 : f32
    %1678 = vector.broadcast %cst_169 : f32 to vector<8x128xf32>
    %1679 = arith.cmpf oeq, %1669, %1678 : vector<8x128xf32>
    %1680 = arith.extui %1679 : vector<8x128xi1> to vector<8x128xi32>
    %1681 = arith.sitofp %1680 : vector<8x128xi32> to vector<8x128xf32>
    %cst_170 = arith.constant 3.000000e+00 : f32
    %1682 = vector.broadcast %cst_170 : f32 to vector<8x128xf32>
    %1683 = arith.cmpf oeq, %1669, %1682 : vector<8x128xf32>
    %1684 = arith.extui %1683 : vector<8x128xi1> to vector<8x128xi32>
    %1685 = arith.sitofp %1684 : vector<8x128xi32> to vector<8x128xf32>
    %cst_171 = arith.constant 4.000000e+00 : f32
    %1686 = vector.broadcast %cst_171 : f32 to vector<8x128xf32>
    %1687 = arith.cmpf oeq, %1669, %1686 : vector<8x128xf32>
    %1688 = arith.extui %1687 : vector<8x128xi1> to vector<8x128xi32>
    %1689 = arith.sitofp %1688 : vector<8x128xi32> to vector<8x128xf32>
    %cst_172 = arith.constant 5.000000e+00 : f32
    %1690 = vector.broadcast %cst_172 : f32 to vector<8x128xf32>
    %1691 = arith.cmpf oeq, %1669, %1690 : vector<8x128xf32>
    %1692 = arith.extui %1691 : vector<8x128xi1> to vector<8x128xi32>
    %1693 = arith.sitofp %1692 : vector<8x128xi32> to vector<8x128xf32>
    %cst_173 = arith.constant 6.000000e+00 : f32
    %1694 = vector.broadcast %cst_173 : f32 to vector<8x128xf32>
    %1695 = arith.cmpf oeq, %1669, %1694 : vector<8x128xf32>
    %1696 = arith.extui %1695 : vector<8x128xi1> to vector<8x128xi32>
    %1697 = arith.sitofp %1696 : vector<8x128xi32> to vector<8x128xf32>
    %cst_174 = arith.constant 7.000000e+00 : f32
    %1698 = vector.broadcast %cst_174 : f32 to vector<8x128xf32>
    %1699 = arith.cmpf oeq, %1669, %1698 : vector<8x128xf32>
    %1700 = arith.extui %1699 : vector<8x128xi1> to vector<8x128xi32>
    %1701 = arith.sitofp %1700 : vector<8x128xi32> to vector<8x128xf32>
    %cst_175 = arith.constant 8.000000e+00 : f32
    %1702 = vector.broadcast %cst_175 : f32 to vector<8x128xf32>
    %1703 = arith.cmpf oeq, %1669, %1702 : vector<8x128xf32>
    %1704 = arith.extui %1703 : vector<8x128xi1> to vector<8x128xi32>
    %1705 = arith.sitofp %1704 : vector<8x128xi32> to vector<8x128xf32>
    %cst_176 = arith.constant 9.000000e+00 : f32
    %1706 = vector.broadcast %cst_176 : f32 to vector<8x128xf32>
    %1707 = arith.cmpf oeq, %1669, %1706 : vector<8x128xf32>
    %1708 = arith.extui %1707 : vector<8x128xi1> to vector<8x128xi32>
    %1709 = arith.sitofp %1708 : vector<8x128xi32> to vector<8x128xf32>
    %cst_177 = arith.constant 1.000000e+01 : f32
    %1710 = vector.broadcast %cst_177 : f32 to vector<8x128xf32>
    %1711 = arith.cmpf oeq, %1669, %1710 : vector<8x128xf32>
    %1712 = arith.extui %1711 : vector<8x128xi1> to vector<8x128xi32>
    %1713 = arith.sitofp %1712 : vector<8x128xi32> to vector<8x128xf32>
    %cst_178 = arith.constant 1.100000e+01 : f32
    %1714 = vector.broadcast %cst_178 : f32 to vector<8x128xf32>
    %1715 = arith.cmpf oeq, %1669, %1714 : vector<8x128xf32>
    %1716 = arith.extui %1715 : vector<8x128xi1> to vector<8x128xi32>
    %1717 = arith.sitofp %1716 : vector<8x128xi32> to vector<8x128xf32>
    %cst_179 = arith.constant 1.200000e+01 : f32
    %1718 = vector.broadcast %cst_179 : f32 to vector<8x128xf32>
    %1719 = arith.cmpf oeq, %1669, %1718 : vector<8x128xf32>
    %1720 = arith.extui %1719 : vector<8x128xi1> to vector<8x128xi32>
    %1721 = arith.sitofp %1720 : vector<8x128xi32> to vector<8x128xf32>
    %cst_180 = arith.constant 1.300000e+01 : f32
    %1722 = vector.broadcast %cst_180 : f32 to vector<8x128xf32>
    %1723 = arith.cmpf oeq, %1669, %1722 : vector<8x128xf32>
    %1724 = arith.extui %1723 : vector<8x128xi1> to vector<8x128xi32>
    %1725 = arith.sitofp %1724 : vector<8x128xi32> to vector<8x128xf32>
    %cst_181 = arith.constant 1.400000e+01 : f32
    %1726 = vector.broadcast %cst_181 : f32 to vector<8x128xf32>
    %1727 = arith.cmpf oeq, %1669, %1726 : vector<8x128xf32>
    %1728 = arith.extui %1727 : vector<8x128xi1> to vector<8x128xi32>
    %1729 = arith.sitofp %1728 : vector<8x128xi32> to vector<8x128xf32>
    %1730 = vector.broadcast %2 : f32 to vector<8x128xf32>
    %1731 = arith.mulf %137, %1730 : vector<8x128xf32>
    %1732 = vector.broadcast %3 : f32 to vector<8x128xf32>
    %1733 = arith.addf %1731, %1732 : vector<8x128xf32>
    %1734 = vector.broadcast %4 : f32 to vector<8x128xf32>
    %1735 = arith.mulf %137, %1734 : vector<8x128xf32>
    %1736 = vector.broadcast %5 : f32 to vector<8x128xf32>
    %1737 = arith.addf %1735, %1736 : vector<8x128xf32>
    %1738 = arith.mulf %1733, %1673 : vector<8x128xf32>
    %cst_182 = arith.constant 1.000000e+00 : f32
    %1739 = vector.broadcast %cst_182 : f32 to vector<8x128xf32>
    %1740 = arith.subf %1739, %1737 : vector<8x128xf32>
    %1741 = arith.mulf %1740, %1677 : vector<8x128xf32>
    %1742 = arith.addf %1738, %1741 : vector<8x128xf32>
    %1743 = vector.broadcast %6 : f32 to vector<8x128xf32>
    %1744 = arith.mulf %137, %1743 : vector<8x128xf32>
    %1745 = vector.broadcast %7 : f32 to vector<8x128xf32>
    %1746 = arith.addf %1744, %1745 : vector<8x128xf32>
    %1747 = arith.mulf %1737, %1677 : vector<8x128xf32>
    %cst_183 = arith.constant 1.000000e+00 : f32
    %1748 = vector.broadcast %cst_183 : f32 to vector<8x128xf32>
    %1749 = arith.subf %1748, %1746 : vector<8x128xf32>
    %1750 = arith.mulf %1749, %1681 : vector<8x128xf32>
    %1751 = arith.addf %1747, %1750 : vector<8x128xf32>
    %1752 = vector.broadcast %8 : f32 to vector<8x128xf32>
    %1753 = arith.mulf %137, %1752 : vector<8x128xf32>
    %1754 = vector.broadcast %9 : f32 to vector<8x128xf32>
    %1755 = arith.addf %1753, %1754 : vector<8x128xf32>
    %1756 = arith.mulf %1746, %1681 : vector<8x128xf32>
    %cst_184 = arith.constant 1.000000e+00 : f32
    %1757 = vector.broadcast %cst_184 : f32 to vector<8x128xf32>
    %1758 = arith.subf %1757, %1755 : vector<8x128xf32>
    %1759 = arith.mulf %1758, %1685 : vector<8x128xf32>
    %1760 = arith.addf %1756, %1759 : vector<8x128xf32>
    %1761 = vector.broadcast %10 : f32 to vector<8x128xf32>
    %1762 = arith.mulf %137, %1761 : vector<8x128xf32>
    %1763 = vector.broadcast %11 : f32 to vector<8x128xf32>
    %1764 = arith.addf %1762, %1763 : vector<8x128xf32>
    %1765 = arith.mulf %1755, %1685 : vector<8x128xf32>
    %cst_185 = arith.constant 1.000000e+00 : f32
    %1766 = vector.broadcast %cst_185 : f32 to vector<8x128xf32>
    %1767 = arith.subf %1766, %1764 : vector<8x128xf32>
    %1768 = arith.mulf %1767, %1689 : vector<8x128xf32>
    %1769 = arith.addf %1765, %1768 : vector<8x128xf32>
    %1770 = vector.broadcast %12 : f32 to vector<8x128xf32>
    %1771 = arith.mulf %137, %1770 : vector<8x128xf32>
    %1772 = vector.broadcast %13 : f32 to vector<8x128xf32>
    %1773 = arith.addf %1771, %1772 : vector<8x128xf32>
    %1774 = arith.mulf %1764, %1689 : vector<8x128xf32>
    %cst_186 = arith.constant 1.000000e+00 : f32
    %1775 = vector.broadcast %cst_186 : f32 to vector<8x128xf32>
    %1776 = arith.subf %1775, %1773 : vector<8x128xf32>
    %1777 = arith.mulf %1776, %1693 : vector<8x128xf32>
    %1778 = arith.addf %1774, %1777 : vector<8x128xf32>
    %1779 = vector.broadcast %14 : f32 to vector<8x128xf32>
    %1780 = arith.mulf %137, %1779 : vector<8x128xf32>
    %1781 = vector.broadcast %15 : f32 to vector<8x128xf32>
    %1782 = arith.addf %1780, %1781 : vector<8x128xf32>
    %1783 = arith.mulf %1773, %1693 : vector<8x128xf32>
    %cst_187 = arith.constant 1.000000e+00 : f32
    %1784 = vector.broadcast %cst_187 : f32 to vector<8x128xf32>
    %1785 = arith.subf %1784, %1782 : vector<8x128xf32>
    %1786 = arith.mulf %1785, %1697 : vector<8x128xf32>
    %1787 = arith.addf %1783, %1786 : vector<8x128xf32>
    %1788 = vector.broadcast %16 : f32 to vector<8x128xf32>
    %1789 = arith.mulf %137, %1788 : vector<8x128xf32>
    %1790 = vector.broadcast %17 : f32 to vector<8x128xf32>
    %1791 = arith.addf %1789, %1790 : vector<8x128xf32>
    %1792 = arith.mulf %1782, %1697 : vector<8x128xf32>
    %cst_188 = arith.constant 1.000000e+00 : f32
    %1793 = vector.broadcast %cst_188 : f32 to vector<8x128xf32>
    %1794 = arith.subf %1793, %1791 : vector<8x128xf32>
    %1795 = arith.mulf %1794, %1701 : vector<8x128xf32>
    %1796 = arith.addf %1792, %1795 : vector<8x128xf32>
    %1797 = vector.broadcast %18 : f32 to vector<8x128xf32>
    %1798 = arith.mulf %137, %1797 : vector<8x128xf32>
    %1799 = vector.broadcast %19 : f32 to vector<8x128xf32>
    %1800 = arith.addf %1798, %1799 : vector<8x128xf32>
    %1801 = arith.mulf %1791, %1701 : vector<8x128xf32>
    %cst_189 = arith.constant 1.000000e+00 : f32
    %1802 = vector.broadcast %cst_189 : f32 to vector<8x128xf32>
    %1803 = arith.subf %1802, %1800 : vector<8x128xf32>
    %1804 = arith.mulf %1803, %1705 : vector<8x128xf32>
    %1805 = arith.addf %1801, %1804 : vector<8x128xf32>
    %1806 = vector.broadcast %20 : f32 to vector<8x128xf32>
    %1807 = arith.mulf %137, %1806 : vector<8x128xf32>
    %1808 = vector.broadcast %21 : f32 to vector<8x128xf32>
    %1809 = arith.addf %1807, %1808 : vector<8x128xf32>
    %1810 = arith.mulf %1800, %1705 : vector<8x128xf32>
    %cst_190 = arith.constant 1.000000e+00 : f32
    %1811 = vector.broadcast %cst_190 : f32 to vector<8x128xf32>
    %1812 = arith.subf %1811, %1809 : vector<8x128xf32>
    %1813 = arith.mulf %1812, %1709 : vector<8x128xf32>
    %1814 = arith.addf %1810, %1813 : vector<8x128xf32>
    %1815 = vector.broadcast %22 : f32 to vector<8x128xf32>
    %1816 = arith.mulf %137, %1815 : vector<8x128xf32>
    %1817 = vector.broadcast %23 : f32 to vector<8x128xf32>
    %1818 = arith.addf %1816, %1817 : vector<8x128xf32>
    %1819 = arith.mulf %1809, %1709 : vector<8x128xf32>
    %cst_191 = arith.constant 1.000000e+00 : f32
    %1820 = vector.broadcast %cst_191 : f32 to vector<8x128xf32>
    %1821 = arith.subf %1820, %1818 : vector<8x128xf32>
    %1822 = arith.mulf %1821, %1713 : vector<8x128xf32>
    %1823 = arith.addf %1819, %1822 : vector<8x128xf32>
    %1824 = vector.broadcast %24 : f32 to vector<8x128xf32>
    %1825 = arith.mulf %137, %1824 : vector<8x128xf32>
    %1826 = vector.broadcast %25 : f32 to vector<8x128xf32>
    %1827 = arith.addf %1825, %1826 : vector<8x128xf32>
    %1828 = arith.mulf %1818, %1713 : vector<8x128xf32>
    %cst_192 = arith.constant 1.000000e+00 : f32
    %1829 = vector.broadcast %cst_192 : f32 to vector<8x128xf32>
    %1830 = arith.subf %1829, %1827 : vector<8x128xf32>
    %1831 = arith.mulf %1830, %1717 : vector<8x128xf32>
    %1832 = arith.addf %1828, %1831 : vector<8x128xf32>
    %1833 = vector.broadcast %26 : f32 to vector<8x128xf32>
    %1834 = arith.mulf %137, %1833 : vector<8x128xf32>
    %1835 = vector.broadcast %27 : f32 to vector<8x128xf32>
    %1836 = arith.addf %1834, %1835 : vector<8x128xf32>
    %1837 = arith.mulf %1827, %1717 : vector<8x128xf32>
    %cst_193 = arith.constant 1.000000e+00 : f32
    %1838 = vector.broadcast %cst_193 : f32 to vector<8x128xf32>
    %1839 = arith.subf %1838, %1836 : vector<8x128xf32>
    %1840 = arith.mulf %1839, %1721 : vector<8x128xf32>
    %1841 = arith.addf %1837, %1840 : vector<8x128xf32>
    %1842 = vector.broadcast %28 : f32 to vector<8x128xf32>
    %1843 = arith.mulf %137, %1842 : vector<8x128xf32>
    %1844 = vector.broadcast %29 : f32 to vector<8x128xf32>
    %1845 = arith.addf %1843, %1844 : vector<8x128xf32>
    %1846 = arith.mulf %1836, %1721 : vector<8x128xf32>
    %cst_194 = arith.constant 1.000000e+00 : f32
    %1847 = vector.broadcast %cst_194 : f32 to vector<8x128xf32>
    %1848 = arith.subf %1847, %1845 : vector<8x128xf32>
    %1849 = arith.mulf %1848, %1725 : vector<8x128xf32>
    %1850 = arith.addf %1846, %1849 : vector<8x128xf32>
    %1851 = vector.broadcast %30 : f32 to vector<8x128xf32>
    %1852 = arith.mulf %137, %1851 : vector<8x128xf32>
    %1853 = vector.broadcast %31 : f32 to vector<8x128xf32>
    %1854 = arith.addf %1852, %1853 : vector<8x128xf32>
    %1855 = arith.mulf %1845, %1725 : vector<8x128xf32>
    %cst_195 = arith.constant 1.000000e+00 : f32
    %1856 = vector.broadcast %cst_195 : f32 to vector<8x128xf32>
    %1857 = arith.subf %1856, %1854 : vector<8x128xf32>
    %1858 = arith.mulf %1857, %1729 : vector<8x128xf32>
    %1859 = arith.addf %1855, %1858 : vector<8x128xf32>
    %1860 = vector.broadcast %32 : f32 to vector<8x128xf32>
    %1861 = arith.mulf %137, %1860 : vector<8x128xf32>
    %1862 = vector.broadcast %33 : f32 to vector<8x128xf32>
    %1863 = arith.addf %1861, %1862 : vector<8x128xf32>
    %1864 = vector.broadcast %34 : f32 to vector<8x128xf32>
    %1865 = arith.mulf %137, %1864 : vector<8x128xf32>
    %1866 = vector.broadcast %35 : f32 to vector<8x128xf32>
    %1867 = arith.addf %1865, %1866 : vector<8x128xf32>
    %1868 = arith.mulf %1863, %1742 : vector<8x128xf32>
    %cst_196 = arith.constant 1.000000e+00 : f32
    %1869 = vector.broadcast %cst_196 : f32 to vector<8x128xf32>
    %1870 = arith.subf %1869, %1867 : vector<8x128xf32>
    %1871 = arith.mulf %1870, %1751 : vector<8x128xf32>
    %1872 = arith.addf %1868, %1871 : vector<8x128xf32>
    %1873 = vector.broadcast %36 : f32 to vector<8x128xf32>
    %1874 = arith.mulf %137, %1873 : vector<8x128xf32>
    %1875 = vector.broadcast %37 : f32 to vector<8x128xf32>
    %1876 = arith.addf %1874, %1875 : vector<8x128xf32>
    %1877 = arith.mulf %1867, %1751 : vector<8x128xf32>
    %cst_197 = arith.constant 1.000000e+00 : f32
    %1878 = vector.broadcast %cst_197 : f32 to vector<8x128xf32>
    %1879 = arith.subf %1878, %1876 : vector<8x128xf32>
    %1880 = arith.mulf %1879, %1760 : vector<8x128xf32>
    %1881 = arith.addf %1877, %1880 : vector<8x128xf32>
    %1882 = vector.broadcast %38 : f32 to vector<8x128xf32>
    %1883 = arith.mulf %137, %1882 : vector<8x128xf32>
    %1884 = vector.broadcast %39 : f32 to vector<8x128xf32>
    %1885 = arith.addf %1883, %1884 : vector<8x128xf32>
    %1886 = arith.mulf %1876, %1760 : vector<8x128xf32>
    %cst_198 = arith.constant 1.000000e+00 : f32
    %1887 = vector.broadcast %cst_198 : f32 to vector<8x128xf32>
    %1888 = arith.subf %1887, %1885 : vector<8x128xf32>
    %1889 = arith.mulf %1888, %1769 : vector<8x128xf32>
    %1890 = arith.addf %1886, %1889 : vector<8x128xf32>
    %1891 = vector.broadcast %40 : f32 to vector<8x128xf32>
    %1892 = arith.mulf %137, %1891 : vector<8x128xf32>
    %1893 = vector.broadcast %41 : f32 to vector<8x128xf32>
    %1894 = arith.addf %1892, %1893 : vector<8x128xf32>
    %1895 = arith.mulf %1885, %1769 : vector<8x128xf32>
    %cst_199 = arith.constant 1.000000e+00 : f32
    %1896 = vector.broadcast %cst_199 : f32 to vector<8x128xf32>
    %1897 = arith.subf %1896, %1894 : vector<8x128xf32>
    %1898 = arith.mulf %1897, %1778 : vector<8x128xf32>
    %1899 = arith.addf %1895, %1898 : vector<8x128xf32>
    %1900 = vector.broadcast %42 : f32 to vector<8x128xf32>
    %1901 = arith.mulf %137, %1900 : vector<8x128xf32>
    %1902 = vector.broadcast %43 : f32 to vector<8x128xf32>
    %1903 = arith.addf %1901, %1902 : vector<8x128xf32>
    %1904 = arith.mulf %1894, %1778 : vector<8x128xf32>
    %cst_200 = arith.constant 1.000000e+00 : f32
    %1905 = vector.broadcast %cst_200 : f32 to vector<8x128xf32>
    %1906 = arith.subf %1905, %1903 : vector<8x128xf32>
    %1907 = arith.mulf %1906, %1787 : vector<8x128xf32>
    %1908 = arith.addf %1904, %1907 : vector<8x128xf32>
    %1909 = vector.broadcast %44 : f32 to vector<8x128xf32>
    %1910 = arith.mulf %137, %1909 : vector<8x128xf32>
    %1911 = vector.broadcast %45 : f32 to vector<8x128xf32>
    %1912 = arith.addf %1910, %1911 : vector<8x128xf32>
    %1913 = arith.mulf %1903, %1787 : vector<8x128xf32>
    %cst_201 = arith.constant 1.000000e+00 : f32
    %1914 = vector.broadcast %cst_201 : f32 to vector<8x128xf32>
    %1915 = arith.subf %1914, %1912 : vector<8x128xf32>
    %1916 = arith.mulf %1915, %1796 : vector<8x128xf32>
    %1917 = arith.addf %1913, %1916 : vector<8x128xf32>
    %1918 = vector.broadcast %46 : f32 to vector<8x128xf32>
    %1919 = arith.mulf %137, %1918 : vector<8x128xf32>
    %1920 = vector.broadcast %47 : f32 to vector<8x128xf32>
    %1921 = arith.addf %1919, %1920 : vector<8x128xf32>
    %1922 = arith.mulf %1912, %1796 : vector<8x128xf32>
    %cst_202 = arith.constant 1.000000e+00 : f32
    %1923 = vector.broadcast %cst_202 : f32 to vector<8x128xf32>
    %1924 = arith.subf %1923, %1921 : vector<8x128xf32>
    %1925 = arith.mulf %1924, %1805 : vector<8x128xf32>
    %1926 = arith.addf %1922, %1925 : vector<8x128xf32>
    %1927 = vector.broadcast %48 : f32 to vector<8x128xf32>
    %1928 = arith.mulf %137, %1927 : vector<8x128xf32>
    %1929 = vector.broadcast %49 : f32 to vector<8x128xf32>
    %1930 = arith.addf %1928, %1929 : vector<8x128xf32>
    %1931 = arith.mulf %1921, %1805 : vector<8x128xf32>
    %cst_203 = arith.constant 1.000000e+00 : f32
    %1932 = vector.broadcast %cst_203 : f32 to vector<8x128xf32>
    %1933 = arith.subf %1932, %1930 : vector<8x128xf32>
    %1934 = arith.mulf %1933, %1814 : vector<8x128xf32>
    %1935 = arith.addf %1931, %1934 : vector<8x128xf32>
    %1936 = vector.broadcast %50 : f32 to vector<8x128xf32>
    %1937 = arith.mulf %137, %1936 : vector<8x128xf32>
    %1938 = vector.broadcast %51 : f32 to vector<8x128xf32>
    %1939 = arith.addf %1937, %1938 : vector<8x128xf32>
    %1940 = arith.mulf %1930, %1814 : vector<8x128xf32>
    %cst_204 = arith.constant 1.000000e+00 : f32
    %1941 = vector.broadcast %cst_204 : f32 to vector<8x128xf32>
    %1942 = arith.subf %1941, %1939 : vector<8x128xf32>
    %1943 = arith.mulf %1942, %1823 : vector<8x128xf32>
    %1944 = arith.addf %1940, %1943 : vector<8x128xf32>
    %1945 = vector.broadcast %52 : f32 to vector<8x128xf32>
    %1946 = arith.mulf %137, %1945 : vector<8x128xf32>
    %1947 = vector.broadcast %53 : f32 to vector<8x128xf32>
    %1948 = arith.addf %1946, %1947 : vector<8x128xf32>
    %1949 = arith.mulf %1939, %1823 : vector<8x128xf32>
    %cst_205 = arith.constant 1.000000e+00 : f32
    %1950 = vector.broadcast %cst_205 : f32 to vector<8x128xf32>
    %1951 = arith.subf %1950, %1948 : vector<8x128xf32>
    %1952 = arith.mulf %1951, %1832 : vector<8x128xf32>
    %1953 = arith.addf %1949, %1952 : vector<8x128xf32>
    %1954 = vector.broadcast %54 : f32 to vector<8x128xf32>
    %1955 = arith.mulf %137, %1954 : vector<8x128xf32>
    %1956 = vector.broadcast %55 : f32 to vector<8x128xf32>
    %1957 = arith.addf %1955, %1956 : vector<8x128xf32>
    %1958 = arith.mulf %1948, %1832 : vector<8x128xf32>
    %cst_206 = arith.constant 1.000000e+00 : f32
    %1959 = vector.broadcast %cst_206 : f32 to vector<8x128xf32>
    %1960 = arith.subf %1959, %1957 : vector<8x128xf32>
    %1961 = arith.mulf %1960, %1841 : vector<8x128xf32>
    %1962 = arith.addf %1958, %1961 : vector<8x128xf32>
    %1963 = vector.broadcast %56 : f32 to vector<8x128xf32>
    %1964 = arith.mulf %137, %1963 : vector<8x128xf32>
    %1965 = vector.broadcast %57 : f32 to vector<8x128xf32>
    %1966 = arith.addf %1964, %1965 : vector<8x128xf32>
    %1967 = arith.mulf %1957, %1841 : vector<8x128xf32>
    %cst_207 = arith.constant 1.000000e+00 : f32
    %1968 = vector.broadcast %cst_207 : f32 to vector<8x128xf32>
    %1969 = arith.subf %1968, %1966 : vector<8x128xf32>
    %1970 = arith.mulf %1969, %1850 : vector<8x128xf32>
    %1971 = arith.addf %1967, %1970 : vector<8x128xf32>
    %1972 = vector.broadcast %58 : f32 to vector<8x128xf32>
    %1973 = arith.mulf %137, %1972 : vector<8x128xf32>
    %1974 = vector.broadcast %59 : f32 to vector<8x128xf32>
    %1975 = arith.addf %1973, %1974 : vector<8x128xf32>
    %1976 = arith.mulf %1966, %1850 : vector<8x128xf32>
    %cst_208 = arith.constant 1.000000e+00 : f32
    %1977 = vector.broadcast %cst_208 : f32 to vector<8x128xf32>
    %1978 = arith.subf %1977, %1975 : vector<8x128xf32>
    %1979 = arith.mulf %1978, %1859 : vector<8x128xf32>
    %1980 = arith.addf %1976, %1979 : vector<8x128xf32>
    %1981 = vector.broadcast %60 : f32 to vector<8x128xf32>
    %1982 = arith.mulf %137, %1981 : vector<8x128xf32>
    %1983 = vector.broadcast %61 : f32 to vector<8x128xf32>
    %1984 = arith.addf %1982, %1983 : vector<8x128xf32>
    %1985 = vector.broadcast %62 : f32 to vector<8x128xf32>
    %1986 = arith.mulf %137, %1985 : vector<8x128xf32>
    %1987 = vector.broadcast %63 : f32 to vector<8x128xf32>
    %1988 = arith.addf %1986, %1987 : vector<8x128xf32>
    %1989 = arith.mulf %1984, %1872 : vector<8x128xf32>
    %cst_209 = arith.constant 1.000000e+00 : f32
    %1990 = vector.broadcast %cst_209 : f32 to vector<8x128xf32>
    %1991 = arith.subf %1990, %1988 : vector<8x128xf32>
    %1992 = arith.mulf %1991, %1881 : vector<8x128xf32>
    %1993 = arith.addf %1989, %1992 : vector<8x128xf32>
    %1994 = vector.broadcast %64 : f32 to vector<8x128xf32>
    %1995 = arith.mulf %137, %1994 : vector<8x128xf32>
    %1996 = vector.broadcast %65 : f32 to vector<8x128xf32>
    %1997 = arith.addf %1995, %1996 : vector<8x128xf32>
    %1998 = arith.mulf %1988, %1881 : vector<8x128xf32>
    %cst_210 = arith.constant 1.000000e+00 : f32
    %1999 = vector.broadcast %cst_210 : f32 to vector<8x128xf32>
    %2000 = arith.subf %1999, %1997 : vector<8x128xf32>
    %2001 = arith.mulf %2000, %1890 : vector<8x128xf32>
    %2002 = arith.addf %1998, %2001 : vector<8x128xf32>
    %2003 = vector.broadcast %66 : f32 to vector<8x128xf32>
    %2004 = arith.mulf %137, %2003 : vector<8x128xf32>
    %2005 = vector.broadcast %67 : f32 to vector<8x128xf32>
    %2006 = arith.addf %2004, %2005 : vector<8x128xf32>
    %2007 = arith.mulf %1997, %1890 : vector<8x128xf32>
    %cst_211 = arith.constant 1.000000e+00 : f32
    %2008 = vector.broadcast %cst_211 : f32 to vector<8x128xf32>
    %2009 = arith.subf %2008, %2006 : vector<8x128xf32>
    %2010 = arith.mulf %2009, %1899 : vector<8x128xf32>
    %2011 = arith.addf %2007, %2010 : vector<8x128xf32>
    %2012 = vector.broadcast %68 : f32 to vector<8x128xf32>
    %2013 = arith.mulf %137, %2012 : vector<8x128xf32>
    %2014 = vector.broadcast %69 : f32 to vector<8x128xf32>
    %2015 = arith.addf %2013, %2014 : vector<8x128xf32>
    %2016 = arith.mulf %2006, %1899 : vector<8x128xf32>
    %cst_212 = arith.constant 1.000000e+00 : f32
    %2017 = vector.broadcast %cst_212 : f32 to vector<8x128xf32>
    %2018 = arith.subf %2017, %2015 : vector<8x128xf32>
    %2019 = arith.mulf %2018, %1908 : vector<8x128xf32>
    %2020 = arith.addf %2016, %2019 : vector<8x128xf32>
    %2021 = vector.broadcast %70 : f32 to vector<8x128xf32>
    %2022 = arith.mulf %137, %2021 : vector<8x128xf32>
    %2023 = vector.broadcast %71 : f32 to vector<8x128xf32>
    %2024 = arith.addf %2022, %2023 : vector<8x128xf32>
    %2025 = arith.mulf %2015, %1908 : vector<8x128xf32>
    %cst_213 = arith.constant 1.000000e+00 : f32
    %2026 = vector.broadcast %cst_213 : f32 to vector<8x128xf32>
    %2027 = arith.subf %2026, %2024 : vector<8x128xf32>
    %2028 = arith.mulf %2027, %1917 : vector<8x128xf32>
    %2029 = arith.addf %2025, %2028 : vector<8x128xf32>
    %2030 = vector.broadcast %72 : f32 to vector<8x128xf32>
    %2031 = arith.mulf %137, %2030 : vector<8x128xf32>
    %2032 = vector.broadcast %73 : f32 to vector<8x128xf32>
    %2033 = arith.addf %2031, %2032 : vector<8x128xf32>
    %2034 = arith.mulf %2024, %1917 : vector<8x128xf32>
    %cst_214 = arith.constant 1.000000e+00 : f32
    %2035 = vector.broadcast %cst_214 : f32 to vector<8x128xf32>
    %2036 = arith.subf %2035, %2033 : vector<8x128xf32>
    %2037 = arith.mulf %2036, %1926 : vector<8x128xf32>
    %2038 = arith.addf %2034, %2037 : vector<8x128xf32>
    %2039 = vector.broadcast %74 : f32 to vector<8x128xf32>
    %2040 = arith.mulf %137, %2039 : vector<8x128xf32>
    %2041 = vector.broadcast %75 : f32 to vector<8x128xf32>
    %2042 = arith.addf %2040, %2041 : vector<8x128xf32>
    %2043 = arith.mulf %2033, %1926 : vector<8x128xf32>
    %cst_215 = arith.constant 1.000000e+00 : f32
    %2044 = vector.broadcast %cst_215 : f32 to vector<8x128xf32>
    %2045 = arith.subf %2044, %2042 : vector<8x128xf32>
    %2046 = arith.mulf %2045, %1935 : vector<8x128xf32>
    %2047 = arith.addf %2043, %2046 : vector<8x128xf32>
    %2048 = vector.broadcast %76 : f32 to vector<8x128xf32>
    %2049 = arith.mulf %137, %2048 : vector<8x128xf32>
    %2050 = vector.broadcast %77 : f32 to vector<8x128xf32>
    %2051 = arith.addf %2049, %2050 : vector<8x128xf32>
    %2052 = arith.mulf %2042, %1935 : vector<8x128xf32>
    %cst_216 = arith.constant 1.000000e+00 : f32
    %2053 = vector.broadcast %cst_216 : f32 to vector<8x128xf32>
    %2054 = arith.subf %2053, %2051 : vector<8x128xf32>
    %2055 = arith.mulf %2054, %1944 : vector<8x128xf32>
    %2056 = arith.addf %2052, %2055 : vector<8x128xf32>
    %2057 = vector.broadcast %78 : f32 to vector<8x128xf32>
    %2058 = arith.mulf %137, %2057 : vector<8x128xf32>
    %2059 = vector.broadcast %79 : f32 to vector<8x128xf32>
    %2060 = arith.addf %2058, %2059 : vector<8x128xf32>
    %2061 = arith.mulf %2051, %1944 : vector<8x128xf32>
    %cst_217 = arith.constant 1.000000e+00 : f32
    %2062 = vector.broadcast %cst_217 : f32 to vector<8x128xf32>
    %2063 = arith.subf %2062, %2060 : vector<8x128xf32>
    %2064 = arith.mulf %2063, %1953 : vector<8x128xf32>
    %2065 = arith.addf %2061, %2064 : vector<8x128xf32>
    %2066 = vector.broadcast %80 : f32 to vector<8x128xf32>
    %2067 = arith.mulf %137, %2066 : vector<8x128xf32>
    %2068 = vector.broadcast %81 : f32 to vector<8x128xf32>
    %2069 = arith.addf %2067, %2068 : vector<8x128xf32>
    %2070 = arith.mulf %2060, %1953 : vector<8x128xf32>
    %cst_218 = arith.constant 1.000000e+00 : f32
    %2071 = vector.broadcast %cst_218 : f32 to vector<8x128xf32>
    %2072 = arith.subf %2071, %2069 : vector<8x128xf32>
    %2073 = arith.mulf %2072, %1962 : vector<8x128xf32>
    %2074 = arith.addf %2070, %2073 : vector<8x128xf32>
    %2075 = vector.broadcast %82 : f32 to vector<8x128xf32>
    %2076 = arith.mulf %137, %2075 : vector<8x128xf32>
    %2077 = vector.broadcast %83 : f32 to vector<8x128xf32>
    %2078 = arith.addf %2076, %2077 : vector<8x128xf32>
    %2079 = arith.mulf %2069, %1962 : vector<8x128xf32>
    %cst_219 = arith.constant 1.000000e+00 : f32
    %2080 = vector.broadcast %cst_219 : f32 to vector<8x128xf32>
    %2081 = arith.subf %2080, %2078 : vector<8x128xf32>
    %2082 = arith.mulf %2081, %1971 : vector<8x128xf32>
    %2083 = arith.addf %2079, %2082 : vector<8x128xf32>
    %2084 = vector.broadcast %84 : f32 to vector<8x128xf32>
    %2085 = arith.mulf %137, %2084 : vector<8x128xf32>
    %2086 = vector.broadcast %85 : f32 to vector<8x128xf32>
    %2087 = arith.addf %2085, %2086 : vector<8x128xf32>
    %2088 = arith.mulf %2078, %1971 : vector<8x128xf32>
    %cst_220 = arith.constant 1.000000e+00 : f32
    %2089 = vector.broadcast %cst_220 : f32 to vector<8x128xf32>
    %2090 = arith.subf %2089, %2087 : vector<8x128xf32>
    %2091 = arith.mulf %2090, %1980 : vector<8x128xf32>
    %2092 = arith.addf %2088, %2091 : vector<8x128xf32>
    %2093 = vector.broadcast %86 : f32 to vector<8x128xf32>
    %2094 = arith.mulf %137, %2093 : vector<8x128xf32>
    %2095 = vector.broadcast %87 : f32 to vector<8x128xf32>
    %2096 = arith.addf %2094, %2095 : vector<8x128xf32>
    %2097 = vector.broadcast %88 : f32 to vector<8x128xf32>
    %2098 = arith.mulf %137, %2097 : vector<8x128xf32>
    %2099 = vector.broadcast %89 : f32 to vector<8x128xf32>
    %2100 = arith.addf %2098, %2099 : vector<8x128xf32>
    %2101 = arith.mulf %2096, %1993 : vector<8x128xf32>
    %cst_221 = arith.constant 1.000000e+00 : f32
    %2102 = vector.broadcast %cst_221 : f32 to vector<8x128xf32>
    %2103 = arith.subf %2102, %2100 : vector<8x128xf32>
    %2104 = arith.mulf %2103, %2002 : vector<8x128xf32>
    %2105 = arith.addf %2101, %2104 : vector<8x128xf32>
    %2106 = vector.broadcast %90 : f32 to vector<8x128xf32>
    %2107 = arith.mulf %137, %2106 : vector<8x128xf32>
    %2108 = vector.broadcast %91 : f32 to vector<8x128xf32>
    %2109 = arith.addf %2107, %2108 : vector<8x128xf32>
    %2110 = arith.mulf %2100, %2002 : vector<8x128xf32>
    %cst_222 = arith.constant 1.000000e+00 : f32
    %2111 = vector.broadcast %cst_222 : f32 to vector<8x128xf32>
    %2112 = arith.subf %2111, %2109 : vector<8x128xf32>
    %2113 = arith.mulf %2112, %2011 : vector<8x128xf32>
    %2114 = arith.addf %2110, %2113 : vector<8x128xf32>
    %2115 = vector.broadcast %92 : f32 to vector<8x128xf32>
    %2116 = arith.mulf %137, %2115 : vector<8x128xf32>
    %2117 = vector.broadcast %93 : f32 to vector<8x128xf32>
    %2118 = arith.addf %2116, %2117 : vector<8x128xf32>
    %2119 = arith.mulf %2109, %2011 : vector<8x128xf32>
    %cst_223 = arith.constant 1.000000e+00 : f32
    %2120 = vector.broadcast %cst_223 : f32 to vector<8x128xf32>
    %2121 = arith.subf %2120, %2118 : vector<8x128xf32>
    %2122 = arith.mulf %2121, %2020 : vector<8x128xf32>
    %2123 = arith.addf %2119, %2122 : vector<8x128xf32>
    %2124 = vector.broadcast %94 : f32 to vector<8x128xf32>
    %2125 = arith.mulf %137, %2124 : vector<8x128xf32>
    %2126 = vector.broadcast %95 : f32 to vector<8x128xf32>
    %2127 = arith.addf %2125, %2126 : vector<8x128xf32>
    %2128 = arith.mulf %2118, %2020 : vector<8x128xf32>
    %cst_224 = arith.constant 1.000000e+00 : f32
    %2129 = vector.broadcast %cst_224 : f32 to vector<8x128xf32>
    %2130 = arith.subf %2129, %2127 : vector<8x128xf32>
    %2131 = arith.mulf %2130, %2029 : vector<8x128xf32>
    %2132 = arith.addf %2128, %2131 : vector<8x128xf32>
    %2133 = vector.broadcast %96 : f32 to vector<8x128xf32>
    %2134 = arith.mulf %137, %2133 : vector<8x128xf32>
    %2135 = vector.broadcast %97 : f32 to vector<8x128xf32>
    %2136 = arith.addf %2134, %2135 : vector<8x128xf32>
    %2137 = arith.mulf %2127, %2029 : vector<8x128xf32>
    %cst_225 = arith.constant 1.000000e+00 : f32
    %2138 = vector.broadcast %cst_225 : f32 to vector<8x128xf32>
    %2139 = arith.subf %2138, %2136 : vector<8x128xf32>
    %2140 = arith.mulf %2139, %2038 : vector<8x128xf32>
    %2141 = arith.addf %2137, %2140 : vector<8x128xf32>
    %2142 = vector.broadcast %98 : f32 to vector<8x128xf32>
    %2143 = arith.mulf %137, %2142 : vector<8x128xf32>
    %2144 = vector.broadcast %99 : f32 to vector<8x128xf32>
    %2145 = arith.addf %2143, %2144 : vector<8x128xf32>
    %2146 = arith.mulf %2136, %2038 : vector<8x128xf32>
    %cst_226 = arith.constant 1.000000e+00 : f32
    %2147 = vector.broadcast %cst_226 : f32 to vector<8x128xf32>
    %2148 = arith.subf %2147, %2145 : vector<8x128xf32>
    %2149 = arith.mulf %2148, %2047 : vector<8x128xf32>
    %2150 = arith.addf %2146, %2149 : vector<8x128xf32>
    %2151 = vector.broadcast %100 : f32 to vector<8x128xf32>
    %2152 = arith.mulf %137, %2151 : vector<8x128xf32>
    %2153 = vector.broadcast %101 : f32 to vector<8x128xf32>
    %2154 = arith.addf %2152, %2153 : vector<8x128xf32>
    %2155 = arith.mulf %2145, %2047 : vector<8x128xf32>
    %cst_227 = arith.constant 1.000000e+00 : f32
    %2156 = vector.broadcast %cst_227 : f32 to vector<8x128xf32>
    %2157 = arith.subf %2156, %2154 : vector<8x128xf32>
    %2158 = arith.mulf %2157, %2056 : vector<8x128xf32>
    %2159 = arith.addf %2155, %2158 : vector<8x128xf32>
    %2160 = vector.broadcast %102 : f32 to vector<8x128xf32>
    %2161 = arith.mulf %137, %2160 : vector<8x128xf32>
    %2162 = vector.broadcast %103 : f32 to vector<8x128xf32>
    %2163 = arith.addf %2161, %2162 : vector<8x128xf32>
    %2164 = arith.mulf %2154, %2056 : vector<8x128xf32>
    %cst_228 = arith.constant 1.000000e+00 : f32
    %2165 = vector.broadcast %cst_228 : f32 to vector<8x128xf32>
    %2166 = arith.subf %2165, %2163 : vector<8x128xf32>
    %2167 = arith.mulf %2166, %2065 : vector<8x128xf32>
    %2168 = arith.addf %2164, %2167 : vector<8x128xf32>
    %2169 = vector.broadcast %104 : f32 to vector<8x128xf32>
    %2170 = arith.mulf %137, %2169 : vector<8x128xf32>
    %2171 = vector.broadcast %105 : f32 to vector<8x128xf32>
    %2172 = arith.addf %2170, %2171 : vector<8x128xf32>
    %2173 = arith.mulf %2163, %2065 : vector<8x128xf32>
    %cst_229 = arith.constant 1.000000e+00 : f32
    %2174 = vector.broadcast %cst_229 : f32 to vector<8x128xf32>
    %2175 = arith.subf %2174, %2172 : vector<8x128xf32>
    %2176 = arith.mulf %2175, %2074 : vector<8x128xf32>
    %2177 = arith.addf %2173, %2176 : vector<8x128xf32>
    %2178 = vector.broadcast %106 : f32 to vector<8x128xf32>
    %2179 = arith.mulf %137, %2178 : vector<8x128xf32>
    %2180 = vector.broadcast %107 : f32 to vector<8x128xf32>
    %2181 = arith.addf %2179, %2180 : vector<8x128xf32>
    %2182 = arith.mulf %2172, %2074 : vector<8x128xf32>
    %cst_230 = arith.constant 1.000000e+00 : f32
    %2183 = vector.broadcast %cst_230 : f32 to vector<8x128xf32>
    %2184 = arith.subf %2183, %2181 : vector<8x128xf32>
    %2185 = arith.mulf %2184, %2083 : vector<8x128xf32>
    %2186 = arith.addf %2182, %2185 : vector<8x128xf32>
    %2187 = vector.broadcast %108 : f32 to vector<8x128xf32>
    %2188 = arith.mulf %137, %2187 : vector<8x128xf32>
    %2189 = vector.broadcast %109 : f32 to vector<8x128xf32>
    %2190 = arith.addf %2188, %2189 : vector<8x128xf32>
    %2191 = arith.mulf %2181, %2083 : vector<8x128xf32>
    %cst_231 = arith.constant 1.000000e+00 : f32
    %2192 = vector.broadcast %cst_231 : f32 to vector<8x128xf32>
    %2193 = arith.subf %2192, %2190 : vector<8x128xf32>
    %2194 = arith.mulf %2193, %2092 : vector<8x128xf32>
    %2195 = arith.addf %2191, %2194 : vector<8x128xf32>
    %2196 = vector.broadcast %110 : f32 to vector<8x128xf32>
    %2197 = arith.mulf %137, %2196 : vector<8x128xf32>
    %2198 = vector.broadcast %111 : f32 to vector<8x128xf32>
    %2199 = arith.addf %2197, %2198 : vector<8x128xf32>
    %2200 = vector.broadcast %112 : f32 to vector<8x128xf32>
    %2201 = arith.mulf %137, %2200 : vector<8x128xf32>
    %2202 = vector.broadcast %113 : f32 to vector<8x128xf32>
    %2203 = arith.addf %2201, %2202 : vector<8x128xf32>
    %2204 = arith.mulf %2199, %2105 : vector<8x128xf32>
    %cst_232 = arith.constant 1.000000e+00 : f32
    %2205 = vector.broadcast %cst_232 : f32 to vector<8x128xf32>
    %2206 = arith.subf %2205, %2203 : vector<8x128xf32>
    %2207 = arith.mulf %2206, %2114 : vector<8x128xf32>
    %2208 = arith.addf %2204, %2207 : vector<8x128xf32>
    %2209 = vector.broadcast %114 : f32 to vector<8x128xf32>
    %2210 = arith.mulf %137, %2209 : vector<8x128xf32>
    %2211 = vector.broadcast %115 : f32 to vector<8x128xf32>
    %2212 = arith.addf %2210, %2211 : vector<8x128xf32>
    %2213 = arith.mulf %2203, %2114 : vector<8x128xf32>
    %cst_233 = arith.constant 1.000000e+00 : f32
    %2214 = vector.broadcast %cst_233 : f32 to vector<8x128xf32>
    %2215 = arith.subf %2214, %2212 : vector<8x128xf32>
    %2216 = arith.mulf %2215, %2123 : vector<8x128xf32>
    %2217 = arith.addf %2213, %2216 : vector<8x128xf32>
    %2218 = vector.broadcast %116 : f32 to vector<8x128xf32>
    %2219 = arith.mulf %137, %2218 : vector<8x128xf32>
    %2220 = vector.broadcast %117 : f32 to vector<8x128xf32>
    %2221 = arith.addf %2219, %2220 : vector<8x128xf32>
    %2222 = arith.mulf %2212, %2123 : vector<8x128xf32>
    %cst_234 = arith.constant 1.000000e+00 : f32
    %2223 = vector.broadcast %cst_234 : f32 to vector<8x128xf32>
    %2224 = arith.subf %2223, %2221 : vector<8x128xf32>
    %2225 = arith.mulf %2224, %2132 : vector<8x128xf32>
    %2226 = arith.addf %2222, %2225 : vector<8x128xf32>
    %2227 = vector.broadcast %118 : f32 to vector<8x128xf32>
    %2228 = arith.mulf %137, %2227 : vector<8x128xf32>
    %2229 = vector.broadcast %119 : f32 to vector<8x128xf32>
    %2230 = arith.addf %2228, %2229 : vector<8x128xf32>
    %2231 = arith.mulf %2221, %2132 : vector<8x128xf32>
    %cst_235 = arith.constant 1.000000e+00 : f32
    %2232 = vector.broadcast %cst_235 : f32 to vector<8x128xf32>
    %2233 = arith.subf %2232, %2230 : vector<8x128xf32>
    %2234 = arith.mulf %2233, %2141 : vector<8x128xf32>
    %2235 = arith.addf %2231, %2234 : vector<8x128xf32>
    %2236 = vector.broadcast %120 : f32 to vector<8x128xf32>
    %2237 = arith.mulf %137, %2236 : vector<8x128xf32>
    %2238 = vector.broadcast %121 : f32 to vector<8x128xf32>
    %2239 = arith.addf %2237, %2238 : vector<8x128xf32>
    %2240 = arith.mulf %2230, %2141 : vector<8x128xf32>
    %cst_236 = arith.constant 1.000000e+00 : f32
    %2241 = vector.broadcast %cst_236 : f32 to vector<8x128xf32>
    %2242 = arith.subf %2241, %2239 : vector<8x128xf32>
    %2243 = arith.mulf %2242, %2150 : vector<8x128xf32>
    %2244 = arith.addf %2240, %2243 : vector<8x128xf32>
    %2245 = vector.broadcast %122 : f32 to vector<8x128xf32>
    %2246 = arith.mulf %137, %2245 : vector<8x128xf32>
    %2247 = vector.broadcast %123 : f32 to vector<8x128xf32>
    %2248 = arith.addf %2246, %2247 : vector<8x128xf32>
    %2249 = arith.mulf %2239, %2150 : vector<8x128xf32>
    %cst_237 = arith.constant 1.000000e+00 : f32
    %2250 = vector.broadcast %cst_237 : f32 to vector<8x128xf32>
    %2251 = arith.subf %2250, %2248 : vector<8x128xf32>
    %2252 = arith.mulf %2251, %2159 : vector<8x128xf32>
    %2253 = arith.addf %2249, %2252 : vector<8x128xf32>
    %2254 = vector.broadcast %124 : f32 to vector<8x128xf32>
    %2255 = arith.mulf %137, %2254 : vector<8x128xf32>
    %2256 = vector.broadcast %125 : f32 to vector<8x128xf32>
    %2257 = arith.addf %2255, %2256 : vector<8x128xf32>
    %2258 = arith.mulf %2248, %2159 : vector<8x128xf32>
    %cst_238 = arith.constant 1.000000e+00 : f32
    %2259 = vector.broadcast %cst_238 : f32 to vector<8x128xf32>
    %2260 = arith.subf %2259, %2257 : vector<8x128xf32>
    %2261 = arith.mulf %2260, %2168 : vector<8x128xf32>
    %2262 = arith.addf %2258, %2261 : vector<8x128xf32>
    %2263 = vector.broadcast %126 : f32 to vector<8x128xf32>
    %2264 = arith.mulf %137, %2263 : vector<8x128xf32>
    %2265 = vector.broadcast %127 : f32 to vector<8x128xf32>
    %2266 = arith.addf %2264, %2265 : vector<8x128xf32>
    %2267 = arith.mulf %2257, %2168 : vector<8x128xf32>
    %cst_239 = arith.constant 1.000000e+00 : f32
    %2268 = vector.broadcast %cst_239 : f32 to vector<8x128xf32>
    %2269 = arith.subf %2268, %2266 : vector<8x128xf32>
    %2270 = arith.mulf %2269, %2177 : vector<8x128xf32>
    %2271 = arith.addf %2267, %2270 : vector<8x128xf32>
    %2272 = vector.broadcast %128 : f32 to vector<8x128xf32>
    %2273 = arith.mulf %137, %2272 : vector<8x128xf32>
    %2274 = vector.broadcast %129 : f32 to vector<8x128xf32>
    %2275 = arith.addf %2273, %2274 : vector<8x128xf32>
    %2276 = arith.mulf %2266, %2177 : vector<8x128xf32>
    %cst_240 = arith.constant 1.000000e+00 : f32
    %2277 = vector.broadcast %cst_240 : f32 to vector<8x128xf32>
    %2278 = arith.subf %2277, %2275 : vector<8x128xf32>
    %2279 = arith.mulf %2278, %2186 : vector<8x128xf32>
    %2280 = arith.addf %2276, %2279 : vector<8x128xf32>
    %2281 = vector.broadcast %130 : f32 to vector<8x128xf32>
    %2282 = arith.mulf %137, %2281 : vector<8x128xf32>
    %2283 = vector.broadcast %131 : f32 to vector<8x128xf32>
    %2284 = arith.addf %2282, %2283 : vector<8x128xf32>
    %2285 = arith.mulf %2275, %2186 : vector<8x128xf32>
    %cst_241 = arith.constant 1.000000e+00 : f32
    %2286 = vector.broadcast %cst_241 : f32 to vector<8x128xf32>
    %2287 = arith.subf %2286, %2284 : vector<8x128xf32>
    %2288 = arith.mulf %2287, %2195 : vector<8x128xf32>
    %2289 = arith.addf %2285, %2288 : vector<8x128xf32>
    %cst_242 = arith.constant 0.000000e+00 : f32
    %2290 = vector.broadcast %cst_242 : f32 to vector<8x128xf32>
    %2291 = arith.subf %2290, %137 : vector<8x128xf32>
    %2292 = math.exp %2291 : vector<8x128xf32>
    %cst_243 = arith.constant 1.000000e+00 : f32
    %2293 = vector.broadcast %cst_243 : f32 to vector<8x128xf32>
    %2294 = arith.addf %2293, %2292 : vector<8x128xf32>
    %cst_244 = arith.constant 1.000000e+00 : f32
    %2295 = vector.broadcast %cst_244 : f32 to vector<8x128xf32>
    %2296 = arith.divf %2295, %2294 : vector<8x128xf32>
    %2297 = arith.mulf %137, %2296 : vector<8x128xf32>
    %c198 = arith.constant 198 : index
    %2298 = memref.load %arg1[%c198] : memref<264xf32, #tpu.memory_space<smem>>
    %2299 = vector.broadcast %2298 : f32 to vector<8x128xf32>
    %2300 = arith.mulf %2299, %2297 : vector<8x128xf32>
    %c199 = arith.constant 199 : index
    %2301 = memref.load %arg1[%c199] : memref<264xf32, #tpu.memory_space<smem>>
    %2302 = vector.broadcast %2301 : f32 to vector<8x128xf32>
    %2303 = arith.mulf %2302, %2208 : vector<8x128xf32>
    %2304 = arith.addf %2300, %2303 : vector<8x128xf32>
    %c200 = arith.constant 200 : index
    %2305 = memref.load %arg1[%c200] : memref<264xf32, #tpu.memory_space<smem>>
    %2306 = vector.broadcast %2305 : f32 to vector<8x128xf32>
    %2307 = arith.mulf %2306, %2217 : vector<8x128xf32>
    %2308 = arith.addf %2304, %2307 : vector<8x128xf32>
    %c201 = arith.constant 201 : index
    %2309 = memref.load %arg1[%c201] : memref<264xf32, #tpu.memory_space<smem>>
    %2310 = vector.broadcast %2309 : f32 to vector<8x128xf32>
    %2311 = arith.mulf %2310, %2226 : vector<8x128xf32>
    %2312 = arith.addf %2308, %2311 : vector<8x128xf32>
    %c202 = arith.constant 202 : index
    %2313 = memref.load %arg1[%c202] : memref<264xf32, #tpu.memory_space<smem>>
    %2314 = vector.broadcast %2313 : f32 to vector<8x128xf32>
    %2315 = arith.mulf %2314, %2235 : vector<8x128xf32>
    %2316 = arith.addf %2312, %2315 : vector<8x128xf32>
    %c203 = arith.constant 203 : index
    %2317 = memref.load %arg1[%c203] : memref<264xf32, #tpu.memory_space<smem>>
    %2318 = vector.broadcast %2317 : f32 to vector<8x128xf32>
    %2319 = arith.mulf %2318, %2244 : vector<8x128xf32>
    %2320 = arith.addf %2316, %2319 : vector<8x128xf32>
    %c204 = arith.constant 204 : index
    %2321 = memref.load %arg1[%c204] : memref<264xf32, #tpu.memory_space<smem>>
    %2322 = vector.broadcast %2321 : f32 to vector<8x128xf32>
    %2323 = arith.mulf %2322, %2253 : vector<8x128xf32>
    %2324 = arith.addf %2320, %2323 : vector<8x128xf32>
    %c205 = arith.constant 205 : index
    %2325 = memref.load %arg1[%c205] : memref<264xf32, #tpu.memory_space<smem>>
    %2326 = vector.broadcast %2325 : f32 to vector<8x128xf32>
    %2327 = arith.mulf %2326, %2262 : vector<8x128xf32>
    %2328 = arith.addf %2324, %2327 : vector<8x128xf32>
    %c206 = arith.constant 206 : index
    %2329 = memref.load %arg1[%c206] : memref<264xf32, #tpu.memory_space<smem>>
    %2330 = vector.broadcast %2329 : f32 to vector<8x128xf32>
    %2331 = arith.mulf %2330, %2271 : vector<8x128xf32>
    %2332 = arith.addf %2328, %2331 : vector<8x128xf32>
    %c207 = arith.constant 207 : index
    %2333 = memref.load %arg1[%c207] : memref<264xf32, #tpu.memory_space<smem>>
    %2334 = vector.broadcast %2333 : f32 to vector<8x128xf32>
    %2335 = arith.mulf %2334, %2280 : vector<8x128xf32>
    %2336 = arith.addf %2332, %2335 : vector<8x128xf32>
    %c208 = arith.constant 208 : index
    %2337 = memref.load %arg1[%c208] : memref<264xf32, #tpu.memory_space<smem>>
    %2338 = vector.broadcast %2337 : f32 to vector<8x128xf32>
    %2339 = arith.mulf %2338, %2289 : vector<8x128xf32>
    %2340 = arith.addf %2336, %2339 : vector<8x128xf32>
    %2341 = arith.addf %1576, %2340 : vector<8x128xf32>
    %c209 = arith.constant 209 : index
    %2342 = memref.load %arg1[%c209] : memref<264xf32, #tpu.memory_space<smem>>
    %2343 = vector.broadcast %2342 : f32 to vector<8x128xf32>
    %2344 = arith.mulf %2343, %2297 : vector<8x128xf32>
    %c210 = arith.constant 210 : index
    %2345 = memref.load %arg1[%c210] : memref<264xf32, #tpu.memory_space<smem>>
    %2346 = vector.broadcast %2345 : f32 to vector<8x128xf32>
    %2347 = arith.mulf %2346, %2208 : vector<8x128xf32>
    %2348 = arith.addf %2344, %2347 : vector<8x128xf32>
    %c211 = arith.constant 211 : index
    %2349 = memref.load %arg1[%c211] : memref<264xf32, #tpu.memory_space<smem>>
    %2350 = vector.broadcast %2349 : f32 to vector<8x128xf32>
    %2351 = arith.mulf %2350, %2217 : vector<8x128xf32>
    %2352 = arith.addf %2348, %2351 : vector<8x128xf32>
    %c212 = arith.constant 212 : index
    %2353 = memref.load %arg1[%c212] : memref<264xf32, #tpu.memory_space<smem>>
    %2354 = vector.broadcast %2353 : f32 to vector<8x128xf32>
    %2355 = arith.mulf %2354, %2226 : vector<8x128xf32>
    %2356 = arith.addf %2352, %2355 : vector<8x128xf32>
    %c213 = arith.constant 213 : index
    %2357 = memref.load %arg1[%c213] : memref<264xf32, #tpu.memory_space<smem>>
    %2358 = vector.broadcast %2357 : f32 to vector<8x128xf32>
    %2359 = arith.mulf %2358, %2235 : vector<8x128xf32>
    %2360 = arith.addf %2356, %2359 : vector<8x128xf32>
    %c214 = arith.constant 214 : index
    %2361 = memref.load %arg1[%c214] : memref<264xf32, #tpu.memory_space<smem>>
    %2362 = vector.broadcast %2361 : f32 to vector<8x128xf32>
    %2363 = arith.mulf %2362, %2244 : vector<8x128xf32>
    %2364 = arith.addf %2360, %2363 : vector<8x128xf32>
    %c215 = arith.constant 215 : index
    %2365 = memref.load %arg1[%c215] : memref<264xf32, #tpu.memory_space<smem>>
    %2366 = vector.broadcast %2365 : f32 to vector<8x128xf32>
    %2367 = arith.mulf %2366, %2253 : vector<8x128xf32>
    %2368 = arith.addf %2364, %2367 : vector<8x128xf32>
    %c216 = arith.constant 216 : index
    %2369 = memref.load %arg1[%c216] : memref<264xf32, #tpu.memory_space<smem>>
    %2370 = vector.broadcast %2369 : f32 to vector<8x128xf32>
    %2371 = arith.mulf %2370, %2262 : vector<8x128xf32>
    %2372 = arith.addf %2368, %2371 : vector<8x128xf32>
    %c217 = arith.constant 217 : index
    %2373 = memref.load %arg1[%c217] : memref<264xf32, #tpu.memory_space<smem>>
    %2374 = vector.broadcast %2373 : f32 to vector<8x128xf32>
    %2375 = arith.mulf %2374, %2271 : vector<8x128xf32>
    %2376 = arith.addf %2372, %2375 : vector<8x128xf32>
    %c218 = arith.constant 218 : index
    %2377 = memref.load %arg1[%c218] : memref<264xf32, #tpu.memory_space<smem>>
    %2378 = vector.broadcast %2377 : f32 to vector<8x128xf32>
    %2379 = arith.mulf %2378, %2280 : vector<8x128xf32>
    %2380 = arith.addf %2376, %2379 : vector<8x128xf32>
    %c219 = arith.constant 219 : index
    %2381 = memref.load %arg1[%c219] : memref<264xf32, #tpu.memory_space<smem>>
    %2382 = vector.broadcast %2381 : f32 to vector<8x128xf32>
    %2383 = arith.mulf %2382, %2289 : vector<8x128xf32>
    %2384 = arith.addf %2380, %2383 : vector<8x128xf32>
    %2385 = arith.addf %1620, %2384 : vector<8x128xf32>
    %c220 = arith.constant 220 : index
    %2386 = memref.load %arg1[%c220] : memref<264xf32, #tpu.memory_space<smem>>
    %2387 = vector.broadcast %2386 : f32 to vector<8x128xf32>
    %2388 = arith.mulf %2387, %2297 : vector<8x128xf32>
    %c221 = arith.constant 221 : index
    %2389 = memref.load %arg1[%c221] : memref<264xf32, #tpu.memory_space<smem>>
    %2390 = vector.broadcast %2389 : f32 to vector<8x128xf32>
    %2391 = arith.mulf %2390, %2208 : vector<8x128xf32>
    %2392 = arith.addf %2388, %2391 : vector<8x128xf32>
    %c222 = arith.constant 222 : index
    %2393 = memref.load %arg1[%c222] : memref<264xf32, #tpu.memory_space<smem>>
    %2394 = vector.broadcast %2393 : f32 to vector<8x128xf32>
    %2395 = arith.mulf %2394, %2217 : vector<8x128xf32>
    %2396 = arith.addf %2392, %2395 : vector<8x128xf32>
    %c223 = arith.constant 223 : index
    %2397 = memref.load %arg1[%c223] : memref<264xf32, #tpu.memory_space<smem>>
    %2398 = vector.broadcast %2397 : f32 to vector<8x128xf32>
    %2399 = arith.mulf %2398, %2226 : vector<8x128xf32>
    %2400 = arith.addf %2396, %2399 : vector<8x128xf32>
    %c224 = arith.constant 224 : index
    %2401 = memref.load %arg1[%c224] : memref<264xf32, #tpu.memory_space<smem>>
    %2402 = vector.broadcast %2401 : f32 to vector<8x128xf32>
    %2403 = arith.mulf %2402, %2235 : vector<8x128xf32>
    %2404 = arith.addf %2400, %2403 : vector<8x128xf32>
    %c225 = arith.constant 225 : index
    %2405 = memref.load %arg1[%c225] : memref<264xf32, #tpu.memory_space<smem>>
    %2406 = vector.broadcast %2405 : f32 to vector<8x128xf32>
    %2407 = arith.mulf %2406, %2244 : vector<8x128xf32>
    %2408 = arith.addf %2404, %2407 : vector<8x128xf32>
    %c226 = arith.constant 226 : index
    %2409 = memref.load %arg1[%c226] : memref<264xf32, #tpu.memory_space<smem>>
    %2410 = vector.broadcast %2409 : f32 to vector<8x128xf32>
    %2411 = arith.mulf %2410, %2253 : vector<8x128xf32>
    %2412 = arith.addf %2408, %2411 : vector<8x128xf32>
    %c227 = arith.constant 227 : index
    %2413 = memref.load %arg1[%c227] : memref<264xf32, #tpu.memory_space<smem>>
    %2414 = vector.broadcast %2413 : f32 to vector<8x128xf32>
    %2415 = arith.mulf %2414, %2262 : vector<8x128xf32>
    %2416 = arith.addf %2412, %2415 : vector<8x128xf32>
    %c228 = arith.constant 228 : index
    %2417 = memref.load %arg1[%c228] : memref<264xf32, #tpu.memory_space<smem>>
    %2418 = vector.broadcast %2417 : f32 to vector<8x128xf32>
    %2419 = arith.mulf %2418, %2271 : vector<8x128xf32>
    %2420 = arith.addf %2416, %2419 : vector<8x128xf32>
    %c229 = arith.constant 229 : index
    %2421 = memref.load %arg1[%c229] : memref<264xf32, #tpu.memory_space<smem>>
    %2422 = vector.broadcast %2421 : f32 to vector<8x128xf32>
    %2423 = arith.mulf %2422, %2280 : vector<8x128xf32>
    %2424 = arith.addf %2420, %2423 : vector<8x128xf32>
    %c230 = arith.constant 230 : index
    %2425 = memref.load %arg1[%c230] : memref<264xf32, #tpu.memory_space<smem>>
    %2426 = vector.broadcast %2425 : f32 to vector<8x128xf32>
    %2427 = arith.mulf %2426, %2289 : vector<8x128xf32>
    %2428 = arith.addf %2424, %2427 : vector<8x128xf32>
    %2429 = arith.addf %1664, %2428 : vector<8x128xf32>
    %2430 = vector.broadcast %0 : f32 to vector<8x128xf32>
    %2431 = arith.subf %2341, %2430 : vector<8x128xf32>
    %2432 = vector.broadcast %1 : f32 to vector<8x128xf32>
    %2433 = arith.mulf %2431, %2432 : vector<8x128xf32>
    %2434 = math.floor %2433 : vector<8x128xf32>
    %cst_245 = arith.constant 0.000000e+00 : f32
    %2435 = vector.broadcast %cst_245 : f32 to vector<8x128xf32>
    %2436 = arith.cmpf oeq, %2434, %2435 : vector<8x128xf32>
    %2437 = arith.extui %2436 : vector<8x128xi1> to vector<8x128xi32>
    %2438 = arith.sitofp %2437 : vector<8x128xi32> to vector<8x128xf32>
    %cst_246 = arith.constant 1.000000e+00 : f32
    %2439 = vector.broadcast %cst_246 : f32 to vector<8x128xf32>
    %2440 = arith.cmpf oeq, %2434, %2439 : vector<8x128xf32>
    %2441 = arith.extui %2440 : vector<8x128xi1> to vector<8x128xi32>
    %2442 = arith.sitofp %2441 : vector<8x128xi32> to vector<8x128xf32>
    %cst_247 = arith.constant 2.000000e+00 : f32
    %2443 = vector.broadcast %cst_247 : f32 to vector<8x128xf32>
    %2444 = arith.cmpf oeq, %2434, %2443 : vector<8x128xf32>
    %2445 = arith.extui %2444 : vector<8x128xi1> to vector<8x128xi32>
    %2446 = arith.sitofp %2445 : vector<8x128xi32> to vector<8x128xf32>
    %cst_248 = arith.constant 3.000000e+00 : f32
    %2447 = vector.broadcast %cst_248 : f32 to vector<8x128xf32>
    %2448 = arith.cmpf oeq, %2434, %2447 : vector<8x128xf32>
    %2449 = arith.extui %2448 : vector<8x128xi1> to vector<8x128xi32>
    %2450 = arith.sitofp %2449 : vector<8x128xi32> to vector<8x128xf32>
    %cst_249 = arith.constant 4.000000e+00 : f32
    %2451 = vector.broadcast %cst_249 : f32 to vector<8x128xf32>
    %2452 = arith.cmpf oeq, %2434, %2451 : vector<8x128xf32>
    %2453 = arith.extui %2452 : vector<8x128xi1> to vector<8x128xi32>
    %2454 = arith.sitofp %2453 : vector<8x128xi32> to vector<8x128xf32>
    %cst_250 = arith.constant 5.000000e+00 : f32
    %2455 = vector.broadcast %cst_250 : f32 to vector<8x128xf32>
    %2456 = arith.cmpf oeq, %2434, %2455 : vector<8x128xf32>
    %2457 = arith.extui %2456 : vector<8x128xi1> to vector<8x128xi32>
    %2458 = arith.sitofp %2457 : vector<8x128xi32> to vector<8x128xf32>
    %cst_251 = arith.constant 6.000000e+00 : f32
    %2459 = vector.broadcast %cst_251 : f32 to vector<8x128xf32>
    %2460 = arith.cmpf oeq, %2434, %2459 : vector<8x128xf32>
    %2461 = arith.extui %2460 : vector<8x128xi1> to vector<8x128xi32>
    %2462 = arith.sitofp %2461 : vector<8x128xi32> to vector<8x128xf32>
    %cst_252 = arith.constant 7.000000e+00 : f32
    %2463 = vector.broadcast %cst_252 : f32 to vector<8x128xf32>
    %2464 = arith.cmpf oeq, %2434, %2463 : vector<8x128xf32>
    %2465 = arith.extui %2464 : vector<8x128xi1> to vector<8x128xi32>
    %2466 = arith.sitofp %2465 : vector<8x128xi32> to vector<8x128xf32>
    %cst_253 = arith.constant 8.000000e+00 : f32
    %2467 = vector.broadcast %cst_253 : f32 to vector<8x128xf32>
    %2468 = arith.cmpf oeq, %2434, %2467 : vector<8x128xf32>
    %2469 = arith.extui %2468 : vector<8x128xi1> to vector<8x128xi32>
    %2470 = arith.sitofp %2469 : vector<8x128xi32> to vector<8x128xf32>
    %cst_254 = arith.constant 9.000000e+00 : f32
    %2471 = vector.broadcast %cst_254 : f32 to vector<8x128xf32>
    %2472 = arith.cmpf oeq, %2434, %2471 : vector<8x128xf32>
    %2473 = arith.extui %2472 : vector<8x128xi1> to vector<8x128xi32>
    %2474 = arith.sitofp %2473 : vector<8x128xi32> to vector<8x128xf32>
    %cst_255 = arith.constant 1.000000e+01 : f32
    %2475 = vector.broadcast %cst_255 : f32 to vector<8x128xf32>
    %2476 = arith.cmpf oeq, %2434, %2475 : vector<8x128xf32>
    %2477 = arith.extui %2476 : vector<8x128xi1> to vector<8x128xi32>
    %2478 = arith.sitofp %2477 : vector<8x128xi32> to vector<8x128xf32>
    %cst_256 = arith.constant 1.100000e+01 : f32
    %2479 = vector.broadcast %cst_256 : f32 to vector<8x128xf32>
    %2480 = arith.cmpf oeq, %2434, %2479 : vector<8x128xf32>
    %2481 = arith.extui %2480 : vector<8x128xi1> to vector<8x128xi32>
    %2482 = arith.sitofp %2481 : vector<8x128xi32> to vector<8x128xf32>
    %cst_257 = arith.constant 1.200000e+01 : f32
    %2483 = vector.broadcast %cst_257 : f32 to vector<8x128xf32>
    %2484 = arith.cmpf oeq, %2434, %2483 : vector<8x128xf32>
    %2485 = arith.extui %2484 : vector<8x128xi1> to vector<8x128xi32>
    %2486 = arith.sitofp %2485 : vector<8x128xi32> to vector<8x128xf32>
    %cst_258 = arith.constant 1.300000e+01 : f32
    %2487 = vector.broadcast %cst_258 : f32 to vector<8x128xf32>
    %2488 = arith.cmpf oeq, %2434, %2487 : vector<8x128xf32>
    %2489 = arith.extui %2488 : vector<8x128xi1> to vector<8x128xi32>
    %2490 = arith.sitofp %2489 : vector<8x128xi32> to vector<8x128xf32>
    %cst_259 = arith.constant 1.400000e+01 : f32
    %2491 = vector.broadcast %cst_259 : f32 to vector<8x128xf32>
    %2492 = arith.cmpf oeq, %2434, %2491 : vector<8x128xf32>
    %2493 = arith.extui %2492 : vector<8x128xi1> to vector<8x128xi32>
    %2494 = arith.sitofp %2493 : vector<8x128xi32> to vector<8x128xf32>
    %2495 = vector.broadcast %2 : f32 to vector<8x128xf32>
    %2496 = arith.mulf %2341, %2495 : vector<8x128xf32>
    %2497 = vector.broadcast %3 : f32 to vector<8x128xf32>
    %2498 = arith.addf %2496, %2497 : vector<8x128xf32>
    %2499 = vector.broadcast %4 : f32 to vector<8x128xf32>
    %2500 = arith.mulf %2341, %2499 : vector<8x128xf32>
    %2501 = vector.broadcast %5 : f32 to vector<8x128xf32>
    %2502 = arith.addf %2500, %2501 : vector<8x128xf32>
    %2503 = arith.mulf %2498, %2438 : vector<8x128xf32>
    %cst_260 = arith.constant 1.000000e+00 : f32
    %2504 = vector.broadcast %cst_260 : f32 to vector<8x128xf32>
    %2505 = arith.subf %2504, %2502 : vector<8x128xf32>
    %2506 = arith.mulf %2505, %2442 : vector<8x128xf32>
    %2507 = arith.addf %2503, %2506 : vector<8x128xf32>
    %2508 = vector.broadcast %6 : f32 to vector<8x128xf32>
    %2509 = arith.mulf %2341, %2508 : vector<8x128xf32>
    %2510 = vector.broadcast %7 : f32 to vector<8x128xf32>
    %2511 = arith.addf %2509, %2510 : vector<8x128xf32>
    %2512 = arith.mulf %2502, %2442 : vector<8x128xf32>
    %cst_261 = arith.constant 1.000000e+00 : f32
    %2513 = vector.broadcast %cst_261 : f32 to vector<8x128xf32>
    %2514 = arith.subf %2513, %2511 : vector<8x128xf32>
    %2515 = arith.mulf %2514, %2446 : vector<8x128xf32>
    %2516 = arith.addf %2512, %2515 : vector<8x128xf32>
    %2517 = vector.broadcast %8 : f32 to vector<8x128xf32>
    %2518 = arith.mulf %2341, %2517 : vector<8x128xf32>
    %2519 = vector.broadcast %9 : f32 to vector<8x128xf32>
    %2520 = arith.addf %2518, %2519 : vector<8x128xf32>
    %2521 = arith.mulf %2511, %2446 : vector<8x128xf32>
    %cst_262 = arith.constant 1.000000e+00 : f32
    %2522 = vector.broadcast %cst_262 : f32 to vector<8x128xf32>
    %2523 = arith.subf %2522, %2520 : vector<8x128xf32>
    %2524 = arith.mulf %2523, %2450 : vector<8x128xf32>
    %2525 = arith.addf %2521, %2524 : vector<8x128xf32>
    %2526 = vector.broadcast %10 : f32 to vector<8x128xf32>
    %2527 = arith.mulf %2341, %2526 : vector<8x128xf32>
    %2528 = vector.broadcast %11 : f32 to vector<8x128xf32>
    %2529 = arith.addf %2527, %2528 : vector<8x128xf32>
    %2530 = arith.mulf %2520, %2450 : vector<8x128xf32>
    %cst_263 = arith.constant 1.000000e+00 : f32
    %2531 = vector.broadcast %cst_263 : f32 to vector<8x128xf32>
    %2532 = arith.subf %2531, %2529 : vector<8x128xf32>
    %2533 = arith.mulf %2532, %2454 : vector<8x128xf32>
    %2534 = arith.addf %2530, %2533 : vector<8x128xf32>
    %2535 = vector.broadcast %12 : f32 to vector<8x128xf32>
    %2536 = arith.mulf %2341, %2535 : vector<8x128xf32>
    %2537 = vector.broadcast %13 : f32 to vector<8x128xf32>
    %2538 = arith.addf %2536, %2537 : vector<8x128xf32>
    %2539 = arith.mulf %2529, %2454 : vector<8x128xf32>
    %cst_264 = arith.constant 1.000000e+00 : f32
    %2540 = vector.broadcast %cst_264 : f32 to vector<8x128xf32>
    %2541 = arith.subf %2540, %2538 : vector<8x128xf32>
    %2542 = arith.mulf %2541, %2458 : vector<8x128xf32>
    %2543 = arith.addf %2539, %2542 : vector<8x128xf32>
    %2544 = vector.broadcast %14 : f32 to vector<8x128xf32>
    %2545 = arith.mulf %2341, %2544 : vector<8x128xf32>
    %2546 = vector.broadcast %15 : f32 to vector<8x128xf32>
    %2547 = arith.addf %2545, %2546 : vector<8x128xf32>
    %2548 = arith.mulf %2538, %2458 : vector<8x128xf32>
    %cst_265 = arith.constant 1.000000e+00 : f32
    %2549 = vector.broadcast %cst_265 : f32 to vector<8x128xf32>
    %2550 = arith.subf %2549, %2547 : vector<8x128xf32>
    %2551 = arith.mulf %2550, %2462 : vector<8x128xf32>
    %2552 = arith.addf %2548, %2551 : vector<8x128xf32>
    %2553 = vector.broadcast %16 : f32 to vector<8x128xf32>
    %2554 = arith.mulf %2341, %2553 : vector<8x128xf32>
    %2555 = vector.broadcast %17 : f32 to vector<8x128xf32>
    %2556 = arith.addf %2554, %2555 : vector<8x128xf32>
    %2557 = arith.mulf %2547, %2462 : vector<8x128xf32>
    %cst_266 = arith.constant 1.000000e+00 : f32
    %2558 = vector.broadcast %cst_266 : f32 to vector<8x128xf32>
    %2559 = arith.subf %2558, %2556 : vector<8x128xf32>
    %2560 = arith.mulf %2559, %2466 : vector<8x128xf32>
    %2561 = arith.addf %2557, %2560 : vector<8x128xf32>
    %2562 = vector.broadcast %18 : f32 to vector<8x128xf32>
    %2563 = arith.mulf %2341, %2562 : vector<8x128xf32>
    %2564 = vector.broadcast %19 : f32 to vector<8x128xf32>
    %2565 = arith.addf %2563, %2564 : vector<8x128xf32>
    %2566 = arith.mulf %2556, %2466 : vector<8x128xf32>
    %cst_267 = arith.constant 1.000000e+00 : f32
    %2567 = vector.broadcast %cst_267 : f32 to vector<8x128xf32>
    %2568 = arith.subf %2567, %2565 : vector<8x128xf32>
    %2569 = arith.mulf %2568, %2470 : vector<8x128xf32>
    %2570 = arith.addf %2566, %2569 : vector<8x128xf32>
    %2571 = vector.broadcast %20 : f32 to vector<8x128xf32>
    %2572 = arith.mulf %2341, %2571 : vector<8x128xf32>
    %2573 = vector.broadcast %21 : f32 to vector<8x128xf32>
    %2574 = arith.addf %2572, %2573 : vector<8x128xf32>
    %2575 = arith.mulf %2565, %2470 : vector<8x128xf32>
    %cst_268 = arith.constant 1.000000e+00 : f32
    %2576 = vector.broadcast %cst_268 : f32 to vector<8x128xf32>
    %2577 = arith.subf %2576, %2574 : vector<8x128xf32>
    %2578 = arith.mulf %2577, %2474 : vector<8x128xf32>
    %2579 = arith.addf %2575, %2578 : vector<8x128xf32>
    %2580 = vector.broadcast %22 : f32 to vector<8x128xf32>
    %2581 = arith.mulf %2341, %2580 : vector<8x128xf32>
    %2582 = vector.broadcast %23 : f32 to vector<8x128xf32>
    %2583 = arith.addf %2581, %2582 : vector<8x128xf32>
    %2584 = arith.mulf %2574, %2474 : vector<8x128xf32>
    %cst_269 = arith.constant 1.000000e+00 : f32
    %2585 = vector.broadcast %cst_269 : f32 to vector<8x128xf32>
    %2586 = arith.subf %2585, %2583 : vector<8x128xf32>
    %2587 = arith.mulf %2586, %2478 : vector<8x128xf32>
    %2588 = arith.addf %2584, %2587 : vector<8x128xf32>
    %2589 = vector.broadcast %24 : f32 to vector<8x128xf32>
    %2590 = arith.mulf %2341, %2589 : vector<8x128xf32>
    %2591 = vector.broadcast %25 : f32 to vector<8x128xf32>
    %2592 = arith.addf %2590, %2591 : vector<8x128xf32>
    %2593 = arith.mulf %2583, %2478 : vector<8x128xf32>
    %cst_270 = arith.constant 1.000000e+00 : f32
    %2594 = vector.broadcast %cst_270 : f32 to vector<8x128xf32>
    %2595 = arith.subf %2594, %2592 : vector<8x128xf32>
    %2596 = arith.mulf %2595, %2482 : vector<8x128xf32>
    %2597 = arith.addf %2593, %2596 : vector<8x128xf32>
    %2598 = vector.broadcast %26 : f32 to vector<8x128xf32>
    %2599 = arith.mulf %2341, %2598 : vector<8x128xf32>
    %2600 = vector.broadcast %27 : f32 to vector<8x128xf32>
    %2601 = arith.addf %2599, %2600 : vector<8x128xf32>
    %2602 = arith.mulf %2592, %2482 : vector<8x128xf32>
    %cst_271 = arith.constant 1.000000e+00 : f32
    %2603 = vector.broadcast %cst_271 : f32 to vector<8x128xf32>
    %2604 = arith.subf %2603, %2601 : vector<8x128xf32>
    %2605 = arith.mulf %2604, %2486 : vector<8x128xf32>
    %2606 = arith.addf %2602, %2605 : vector<8x128xf32>
    %2607 = vector.broadcast %28 : f32 to vector<8x128xf32>
    %2608 = arith.mulf %2341, %2607 : vector<8x128xf32>
    %2609 = vector.broadcast %29 : f32 to vector<8x128xf32>
    %2610 = arith.addf %2608, %2609 : vector<8x128xf32>
    %2611 = arith.mulf %2601, %2486 : vector<8x128xf32>
    %cst_272 = arith.constant 1.000000e+00 : f32
    %2612 = vector.broadcast %cst_272 : f32 to vector<8x128xf32>
    %2613 = arith.subf %2612, %2610 : vector<8x128xf32>
    %2614 = arith.mulf %2613, %2490 : vector<8x128xf32>
    %2615 = arith.addf %2611, %2614 : vector<8x128xf32>
    %2616 = vector.broadcast %30 : f32 to vector<8x128xf32>
    %2617 = arith.mulf %2341, %2616 : vector<8x128xf32>
    %2618 = vector.broadcast %31 : f32 to vector<8x128xf32>
    %2619 = arith.addf %2617, %2618 : vector<8x128xf32>
    %2620 = arith.mulf %2610, %2490 : vector<8x128xf32>
    %cst_273 = arith.constant 1.000000e+00 : f32
    %2621 = vector.broadcast %cst_273 : f32 to vector<8x128xf32>
    %2622 = arith.subf %2621, %2619 : vector<8x128xf32>
    %2623 = arith.mulf %2622, %2494 : vector<8x128xf32>
    %2624 = arith.addf %2620, %2623 : vector<8x128xf32>
    %2625 = vector.broadcast %32 : f32 to vector<8x128xf32>
    %2626 = arith.mulf %2341, %2625 : vector<8x128xf32>
    %2627 = vector.broadcast %33 : f32 to vector<8x128xf32>
    %2628 = arith.addf %2626, %2627 : vector<8x128xf32>
    %2629 = vector.broadcast %34 : f32 to vector<8x128xf32>
    %2630 = arith.mulf %2341, %2629 : vector<8x128xf32>
    %2631 = vector.broadcast %35 : f32 to vector<8x128xf32>
    %2632 = arith.addf %2630, %2631 : vector<8x128xf32>
    %2633 = arith.mulf %2628, %2507 : vector<8x128xf32>
    %cst_274 = arith.constant 1.000000e+00 : f32
    %2634 = vector.broadcast %cst_274 : f32 to vector<8x128xf32>
    %2635 = arith.subf %2634, %2632 : vector<8x128xf32>
    %2636 = arith.mulf %2635, %2516 : vector<8x128xf32>
    %2637 = arith.addf %2633, %2636 : vector<8x128xf32>
    %2638 = vector.broadcast %36 : f32 to vector<8x128xf32>
    %2639 = arith.mulf %2341, %2638 : vector<8x128xf32>
    %2640 = vector.broadcast %37 : f32 to vector<8x128xf32>
    %2641 = arith.addf %2639, %2640 : vector<8x128xf32>
    %2642 = arith.mulf %2632, %2516 : vector<8x128xf32>
    %cst_275 = arith.constant 1.000000e+00 : f32
    %2643 = vector.broadcast %cst_275 : f32 to vector<8x128xf32>
    %2644 = arith.subf %2643, %2641 : vector<8x128xf32>
    %2645 = arith.mulf %2644, %2525 : vector<8x128xf32>
    %2646 = arith.addf %2642, %2645 : vector<8x128xf32>
    %2647 = vector.broadcast %38 : f32 to vector<8x128xf32>
    %2648 = arith.mulf %2341, %2647 : vector<8x128xf32>
    %2649 = vector.broadcast %39 : f32 to vector<8x128xf32>
    %2650 = arith.addf %2648, %2649 : vector<8x128xf32>
    %2651 = arith.mulf %2641, %2525 : vector<8x128xf32>
    %cst_276 = arith.constant 1.000000e+00 : f32
    %2652 = vector.broadcast %cst_276 : f32 to vector<8x128xf32>
    %2653 = arith.subf %2652, %2650 : vector<8x128xf32>
    %2654 = arith.mulf %2653, %2534 : vector<8x128xf32>
    %2655 = arith.addf %2651, %2654 : vector<8x128xf32>
    %2656 = vector.broadcast %40 : f32 to vector<8x128xf32>
    %2657 = arith.mulf %2341, %2656 : vector<8x128xf32>
    %2658 = vector.broadcast %41 : f32 to vector<8x128xf32>
    %2659 = arith.addf %2657, %2658 : vector<8x128xf32>
    %2660 = arith.mulf %2650, %2534 : vector<8x128xf32>
    %cst_277 = arith.constant 1.000000e+00 : f32
    %2661 = vector.broadcast %cst_277 : f32 to vector<8x128xf32>
    %2662 = arith.subf %2661, %2659 : vector<8x128xf32>
    %2663 = arith.mulf %2662, %2543 : vector<8x128xf32>
    %2664 = arith.addf %2660, %2663 : vector<8x128xf32>
    %2665 = vector.broadcast %42 : f32 to vector<8x128xf32>
    %2666 = arith.mulf %2341, %2665 : vector<8x128xf32>
    %2667 = vector.broadcast %43 : f32 to vector<8x128xf32>
    %2668 = arith.addf %2666, %2667 : vector<8x128xf32>
    %2669 = arith.mulf %2659, %2543 : vector<8x128xf32>
    %cst_278 = arith.constant 1.000000e+00 : f32
    %2670 = vector.broadcast %cst_278 : f32 to vector<8x128xf32>
    %2671 = arith.subf %2670, %2668 : vector<8x128xf32>
    %2672 = arith.mulf %2671, %2552 : vector<8x128xf32>
    %2673 = arith.addf %2669, %2672 : vector<8x128xf32>
    %2674 = vector.broadcast %44 : f32 to vector<8x128xf32>
    %2675 = arith.mulf %2341, %2674 : vector<8x128xf32>
    %2676 = vector.broadcast %45 : f32 to vector<8x128xf32>
    %2677 = arith.addf %2675, %2676 : vector<8x128xf32>
    %2678 = arith.mulf %2668, %2552 : vector<8x128xf32>
    %cst_279 = arith.constant 1.000000e+00 : f32
    %2679 = vector.broadcast %cst_279 : f32 to vector<8x128xf32>
    %2680 = arith.subf %2679, %2677 : vector<8x128xf32>
    %2681 = arith.mulf %2680, %2561 : vector<8x128xf32>
    %2682 = arith.addf %2678, %2681 : vector<8x128xf32>
    %2683 = vector.broadcast %46 : f32 to vector<8x128xf32>
    %2684 = arith.mulf %2341, %2683 : vector<8x128xf32>
    %2685 = vector.broadcast %47 : f32 to vector<8x128xf32>
    %2686 = arith.addf %2684, %2685 : vector<8x128xf32>
    %2687 = arith.mulf %2677, %2561 : vector<8x128xf32>
    %cst_280 = arith.constant 1.000000e+00 : f32
    %2688 = vector.broadcast %cst_280 : f32 to vector<8x128xf32>
    %2689 = arith.subf %2688, %2686 : vector<8x128xf32>
    %2690 = arith.mulf %2689, %2570 : vector<8x128xf32>
    %2691 = arith.addf %2687, %2690 : vector<8x128xf32>
    %2692 = vector.broadcast %48 : f32 to vector<8x128xf32>
    %2693 = arith.mulf %2341, %2692 : vector<8x128xf32>
    %2694 = vector.broadcast %49 : f32 to vector<8x128xf32>
    %2695 = arith.addf %2693, %2694 : vector<8x128xf32>
    %2696 = arith.mulf %2686, %2570 : vector<8x128xf32>
    %cst_281 = arith.constant 1.000000e+00 : f32
    %2697 = vector.broadcast %cst_281 : f32 to vector<8x128xf32>
    %2698 = arith.subf %2697, %2695 : vector<8x128xf32>
    %2699 = arith.mulf %2698, %2579 : vector<8x128xf32>
    %2700 = arith.addf %2696, %2699 : vector<8x128xf32>
    %2701 = vector.broadcast %50 : f32 to vector<8x128xf32>
    %2702 = arith.mulf %2341, %2701 : vector<8x128xf32>
    %2703 = vector.broadcast %51 : f32 to vector<8x128xf32>
    %2704 = arith.addf %2702, %2703 : vector<8x128xf32>
    %2705 = arith.mulf %2695, %2579 : vector<8x128xf32>
    %cst_282 = arith.constant 1.000000e+00 : f32
    %2706 = vector.broadcast %cst_282 : f32 to vector<8x128xf32>
    %2707 = arith.subf %2706, %2704 : vector<8x128xf32>
    %2708 = arith.mulf %2707, %2588 : vector<8x128xf32>
    %2709 = arith.addf %2705, %2708 : vector<8x128xf32>
    %2710 = vector.broadcast %52 : f32 to vector<8x128xf32>
    %2711 = arith.mulf %2341, %2710 : vector<8x128xf32>
    %2712 = vector.broadcast %53 : f32 to vector<8x128xf32>
    %2713 = arith.addf %2711, %2712 : vector<8x128xf32>
    %2714 = arith.mulf %2704, %2588 : vector<8x128xf32>
    %cst_283 = arith.constant 1.000000e+00 : f32
    %2715 = vector.broadcast %cst_283 : f32 to vector<8x128xf32>
    %2716 = arith.subf %2715, %2713 : vector<8x128xf32>
    %2717 = arith.mulf %2716, %2597 : vector<8x128xf32>
    %2718 = arith.addf %2714, %2717 : vector<8x128xf32>
    %2719 = vector.broadcast %54 : f32 to vector<8x128xf32>
    %2720 = arith.mulf %2341, %2719 : vector<8x128xf32>
    %2721 = vector.broadcast %55 : f32 to vector<8x128xf32>
    %2722 = arith.addf %2720, %2721 : vector<8x128xf32>
    %2723 = arith.mulf %2713, %2597 : vector<8x128xf32>
    %cst_284 = arith.constant 1.000000e+00 : f32
    %2724 = vector.broadcast %cst_284 : f32 to vector<8x128xf32>
    %2725 = arith.subf %2724, %2722 : vector<8x128xf32>
    %2726 = arith.mulf %2725, %2606 : vector<8x128xf32>
    %2727 = arith.addf %2723, %2726 : vector<8x128xf32>
    %2728 = vector.broadcast %56 : f32 to vector<8x128xf32>
    %2729 = arith.mulf %2341, %2728 : vector<8x128xf32>
    %2730 = vector.broadcast %57 : f32 to vector<8x128xf32>
    %2731 = arith.addf %2729, %2730 : vector<8x128xf32>
    %2732 = arith.mulf %2722, %2606 : vector<8x128xf32>
    %cst_285 = arith.constant 1.000000e+00 : f32
    %2733 = vector.broadcast %cst_285 : f32 to vector<8x128xf32>
    %2734 = arith.subf %2733, %2731 : vector<8x128xf32>
    %2735 = arith.mulf %2734, %2615 : vector<8x128xf32>
    %2736 = arith.addf %2732, %2735 : vector<8x128xf32>
    %2737 = vector.broadcast %58 : f32 to vector<8x128xf32>
    %2738 = arith.mulf %2341, %2737 : vector<8x128xf32>
    %2739 = vector.broadcast %59 : f32 to vector<8x128xf32>
    %2740 = arith.addf %2738, %2739 : vector<8x128xf32>
    %2741 = arith.mulf %2731, %2615 : vector<8x128xf32>
    %cst_286 = arith.constant 1.000000e+00 : f32
    %2742 = vector.broadcast %cst_286 : f32 to vector<8x128xf32>
    %2743 = arith.subf %2742, %2740 : vector<8x128xf32>
    %2744 = arith.mulf %2743, %2624 : vector<8x128xf32>
    %2745 = arith.addf %2741, %2744 : vector<8x128xf32>
    %2746 = vector.broadcast %60 : f32 to vector<8x128xf32>
    %2747 = arith.mulf %2341, %2746 : vector<8x128xf32>
    %2748 = vector.broadcast %61 : f32 to vector<8x128xf32>
    %2749 = arith.addf %2747, %2748 : vector<8x128xf32>
    %2750 = vector.broadcast %62 : f32 to vector<8x128xf32>
    %2751 = arith.mulf %2341, %2750 : vector<8x128xf32>
    %2752 = vector.broadcast %63 : f32 to vector<8x128xf32>
    %2753 = arith.addf %2751, %2752 : vector<8x128xf32>
    %2754 = arith.mulf %2749, %2637 : vector<8x128xf32>
    %cst_287 = arith.constant 1.000000e+00 : f32
    %2755 = vector.broadcast %cst_287 : f32 to vector<8x128xf32>
    %2756 = arith.subf %2755, %2753 : vector<8x128xf32>
    %2757 = arith.mulf %2756, %2646 : vector<8x128xf32>
    %2758 = arith.addf %2754, %2757 : vector<8x128xf32>
    %2759 = vector.broadcast %64 : f32 to vector<8x128xf32>
    %2760 = arith.mulf %2341, %2759 : vector<8x128xf32>
    %2761 = vector.broadcast %65 : f32 to vector<8x128xf32>
    %2762 = arith.addf %2760, %2761 : vector<8x128xf32>
    %2763 = arith.mulf %2753, %2646 : vector<8x128xf32>
    %cst_288 = arith.constant 1.000000e+00 : f32
    %2764 = vector.broadcast %cst_288 : f32 to vector<8x128xf32>
    %2765 = arith.subf %2764, %2762 : vector<8x128xf32>
    %2766 = arith.mulf %2765, %2655 : vector<8x128xf32>
    %2767 = arith.addf %2763, %2766 : vector<8x128xf32>
    %2768 = vector.broadcast %66 : f32 to vector<8x128xf32>
    %2769 = arith.mulf %2341, %2768 : vector<8x128xf32>
    %2770 = vector.broadcast %67 : f32 to vector<8x128xf32>
    %2771 = arith.addf %2769, %2770 : vector<8x128xf32>
    %2772 = arith.mulf %2762, %2655 : vector<8x128xf32>
    %cst_289 = arith.constant 1.000000e+00 : f32
    %2773 = vector.broadcast %cst_289 : f32 to vector<8x128xf32>
    %2774 = arith.subf %2773, %2771 : vector<8x128xf32>
    %2775 = arith.mulf %2774, %2664 : vector<8x128xf32>
    %2776 = arith.addf %2772, %2775 : vector<8x128xf32>
    %2777 = vector.broadcast %68 : f32 to vector<8x128xf32>
    %2778 = arith.mulf %2341, %2777 : vector<8x128xf32>
    %2779 = vector.broadcast %69 : f32 to vector<8x128xf32>
    %2780 = arith.addf %2778, %2779 : vector<8x128xf32>
    %2781 = arith.mulf %2771, %2664 : vector<8x128xf32>
    %cst_290 = arith.constant 1.000000e+00 : f32
    %2782 = vector.broadcast %cst_290 : f32 to vector<8x128xf32>
    %2783 = arith.subf %2782, %2780 : vector<8x128xf32>
    %2784 = arith.mulf %2783, %2673 : vector<8x128xf32>
    %2785 = arith.addf %2781, %2784 : vector<8x128xf32>
    %2786 = vector.broadcast %70 : f32 to vector<8x128xf32>
    %2787 = arith.mulf %2341, %2786 : vector<8x128xf32>
    %2788 = vector.broadcast %71 : f32 to vector<8x128xf32>
    %2789 = arith.addf %2787, %2788 : vector<8x128xf32>
    %2790 = arith.mulf %2780, %2673 : vector<8x128xf32>
    %cst_291 = arith.constant 1.000000e+00 : f32
    %2791 = vector.broadcast %cst_291 : f32 to vector<8x128xf32>
    %2792 = arith.subf %2791, %2789 : vector<8x128xf32>
    %2793 = arith.mulf %2792, %2682 : vector<8x128xf32>
    %2794 = arith.addf %2790, %2793 : vector<8x128xf32>
    %2795 = vector.broadcast %72 : f32 to vector<8x128xf32>
    %2796 = arith.mulf %2341, %2795 : vector<8x128xf32>
    %2797 = vector.broadcast %73 : f32 to vector<8x128xf32>
    %2798 = arith.addf %2796, %2797 : vector<8x128xf32>
    %2799 = arith.mulf %2789, %2682 : vector<8x128xf32>
    %cst_292 = arith.constant 1.000000e+00 : f32
    %2800 = vector.broadcast %cst_292 : f32 to vector<8x128xf32>
    %2801 = arith.subf %2800, %2798 : vector<8x128xf32>
    %2802 = arith.mulf %2801, %2691 : vector<8x128xf32>
    %2803 = arith.addf %2799, %2802 : vector<8x128xf32>
    %2804 = vector.broadcast %74 : f32 to vector<8x128xf32>
    %2805 = arith.mulf %2341, %2804 : vector<8x128xf32>
    %2806 = vector.broadcast %75 : f32 to vector<8x128xf32>
    %2807 = arith.addf %2805, %2806 : vector<8x128xf32>
    %2808 = arith.mulf %2798, %2691 : vector<8x128xf32>
    %cst_293 = arith.constant 1.000000e+00 : f32
    %2809 = vector.broadcast %cst_293 : f32 to vector<8x128xf32>
    %2810 = arith.subf %2809, %2807 : vector<8x128xf32>
    %2811 = arith.mulf %2810, %2700 : vector<8x128xf32>
    %2812 = arith.addf %2808, %2811 : vector<8x128xf32>
    %2813 = vector.broadcast %76 : f32 to vector<8x128xf32>
    %2814 = arith.mulf %2341, %2813 : vector<8x128xf32>
    %2815 = vector.broadcast %77 : f32 to vector<8x128xf32>
    %2816 = arith.addf %2814, %2815 : vector<8x128xf32>
    %2817 = arith.mulf %2807, %2700 : vector<8x128xf32>
    %cst_294 = arith.constant 1.000000e+00 : f32
    %2818 = vector.broadcast %cst_294 : f32 to vector<8x128xf32>
    %2819 = arith.subf %2818, %2816 : vector<8x128xf32>
    %2820 = arith.mulf %2819, %2709 : vector<8x128xf32>
    %2821 = arith.addf %2817, %2820 : vector<8x128xf32>
    %2822 = vector.broadcast %78 : f32 to vector<8x128xf32>
    %2823 = arith.mulf %2341, %2822 : vector<8x128xf32>
    %2824 = vector.broadcast %79 : f32 to vector<8x128xf32>
    %2825 = arith.addf %2823, %2824 : vector<8x128xf32>
    %2826 = arith.mulf %2816, %2709 : vector<8x128xf32>
    %cst_295 = arith.constant 1.000000e+00 : f32
    %2827 = vector.broadcast %cst_295 : f32 to vector<8x128xf32>
    %2828 = arith.subf %2827, %2825 : vector<8x128xf32>
    %2829 = arith.mulf %2828, %2718 : vector<8x128xf32>
    %2830 = arith.addf %2826, %2829 : vector<8x128xf32>
    %2831 = vector.broadcast %80 : f32 to vector<8x128xf32>
    %2832 = arith.mulf %2341, %2831 : vector<8x128xf32>
    %2833 = vector.broadcast %81 : f32 to vector<8x128xf32>
    %2834 = arith.addf %2832, %2833 : vector<8x128xf32>
    %2835 = arith.mulf %2825, %2718 : vector<8x128xf32>
    %cst_296 = arith.constant 1.000000e+00 : f32
    %2836 = vector.broadcast %cst_296 : f32 to vector<8x128xf32>
    %2837 = arith.subf %2836, %2834 : vector<8x128xf32>
    %2838 = arith.mulf %2837, %2727 : vector<8x128xf32>
    %2839 = arith.addf %2835, %2838 : vector<8x128xf32>
    %2840 = vector.broadcast %82 : f32 to vector<8x128xf32>
    %2841 = arith.mulf %2341, %2840 : vector<8x128xf32>
    %2842 = vector.broadcast %83 : f32 to vector<8x128xf32>
    %2843 = arith.addf %2841, %2842 : vector<8x128xf32>
    %2844 = arith.mulf %2834, %2727 : vector<8x128xf32>
    %cst_297 = arith.constant 1.000000e+00 : f32
    %2845 = vector.broadcast %cst_297 : f32 to vector<8x128xf32>
    %2846 = arith.subf %2845, %2843 : vector<8x128xf32>
    %2847 = arith.mulf %2846, %2736 : vector<8x128xf32>
    %2848 = arith.addf %2844, %2847 : vector<8x128xf32>
    %2849 = vector.broadcast %84 : f32 to vector<8x128xf32>
    %2850 = arith.mulf %2341, %2849 : vector<8x128xf32>
    %2851 = vector.broadcast %85 : f32 to vector<8x128xf32>
    %2852 = arith.addf %2850, %2851 : vector<8x128xf32>
    %2853 = arith.mulf %2843, %2736 : vector<8x128xf32>
    %cst_298 = arith.constant 1.000000e+00 : f32
    %2854 = vector.broadcast %cst_298 : f32 to vector<8x128xf32>
    %2855 = arith.subf %2854, %2852 : vector<8x128xf32>
    %2856 = arith.mulf %2855, %2745 : vector<8x128xf32>
    %2857 = arith.addf %2853, %2856 : vector<8x128xf32>
    %2858 = vector.broadcast %86 : f32 to vector<8x128xf32>
    %2859 = arith.mulf %2341, %2858 : vector<8x128xf32>
    %2860 = vector.broadcast %87 : f32 to vector<8x128xf32>
    %2861 = arith.addf %2859, %2860 : vector<8x128xf32>
    %2862 = vector.broadcast %88 : f32 to vector<8x128xf32>
    %2863 = arith.mulf %2341, %2862 : vector<8x128xf32>
    %2864 = vector.broadcast %89 : f32 to vector<8x128xf32>
    %2865 = arith.addf %2863, %2864 : vector<8x128xf32>
    %2866 = arith.mulf %2861, %2758 : vector<8x128xf32>
    %cst_299 = arith.constant 1.000000e+00 : f32
    %2867 = vector.broadcast %cst_299 : f32 to vector<8x128xf32>
    %2868 = arith.subf %2867, %2865 : vector<8x128xf32>
    %2869 = arith.mulf %2868, %2767 : vector<8x128xf32>
    %2870 = arith.addf %2866, %2869 : vector<8x128xf32>
    %2871 = vector.broadcast %90 : f32 to vector<8x128xf32>
    %2872 = arith.mulf %2341, %2871 : vector<8x128xf32>
    %2873 = vector.broadcast %91 : f32 to vector<8x128xf32>
    %2874 = arith.addf %2872, %2873 : vector<8x128xf32>
    %2875 = arith.mulf %2865, %2767 : vector<8x128xf32>
    %cst_300 = arith.constant 1.000000e+00 : f32
    %2876 = vector.broadcast %cst_300 : f32 to vector<8x128xf32>
    %2877 = arith.subf %2876, %2874 : vector<8x128xf32>
    %2878 = arith.mulf %2877, %2776 : vector<8x128xf32>
    %2879 = arith.addf %2875, %2878 : vector<8x128xf32>
    %2880 = vector.broadcast %92 : f32 to vector<8x128xf32>
    %2881 = arith.mulf %2341, %2880 : vector<8x128xf32>
    %2882 = vector.broadcast %93 : f32 to vector<8x128xf32>
    %2883 = arith.addf %2881, %2882 : vector<8x128xf32>
    %2884 = arith.mulf %2874, %2776 : vector<8x128xf32>
    %cst_301 = arith.constant 1.000000e+00 : f32
    %2885 = vector.broadcast %cst_301 : f32 to vector<8x128xf32>
    %2886 = arith.subf %2885, %2883 : vector<8x128xf32>
    %2887 = arith.mulf %2886, %2785 : vector<8x128xf32>
    %2888 = arith.addf %2884, %2887 : vector<8x128xf32>
    %2889 = vector.broadcast %94 : f32 to vector<8x128xf32>
    %2890 = arith.mulf %2341, %2889 : vector<8x128xf32>
    %2891 = vector.broadcast %95 : f32 to vector<8x128xf32>
    %2892 = arith.addf %2890, %2891 : vector<8x128xf32>
    %2893 = arith.mulf %2883, %2785 : vector<8x128xf32>
    %cst_302 = arith.constant 1.000000e+00 : f32
    %2894 = vector.broadcast %cst_302 : f32 to vector<8x128xf32>
    %2895 = arith.subf %2894, %2892 : vector<8x128xf32>
    %2896 = arith.mulf %2895, %2794 : vector<8x128xf32>
    %2897 = arith.addf %2893, %2896 : vector<8x128xf32>
    %2898 = vector.broadcast %96 : f32 to vector<8x128xf32>
    %2899 = arith.mulf %2341, %2898 : vector<8x128xf32>
    %2900 = vector.broadcast %97 : f32 to vector<8x128xf32>
    %2901 = arith.addf %2899, %2900 : vector<8x128xf32>
    %2902 = arith.mulf %2892, %2794 : vector<8x128xf32>
    %cst_303 = arith.constant 1.000000e+00 : f32
    %2903 = vector.broadcast %cst_303 : f32 to vector<8x128xf32>
    %2904 = arith.subf %2903, %2901 : vector<8x128xf32>
    %2905 = arith.mulf %2904, %2803 : vector<8x128xf32>
    %2906 = arith.addf %2902, %2905 : vector<8x128xf32>
    %2907 = vector.broadcast %98 : f32 to vector<8x128xf32>
    %2908 = arith.mulf %2341, %2907 : vector<8x128xf32>
    %2909 = vector.broadcast %99 : f32 to vector<8x128xf32>
    %2910 = arith.addf %2908, %2909 : vector<8x128xf32>
    %2911 = arith.mulf %2901, %2803 : vector<8x128xf32>
    %cst_304 = arith.constant 1.000000e+00 : f32
    %2912 = vector.broadcast %cst_304 : f32 to vector<8x128xf32>
    %2913 = arith.subf %2912, %2910 : vector<8x128xf32>
    %2914 = arith.mulf %2913, %2812 : vector<8x128xf32>
    %2915 = arith.addf %2911, %2914 : vector<8x128xf32>
    %2916 = vector.broadcast %100 : f32 to vector<8x128xf32>
    %2917 = arith.mulf %2341, %2916 : vector<8x128xf32>
    %2918 = vector.broadcast %101 : f32 to vector<8x128xf32>
    %2919 = arith.addf %2917, %2918 : vector<8x128xf32>
    %2920 = arith.mulf %2910, %2812 : vector<8x128xf32>
    %cst_305 = arith.constant 1.000000e+00 : f32
    %2921 = vector.broadcast %cst_305 : f32 to vector<8x128xf32>
    %2922 = arith.subf %2921, %2919 : vector<8x128xf32>
    %2923 = arith.mulf %2922, %2821 : vector<8x128xf32>
    %2924 = arith.addf %2920, %2923 : vector<8x128xf32>
    %2925 = vector.broadcast %102 : f32 to vector<8x128xf32>
    %2926 = arith.mulf %2341, %2925 : vector<8x128xf32>
    %2927 = vector.broadcast %103 : f32 to vector<8x128xf32>
    %2928 = arith.addf %2926, %2927 : vector<8x128xf32>
    %2929 = arith.mulf %2919, %2821 : vector<8x128xf32>
    %cst_306 = arith.constant 1.000000e+00 : f32
    %2930 = vector.broadcast %cst_306 : f32 to vector<8x128xf32>
    %2931 = arith.subf %2930, %2928 : vector<8x128xf32>
    %2932 = arith.mulf %2931, %2830 : vector<8x128xf32>
    %2933 = arith.addf %2929, %2932 : vector<8x128xf32>
    %2934 = vector.broadcast %104 : f32 to vector<8x128xf32>
    %2935 = arith.mulf %2341, %2934 : vector<8x128xf32>
    %2936 = vector.broadcast %105 : f32 to vector<8x128xf32>
    %2937 = arith.addf %2935, %2936 : vector<8x128xf32>
    %2938 = arith.mulf %2928, %2830 : vector<8x128xf32>
    %cst_307 = arith.constant 1.000000e+00 : f32
    %2939 = vector.broadcast %cst_307 : f32 to vector<8x128xf32>
    %2940 = arith.subf %2939, %2937 : vector<8x128xf32>
    %2941 = arith.mulf %2940, %2839 : vector<8x128xf32>
    %2942 = arith.addf %2938, %2941 : vector<8x128xf32>
    %2943 = vector.broadcast %106 : f32 to vector<8x128xf32>
    %2944 = arith.mulf %2341, %2943 : vector<8x128xf32>
    %2945 = vector.broadcast %107 : f32 to vector<8x128xf32>
    %2946 = arith.addf %2944, %2945 : vector<8x128xf32>
    %2947 = arith.mulf %2937, %2839 : vector<8x128xf32>
    %cst_308 = arith.constant 1.000000e+00 : f32
    %2948 = vector.broadcast %cst_308 : f32 to vector<8x128xf32>
    %2949 = arith.subf %2948, %2946 : vector<8x128xf32>
    %2950 = arith.mulf %2949, %2848 : vector<8x128xf32>
    %2951 = arith.addf %2947, %2950 : vector<8x128xf32>
    %2952 = vector.broadcast %108 : f32 to vector<8x128xf32>
    %2953 = arith.mulf %2341, %2952 : vector<8x128xf32>
    %2954 = vector.broadcast %109 : f32 to vector<8x128xf32>
    %2955 = arith.addf %2953, %2954 : vector<8x128xf32>
    %2956 = arith.mulf %2946, %2848 : vector<8x128xf32>
    %cst_309 = arith.constant 1.000000e+00 : f32
    %2957 = vector.broadcast %cst_309 : f32 to vector<8x128xf32>
    %2958 = arith.subf %2957, %2955 : vector<8x128xf32>
    %2959 = arith.mulf %2958, %2857 : vector<8x128xf32>
    %2960 = arith.addf %2956, %2959 : vector<8x128xf32>
    %2961 = vector.broadcast %110 : f32 to vector<8x128xf32>
    %2962 = arith.mulf %2341, %2961 : vector<8x128xf32>
    %2963 = vector.broadcast %111 : f32 to vector<8x128xf32>
    %2964 = arith.addf %2962, %2963 : vector<8x128xf32>
    %2965 = vector.broadcast %112 : f32 to vector<8x128xf32>
    %2966 = arith.mulf %2341, %2965 : vector<8x128xf32>
    %2967 = vector.broadcast %113 : f32 to vector<8x128xf32>
    %2968 = arith.addf %2966, %2967 : vector<8x128xf32>
    %2969 = arith.mulf %2964, %2870 : vector<8x128xf32>
    %cst_310 = arith.constant 1.000000e+00 : f32
    %2970 = vector.broadcast %cst_310 : f32 to vector<8x128xf32>
    %2971 = arith.subf %2970, %2968 : vector<8x128xf32>
    %2972 = arith.mulf %2971, %2879 : vector<8x128xf32>
    %2973 = arith.addf %2969, %2972 : vector<8x128xf32>
    %2974 = vector.broadcast %114 : f32 to vector<8x128xf32>
    %2975 = arith.mulf %2341, %2974 : vector<8x128xf32>
    %2976 = vector.broadcast %115 : f32 to vector<8x128xf32>
    %2977 = arith.addf %2975, %2976 : vector<8x128xf32>
    %2978 = arith.mulf %2968, %2879 : vector<8x128xf32>
    %cst_311 = arith.constant 1.000000e+00 : f32
    %2979 = vector.broadcast %cst_311 : f32 to vector<8x128xf32>
    %2980 = arith.subf %2979, %2977 : vector<8x128xf32>
    %2981 = arith.mulf %2980, %2888 : vector<8x128xf32>
    %2982 = arith.addf %2978, %2981 : vector<8x128xf32>
    %2983 = vector.broadcast %116 : f32 to vector<8x128xf32>
    %2984 = arith.mulf %2341, %2983 : vector<8x128xf32>
    %2985 = vector.broadcast %117 : f32 to vector<8x128xf32>
    %2986 = arith.addf %2984, %2985 : vector<8x128xf32>
    %2987 = arith.mulf %2977, %2888 : vector<8x128xf32>
    %cst_312 = arith.constant 1.000000e+00 : f32
    %2988 = vector.broadcast %cst_312 : f32 to vector<8x128xf32>
    %2989 = arith.subf %2988, %2986 : vector<8x128xf32>
    %2990 = arith.mulf %2989, %2897 : vector<8x128xf32>
    %2991 = arith.addf %2987, %2990 : vector<8x128xf32>
    %2992 = vector.broadcast %118 : f32 to vector<8x128xf32>
    %2993 = arith.mulf %2341, %2992 : vector<8x128xf32>
    %2994 = vector.broadcast %119 : f32 to vector<8x128xf32>
    %2995 = arith.addf %2993, %2994 : vector<8x128xf32>
    %2996 = arith.mulf %2986, %2897 : vector<8x128xf32>
    %cst_313 = arith.constant 1.000000e+00 : f32
    %2997 = vector.broadcast %cst_313 : f32 to vector<8x128xf32>
    %2998 = arith.subf %2997, %2995 : vector<8x128xf32>
    %2999 = arith.mulf %2998, %2906 : vector<8x128xf32>
    %3000 = arith.addf %2996, %2999 : vector<8x128xf32>
    %3001 = vector.broadcast %120 : f32 to vector<8x128xf32>
    %3002 = arith.mulf %2341, %3001 : vector<8x128xf32>
    %3003 = vector.broadcast %121 : f32 to vector<8x128xf32>
    %3004 = arith.addf %3002, %3003 : vector<8x128xf32>
    %3005 = arith.mulf %2995, %2906 : vector<8x128xf32>
    %cst_314 = arith.constant 1.000000e+00 : f32
    %3006 = vector.broadcast %cst_314 : f32 to vector<8x128xf32>
    %3007 = arith.subf %3006, %3004 : vector<8x128xf32>
    %3008 = arith.mulf %3007, %2915 : vector<8x128xf32>
    %3009 = arith.addf %3005, %3008 : vector<8x128xf32>
    %3010 = vector.broadcast %122 : f32 to vector<8x128xf32>
    %3011 = arith.mulf %2341, %3010 : vector<8x128xf32>
    %3012 = vector.broadcast %123 : f32 to vector<8x128xf32>
    %3013 = arith.addf %3011, %3012 : vector<8x128xf32>
    %3014 = arith.mulf %3004, %2915 : vector<8x128xf32>
    %cst_315 = arith.constant 1.000000e+00 : f32
    %3015 = vector.broadcast %cst_315 : f32 to vector<8x128xf32>
    %3016 = arith.subf %3015, %3013 : vector<8x128xf32>
    %3017 = arith.mulf %3016, %2924 : vector<8x128xf32>
    %3018 = arith.addf %3014, %3017 : vector<8x128xf32>
    %3019 = vector.broadcast %124 : f32 to vector<8x128xf32>
    %3020 = arith.mulf %2341, %3019 : vector<8x128xf32>
    %3021 = vector.broadcast %125 : f32 to vector<8x128xf32>
    %3022 = arith.addf %3020, %3021 : vector<8x128xf32>
    %3023 = arith.mulf %3013, %2924 : vector<8x128xf32>
    %cst_316 = arith.constant 1.000000e+00 : f32
    %3024 = vector.broadcast %cst_316 : f32 to vector<8x128xf32>
    %3025 = arith.subf %3024, %3022 : vector<8x128xf32>
    %3026 = arith.mulf %3025, %2933 : vector<8x128xf32>
    %3027 = arith.addf %3023, %3026 : vector<8x128xf32>
    %3028 = vector.broadcast %126 : f32 to vector<8x128xf32>
    %3029 = arith.mulf %2341, %3028 : vector<8x128xf32>
    %3030 = vector.broadcast %127 : f32 to vector<8x128xf32>
    %3031 = arith.addf %3029, %3030 : vector<8x128xf32>
    %3032 = arith.mulf %3022, %2933 : vector<8x128xf32>
    %cst_317 = arith.constant 1.000000e+00 : f32
    %3033 = vector.broadcast %cst_317 : f32 to vector<8x128xf32>
    %3034 = arith.subf %3033, %3031 : vector<8x128xf32>
    %3035 = arith.mulf %3034, %2942 : vector<8x128xf32>
    %3036 = arith.addf %3032, %3035 : vector<8x128xf32>
    %3037 = vector.broadcast %128 : f32 to vector<8x128xf32>
    %3038 = arith.mulf %2341, %3037 : vector<8x128xf32>
    %3039 = vector.broadcast %129 : f32 to vector<8x128xf32>
    %3040 = arith.addf %3038, %3039 : vector<8x128xf32>
    %3041 = arith.mulf %3031, %2942 : vector<8x128xf32>
    %cst_318 = arith.constant 1.000000e+00 : f32
    %3042 = vector.broadcast %cst_318 : f32 to vector<8x128xf32>
    %3043 = arith.subf %3042, %3040 : vector<8x128xf32>
    %3044 = arith.mulf %3043, %2951 : vector<8x128xf32>
    %3045 = arith.addf %3041, %3044 : vector<8x128xf32>
    %3046 = vector.broadcast %130 : f32 to vector<8x128xf32>
    %3047 = arith.mulf %2341, %3046 : vector<8x128xf32>
    %3048 = vector.broadcast %131 : f32 to vector<8x128xf32>
    %3049 = arith.addf %3047, %3048 : vector<8x128xf32>
    %3050 = arith.mulf %3040, %2951 : vector<8x128xf32>
    %cst_319 = arith.constant 1.000000e+00 : f32
    %3051 = vector.broadcast %cst_319 : f32 to vector<8x128xf32>
    %3052 = arith.subf %3051, %3049 : vector<8x128xf32>
    %3053 = arith.mulf %3052, %2960 : vector<8x128xf32>
    %3054 = arith.addf %3050, %3053 : vector<8x128xf32>
    %cst_320 = arith.constant 0.000000e+00 : f32
    %3055 = vector.broadcast %cst_320 : f32 to vector<8x128xf32>
    %3056 = arith.subf %3055, %2341 : vector<8x128xf32>
    %3057 = math.exp %3056 : vector<8x128xf32>
    %cst_321 = arith.constant 1.000000e+00 : f32
    %3058 = vector.broadcast %cst_321 : f32 to vector<8x128xf32>
    %3059 = arith.addf %3058, %3057 : vector<8x128xf32>
    %cst_322 = arith.constant 1.000000e+00 : f32
    %3060 = vector.broadcast %cst_322 : f32 to vector<8x128xf32>
    %3061 = arith.divf %3060, %3059 : vector<8x128xf32>
    %3062 = arith.mulf %2341, %3061 : vector<8x128xf32>
    %c231 = arith.constant 231 : index
    %3063 = memref.load %arg1[%c231] : memref<264xf32, #tpu.memory_space<smem>>
    %3064 = vector.broadcast %3063 : f32 to vector<8x128xf32>
    %3065 = arith.mulf %3064, %3062 : vector<8x128xf32>
    %c232 = arith.constant 232 : index
    %3066 = memref.load %arg1[%c232] : memref<264xf32, #tpu.memory_space<smem>>
    %3067 = vector.broadcast %3066 : f32 to vector<8x128xf32>
    %3068 = arith.mulf %3067, %2973 : vector<8x128xf32>
    %3069 = arith.addf %3065, %3068 : vector<8x128xf32>
    %c233 = arith.constant 233 : index
    %3070 = memref.load %arg1[%c233] : memref<264xf32, #tpu.memory_space<smem>>
    %3071 = vector.broadcast %3070 : f32 to vector<8x128xf32>
    %3072 = arith.mulf %3071, %2982 : vector<8x128xf32>
    %3073 = arith.addf %3069, %3072 : vector<8x128xf32>
    %c234 = arith.constant 234 : index
    %3074 = memref.load %arg1[%c234] : memref<264xf32, #tpu.memory_space<smem>>
    %3075 = vector.broadcast %3074 : f32 to vector<8x128xf32>
    %3076 = arith.mulf %3075, %2991 : vector<8x128xf32>
    %3077 = arith.addf %3073, %3076 : vector<8x128xf32>
    %c235 = arith.constant 235 : index
    %3078 = memref.load %arg1[%c235] : memref<264xf32, #tpu.memory_space<smem>>
    %3079 = vector.broadcast %3078 : f32 to vector<8x128xf32>
    %3080 = arith.mulf %3079, %3000 : vector<8x128xf32>
    %3081 = arith.addf %3077, %3080 : vector<8x128xf32>
    %c236 = arith.constant 236 : index
    %3082 = memref.load %arg1[%c236] : memref<264xf32, #tpu.memory_space<smem>>
    %3083 = vector.broadcast %3082 : f32 to vector<8x128xf32>
    %3084 = arith.mulf %3083, %3009 : vector<8x128xf32>
    %3085 = arith.addf %3081, %3084 : vector<8x128xf32>
    %c237 = arith.constant 237 : index
    %3086 = memref.load %arg1[%c237] : memref<264xf32, #tpu.memory_space<smem>>
    %3087 = vector.broadcast %3086 : f32 to vector<8x128xf32>
    %3088 = arith.mulf %3087, %3018 : vector<8x128xf32>
    %3089 = arith.addf %3085, %3088 : vector<8x128xf32>
    %c238 = arith.constant 238 : index
    %3090 = memref.load %arg1[%c238] : memref<264xf32, #tpu.memory_space<smem>>
    %3091 = vector.broadcast %3090 : f32 to vector<8x128xf32>
    %3092 = arith.mulf %3091, %3027 : vector<8x128xf32>
    %3093 = arith.addf %3089, %3092 : vector<8x128xf32>
    %c239 = arith.constant 239 : index
    %3094 = memref.load %arg1[%c239] : memref<264xf32, #tpu.memory_space<smem>>
    %3095 = vector.broadcast %3094 : f32 to vector<8x128xf32>
    %3096 = arith.mulf %3095, %3036 : vector<8x128xf32>
    %3097 = arith.addf %3093, %3096 : vector<8x128xf32>
    %c240 = arith.constant 240 : index
    %3098 = memref.load %arg1[%c240] : memref<264xf32, #tpu.memory_space<smem>>
    %3099 = vector.broadcast %3098 : f32 to vector<8x128xf32>
    %3100 = arith.mulf %3099, %3045 : vector<8x128xf32>
    %3101 = arith.addf %3097, %3100 : vector<8x128xf32>
    %c241 = arith.constant 241 : index
    %3102 = memref.load %arg1[%c241] : memref<264xf32, #tpu.memory_space<smem>>
    %3103 = vector.broadcast %3102 : f32 to vector<8x128xf32>
    %3104 = arith.mulf %3103, %3054 : vector<8x128xf32>
    %3105 = arith.addf %3101, %3104 : vector<8x128xf32>
    %3106 = vector.broadcast %0 : f32 to vector<8x128xf32>
    %3107 = arith.subf %2385, %3106 : vector<8x128xf32>
    %3108 = vector.broadcast %1 : f32 to vector<8x128xf32>
    %3109 = arith.mulf %3107, %3108 : vector<8x128xf32>
    %3110 = math.floor %3109 : vector<8x128xf32>
    %cst_323 = arith.constant 0.000000e+00 : f32
    %3111 = vector.broadcast %cst_323 : f32 to vector<8x128xf32>
    %3112 = arith.cmpf oeq, %3110, %3111 : vector<8x128xf32>
    %3113 = arith.extui %3112 : vector<8x128xi1> to vector<8x128xi32>
    %3114 = arith.sitofp %3113 : vector<8x128xi32> to vector<8x128xf32>
    %cst_324 = arith.constant 1.000000e+00 : f32
    %3115 = vector.broadcast %cst_324 : f32 to vector<8x128xf32>
    %3116 = arith.cmpf oeq, %3110, %3115 : vector<8x128xf32>
    %3117 = arith.extui %3116 : vector<8x128xi1> to vector<8x128xi32>
    %3118 = arith.sitofp %3117 : vector<8x128xi32> to vector<8x128xf32>
    %cst_325 = arith.constant 2.000000e+00 : f32
    %3119 = vector.broadcast %cst_325 : f32 to vector<8x128xf32>
    %3120 = arith.cmpf oeq, %3110, %3119 : vector<8x128xf32>
    %3121 = arith.extui %3120 : vector<8x128xi1> to vector<8x128xi32>
    %3122 = arith.sitofp %3121 : vector<8x128xi32> to vector<8x128xf32>
    %cst_326 = arith.constant 3.000000e+00 : f32
    %3123 = vector.broadcast %cst_326 : f32 to vector<8x128xf32>
    %3124 = arith.cmpf oeq, %3110, %3123 : vector<8x128xf32>
    %3125 = arith.extui %3124 : vector<8x128xi1> to vector<8x128xi32>
    %3126 = arith.sitofp %3125 : vector<8x128xi32> to vector<8x128xf32>
    %cst_327 = arith.constant 4.000000e+00 : f32
    %3127 = vector.broadcast %cst_327 : f32 to vector<8x128xf32>
    %3128 = arith.cmpf oeq, %3110, %3127 : vector<8x128xf32>
    %3129 = arith.extui %3128 : vector<8x128xi1> to vector<8x128xi32>
    %3130 = arith.sitofp %3129 : vector<8x128xi32> to vector<8x128xf32>
    %cst_328 = arith.constant 5.000000e+00 : f32
    %3131 = vector.broadcast %cst_328 : f32 to vector<8x128xf32>
    %3132 = arith.cmpf oeq, %3110, %3131 : vector<8x128xf32>
    %3133 = arith.extui %3132 : vector<8x128xi1> to vector<8x128xi32>
    %3134 = arith.sitofp %3133 : vector<8x128xi32> to vector<8x128xf32>
    %cst_329 = arith.constant 6.000000e+00 : f32
    %3135 = vector.broadcast %cst_329 : f32 to vector<8x128xf32>
    %3136 = arith.cmpf oeq, %3110, %3135 : vector<8x128xf32>
    %3137 = arith.extui %3136 : vector<8x128xi1> to vector<8x128xi32>
    %3138 = arith.sitofp %3137 : vector<8x128xi32> to vector<8x128xf32>
    %cst_330 = arith.constant 7.000000e+00 : f32
    %3139 = vector.broadcast %cst_330 : f32 to vector<8x128xf32>
    %3140 = arith.cmpf oeq, %3110, %3139 : vector<8x128xf32>
    %3141 = arith.extui %3140 : vector<8x128xi1> to vector<8x128xi32>
    %3142 = arith.sitofp %3141 : vector<8x128xi32> to vector<8x128xf32>
    %cst_331 = arith.constant 8.000000e+00 : f32
    %3143 = vector.broadcast %cst_331 : f32 to vector<8x128xf32>
    %3144 = arith.cmpf oeq, %3110, %3143 : vector<8x128xf32>
    %3145 = arith.extui %3144 : vector<8x128xi1> to vector<8x128xi32>
    %3146 = arith.sitofp %3145 : vector<8x128xi32> to vector<8x128xf32>
    %cst_332 = arith.constant 9.000000e+00 : f32
    %3147 = vector.broadcast %cst_332 : f32 to vector<8x128xf32>
    %3148 = arith.cmpf oeq, %3110, %3147 : vector<8x128xf32>
    %3149 = arith.extui %3148 : vector<8x128xi1> to vector<8x128xi32>
    %3150 = arith.sitofp %3149 : vector<8x128xi32> to vector<8x128xf32>
    %cst_333 = arith.constant 1.000000e+01 : f32
    %3151 = vector.broadcast %cst_333 : f32 to vector<8x128xf32>
    %3152 = arith.cmpf oeq, %3110, %3151 : vector<8x128xf32>
    %3153 = arith.extui %3152 : vector<8x128xi1> to vector<8x128xi32>
    %3154 = arith.sitofp %3153 : vector<8x128xi32> to vector<8x128xf32>
    %cst_334 = arith.constant 1.100000e+01 : f32
    %3155 = vector.broadcast %cst_334 : f32 to vector<8x128xf32>
    %3156 = arith.cmpf oeq, %3110, %3155 : vector<8x128xf32>
    %3157 = arith.extui %3156 : vector<8x128xi1> to vector<8x128xi32>
    %3158 = arith.sitofp %3157 : vector<8x128xi32> to vector<8x128xf32>
    %cst_335 = arith.constant 1.200000e+01 : f32
    %3159 = vector.broadcast %cst_335 : f32 to vector<8x128xf32>
    %3160 = arith.cmpf oeq, %3110, %3159 : vector<8x128xf32>
    %3161 = arith.extui %3160 : vector<8x128xi1> to vector<8x128xi32>
    %3162 = arith.sitofp %3161 : vector<8x128xi32> to vector<8x128xf32>
    %cst_336 = arith.constant 1.300000e+01 : f32
    %3163 = vector.broadcast %cst_336 : f32 to vector<8x128xf32>
    %3164 = arith.cmpf oeq, %3110, %3163 : vector<8x128xf32>
    %3165 = arith.extui %3164 : vector<8x128xi1> to vector<8x128xi32>
    %3166 = arith.sitofp %3165 : vector<8x128xi32> to vector<8x128xf32>
    %cst_337 = arith.constant 1.400000e+01 : f32
    %3167 = vector.broadcast %cst_337 : f32 to vector<8x128xf32>
    %3168 = arith.cmpf oeq, %3110, %3167 : vector<8x128xf32>
    %3169 = arith.extui %3168 : vector<8x128xi1> to vector<8x128xi32>
    %3170 = arith.sitofp %3169 : vector<8x128xi32> to vector<8x128xf32>
    %3171 = vector.broadcast %2 : f32 to vector<8x128xf32>
    %3172 = arith.mulf %2385, %3171 : vector<8x128xf32>
    %3173 = vector.broadcast %3 : f32 to vector<8x128xf32>
    %3174 = arith.addf %3172, %3173 : vector<8x128xf32>
    %3175 = vector.broadcast %4 : f32 to vector<8x128xf32>
    %3176 = arith.mulf %2385, %3175 : vector<8x128xf32>
    %3177 = vector.broadcast %5 : f32 to vector<8x128xf32>
    %3178 = arith.addf %3176, %3177 : vector<8x128xf32>
    %3179 = arith.mulf %3174, %3114 : vector<8x128xf32>
    %cst_338 = arith.constant 1.000000e+00 : f32
    %3180 = vector.broadcast %cst_338 : f32 to vector<8x128xf32>
    %3181 = arith.subf %3180, %3178 : vector<8x128xf32>
    %3182 = arith.mulf %3181, %3118 : vector<8x128xf32>
    %3183 = arith.addf %3179, %3182 : vector<8x128xf32>
    %3184 = vector.broadcast %6 : f32 to vector<8x128xf32>
    %3185 = arith.mulf %2385, %3184 : vector<8x128xf32>
    %3186 = vector.broadcast %7 : f32 to vector<8x128xf32>
    %3187 = arith.addf %3185, %3186 : vector<8x128xf32>
    %3188 = arith.mulf %3178, %3118 : vector<8x128xf32>
    %cst_339 = arith.constant 1.000000e+00 : f32
    %3189 = vector.broadcast %cst_339 : f32 to vector<8x128xf32>
    %3190 = arith.subf %3189, %3187 : vector<8x128xf32>
    %3191 = arith.mulf %3190, %3122 : vector<8x128xf32>
    %3192 = arith.addf %3188, %3191 : vector<8x128xf32>
    %3193 = vector.broadcast %8 : f32 to vector<8x128xf32>
    %3194 = arith.mulf %2385, %3193 : vector<8x128xf32>
    %3195 = vector.broadcast %9 : f32 to vector<8x128xf32>
    %3196 = arith.addf %3194, %3195 : vector<8x128xf32>
    %3197 = arith.mulf %3187, %3122 : vector<8x128xf32>
    %cst_340 = arith.constant 1.000000e+00 : f32
    %3198 = vector.broadcast %cst_340 : f32 to vector<8x128xf32>
    %3199 = arith.subf %3198, %3196 : vector<8x128xf32>
    %3200 = arith.mulf %3199, %3126 : vector<8x128xf32>
    %3201 = arith.addf %3197, %3200 : vector<8x128xf32>
    %3202 = vector.broadcast %10 : f32 to vector<8x128xf32>
    %3203 = arith.mulf %2385, %3202 : vector<8x128xf32>
    %3204 = vector.broadcast %11 : f32 to vector<8x128xf32>
    %3205 = arith.addf %3203, %3204 : vector<8x128xf32>
    %3206 = arith.mulf %3196, %3126 : vector<8x128xf32>
    %cst_341 = arith.constant 1.000000e+00 : f32
    %3207 = vector.broadcast %cst_341 : f32 to vector<8x128xf32>
    %3208 = arith.subf %3207, %3205 : vector<8x128xf32>
    %3209 = arith.mulf %3208, %3130 : vector<8x128xf32>
    %3210 = arith.addf %3206, %3209 : vector<8x128xf32>
    %3211 = vector.broadcast %12 : f32 to vector<8x128xf32>
    %3212 = arith.mulf %2385, %3211 : vector<8x128xf32>
    %3213 = vector.broadcast %13 : f32 to vector<8x128xf32>
    %3214 = arith.addf %3212, %3213 : vector<8x128xf32>
    %3215 = arith.mulf %3205, %3130 : vector<8x128xf32>
    %cst_342 = arith.constant 1.000000e+00 : f32
    %3216 = vector.broadcast %cst_342 : f32 to vector<8x128xf32>
    %3217 = arith.subf %3216, %3214 : vector<8x128xf32>
    %3218 = arith.mulf %3217, %3134 : vector<8x128xf32>
    %3219 = arith.addf %3215, %3218 : vector<8x128xf32>
    %3220 = vector.broadcast %14 : f32 to vector<8x128xf32>
    %3221 = arith.mulf %2385, %3220 : vector<8x128xf32>
    %3222 = vector.broadcast %15 : f32 to vector<8x128xf32>
    %3223 = arith.addf %3221, %3222 : vector<8x128xf32>
    %3224 = arith.mulf %3214, %3134 : vector<8x128xf32>
    %cst_343 = arith.constant 1.000000e+00 : f32
    %3225 = vector.broadcast %cst_343 : f32 to vector<8x128xf32>
    %3226 = arith.subf %3225, %3223 : vector<8x128xf32>
    %3227 = arith.mulf %3226, %3138 : vector<8x128xf32>
    %3228 = arith.addf %3224, %3227 : vector<8x128xf32>
    %3229 = vector.broadcast %16 : f32 to vector<8x128xf32>
    %3230 = arith.mulf %2385, %3229 : vector<8x128xf32>
    %3231 = vector.broadcast %17 : f32 to vector<8x128xf32>
    %3232 = arith.addf %3230, %3231 : vector<8x128xf32>
    %3233 = arith.mulf %3223, %3138 : vector<8x128xf32>
    %cst_344 = arith.constant 1.000000e+00 : f32
    %3234 = vector.broadcast %cst_344 : f32 to vector<8x128xf32>
    %3235 = arith.subf %3234, %3232 : vector<8x128xf32>
    %3236 = arith.mulf %3235, %3142 : vector<8x128xf32>
    %3237 = arith.addf %3233, %3236 : vector<8x128xf32>
    %3238 = vector.broadcast %18 : f32 to vector<8x128xf32>
    %3239 = arith.mulf %2385, %3238 : vector<8x128xf32>
    %3240 = vector.broadcast %19 : f32 to vector<8x128xf32>
    %3241 = arith.addf %3239, %3240 : vector<8x128xf32>
    %3242 = arith.mulf %3232, %3142 : vector<8x128xf32>
    %cst_345 = arith.constant 1.000000e+00 : f32
    %3243 = vector.broadcast %cst_345 : f32 to vector<8x128xf32>
    %3244 = arith.subf %3243, %3241 : vector<8x128xf32>
    %3245 = arith.mulf %3244, %3146 : vector<8x128xf32>
    %3246 = arith.addf %3242, %3245 : vector<8x128xf32>
    %3247 = vector.broadcast %20 : f32 to vector<8x128xf32>
    %3248 = arith.mulf %2385, %3247 : vector<8x128xf32>
    %3249 = vector.broadcast %21 : f32 to vector<8x128xf32>
    %3250 = arith.addf %3248, %3249 : vector<8x128xf32>
    %3251 = arith.mulf %3241, %3146 : vector<8x128xf32>
    %cst_346 = arith.constant 1.000000e+00 : f32
    %3252 = vector.broadcast %cst_346 : f32 to vector<8x128xf32>
    %3253 = arith.subf %3252, %3250 : vector<8x128xf32>
    %3254 = arith.mulf %3253, %3150 : vector<8x128xf32>
    %3255 = arith.addf %3251, %3254 : vector<8x128xf32>
    %3256 = vector.broadcast %22 : f32 to vector<8x128xf32>
    %3257 = arith.mulf %2385, %3256 : vector<8x128xf32>
    %3258 = vector.broadcast %23 : f32 to vector<8x128xf32>
    %3259 = arith.addf %3257, %3258 : vector<8x128xf32>
    %3260 = arith.mulf %3250, %3150 : vector<8x128xf32>
    %cst_347 = arith.constant 1.000000e+00 : f32
    %3261 = vector.broadcast %cst_347 : f32 to vector<8x128xf32>
    %3262 = arith.subf %3261, %3259 : vector<8x128xf32>
    %3263 = arith.mulf %3262, %3154 : vector<8x128xf32>
    %3264 = arith.addf %3260, %3263 : vector<8x128xf32>
    %3265 = vector.broadcast %24 : f32 to vector<8x128xf32>
    %3266 = arith.mulf %2385, %3265 : vector<8x128xf32>
    %3267 = vector.broadcast %25 : f32 to vector<8x128xf32>
    %3268 = arith.addf %3266, %3267 : vector<8x128xf32>
    %3269 = arith.mulf %3259, %3154 : vector<8x128xf32>
    %cst_348 = arith.constant 1.000000e+00 : f32
    %3270 = vector.broadcast %cst_348 : f32 to vector<8x128xf32>
    %3271 = arith.subf %3270, %3268 : vector<8x128xf32>
    %3272 = arith.mulf %3271, %3158 : vector<8x128xf32>
    %3273 = arith.addf %3269, %3272 : vector<8x128xf32>
    %3274 = vector.broadcast %26 : f32 to vector<8x128xf32>
    %3275 = arith.mulf %2385, %3274 : vector<8x128xf32>
    %3276 = vector.broadcast %27 : f32 to vector<8x128xf32>
    %3277 = arith.addf %3275, %3276 : vector<8x128xf32>
    %3278 = arith.mulf %3268, %3158 : vector<8x128xf32>
    %cst_349 = arith.constant 1.000000e+00 : f32
    %3279 = vector.broadcast %cst_349 : f32 to vector<8x128xf32>
    %3280 = arith.subf %3279, %3277 : vector<8x128xf32>
    %3281 = arith.mulf %3280, %3162 : vector<8x128xf32>
    %3282 = arith.addf %3278, %3281 : vector<8x128xf32>
    %3283 = vector.broadcast %28 : f32 to vector<8x128xf32>
    %3284 = arith.mulf %2385, %3283 : vector<8x128xf32>
    %3285 = vector.broadcast %29 : f32 to vector<8x128xf32>
    %3286 = arith.addf %3284, %3285 : vector<8x128xf32>
    %3287 = arith.mulf %3277, %3162 : vector<8x128xf32>
    %cst_350 = arith.constant 1.000000e+00 : f32
    %3288 = vector.broadcast %cst_350 : f32 to vector<8x128xf32>
    %3289 = arith.subf %3288, %3286 : vector<8x128xf32>
    %3290 = arith.mulf %3289, %3166 : vector<8x128xf32>
    %3291 = arith.addf %3287, %3290 : vector<8x128xf32>
    %3292 = vector.broadcast %30 : f32 to vector<8x128xf32>
    %3293 = arith.mulf %2385, %3292 : vector<8x128xf32>
    %3294 = vector.broadcast %31 : f32 to vector<8x128xf32>
    %3295 = arith.addf %3293, %3294 : vector<8x128xf32>
    %3296 = arith.mulf %3286, %3166 : vector<8x128xf32>
    %cst_351 = arith.constant 1.000000e+00 : f32
    %3297 = vector.broadcast %cst_351 : f32 to vector<8x128xf32>
    %3298 = arith.subf %3297, %3295 : vector<8x128xf32>
    %3299 = arith.mulf %3298, %3170 : vector<8x128xf32>
    %3300 = arith.addf %3296, %3299 : vector<8x128xf32>
    %3301 = vector.broadcast %32 : f32 to vector<8x128xf32>
    %3302 = arith.mulf %2385, %3301 : vector<8x128xf32>
    %3303 = vector.broadcast %33 : f32 to vector<8x128xf32>
    %3304 = arith.addf %3302, %3303 : vector<8x128xf32>
    %3305 = vector.broadcast %34 : f32 to vector<8x128xf32>
    %3306 = arith.mulf %2385, %3305 : vector<8x128xf32>
    %3307 = vector.broadcast %35 : f32 to vector<8x128xf32>
    %3308 = arith.addf %3306, %3307 : vector<8x128xf32>
    %3309 = arith.mulf %3304, %3183 : vector<8x128xf32>
    %cst_352 = arith.constant 1.000000e+00 : f32
    %3310 = vector.broadcast %cst_352 : f32 to vector<8x128xf32>
    %3311 = arith.subf %3310, %3308 : vector<8x128xf32>
    %3312 = arith.mulf %3311, %3192 : vector<8x128xf32>
    %3313 = arith.addf %3309, %3312 : vector<8x128xf32>
    %3314 = vector.broadcast %36 : f32 to vector<8x128xf32>
    %3315 = arith.mulf %2385, %3314 : vector<8x128xf32>
    %3316 = vector.broadcast %37 : f32 to vector<8x128xf32>
    %3317 = arith.addf %3315, %3316 : vector<8x128xf32>
    %3318 = arith.mulf %3308, %3192 : vector<8x128xf32>
    %cst_353 = arith.constant 1.000000e+00 : f32
    %3319 = vector.broadcast %cst_353 : f32 to vector<8x128xf32>
    %3320 = arith.subf %3319, %3317 : vector<8x128xf32>
    %3321 = arith.mulf %3320, %3201 : vector<8x128xf32>
    %3322 = arith.addf %3318, %3321 : vector<8x128xf32>
    %3323 = vector.broadcast %38 : f32 to vector<8x128xf32>
    %3324 = arith.mulf %2385, %3323 : vector<8x128xf32>
    %3325 = vector.broadcast %39 : f32 to vector<8x128xf32>
    %3326 = arith.addf %3324, %3325 : vector<8x128xf32>
    %3327 = arith.mulf %3317, %3201 : vector<8x128xf32>
    %cst_354 = arith.constant 1.000000e+00 : f32
    %3328 = vector.broadcast %cst_354 : f32 to vector<8x128xf32>
    %3329 = arith.subf %3328, %3326 : vector<8x128xf32>
    %3330 = arith.mulf %3329, %3210 : vector<8x128xf32>
    %3331 = arith.addf %3327, %3330 : vector<8x128xf32>
    %3332 = vector.broadcast %40 : f32 to vector<8x128xf32>
    %3333 = arith.mulf %2385, %3332 : vector<8x128xf32>
    %3334 = vector.broadcast %41 : f32 to vector<8x128xf32>
    %3335 = arith.addf %3333, %3334 : vector<8x128xf32>
    %3336 = arith.mulf %3326, %3210 : vector<8x128xf32>
    %cst_355 = arith.constant 1.000000e+00 : f32
    %3337 = vector.broadcast %cst_355 : f32 to vector<8x128xf32>
    %3338 = arith.subf %3337, %3335 : vector<8x128xf32>
    %3339 = arith.mulf %3338, %3219 : vector<8x128xf32>
    %3340 = arith.addf %3336, %3339 : vector<8x128xf32>
    %3341 = vector.broadcast %42 : f32 to vector<8x128xf32>
    %3342 = arith.mulf %2385, %3341 : vector<8x128xf32>
    %3343 = vector.broadcast %43 : f32 to vector<8x128xf32>
    %3344 = arith.addf %3342, %3343 : vector<8x128xf32>
    %3345 = arith.mulf %3335, %3219 : vector<8x128xf32>
    %cst_356 = arith.constant 1.000000e+00 : f32
    %3346 = vector.broadcast %cst_356 : f32 to vector<8x128xf32>
    %3347 = arith.subf %3346, %3344 : vector<8x128xf32>
    %3348 = arith.mulf %3347, %3228 : vector<8x128xf32>
    %3349 = arith.addf %3345, %3348 : vector<8x128xf32>
    %3350 = vector.broadcast %44 : f32 to vector<8x128xf32>
    %3351 = arith.mulf %2385, %3350 : vector<8x128xf32>
    %3352 = vector.broadcast %45 : f32 to vector<8x128xf32>
    %3353 = arith.addf %3351, %3352 : vector<8x128xf32>
    %3354 = arith.mulf %3344, %3228 : vector<8x128xf32>
    %cst_357 = arith.constant 1.000000e+00 : f32
    %3355 = vector.broadcast %cst_357 : f32 to vector<8x128xf32>
    %3356 = arith.subf %3355, %3353 : vector<8x128xf32>
    %3357 = arith.mulf %3356, %3237 : vector<8x128xf32>
    %3358 = arith.addf %3354, %3357 : vector<8x128xf32>
    %3359 = vector.broadcast %46 : f32 to vector<8x128xf32>
    %3360 = arith.mulf %2385, %3359 : vector<8x128xf32>
    %3361 = vector.broadcast %47 : f32 to vector<8x128xf32>
    %3362 = arith.addf %3360, %3361 : vector<8x128xf32>
    %3363 = arith.mulf %3353, %3237 : vector<8x128xf32>
    %cst_358 = arith.constant 1.000000e+00 : f32
    %3364 = vector.broadcast %cst_358 : f32 to vector<8x128xf32>
    %3365 = arith.subf %3364, %3362 : vector<8x128xf32>
    %3366 = arith.mulf %3365, %3246 : vector<8x128xf32>
    %3367 = arith.addf %3363, %3366 : vector<8x128xf32>
    %3368 = vector.broadcast %48 : f32 to vector<8x128xf32>
    %3369 = arith.mulf %2385, %3368 : vector<8x128xf32>
    %3370 = vector.broadcast %49 : f32 to vector<8x128xf32>
    %3371 = arith.addf %3369, %3370 : vector<8x128xf32>
    %3372 = arith.mulf %3362, %3246 : vector<8x128xf32>
    %cst_359 = arith.constant 1.000000e+00 : f32
    %3373 = vector.broadcast %cst_359 : f32 to vector<8x128xf32>
    %3374 = arith.subf %3373, %3371 : vector<8x128xf32>
    %3375 = arith.mulf %3374, %3255 : vector<8x128xf32>
    %3376 = arith.addf %3372, %3375 : vector<8x128xf32>
    %3377 = vector.broadcast %50 : f32 to vector<8x128xf32>
    %3378 = arith.mulf %2385, %3377 : vector<8x128xf32>
    %3379 = vector.broadcast %51 : f32 to vector<8x128xf32>
    %3380 = arith.addf %3378, %3379 : vector<8x128xf32>
    %3381 = arith.mulf %3371, %3255 : vector<8x128xf32>
    %cst_360 = arith.constant 1.000000e+00 : f32
    %3382 = vector.broadcast %cst_360 : f32 to vector<8x128xf32>
    %3383 = arith.subf %3382, %3380 : vector<8x128xf32>
    %3384 = arith.mulf %3383, %3264 : vector<8x128xf32>
    %3385 = arith.addf %3381, %3384 : vector<8x128xf32>
    %3386 = vector.broadcast %52 : f32 to vector<8x128xf32>
    %3387 = arith.mulf %2385, %3386 : vector<8x128xf32>
    %3388 = vector.broadcast %53 : f32 to vector<8x128xf32>
    %3389 = arith.addf %3387, %3388 : vector<8x128xf32>
    %3390 = arith.mulf %3380, %3264 : vector<8x128xf32>
    %cst_361 = arith.constant 1.000000e+00 : f32
    %3391 = vector.broadcast %cst_361 : f32 to vector<8x128xf32>
    %3392 = arith.subf %3391, %3389 : vector<8x128xf32>
    %3393 = arith.mulf %3392, %3273 : vector<8x128xf32>
    %3394 = arith.addf %3390, %3393 : vector<8x128xf32>
    %3395 = vector.broadcast %54 : f32 to vector<8x128xf32>
    %3396 = arith.mulf %2385, %3395 : vector<8x128xf32>
    %3397 = vector.broadcast %55 : f32 to vector<8x128xf32>
    %3398 = arith.addf %3396, %3397 : vector<8x128xf32>
    %3399 = arith.mulf %3389, %3273 : vector<8x128xf32>
    %cst_362 = arith.constant 1.000000e+00 : f32
    %3400 = vector.broadcast %cst_362 : f32 to vector<8x128xf32>
    %3401 = arith.subf %3400, %3398 : vector<8x128xf32>
    %3402 = arith.mulf %3401, %3282 : vector<8x128xf32>
    %3403 = arith.addf %3399, %3402 : vector<8x128xf32>
    %3404 = vector.broadcast %56 : f32 to vector<8x128xf32>
    %3405 = arith.mulf %2385, %3404 : vector<8x128xf32>
    %3406 = vector.broadcast %57 : f32 to vector<8x128xf32>
    %3407 = arith.addf %3405, %3406 : vector<8x128xf32>
    %3408 = arith.mulf %3398, %3282 : vector<8x128xf32>
    %cst_363 = arith.constant 1.000000e+00 : f32
    %3409 = vector.broadcast %cst_363 : f32 to vector<8x128xf32>
    %3410 = arith.subf %3409, %3407 : vector<8x128xf32>
    %3411 = arith.mulf %3410, %3291 : vector<8x128xf32>
    %3412 = arith.addf %3408, %3411 : vector<8x128xf32>
    %3413 = vector.broadcast %58 : f32 to vector<8x128xf32>
    %3414 = arith.mulf %2385, %3413 : vector<8x128xf32>
    %3415 = vector.broadcast %59 : f32 to vector<8x128xf32>
    %3416 = arith.addf %3414, %3415 : vector<8x128xf32>
    %3417 = arith.mulf %3407, %3291 : vector<8x128xf32>
    %cst_364 = arith.constant 1.000000e+00 : f32
    %3418 = vector.broadcast %cst_364 : f32 to vector<8x128xf32>
    %3419 = arith.subf %3418, %3416 : vector<8x128xf32>
    %3420 = arith.mulf %3419, %3300 : vector<8x128xf32>
    %3421 = arith.addf %3417, %3420 : vector<8x128xf32>
    %3422 = vector.broadcast %60 : f32 to vector<8x128xf32>
    %3423 = arith.mulf %2385, %3422 : vector<8x128xf32>
    %3424 = vector.broadcast %61 : f32 to vector<8x128xf32>
    %3425 = arith.addf %3423, %3424 : vector<8x128xf32>
    %3426 = vector.broadcast %62 : f32 to vector<8x128xf32>
    %3427 = arith.mulf %2385, %3426 : vector<8x128xf32>
    %3428 = vector.broadcast %63 : f32 to vector<8x128xf32>
    %3429 = arith.addf %3427, %3428 : vector<8x128xf32>
    %3430 = arith.mulf %3425, %3313 : vector<8x128xf32>
    %cst_365 = arith.constant 1.000000e+00 : f32
    %3431 = vector.broadcast %cst_365 : f32 to vector<8x128xf32>
    %3432 = arith.subf %3431, %3429 : vector<8x128xf32>
    %3433 = arith.mulf %3432, %3322 : vector<8x128xf32>
    %3434 = arith.addf %3430, %3433 : vector<8x128xf32>
    %3435 = vector.broadcast %64 : f32 to vector<8x128xf32>
    %3436 = arith.mulf %2385, %3435 : vector<8x128xf32>
    %3437 = vector.broadcast %65 : f32 to vector<8x128xf32>
    %3438 = arith.addf %3436, %3437 : vector<8x128xf32>
    %3439 = arith.mulf %3429, %3322 : vector<8x128xf32>
    %cst_366 = arith.constant 1.000000e+00 : f32
    %3440 = vector.broadcast %cst_366 : f32 to vector<8x128xf32>
    %3441 = arith.subf %3440, %3438 : vector<8x128xf32>
    %3442 = arith.mulf %3441, %3331 : vector<8x128xf32>
    %3443 = arith.addf %3439, %3442 : vector<8x128xf32>
    %3444 = vector.broadcast %66 : f32 to vector<8x128xf32>
    %3445 = arith.mulf %2385, %3444 : vector<8x128xf32>
    %3446 = vector.broadcast %67 : f32 to vector<8x128xf32>
    %3447 = arith.addf %3445, %3446 : vector<8x128xf32>
    %3448 = arith.mulf %3438, %3331 : vector<8x128xf32>
    %cst_367 = arith.constant 1.000000e+00 : f32
    %3449 = vector.broadcast %cst_367 : f32 to vector<8x128xf32>
    %3450 = arith.subf %3449, %3447 : vector<8x128xf32>
    %3451 = arith.mulf %3450, %3340 : vector<8x128xf32>
    %3452 = arith.addf %3448, %3451 : vector<8x128xf32>
    %3453 = vector.broadcast %68 : f32 to vector<8x128xf32>
    %3454 = arith.mulf %2385, %3453 : vector<8x128xf32>
    %3455 = vector.broadcast %69 : f32 to vector<8x128xf32>
    %3456 = arith.addf %3454, %3455 : vector<8x128xf32>
    %3457 = arith.mulf %3447, %3340 : vector<8x128xf32>
    %cst_368 = arith.constant 1.000000e+00 : f32
    %3458 = vector.broadcast %cst_368 : f32 to vector<8x128xf32>
    %3459 = arith.subf %3458, %3456 : vector<8x128xf32>
    %3460 = arith.mulf %3459, %3349 : vector<8x128xf32>
    %3461 = arith.addf %3457, %3460 : vector<8x128xf32>
    %3462 = vector.broadcast %70 : f32 to vector<8x128xf32>
    %3463 = arith.mulf %2385, %3462 : vector<8x128xf32>
    %3464 = vector.broadcast %71 : f32 to vector<8x128xf32>
    %3465 = arith.addf %3463, %3464 : vector<8x128xf32>
    %3466 = arith.mulf %3456, %3349 : vector<8x128xf32>
    %cst_369 = arith.constant 1.000000e+00 : f32
    %3467 = vector.broadcast %cst_369 : f32 to vector<8x128xf32>
    %3468 = arith.subf %3467, %3465 : vector<8x128xf32>
    %3469 = arith.mulf %3468, %3358 : vector<8x128xf32>
    %3470 = arith.addf %3466, %3469 : vector<8x128xf32>
    %3471 = vector.broadcast %72 : f32 to vector<8x128xf32>
    %3472 = arith.mulf %2385, %3471 : vector<8x128xf32>
    %3473 = vector.broadcast %73 : f32 to vector<8x128xf32>
    %3474 = arith.addf %3472, %3473 : vector<8x128xf32>
    %3475 = arith.mulf %3465, %3358 : vector<8x128xf32>
    %cst_370 = arith.constant 1.000000e+00 : f32
    %3476 = vector.broadcast %cst_370 : f32 to vector<8x128xf32>
    %3477 = arith.subf %3476, %3474 : vector<8x128xf32>
    %3478 = arith.mulf %3477, %3367 : vector<8x128xf32>
    %3479 = arith.addf %3475, %3478 : vector<8x128xf32>
    %3480 = vector.broadcast %74 : f32 to vector<8x128xf32>
    %3481 = arith.mulf %2385, %3480 : vector<8x128xf32>
    %3482 = vector.broadcast %75 : f32 to vector<8x128xf32>
    %3483 = arith.addf %3481, %3482 : vector<8x128xf32>
    %3484 = arith.mulf %3474, %3367 : vector<8x128xf32>
    %cst_371 = arith.constant 1.000000e+00 : f32
    %3485 = vector.broadcast %cst_371 : f32 to vector<8x128xf32>
    %3486 = arith.subf %3485, %3483 : vector<8x128xf32>
    %3487 = arith.mulf %3486, %3376 : vector<8x128xf32>
    %3488 = arith.addf %3484, %3487 : vector<8x128xf32>
    %3489 = vector.broadcast %76 : f32 to vector<8x128xf32>
    %3490 = arith.mulf %2385, %3489 : vector<8x128xf32>
    %3491 = vector.broadcast %77 : f32 to vector<8x128xf32>
    %3492 = arith.addf %3490, %3491 : vector<8x128xf32>
    %3493 = arith.mulf %3483, %3376 : vector<8x128xf32>
    %cst_372 = arith.constant 1.000000e+00 : f32
    %3494 = vector.broadcast %cst_372 : f32 to vector<8x128xf32>
    %3495 = arith.subf %3494, %3492 : vector<8x128xf32>
    %3496 = arith.mulf %3495, %3385 : vector<8x128xf32>
    %3497 = arith.addf %3493, %3496 : vector<8x128xf32>
    %3498 = vector.broadcast %78 : f32 to vector<8x128xf32>
    %3499 = arith.mulf %2385, %3498 : vector<8x128xf32>
    %3500 = vector.broadcast %79 : f32 to vector<8x128xf32>
    %3501 = arith.addf %3499, %3500 : vector<8x128xf32>
    %3502 = arith.mulf %3492, %3385 : vector<8x128xf32>
    %cst_373 = arith.constant 1.000000e+00 : f32
    %3503 = vector.broadcast %cst_373 : f32 to vector<8x128xf32>
    %3504 = arith.subf %3503, %3501 : vector<8x128xf32>
    %3505 = arith.mulf %3504, %3394 : vector<8x128xf32>
    %3506 = arith.addf %3502, %3505 : vector<8x128xf32>
    %3507 = vector.broadcast %80 : f32 to vector<8x128xf32>
    %3508 = arith.mulf %2385, %3507 : vector<8x128xf32>
    %3509 = vector.broadcast %81 : f32 to vector<8x128xf32>
    %3510 = arith.addf %3508, %3509 : vector<8x128xf32>
    %3511 = arith.mulf %3501, %3394 : vector<8x128xf32>
    %cst_374 = arith.constant 1.000000e+00 : f32
    %3512 = vector.broadcast %cst_374 : f32 to vector<8x128xf32>
    %3513 = arith.subf %3512, %3510 : vector<8x128xf32>
    %3514 = arith.mulf %3513, %3403 : vector<8x128xf32>
    %3515 = arith.addf %3511, %3514 : vector<8x128xf32>
    %3516 = vector.broadcast %82 : f32 to vector<8x128xf32>
    %3517 = arith.mulf %2385, %3516 : vector<8x128xf32>
    %3518 = vector.broadcast %83 : f32 to vector<8x128xf32>
    %3519 = arith.addf %3517, %3518 : vector<8x128xf32>
    %3520 = arith.mulf %3510, %3403 : vector<8x128xf32>
    %cst_375 = arith.constant 1.000000e+00 : f32
    %3521 = vector.broadcast %cst_375 : f32 to vector<8x128xf32>
    %3522 = arith.subf %3521, %3519 : vector<8x128xf32>
    %3523 = arith.mulf %3522, %3412 : vector<8x128xf32>
    %3524 = arith.addf %3520, %3523 : vector<8x128xf32>
    %3525 = vector.broadcast %84 : f32 to vector<8x128xf32>
    %3526 = arith.mulf %2385, %3525 : vector<8x128xf32>
    %3527 = vector.broadcast %85 : f32 to vector<8x128xf32>
    %3528 = arith.addf %3526, %3527 : vector<8x128xf32>
    %3529 = arith.mulf %3519, %3412 : vector<8x128xf32>
    %cst_376 = arith.constant 1.000000e+00 : f32
    %3530 = vector.broadcast %cst_376 : f32 to vector<8x128xf32>
    %3531 = arith.subf %3530, %3528 : vector<8x128xf32>
    %3532 = arith.mulf %3531, %3421 : vector<8x128xf32>
    %3533 = arith.addf %3529, %3532 : vector<8x128xf32>
    %3534 = vector.broadcast %86 : f32 to vector<8x128xf32>
    %3535 = arith.mulf %2385, %3534 : vector<8x128xf32>
    %3536 = vector.broadcast %87 : f32 to vector<8x128xf32>
    %3537 = arith.addf %3535, %3536 : vector<8x128xf32>
    %3538 = vector.broadcast %88 : f32 to vector<8x128xf32>
    %3539 = arith.mulf %2385, %3538 : vector<8x128xf32>
    %3540 = vector.broadcast %89 : f32 to vector<8x128xf32>
    %3541 = arith.addf %3539, %3540 : vector<8x128xf32>
    %3542 = arith.mulf %3537, %3434 : vector<8x128xf32>
    %cst_377 = arith.constant 1.000000e+00 : f32
    %3543 = vector.broadcast %cst_377 : f32 to vector<8x128xf32>
    %3544 = arith.subf %3543, %3541 : vector<8x128xf32>
    %3545 = arith.mulf %3544, %3443 : vector<8x128xf32>
    %3546 = arith.addf %3542, %3545 : vector<8x128xf32>
    %3547 = vector.broadcast %90 : f32 to vector<8x128xf32>
    %3548 = arith.mulf %2385, %3547 : vector<8x128xf32>
    %3549 = vector.broadcast %91 : f32 to vector<8x128xf32>
    %3550 = arith.addf %3548, %3549 : vector<8x128xf32>
    %3551 = arith.mulf %3541, %3443 : vector<8x128xf32>
    %cst_378 = arith.constant 1.000000e+00 : f32
    %3552 = vector.broadcast %cst_378 : f32 to vector<8x128xf32>
    %3553 = arith.subf %3552, %3550 : vector<8x128xf32>
    %3554 = arith.mulf %3553, %3452 : vector<8x128xf32>
    %3555 = arith.addf %3551, %3554 : vector<8x128xf32>
    %3556 = vector.broadcast %92 : f32 to vector<8x128xf32>
    %3557 = arith.mulf %2385, %3556 : vector<8x128xf32>
    %3558 = vector.broadcast %93 : f32 to vector<8x128xf32>
    %3559 = arith.addf %3557, %3558 : vector<8x128xf32>
    %3560 = arith.mulf %3550, %3452 : vector<8x128xf32>
    %cst_379 = arith.constant 1.000000e+00 : f32
    %3561 = vector.broadcast %cst_379 : f32 to vector<8x128xf32>
    %3562 = arith.subf %3561, %3559 : vector<8x128xf32>
    %3563 = arith.mulf %3562, %3461 : vector<8x128xf32>
    %3564 = arith.addf %3560, %3563 : vector<8x128xf32>
    %3565 = vector.broadcast %94 : f32 to vector<8x128xf32>
    %3566 = arith.mulf %2385, %3565 : vector<8x128xf32>
    %3567 = vector.broadcast %95 : f32 to vector<8x128xf32>
    %3568 = arith.addf %3566, %3567 : vector<8x128xf32>
    %3569 = arith.mulf %3559, %3461 : vector<8x128xf32>
    %cst_380 = arith.constant 1.000000e+00 : f32
    %3570 = vector.broadcast %cst_380 : f32 to vector<8x128xf32>
    %3571 = arith.subf %3570, %3568 : vector<8x128xf32>
    %3572 = arith.mulf %3571, %3470 : vector<8x128xf32>
    %3573 = arith.addf %3569, %3572 : vector<8x128xf32>
    %3574 = vector.broadcast %96 : f32 to vector<8x128xf32>
    %3575 = arith.mulf %2385, %3574 : vector<8x128xf32>
    %3576 = vector.broadcast %97 : f32 to vector<8x128xf32>
    %3577 = arith.addf %3575, %3576 : vector<8x128xf32>
    %3578 = arith.mulf %3568, %3470 : vector<8x128xf32>
    %cst_381 = arith.constant 1.000000e+00 : f32
    %3579 = vector.broadcast %cst_381 : f32 to vector<8x128xf32>
    %3580 = arith.subf %3579, %3577 : vector<8x128xf32>
    %3581 = arith.mulf %3580, %3479 : vector<8x128xf32>
    %3582 = arith.addf %3578, %3581 : vector<8x128xf32>
    %3583 = vector.broadcast %98 : f32 to vector<8x128xf32>
    %3584 = arith.mulf %2385, %3583 : vector<8x128xf32>
    %3585 = vector.broadcast %99 : f32 to vector<8x128xf32>
    %3586 = arith.addf %3584, %3585 : vector<8x128xf32>
    %3587 = arith.mulf %3577, %3479 : vector<8x128xf32>
    %cst_382 = arith.constant 1.000000e+00 : f32
    %3588 = vector.broadcast %cst_382 : f32 to vector<8x128xf32>
    %3589 = arith.subf %3588, %3586 : vector<8x128xf32>
    %3590 = arith.mulf %3589, %3488 : vector<8x128xf32>
    %3591 = arith.addf %3587, %3590 : vector<8x128xf32>
    %3592 = vector.broadcast %100 : f32 to vector<8x128xf32>
    %3593 = arith.mulf %2385, %3592 : vector<8x128xf32>
    %3594 = vector.broadcast %101 : f32 to vector<8x128xf32>
    %3595 = arith.addf %3593, %3594 : vector<8x128xf32>
    %3596 = arith.mulf %3586, %3488 : vector<8x128xf32>
    %cst_383 = arith.constant 1.000000e+00 : f32
    %3597 = vector.broadcast %cst_383 : f32 to vector<8x128xf32>
    %3598 = arith.subf %3597, %3595 : vector<8x128xf32>
    %3599 = arith.mulf %3598, %3497 : vector<8x128xf32>
    %3600 = arith.addf %3596, %3599 : vector<8x128xf32>
    %3601 = vector.broadcast %102 : f32 to vector<8x128xf32>
    %3602 = arith.mulf %2385, %3601 : vector<8x128xf32>
    %3603 = vector.broadcast %103 : f32 to vector<8x128xf32>
    %3604 = arith.addf %3602, %3603 : vector<8x128xf32>
    %3605 = arith.mulf %3595, %3497 : vector<8x128xf32>
    %cst_384 = arith.constant 1.000000e+00 : f32
    %3606 = vector.broadcast %cst_384 : f32 to vector<8x128xf32>
    %3607 = arith.subf %3606, %3604 : vector<8x128xf32>
    %3608 = arith.mulf %3607, %3506 : vector<8x128xf32>
    %3609 = arith.addf %3605, %3608 : vector<8x128xf32>
    %3610 = vector.broadcast %104 : f32 to vector<8x128xf32>
    %3611 = arith.mulf %2385, %3610 : vector<8x128xf32>
    %3612 = vector.broadcast %105 : f32 to vector<8x128xf32>
    %3613 = arith.addf %3611, %3612 : vector<8x128xf32>
    %3614 = arith.mulf %3604, %3506 : vector<8x128xf32>
    %cst_385 = arith.constant 1.000000e+00 : f32
    %3615 = vector.broadcast %cst_385 : f32 to vector<8x128xf32>
    %3616 = arith.subf %3615, %3613 : vector<8x128xf32>
    %3617 = arith.mulf %3616, %3515 : vector<8x128xf32>
    %3618 = arith.addf %3614, %3617 : vector<8x128xf32>
    %3619 = vector.broadcast %106 : f32 to vector<8x128xf32>
    %3620 = arith.mulf %2385, %3619 : vector<8x128xf32>
    %3621 = vector.broadcast %107 : f32 to vector<8x128xf32>
    %3622 = arith.addf %3620, %3621 : vector<8x128xf32>
    %3623 = arith.mulf %3613, %3515 : vector<8x128xf32>
    %cst_386 = arith.constant 1.000000e+00 : f32
    %3624 = vector.broadcast %cst_386 : f32 to vector<8x128xf32>
    %3625 = arith.subf %3624, %3622 : vector<8x128xf32>
    %3626 = arith.mulf %3625, %3524 : vector<8x128xf32>
    %3627 = arith.addf %3623, %3626 : vector<8x128xf32>
    %3628 = vector.broadcast %108 : f32 to vector<8x128xf32>
    %3629 = arith.mulf %2385, %3628 : vector<8x128xf32>
    %3630 = vector.broadcast %109 : f32 to vector<8x128xf32>
    %3631 = arith.addf %3629, %3630 : vector<8x128xf32>
    %3632 = arith.mulf %3622, %3524 : vector<8x128xf32>
    %cst_387 = arith.constant 1.000000e+00 : f32
    %3633 = vector.broadcast %cst_387 : f32 to vector<8x128xf32>
    %3634 = arith.subf %3633, %3631 : vector<8x128xf32>
    %3635 = arith.mulf %3634, %3533 : vector<8x128xf32>
    %3636 = arith.addf %3632, %3635 : vector<8x128xf32>
    %3637 = vector.broadcast %110 : f32 to vector<8x128xf32>
    %3638 = arith.mulf %2385, %3637 : vector<8x128xf32>
    %3639 = vector.broadcast %111 : f32 to vector<8x128xf32>
    %3640 = arith.addf %3638, %3639 : vector<8x128xf32>
    %3641 = vector.broadcast %112 : f32 to vector<8x128xf32>
    %3642 = arith.mulf %2385, %3641 : vector<8x128xf32>
    %3643 = vector.broadcast %113 : f32 to vector<8x128xf32>
    %3644 = arith.addf %3642, %3643 : vector<8x128xf32>
    %3645 = arith.mulf %3640, %3546 : vector<8x128xf32>
    %cst_388 = arith.constant 1.000000e+00 : f32
    %3646 = vector.broadcast %cst_388 : f32 to vector<8x128xf32>
    %3647 = arith.subf %3646, %3644 : vector<8x128xf32>
    %3648 = arith.mulf %3647, %3555 : vector<8x128xf32>
    %3649 = arith.addf %3645, %3648 : vector<8x128xf32>
    %3650 = vector.broadcast %114 : f32 to vector<8x128xf32>
    %3651 = arith.mulf %2385, %3650 : vector<8x128xf32>
    %3652 = vector.broadcast %115 : f32 to vector<8x128xf32>
    %3653 = arith.addf %3651, %3652 : vector<8x128xf32>
    %3654 = arith.mulf %3644, %3555 : vector<8x128xf32>
    %cst_389 = arith.constant 1.000000e+00 : f32
    %3655 = vector.broadcast %cst_389 : f32 to vector<8x128xf32>
    %3656 = arith.subf %3655, %3653 : vector<8x128xf32>
    %3657 = arith.mulf %3656, %3564 : vector<8x128xf32>
    %3658 = arith.addf %3654, %3657 : vector<8x128xf32>
    %3659 = vector.broadcast %116 : f32 to vector<8x128xf32>
    %3660 = arith.mulf %2385, %3659 : vector<8x128xf32>
    %3661 = vector.broadcast %117 : f32 to vector<8x128xf32>
    %3662 = arith.addf %3660, %3661 : vector<8x128xf32>
    %3663 = arith.mulf %3653, %3564 : vector<8x128xf32>
    %cst_390 = arith.constant 1.000000e+00 : f32
    %3664 = vector.broadcast %cst_390 : f32 to vector<8x128xf32>
    %3665 = arith.subf %3664, %3662 : vector<8x128xf32>
    %3666 = arith.mulf %3665, %3573 : vector<8x128xf32>
    %3667 = arith.addf %3663, %3666 : vector<8x128xf32>
    %3668 = vector.broadcast %118 : f32 to vector<8x128xf32>
    %3669 = arith.mulf %2385, %3668 : vector<8x128xf32>
    %3670 = vector.broadcast %119 : f32 to vector<8x128xf32>
    %3671 = arith.addf %3669, %3670 : vector<8x128xf32>
    %3672 = arith.mulf %3662, %3573 : vector<8x128xf32>
    %cst_391 = arith.constant 1.000000e+00 : f32
    %3673 = vector.broadcast %cst_391 : f32 to vector<8x128xf32>
    %3674 = arith.subf %3673, %3671 : vector<8x128xf32>
    %3675 = arith.mulf %3674, %3582 : vector<8x128xf32>
    %3676 = arith.addf %3672, %3675 : vector<8x128xf32>
    %3677 = vector.broadcast %120 : f32 to vector<8x128xf32>
    %3678 = arith.mulf %2385, %3677 : vector<8x128xf32>
    %3679 = vector.broadcast %121 : f32 to vector<8x128xf32>
    %3680 = arith.addf %3678, %3679 : vector<8x128xf32>
    %3681 = arith.mulf %3671, %3582 : vector<8x128xf32>
    %cst_392 = arith.constant 1.000000e+00 : f32
    %3682 = vector.broadcast %cst_392 : f32 to vector<8x128xf32>
    %3683 = arith.subf %3682, %3680 : vector<8x128xf32>
    %3684 = arith.mulf %3683, %3591 : vector<8x128xf32>
    %3685 = arith.addf %3681, %3684 : vector<8x128xf32>
    %3686 = vector.broadcast %122 : f32 to vector<8x128xf32>
    %3687 = arith.mulf %2385, %3686 : vector<8x128xf32>
    %3688 = vector.broadcast %123 : f32 to vector<8x128xf32>
    %3689 = arith.addf %3687, %3688 : vector<8x128xf32>
    %3690 = arith.mulf %3680, %3591 : vector<8x128xf32>
    %cst_393 = arith.constant 1.000000e+00 : f32
    %3691 = vector.broadcast %cst_393 : f32 to vector<8x128xf32>
    %3692 = arith.subf %3691, %3689 : vector<8x128xf32>
    %3693 = arith.mulf %3692, %3600 : vector<8x128xf32>
    %3694 = arith.addf %3690, %3693 : vector<8x128xf32>
    %3695 = vector.broadcast %124 : f32 to vector<8x128xf32>
    %3696 = arith.mulf %2385, %3695 : vector<8x128xf32>
    %3697 = vector.broadcast %125 : f32 to vector<8x128xf32>
    %3698 = arith.addf %3696, %3697 : vector<8x128xf32>
    %3699 = arith.mulf %3689, %3600 : vector<8x128xf32>
    %cst_394 = arith.constant 1.000000e+00 : f32
    %3700 = vector.broadcast %cst_394 : f32 to vector<8x128xf32>
    %3701 = arith.subf %3700, %3698 : vector<8x128xf32>
    %3702 = arith.mulf %3701, %3609 : vector<8x128xf32>
    %3703 = arith.addf %3699, %3702 : vector<8x128xf32>
    %3704 = vector.broadcast %126 : f32 to vector<8x128xf32>
    %3705 = arith.mulf %2385, %3704 : vector<8x128xf32>
    %3706 = vector.broadcast %127 : f32 to vector<8x128xf32>
    %3707 = arith.addf %3705, %3706 : vector<8x128xf32>
    %3708 = arith.mulf %3698, %3609 : vector<8x128xf32>
    %cst_395 = arith.constant 1.000000e+00 : f32
    %3709 = vector.broadcast %cst_395 : f32 to vector<8x128xf32>
    %3710 = arith.subf %3709, %3707 : vector<8x128xf32>
    %3711 = arith.mulf %3710, %3618 : vector<8x128xf32>
    %3712 = arith.addf %3708, %3711 : vector<8x128xf32>
    %3713 = vector.broadcast %128 : f32 to vector<8x128xf32>
    %3714 = arith.mulf %2385, %3713 : vector<8x128xf32>
    %3715 = vector.broadcast %129 : f32 to vector<8x128xf32>
    %3716 = arith.addf %3714, %3715 : vector<8x128xf32>
    %3717 = arith.mulf %3707, %3618 : vector<8x128xf32>
    %cst_396 = arith.constant 1.000000e+00 : f32
    %3718 = vector.broadcast %cst_396 : f32 to vector<8x128xf32>
    %3719 = arith.subf %3718, %3716 : vector<8x128xf32>
    %3720 = arith.mulf %3719, %3627 : vector<8x128xf32>
    %3721 = arith.addf %3717, %3720 : vector<8x128xf32>
    %3722 = vector.broadcast %130 : f32 to vector<8x128xf32>
    %3723 = arith.mulf %2385, %3722 : vector<8x128xf32>
    %3724 = vector.broadcast %131 : f32 to vector<8x128xf32>
    %3725 = arith.addf %3723, %3724 : vector<8x128xf32>
    %3726 = arith.mulf %3716, %3627 : vector<8x128xf32>
    %cst_397 = arith.constant 1.000000e+00 : f32
    %3727 = vector.broadcast %cst_397 : f32 to vector<8x128xf32>
    %3728 = arith.subf %3727, %3725 : vector<8x128xf32>
    %3729 = arith.mulf %3728, %3636 : vector<8x128xf32>
    %3730 = arith.addf %3726, %3729 : vector<8x128xf32>
    %cst_398 = arith.constant 0.000000e+00 : f32
    %3731 = vector.broadcast %cst_398 : f32 to vector<8x128xf32>
    %3732 = arith.subf %3731, %2385 : vector<8x128xf32>
    %3733 = math.exp %3732 : vector<8x128xf32>
    %cst_399 = arith.constant 1.000000e+00 : f32
    %3734 = vector.broadcast %cst_399 : f32 to vector<8x128xf32>
    %3735 = arith.addf %3734, %3733 : vector<8x128xf32>
    %cst_400 = arith.constant 1.000000e+00 : f32
    %3736 = vector.broadcast %cst_400 : f32 to vector<8x128xf32>
    %3737 = arith.divf %3736, %3735 : vector<8x128xf32>
    %3738 = arith.mulf %2385, %3737 : vector<8x128xf32>
    %c242 = arith.constant 242 : index
    %3739 = memref.load %arg1[%c242] : memref<264xf32, #tpu.memory_space<smem>>
    %3740 = vector.broadcast %3739 : f32 to vector<8x128xf32>
    %3741 = arith.mulf %3740, %3738 : vector<8x128xf32>
    %c243 = arith.constant 243 : index
    %3742 = memref.load %arg1[%c243] : memref<264xf32, #tpu.memory_space<smem>>
    %3743 = vector.broadcast %3742 : f32 to vector<8x128xf32>
    %3744 = arith.mulf %3743, %3649 : vector<8x128xf32>
    %3745 = arith.addf %3741, %3744 : vector<8x128xf32>
    %c244 = arith.constant 244 : index
    %3746 = memref.load %arg1[%c244] : memref<264xf32, #tpu.memory_space<smem>>
    %3747 = vector.broadcast %3746 : f32 to vector<8x128xf32>
    %3748 = arith.mulf %3747, %3658 : vector<8x128xf32>
    %3749 = arith.addf %3745, %3748 : vector<8x128xf32>
    %c245 = arith.constant 245 : index
    %3750 = memref.load %arg1[%c245] : memref<264xf32, #tpu.memory_space<smem>>
    %3751 = vector.broadcast %3750 : f32 to vector<8x128xf32>
    %3752 = arith.mulf %3751, %3667 : vector<8x128xf32>
    %3753 = arith.addf %3749, %3752 : vector<8x128xf32>
    %c246 = arith.constant 246 : index
    %3754 = memref.load %arg1[%c246] : memref<264xf32, #tpu.memory_space<smem>>
    %3755 = vector.broadcast %3754 : f32 to vector<8x128xf32>
    %3756 = arith.mulf %3755, %3676 : vector<8x128xf32>
    %3757 = arith.addf %3753, %3756 : vector<8x128xf32>
    %c247 = arith.constant 247 : index
    %3758 = memref.load %arg1[%c247] : memref<264xf32, #tpu.memory_space<smem>>
    %3759 = vector.broadcast %3758 : f32 to vector<8x128xf32>
    %3760 = arith.mulf %3759, %3685 : vector<8x128xf32>
    %3761 = arith.addf %3757, %3760 : vector<8x128xf32>
    %c248 = arith.constant 248 : index
    %3762 = memref.load %arg1[%c248] : memref<264xf32, #tpu.memory_space<smem>>
    %3763 = vector.broadcast %3762 : f32 to vector<8x128xf32>
    %3764 = arith.mulf %3763, %3694 : vector<8x128xf32>
    %3765 = arith.addf %3761, %3764 : vector<8x128xf32>
    %c249 = arith.constant 249 : index
    %3766 = memref.load %arg1[%c249] : memref<264xf32, #tpu.memory_space<smem>>
    %3767 = vector.broadcast %3766 : f32 to vector<8x128xf32>
    %3768 = arith.mulf %3767, %3703 : vector<8x128xf32>
    %3769 = arith.addf %3765, %3768 : vector<8x128xf32>
    %c250 = arith.constant 250 : index
    %3770 = memref.load %arg1[%c250] : memref<264xf32, #tpu.memory_space<smem>>
    %3771 = vector.broadcast %3770 : f32 to vector<8x128xf32>
    %3772 = arith.mulf %3771, %3712 : vector<8x128xf32>
    %3773 = arith.addf %3769, %3772 : vector<8x128xf32>
    %c251 = arith.constant 251 : index
    %3774 = memref.load %arg1[%c251] : memref<264xf32, #tpu.memory_space<smem>>
    %3775 = vector.broadcast %3774 : f32 to vector<8x128xf32>
    %3776 = arith.mulf %3775, %3721 : vector<8x128xf32>
    %3777 = arith.addf %3773, %3776 : vector<8x128xf32>
    %c252 = arith.constant 252 : index
    %3778 = memref.load %arg1[%c252] : memref<264xf32, #tpu.memory_space<smem>>
    %3779 = vector.broadcast %3778 : f32 to vector<8x128xf32>
    %3780 = arith.mulf %3779, %3730 : vector<8x128xf32>
    %3781 = arith.addf %3777, %3780 : vector<8x128xf32>
    %3782 = arith.addf %3105, %3781 : vector<8x128xf32>
    %3783 = vector.broadcast %0 : f32 to vector<8x128xf32>
    %3784 = arith.subf %2429, %3783 : vector<8x128xf32>
    %3785 = vector.broadcast %1 : f32 to vector<8x128xf32>
    %3786 = arith.mulf %3784, %3785 : vector<8x128xf32>
    %3787 = math.floor %3786 : vector<8x128xf32>
    %cst_401 = arith.constant 0.000000e+00 : f32
    %3788 = vector.broadcast %cst_401 : f32 to vector<8x128xf32>
    %3789 = arith.cmpf oeq, %3787, %3788 : vector<8x128xf32>
    %3790 = arith.extui %3789 : vector<8x128xi1> to vector<8x128xi32>
    %3791 = arith.sitofp %3790 : vector<8x128xi32> to vector<8x128xf32>
    %cst_402 = arith.constant 1.000000e+00 : f32
    %3792 = vector.broadcast %cst_402 : f32 to vector<8x128xf32>
    %3793 = arith.cmpf oeq, %3787, %3792 : vector<8x128xf32>
    %3794 = arith.extui %3793 : vector<8x128xi1> to vector<8x128xi32>
    %3795 = arith.sitofp %3794 : vector<8x128xi32> to vector<8x128xf32>
    %cst_403 = arith.constant 2.000000e+00 : f32
    %3796 = vector.broadcast %cst_403 : f32 to vector<8x128xf32>
    %3797 = arith.cmpf oeq, %3787, %3796 : vector<8x128xf32>
    %3798 = arith.extui %3797 : vector<8x128xi1> to vector<8x128xi32>
    %3799 = arith.sitofp %3798 : vector<8x128xi32> to vector<8x128xf32>
    %cst_404 = arith.constant 3.000000e+00 : f32
    %3800 = vector.broadcast %cst_404 : f32 to vector<8x128xf32>
    %3801 = arith.cmpf oeq, %3787, %3800 : vector<8x128xf32>
    %3802 = arith.extui %3801 : vector<8x128xi1> to vector<8x128xi32>
    %3803 = arith.sitofp %3802 : vector<8x128xi32> to vector<8x128xf32>
    %cst_405 = arith.constant 4.000000e+00 : f32
    %3804 = vector.broadcast %cst_405 : f32 to vector<8x128xf32>
    %3805 = arith.cmpf oeq, %3787, %3804 : vector<8x128xf32>
    %3806 = arith.extui %3805 : vector<8x128xi1> to vector<8x128xi32>
    %3807 = arith.sitofp %3806 : vector<8x128xi32> to vector<8x128xf32>
    %cst_406 = arith.constant 5.000000e+00 : f32
    %3808 = vector.broadcast %cst_406 : f32 to vector<8x128xf32>
    %3809 = arith.cmpf oeq, %3787, %3808 : vector<8x128xf32>
    %3810 = arith.extui %3809 : vector<8x128xi1> to vector<8x128xi32>
    %3811 = arith.sitofp %3810 : vector<8x128xi32> to vector<8x128xf32>
    %cst_407 = arith.constant 6.000000e+00 : f32
    %3812 = vector.broadcast %cst_407 : f32 to vector<8x128xf32>
    %3813 = arith.cmpf oeq, %3787, %3812 : vector<8x128xf32>
    %3814 = arith.extui %3813 : vector<8x128xi1> to vector<8x128xi32>
    %3815 = arith.sitofp %3814 : vector<8x128xi32> to vector<8x128xf32>
    %cst_408 = arith.constant 7.000000e+00 : f32
    %3816 = vector.broadcast %cst_408 : f32 to vector<8x128xf32>
    %3817 = arith.cmpf oeq, %3787, %3816 : vector<8x128xf32>
    %3818 = arith.extui %3817 : vector<8x128xi1> to vector<8x128xi32>
    %3819 = arith.sitofp %3818 : vector<8x128xi32> to vector<8x128xf32>
    %cst_409 = arith.constant 8.000000e+00 : f32
    %3820 = vector.broadcast %cst_409 : f32 to vector<8x128xf32>
    %3821 = arith.cmpf oeq, %3787, %3820 : vector<8x128xf32>
    %3822 = arith.extui %3821 : vector<8x128xi1> to vector<8x128xi32>
    %3823 = arith.sitofp %3822 : vector<8x128xi32> to vector<8x128xf32>
    %cst_410 = arith.constant 9.000000e+00 : f32
    %3824 = vector.broadcast %cst_410 : f32 to vector<8x128xf32>
    %3825 = arith.cmpf oeq, %3787, %3824 : vector<8x128xf32>
    %3826 = arith.extui %3825 : vector<8x128xi1> to vector<8x128xi32>
    %3827 = arith.sitofp %3826 : vector<8x128xi32> to vector<8x128xf32>
    %cst_411 = arith.constant 1.000000e+01 : f32
    %3828 = vector.broadcast %cst_411 : f32 to vector<8x128xf32>
    %3829 = arith.cmpf oeq, %3787, %3828 : vector<8x128xf32>
    %3830 = arith.extui %3829 : vector<8x128xi1> to vector<8x128xi32>
    %3831 = arith.sitofp %3830 : vector<8x128xi32> to vector<8x128xf32>
    %cst_412 = arith.constant 1.100000e+01 : f32
    %3832 = vector.broadcast %cst_412 : f32 to vector<8x128xf32>
    %3833 = arith.cmpf oeq, %3787, %3832 : vector<8x128xf32>
    %3834 = arith.extui %3833 : vector<8x128xi1> to vector<8x128xi32>
    %3835 = arith.sitofp %3834 : vector<8x128xi32> to vector<8x128xf32>
    %cst_413 = arith.constant 1.200000e+01 : f32
    %3836 = vector.broadcast %cst_413 : f32 to vector<8x128xf32>
    %3837 = arith.cmpf oeq, %3787, %3836 : vector<8x128xf32>
    %3838 = arith.extui %3837 : vector<8x128xi1> to vector<8x128xi32>
    %3839 = arith.sitofp %3838 : vector<8x128xi32> to vector<8x128xf32>
    %cst_414 = arith.constant 1.300000e+01 : f32
    %3840 = vector.broadcast %cst_414 : f32 to vector<8x128xf32>
    %3841 = arith.cmpf oeq, %3787, %3840 : vector<8x128xf32>
    %3842 = arith.extui %3841 : vector<8x128xi1> to vector<8x128xi32>
    %3843 = arith.sitofp %3842 : vector<8x128xi32> to vector<8x128xf32>
    %cst_415 = arith.constant 1.400000e+01 : f32
    %3844 = vector.broadcast %cst_415 : f32 to vector<8x128xf32>
    %3845 = arith.cmpf oeq, %3787, %3844 : vector<8x128xf32>
    %3846 = arith.extui %3845 : vector<8x128xi1> to vector<8x128xi32>
    %3847 = arith.sitofp %3846 : vector<8x128xi32> to vector<8x128xf32>
    %3848 = vector.broadcast %2 : f32 to vector<8x128xf32>
    %3849 = arith.mulf %2429, %3848 : vector<8x128xf32>
    %3850 = vector.broadcast %3 : f32 to vector<8x128xf32>
    %3851 = arith.addf %3849, %3850 : vector<8x128xf32>
    %3852 = vector.broadcast %4 : f32 to vector<8x128xf32>
    %3853 = arith.mulf %2429, %3852 : vector<8x128xf32>
    %3854 = vector.broadcast %5 : f32 to vector<8x128xf32>
    %3855 = arith.addf %3853, %3854 : vector<8x128xf32>
    %3856 = arith.mulf %3851, %3791 : vector<8x128xf32>
    %cst_416 = arith.constant 1.000000e+00 : f32
    %3857 = vector.broadcast %cst_416 : f32 to vector<8x128xf32>
    %3858 = arith.subf %3857, %3855 : vector<8x128xf32>
    %3859 = arith.mulf %3858, %3795 : vector<8x128xf32>
    %3860 = arith.addf %3856, %3859 : vector<8x128xf32>
    %3861 = vector.broadcast %6 : f32 to vector<8x128xf32>
    %3862 = arith.mulf %2429, %3861 : vector<8x128xf32>
    %3863 = vector.broadcast %7 : f32 to vector<8x128xf32>
    %3864 = arith.addf %3862, %3863 : vector<8x128xf32>
    %3865 = arith.mulf %3855, %3795 : vector<8x128xf32>
    %cst_417 = arith.constant 1.000000e+00 : f32
    %3866 = vector.broadcast %cst_417 : f32 to vector<8x128xf32>
    %3867 = arith.subf %3866, %3864 : vector<8x128xf32>
    %3868 = arith.mulf %3867, %3799 : vector<8x128xf32>
    %3869 = arith.addf %3865, %3868 : vector<8x128xf32>
    %3870 = vector.broadcast %8 : f32 to vector<8x128xf32>
    %3871 = arith.mulf %2429, %3870 : vector<8x128xf32>
    %3872 = vector.broadcast %9 : f32 to vector<8x128xf32>
    %3873 = arith.addf %3871, %3872 : vector<8x128xf32>
    %3874 = arith.mulf %3864, %3799 : vector<8x128xf32>
    %cst_418 = arith.constant 1.000000e+00 : f32
    %3875 = vector.broadcast %cst_418 : f32 to vector<8x128xf32>
    %3876 = arith.subf %3875, %3873 : vector<8x128xf32>
    %3877 = arith.mulf %3876, %3803 : vector<8x128xf32>
    %3878 = arith.addf %3874, %3877 : vector<8x128xf32>
    %3879 = vector.broadcast %10 : f32 to vector<8x128xf32>
    %3880 = arith.mulf %2429, %3879 : vector<8x128xf32>
    %3881 = vector.broadcast %11 : f32 to vector<8x128xf32>
    %3882 = arith.addf %3880, %3881 : vector<8x128xf32>
    %3883 = arith.mulf %3873, %3803 : vector<8x128xf32>
    %cst_419 = arith.constant 1.000000e+00 : f32
    %3884 = vector.broadcast %cst_419 : f32 to vector<8x128xf32>
    %3885 = arith.subf %3884, %3882 : vector<8x128xf32>
    %3886 = arith.mulf %3885, %3807 : vector<8x128xf32>
    %3887 = arith.addf %3883, %3886 : vector<8x128xf32>
    %3888 = vector.broadcast %12 : f32 to vector<8x128xf32>
    %3889 = arith.mulf %2429, %3888 : vector<8x128xf32>
    %3890 = vector.broadcast %13 : f32 to vector<8x128xf32>
    %3891 = arith.addf %3889, %3890 : vector<8x128xf32>
    %3892 = arith.mulf %3882, %3807 : vector<8x128xf32>
    %cst_420 = arith.constant 1.000000e+00 : f32
    %3893 = vector.broadcast %cst_420 : f32 to vector<8x128xf32>
    %3894 = arith.subf %3893, %3891 : vector<8x128xf32>
    %3895 = arith.mulf %3894, %3811 : vector<8x128xf32>
    %3896 = arith.addf %3892, %3895 : vector<8x128xf32>
    %3897 = vector.broadcast %14 : f32 to vector<8x128xf32>
    %3898 = arith.mulf %2429, %3897 : vector<8x128xf32>
    %3899 = vector.broadcast %15 : f32 to vector<8x128xf32>
    %3900 = arith.addf %3898, %3899 : vector<8x128xf32>
    %3901 = arith.mulf %3891, %3811 : vector<8x128xf32>
    %cst_421 = arith.constant 1.000000e+00 : f32
    %3902 = vector.broadcast %cst_421 : f32 to vector<8x128xf32>
    %3903 = arith.subf %3902, %3900 : vector<8x128xf32>
    %3904 = arith.mulf %3903, %3815 : vector<8x128xf32>
    %3905 = arith.addf %3901, %3904 : vector<8x128xf32>
    %3906 = vector.broadcast %16 : f32 to vector<8x128xf32>
    %3907 = arith.mulf %2429, %3906 : vector<8x128xf32>
    %3908 = vector.broadcast %17 : f32 to vector<8x128xf32>
    %3909 = arith.addf %3907, %3908 : vector<8x128xf32>
    %3910 = arith.mulf %3900, %3815 : vector<8x128xf32>
    %cst_422 = arith.constant 1.000000e+00 : f32
    %3911 = vector.broadcast %cst_422 : f32 to vector<8x128xf32>
    %3912 = arith.subf %3911, %3909 : vector<8x128xf32>
    %3913 = arith.mulf %3912, %3819 : vector<8x128xf32>
    %3914 = arith.addf %3910, %3913 : vector<8x128xf32>
    %3915 = vector.broadcast %18 : f32 to vector<8x128xf32>
    %3916 = arith.mulf %2429, %3915 : vector<8x128xf32>
    %3917 = vector.broadcast %19 : f32 to vector<8x128xf32>
    %3918 = arith.addf %3916, %3917 : vector<8x128xf32>
    %3919 = arith.mulf %3909, %3819 : vector<8x128xf32>
    %cst_423 = arith.constant 1.000000e+00 : f32
    %3920 = vector.broadcast %cst_423 : f32 to vector<8x128xf32>
    %3921 = arith.subf %3920, %3918 : vector<8x128xf32>
    %3922 = arith.mulf %3921, %3823 : vector<8x128xf32>
    %3923 = arith.addf %3919, %3922 : vector<8x128xf32>
    %3924 = vector.broadcast %20 : f32 to vector<8x128xf32>
    %3925 = arith.mulf %2429, %3924 : vector<8x128xf32>
    %3926 = vector.broadcast %21 : f32 to vector<8x128xf32>
    %3927 = arith.addf %3925, %3926 : vector<8x128xf32>
    %3928 = arith.mulf %3918, %3823 : vector<8x128xf32>
    %cst_424 = arith.constant 1.000000e+00 : f32
    %3929 = vector.broadcast %cst_424 : f32 to vector<8x128xf32>
    %3930 = arith.subf %3929, %3927 : vector<8x128xf32>
    %3931 = arith.mulf %3930, %3827 : vector<8x128xf32>
    %3932 = arith.addf %3928, %3931 : vector<8x128xf32>
    %3933 = vector.broadcast %22 : f32 to vector<8x128xf32>
    %3934 = arith.mulf %2429, %3933 : vector<8x128xf32>
    %3935 = vector.broadcast %23 : f32 to vector<8x128xf32>
    %3936 = arith.addf %3934, %3935 : vector<8x128xf32>
    %3937 = arith.mulf %3927, %3827 : vector<8x128xf32>
    %cst_425 = arith.constant 1.000000e+00 : f32
    %3938 = vector.broadcast %cst_425 : f32 to vector<8x128xf32>
    %3939 = arith.subf %3938, %3936 : vector<8x128xf32>
    %3940 = arith.mulf %3939, %3831 : vector<8x128xf32>
    %3941 = arith.addf %3937, %3940 : vector<8x128xf32>
    %3942 = vector.broadcast %24 : f32 to vector<8x128xf32>
    %3943 = arith.mulf %2429, %3942 : vector<8x128xf32>
    %3944 = vector.broadcast %25 : f32 to vector<8x128xf32>
    %3945 = arith.addf %3943, %3944 : vector<8x128xf32>
    %3946 = arith.mulf %3936, %3831 : vector<8x128xf32>
    %cst_426 = arith.constant 1.000000e+00 : f32
    %3947 = vector.broadcast %cst_426 : f32 to vector<8x128xf32>
    %3948 = arith.subf %3947, %3945 : vector<8x128xf32>
    %3949 = arith.mulf %3948, %3835 : vector<8x128xf32>
    %3950 = arith.addf %3946, %3949 : vector<8x128xf32>
    %3951 = vector.broadcast %26 : f32 to vector<8x128xf32>
    %3952 = arith.mulf %2429, %3951 : vector<8x128xf32>
    %3953 = vector.broadcast %27 : f32 to vector<8x128xf32>
    %3954 = arith.addf %3952, %3953 : vector<8x128xf32>
    %3955 = arith.mulf %3945, %3835 : vector<8x128xf32>
    %cst_427 = arith.constant 1.000000e+00 : f32
    %3956 = vector.broadcast %cst_427 : f32 to vector<8x128xf32>
    %3957 = arith.subf %3956, %3954 : vector<8x128xf32>
    %3958 = arith.mulf %3957, %3839 : vector<8x128xf32>
    %3959 = arith.addf %3955, %3958 : vector<8x128xf32>
    %3960 = vector.broadcast %28 : f32 to vector<8x128xf32>
    %3961 = arith.mulf %2429, %3960 : vector<8x128xf32>
    %3962 = vector.broadcast %29 : f32 to vector<8x128xf32>
    %3963 = arith.addf %3961, %3962 : vector<8x128xf32>
    %3964 = arith.mulf %3954, %3839 : vector<8x128xf32>
    %cst_428 = arith.constant 1.000000e+00 : f32
    %3965 = vector.broadcast %cst_428 : f32 to vector<8x128xf32>
    %3966 = arith.subf %3965, %3963 : vector<8x128xf32>
    %3967 = arith.mulf %3966, %3843 : vector<8x128xf32>
    %3968 = arith.addf %3964, %3967 : vector<8x128xf32>
    %3969 = vector.broadcast %30 : f32 to vector<8x128xf32>
    %3970 = arith.mulf %2429, %3969 : vector<8x128xf32>
    %3971 = vector.broadcast %31 : f32 to vector<8x128xf32>
    %3972 = arith.addf %3970, %3971 : vector<8x128xf32>
    %3973 = arith.mulf %3963, %3843 : vector<8x128xf32>
    %cst_429 = arith.constant 1.000000e+00 : f32
    %3974 = vector.broadcast %cst_429 : f32 to vector<8x128xf32>
    %3975 = arith.subf %3974, %3972 : vector<8x128xf32>
    %3976 = arith.mulf %3975, %3847 : vector<8x128xf32>
    %3977 = arith.addf %3973, %3976 : vector<8x128xf32>
    %3978 = vector.broadcast %32 : f32 to vector<8x128xf32>
    %3979 = arith.mulf %2429, %3978 : vector<8x128xf32>
    %3980 = vector.broadcast %33 : f32 to vector<8x128xf32>
    %3981 = arith.addf %3979, %3980 : vector<8x128xf32>
    %3982 = vector.broadcast %34 : f32 to vector<8x128xf32>
    %3983 = arith.mulf %2429, %3982 : vector<8x128xf32>
    %3984 = vector.broadcast %35 : f32 to vector<8x128xf32>
    %3985 = arith.addf %3983, %3984 : vector<8x128xf32>
    %3986 = arith.mulf %3981, %3860 : vector<8x128xf32>
    %cst_430 = arith.constant 1.000000e+00 : f32
    %3987 = vector.broadcast %cst_430 : f32 to vector<8x128xf32>
    %3988 = arith.subf %3987, %3985 : vector<8x128xf32>
    %3989 = arith.mulf %3988, %3869 : vector<8x128xf32>
    %3990 = arith.addf %3986, %3989 : vector<8x128xf32>
    %3991 = vector.broadcast %36 : f32 to vector<8x128xf32>
    %3992 = arith.mulf %2429, %3991 : vector<8x128xf32>
    %3993 = vector.broadcast %37 : f32 to vector<8x128xf32>
    %3994 = arith.addf %3992, %3993 : vector<8x128xf32>
    %3995 = arith.mulf %3985, %3869 : vector<8x128xf32>
    %cst_431 = arith.constant 1.000000e+00 : f32
    %3996 = vector.broadcast %cst_431 : f32 to vector<8x128xf32>
    %3997 = arith.subf %3996, %3994 : vector<8x128xf32>
    %3998 = arith.mulf %3997, %3878 : vector<8x128xf32>
    %3999 = arith.addf %3995, %3998 : vector<8x128xf32>
    %4000 = vector.broadcast %38 : f32 to vector<8x128xf32>
    %4001 = arith.mulf %2429, %4000 : vector<8x128xf32>
    %4002 = vector.broadcast %39 : f32 to vector<8x128xf32>
    %4003 = arith.addf %4001, %4002 : vector<8x128xf32>
    %4004 = arith.mulf %3994, %3878 : vector<8x128xf32>
    %cst_432 = arith.constant 1.000000e+00 : f32
    %4005 = vector.broadcast %cst_432 : f32 to vector<8x128xf32>
    %4006 = arith.subf %4005, %4003 : vector<8x128xf32>
    %4007 = arith.mulf %4006, %3887 : vector<8x128xf32>
    %4008 = arith.addf %4004, %4007 : vector<8x128xf32>
    %4009 = vector.broadcast %40 : f32 to vector<8x128xf32>
    %4010 = arith.mulf %2429, %4009 : vector<8x128xf32>
    %4011 = vector.broadcast %41 : f32 to vector<8x128xf32>
    %4012 = arith.addf %4010, %4011 : vector<8x128xf32>
    %4013 = arith.mulf %4003, %3887 : vector<8x128xf32>
    %cst_433 = arith.constant 1.000000e+00 : f32
    %4014 = vector.broadcast %cst_433 : f32 to vector<8x128xf32>
    %4015 = arith.subf %4014, %4012 : vector<8x128xf32>
    %4016 = arith.mulf %4015, %3896 : vector<8x128xf32>
    %4017 = arith.addf %4013, %4016 : vector<8x128xf32>
    %4018 = vector.broadcast %42 : f32 to vector<8x128xf32>
    %4019 = arith.mulf %2429, %4018 : vector<8x128xf32>
    %4020 = vector.broadcast %43 : f32 to vector<8x128xf32>
    %4021 = arith.addf %4019, %4020 : vector<8x128xf32>
    %4022 = arith.mulf %4012, %3896 : vector<8x128xf32>
    %cst_434 = arith.constant 1.000000e+00 : f32
    %4023 = vector.broadcast %cst_434 : f32 to vector<8x128xf32>
    %4024 = arith.subf %4023, %4021 : vector<8x128xf32>
    %4025 = arith.mulf %4024, %3905 : vector<8x128xf32>
    %4026 = arith.addf %4022, %4025 : vector<8x128xf32>
    %4027 = vector.broadcast %44 : f32 to vector<8x128xf32>
    %4028 = arith.mulf %2429, %4027 : vector<8x128xf32>
    %4029 = vector.broadcast %45 : f32 to vector<8x128xf32>
    %4030 = arith.addf %4028, %4029 : vector<8x128xf32>
    %4031 = arith.mulf %4021, %3905 : vector<8x128xf32>
    %cst_435 = arith.constant 1.000000e+00 : f32
    %4032 = vector.broadcast %cst_435 : f32 to vector<8x128xf32>
    %4033 = arith.subf %4032, %4030 : vector<8x128xf32>
    %4034 = arith.mulf %4033, %3914 : vector<8x128xf32>
    %4035 = arith.addf %4031, %4034 : vector<8x128xf32>
    %4036 = vector.broadcast %46 : f32 to vector<8x128xf32>
    %4037 = arith.mulf %2429, %4036 : vector<8x128xf32>
    %4038 = vector.broadcast %47 : f32 to vector<8x128xf32>
    %4039 = arith.addf %4037, %4038 : vector<8x128xf32>
    %4040 = arith.mulf %4030, %3914 : vector<8x128xf32>
    %cst_436 = arith.constant 1.000000e+00 : f32
    %4041 = vector.broadcast %cst_436 : f32 to vector<8x128xf32>
    %4042 = arith.subf %4041, %4039 : vector<8x128xf32>
    %4043 = arith.mulf %4042, %3923 : vector<8x128xf32>
    %4044 = arith.addf %4040, %4043 : vector<8x128xf32>
    %4045 = vector.broadcast %48 : f32 to vector<8x128xf32>
    %4046 = arith.mulf %2429, %4045 : vector<8x128xf32>
    %4047 = vector.broadcast %49 : f32 to vector<8x128xf32>
    %4048 = arith.addf %4046, %4047 : vector<8x128xf32>
    %4049 = arith.mulf %4039, %3923 : vector<8x128xf32>
    %cst_437 = arith.constant 1.000000e+00 : f32
    %4050 = vector.broadcast %cst_437 : f32 to vector<8x128xf32>
    %4051 = arith.subf %4050, %4048 : vector<8x128xf32>
    %4052 = arith.mulf %4051, %3932 : vector<8x128xf32>
    %4053 = arith.addf %4049, %4052 : vector<8x128xf32>
    %4054 = vector.broadcast %50 : f32 to vector<8x128xf32>
    %4055 = arith.mulf %2429, %4054 : vector<8x128xf32>
    %4056 = vector.broadcast %51 : f32 to vector<8x128xf32>
    %4057 = arith.addf %4055, %4056 : vector<8x128xf32>
    %4058 = arith.mulf %4048, %3932 : vector<8x128xf32>
    %cst_438 = arith.constant 1.000000e+00 : f32
    %4059 = vector.broadcast %cst_438 : f32 to vector<8x128xf32>
    %4060 = arith.subf %4059, %4057 : vector<8x128xf32>
    %4061 = arith.mulf %4060, %3941 : vector<8x128xf32>
    %4062 = arith.addf %4058, %4061 : vector<8x128xf32>
    %4063 = vector.broadcast %52 : f32 to vector<8x128xf32>
    %4064 = arith.mulf %2429, %4063 : vector<8x128xf32>
    %4065 = vector.broadcast %53 : f32 to vector<8x128xf32>
    %4066 = arith.addf %4064, %4065 : vector<8x128xf32>
    %4067 = arith.mulf %4057, %3941 : vector<8x128xf32>
    %cst_439 = arith.constant 1.000000e+00 : f32
    %4068 = vector.broadcast %cst_439 : f32 to vector<8x128xf32>
    %4069 = arith.subf %4068, %4066 : vector<8x128xf32>
    %4070 = arith.mulf %4069, %3950 : vector<8x128xf32>
    %4071 = arith.addf %4067, %4070 : vector<8x128xf32>
    %4072 = vector.broadcast %54 : f32 to vector<8x128xf32>
    %4073 = arith.mulf %2429, %4072 : vector<8x128xf32>
    %4074 = vector.broadcast %55 : f32 to vector<8x128xf32>
    %4075 = arith.addf %4073, %4074 : vector<8x128xf32>
    %4076 = arith.mulf %4066, %3950 : vector<8x128xf32>
    %cst_440 = arith.constant 1.000000e+00 : f32
    %4077 = vector.broadcast %cst_440 : f32 to vector<8x128xf32>
    %4078 = arith.subf %4077, %4075 : vector<8x128xf32>
    %4079 = arith.mulf %4078, %3959 : vector<8x128xf32>
    %4080 = arith.addf %4076, %4079 : vector<8x128xf32>
    %4081 = vector.broadcast %56 : f32 to vector<8x128xf32>
    %4082 = arith.mulf %2429, %4081 : vector<8x128xf32>
    %4083 = vector.broadcast %57 : f32 to vector<8x128xf32>
    %4084 = arith.addf %4082, %4083 : vector<8x128xf32>
    %4085 = arith.mulf %4075, %3959 : vector<8x128xf32>
    %cst_441 = arith.constant 1.000000e+00 : f32
    %4086 = vector.broadcast %cst_441 : f32 to vector<8x128xf32>
    %4087 = arith.subf %4086, %4084 : vector<8x128xf32>
    %4088 = arith.mulf %4087, %3968 : vector<8x128xf32>
    %4089 = arith.addf %4085, %4088 : vector<8x128xf32>
    %4090 = vector.broadcast %58 : f32 to vector<8x128xf32>
    %4091 = arith.mulf %2429, %4090 : vector<8x128xf32>
    %4092 = vector.broadcast %59 : f32 to vector<8x128xf32>
    %4093 = arith.addf %4091, %4092 : vector<8x128xf32>
    %4094 = arith.mulf %4084, %3968 : vector<8x128xf32>
    %cst_442 = arith.constant 1.000000e+00 : f32
    %4095 = vector.broadcast %cst_442 : f32 to vector<8x128xf32>
    %4096 = arith.subf %4095, %4093 : vector<8x128xf32>
    %4097 = arith.mulf %4096, %3977 : vector<8x128xf32>
    %4098 = arith.addf %4094, %4097 : vector<8x128xf32>
    %4099 = vector.broadcast %60 : f32 to vector<8x128xf32>
    %4100 = arith.mulf %2429, %4099 : vector<8x128xf32>
    %4101 = vector.broadcast %61 : f32 to vector<8x128xf32>
    %4102 = arith.addf %4100, %4101 : vector<8x128xf32>
    %4103 = vector.broadcast %62 : f32 to vector<8x128xf32>
    %4104 = arith.mulf %2429, %4103 : vector<8x128xf32>
    %4105 = vector.broadcast %63 : f32 to vector<8x128xf32>
    %4106 = arith.addf %4104, %4105 : vector<8x128xf32>
    %4107 = arith.mulf %4102, %3990 : vector<8x128xf32>
    %cst_443 = arith.constant 1.000000e+00 : f32
    %4108 = vector.broadcast %cst_443 : f32 to vector<8x128xf32>
    %4109 = arith.subf %4108, %4106 : vector<8x128xf32>
    %4110 = arith.mulf %4109, %3999 : vector<8x128xf32>
    %4111 = arith.addf %4107, %4110 : vector<8x128xf32>
    %4112 = vector.broadcast %64 : f32 to vector<8x128xf32>
    %4113 = arith.mulf %2429, %4112 : vector<8x128xf32>
    %4114 = vector.broadcast %65 : f32 to vector<8x128xf32>
    %4115 = arith.addf %4113, %4114 : vector<8x128xf32>
    %4116 = arith.mulf %4106, %3999 : vector<8x128xf32>
    %cst_444 = arith.constant 1.000000e+00 : f32
    %4117 = vector.broadcast %cst_444 : f32 to vector<8x128xf32>
    %4118 = arith.subf %4117, %4115 : vector<8x128xf32>
    %4119 = arith.mulf %4118, %4008 : vector<8x128xf32>
    %4120 = arith.addf %4116, %4119 : vector<8x128xf32>
    %4121 = vector.broadcast %66 : f32 to vector<8x128xf32>
    %4122 = arith.mulf %2429, %4121 : vector<8x128xf32>
    %4123 = vector.broadcast %67 : f32 to vector<8x128xf32>
    %4124 = arith.addf %4122, %4123 : vector<8x128xf32>
    %4125 = arith.mulf %4115, %4008 : vector<8x128xf32>
    %cst_445 = arith.constant 1.000000e+00 : f32
    %4126 = vector.broadcast %cst_445 : f32 to vector<8x128xf32>
    %4127 = arith.subf %4126, %4124 : vector<8x128xf32>
    %4128 = arith.mulf %4127, %4017 : vector<8x128xf32>
    %4129 = arith.addf %4125, %4128 : vector<8x128xf32>
    %4130 = vector.broadcast %68 : f32 to vector<8x128xf32>
    %4131 = arith.mulf %2429, %4130 : vector<8x128xf32>
    %4132 = vector.broadcast %69 : f32 to vector<8x128xf32>
    %4133 = arith.addf %4131, %4132 : vector<8x128xf32>
    %4134 = arith.mulf %4124, %4017 : vector<8x128xf32>
    %cst_446 = arith.constant 1.000000e+00 : f32
    %4135 = vector.broadcast %cst_446 : f32 to vector<8x128xf32>
    %4136 = arith.subf %4135, %4133 : vector<8x128xf32>
    %4137 = arith.mulf %4136, %4026 : vector<8x128xf32>
    %4138 = arith.addf %4134, %4137 : vector<8x128xf32>
    %4139 = vector.broadcast %70 : f32 to vector<8x128xf32>
    %4140 = arith.mulf %2429, %4139 : vector<8x128xf32>
    %4141 = vector.broadcast %71 : f32 to vector<8x128xf32>
    %4142 = arith.addf %4140, %4141 : vector<8x128xf32>
    %4143 = arith.mulf %4133, %4026 : vector<8x128xf32>
    %cst_447 = arith.constant 1.000000e+00 : f32
    %4144 = vector.broadcast %cst_447 : f32 to vector<8x128xf32>
    %4145 = arith.subf %4144, %4142 : vector<8x128xf32>
    %4146 = arith.mulf %4145, %4035 : vector<8x128xf32>
    %4147 = arith.addf %4143, %4146 : vector<8x128xf32>
    %4148 = vector.broadcast %72 : f32 to vector<8x128xf32>
    %4149 = arith.mulf %2429, %4148 : vector<8x128xf32>
    %4150 = vector.broadcast %73 : f32 to vector<8x128xf32>
    %4151 = arith.addf %4149, %4150 : vector<8x128xf32>
    %4152 = arith.mulf %4142, %4035 : vector<8x128xf32>
    %cst_448 = arith.constant 1.000000e+00 : f32
    %4153 = vector.broadcast %cst_448 : f32 to vector<8x128xf32>
    %4154 = arith.subf %4153, %4151 : vector<8x128xf32>
    %4155 = arith.mulf %4154, %4044 : vector<8x128xf32>
    %4156 = arith.addf %4152, %4155 : vector<8x128xf32>
    %4157 = vector.broadcast %74 : f32 to vector<8x128xf32>
    %4158 = arith.mulf %2429, %4157 : vector<8x128xf32>
    %4159 = vector.broadcast %75 : f32 to vector<8x128xf32>
    %4160 = arith.addf %4158, %4159 : vector<8x128xf32>
    %4161 = arith.mulf %4151, %4044 : vector<8x128xf32>
    %cst_449 = arith.constant 1.000000e+00 : f32
    %4162 = vector.broadcast %cst_449 : f32 to vector<8x128xf32>
    %4163 = arith.subf %4162, %4160 : vector<8x128xf32>
    %4164 = arith.mulf %4163, %4053 : vector<8x128xf32>
    %4165 = arith.addf %4161, %4164 : vector<8x128xf32>
    %4166 = vector.broadcast %76 : f32 to vector<8x128xf32>
    %4167 = arith.mulf %2429, %4166 : vector<8x128xf32>
    %4168 = vector.broadcast %77 : f32 to vector<8x128xf32>
    %4169 = arith.addf %4167, %4168 : vector<8x128xf32>
    %4170 = arith.mulf %4160, %4053 : vector<8x128xf32>
    %cst_450 = arith.constant 1.000000e+00 : f32
    %4171 = vector.broadcast %cst_450 : f32 to vector<8x128xf32>
    %4172 = arith.subf %4171, %4169 : vector<8x128xf32>
    %4173 = arith.mulf %4172, %4062 : vector<8x128xf32>
    %4174 = arith.addf %4170, %4173 : vector<8x128xf32>
    %4175 = vector.broadcast %78 : f32 to vector<8x128xf32>
    %4176 = arith.mulf %2429, %4175 : vector<8x128xf32>
    %4177 = vector.broadcast %79 : f32 to vector<8x128xf32>
    %4178 = arith.addf %4176, %4177 : vector<8x128xf32>
    %4179 = arith.mulf %4169, %4062 : vector<8x128xf32>
    %cst_451 = arith.constant 1.000000e+00 : f32
    %4180 = vector.broadcast %cst_451 : f32 to vector<8x128xf32>
    %4181 = arith.subf %4180, %4178 : vector<8x128xf32>
    %4182 = arith.mulf %4181, %4071 : vector<8x128xf32>
    %4183 = arith.addf %4179, %4182 : vector<8x128xf32>
    %4184 = vector.broadcast %80 : f32 to vector<8x128xf32>
    %4185 = arith.mulf %2429, %4184 : vector<8x128xf32>
    %4186 = vector.broadcast %81 : f32 to vector<8x128xf32>
    %4187 = arith.addf %4185, %4186 : vector<8x128xf32>
    %4188 = arith.mulf %4178, %4071 : vector<8x128xf32>
    %cst_452 = arith.constant 1.000000e+00 : f32
    %4189 = vector.broadcast %cst_452 : f32 to vector<8x128xf32>
    %4190 = arith.subf %4189, %4187 : vector<8x128xf32>
    %4191 = arith.mulf %4190, %4080 : vector<8x128xf32>
    %4192 = arith.addf %4188, %4191 : vector<8x128xf32>
    %4193 = vector.broadcast %82 : f32 to vector<8x128xf32>
    %4194 = arith.mulf %2429, %4193 : vector<8x128xf32>
    %4195 = vector.broadcast %83 : f32 to vector<8x128xf32>
    %4196 = arith.addf %4194, %4195 : vector<8x128xf32>
    %4197 = arith.mulf %4187, %4080 : vector<8x128xf32>
    %cst_453 = arith.constant 1.000000e+00 : f32
    %4198 = vector.broadcast %cst_453 : f32 to vector<8x128xf32>
    %4199 = arith.subf %4198, %4196 : vector<8x128xf32>
    %4200 = arith.mulf %4199, %4089 : vector<8x128xf32>
    %4201 = arith.addf %4197, %4200 : vector<8x128xf32>
    %4202 = vector.broadcast %84 : f32 to vector<8x128xf32>
    %4203 = arith.mulf %2429, %4202 : vector<8x128xf32>
    %4204 = vector.broadcast %85 : f32 to vector<8x128xf32>
    %4205 = arith.addf %4203, %4204 : vector<8x128xf32>
    %4206 = arith.mulf %4196, %4089 : vector<8x128xf32>
    %cst_454 = arith.constant 1.000000e+00 : f32
    %4207 = vector.broadcast %cst_454 : f32 to vector<8x128xf32>
    %4208 = arith.subf %4207, %4205 : vector<8x128xf32>
    %4209 = arith.mulf %4208, %4098 : vector<8x128xf32>
    %4210 = arith.addf %4206, %4209 : vector<8x128xf32>
    %4211 = vector.broadcast %86 : f32 to vector<8x128xf32>
    %4212 = arith.mulf %2429, %4211 : vector<8x128xf32>
    %4213 = vector.broadcast %87 : f32 to vector<8x128xf32>
    %4214 = arith.addf %4212, %4213 : vector<8x128xf32>
    %4215 = vector.broadcast %88 : f32 to vector<8x128xf32>
    %4216 = arith.mulf %2429, %4215 : vector<8x128xf32>
    %4217 = vector.broadcast %89 : f32 to vector<8x128xf32>
    %4218 = arith.addf %4216, %4217 : vector<8x128xf32>
    %4219 = arith.mulf %4214, %4111 : vector<8x128xf32>
    %cst_455 = arith.constant 1.000000e+00 : f32
    %4220 = vector.broadcast %cst_455 : f32 to vector<8x128xf32>
    %4221 = arith.subf %4220, %4218 : vector<8x128xf32>
    %4222 = arith.mulf %4221, %4120 : vector<8x128xf32>
    %4223 = arith.addf %4219, %4222 : vector<8x128xf32>
    %4224 = vector.broadcast %90 : f32 to vector<8x128xf32>
    %4225 = arith.mulf %2429, %4224 : vector<8x128xf32>
    %4226 = vector.broadcast %91 : f32 to vector<8x128xf32>
    %4227 = arith.addf %4225, %4226 : vector<8x128xf32>
    %4228 = arith.mulf %4218, %4120 : vector<8x128xf32>
    %cst_456 = arith.constant 1.000000e+00 : f32
    %4229 = vector.broadcast %cst_456 : f32 to vector<8x128xf32>
    %4230 = arith.subf %4229, %4227 : vector<8x128xf32>
    %4231 = arith.mulf %4230, %4129 : vector<8x128xf32>
    %4232 = arith.addf %4228, %4231 : vector<8x128xf32>
    %4233 = vector.broadcast %92 : f32 to vector<8x128xf32>
    %4234 = arith.mulf %2429, %4233 : vector<8x128xf32>
    %4235 = vector.broadcast %93 : f32 to vector<8x128xf32>
    %4236 = arith.addf %4234, %4235 : vector<8x128xf32>
    %4237 = arith.mulf %4227, %4129 : vector<8x128xf32>
    %cst_457 = arith.constant 1.000000e+00 : f32
    %4238 = vector.broadcast %cst_457 : f32 to vector<8x128xf32>
    %4239 = arith.subf %4238, %4236 : vector<8x128xf32>
    %4240 = arith.mulf %4239, %4138 : vector<8x128xf32>
    %4241 = arith.addf %4237, %4240 : vector<8x128xf32>
    %4242 = vector.broadcast %94 : f32 to vector<8x128xf32>
    %4243 = arith.mulf %2429, %4242 : vector<8x128xf32>
    %4244 = vector.broadcast %95 : f32 to vector<8x128xf32>
    %4245 = arith.addf %4243, %4244 : vector<8x128xf32>
    %4246 = arith.mulf %4236, %4138 : vector<8x128xf32>
    %cst_458 = arith.constant 1.000000e+00 : f32
    %4247 = vector.broadcast %cst_458 : f32 to vector<8x128xf32>
    %4248 = arith.subf %4247, %4245 : vector<8x128xf32>
    %4249 = arith.mulf %4248, %4147 : vector<8x128xf32>
    %4250 = arith.addf %4246, %4249 : vector<8x128xf32>
    %4251 = vector.broadcast %96 : f32 to vector<8x128xf32>
    %4252 = arith.mulf %2429, %4251 : vector<8x128xf32>
    %4253 = vector.broadcast %97 : f32 to vector<8x128xf32>
    %4254 = arith.addf %4252, %4253 : vector<8x128xf32>
    %4255 = arith.mulf %4245, %4147 : vector<8x128xf32>
    %cst_459 = arith.constant 1.000000e+00 : f32
    %4256 = vector.broadcast %cst_459 : f32 to vector<8x128xf32>
    %4257 = arith.subf %4256, %4254 : vector<8x128xf32>
    %4258 = arith.mulf %4257, %4156 : vector<8x128xf32>
    %4259 = arith.addf %4255, %4258 : vector<8x128xf32>
    %4260 = vector.broadcast %98 : f32 to vector<8x128xf32>
    %4261 = arith.mulf %2429, %4260 : vector<8x128xf32>
    %4262 = vector.broadcast %99 : f32 to vector<8x128xf32>
    %4263 = arith.addf %4261, %4262 : vector<8x128xf32>
    %4264 = arith.mulf %4254, %4156 : vector<8x128xf32>
    %cst_460 = arith.constant 1.000000e+00 : f32
    %4265 = vector.broadcast %cst_460 : f32 to vector<8x128xf32>
    %4266 = arith.subf %4265, %4263 : vector<8x128xf32>
    %4267 = arith.mulf %4266, %4165 : vector<8x128xf32>
    %4268 = arith.addf %4264, %4267 : vector<8x128xf32>
    %4269 = vector.broadcast %100 : f32 to vector<8x128xf32>
    %4270 = arith.mulf %2429, %4269 : vector<8x128xf32>
    %4271 = vector.broadcast %101 : f32 to vector<8x128xf32>
    %4272 = arith.addf %4270, %4271 : vector<8x128xf32>
    %4273 = arith.mulf %4263, %4165 : vector<8x128xf32>
    %cst_461 = arith.constant 1.000000e+00 : f32
    %4274 = vector.broadcast %cst_461 : f32 to vector<8x128xf32>
    %4275 = arith.subf %4274, %4272 : vector<8x128xf32>
    %4276 = arith.mulf %4275, %4174 : vector<8x128xf32>
    %4277 = arith.addf %4273, %4276 : vector<8x128xf32>
    %4278 = vector.broadcast %102 : f32 to vector<8x128xf32>
    %4279 = arith.mulf %2429, %4278 : vector<8x128xf32>
    %4280 = vector.broadcast %103 : f32 to vector<8x128xf32>
    %4281 = arith.addf %4279, %4280 : vector<8x128xf32>
    %4282 = arith.mulf %4272, %4174 : vector<8x128xf32>
    %cst_462 = arith.constant 1.000000e+00 : f32
    %4283 = vector.broadcast %cst_462 : f32 to vector<8x128xf32>
    %4284 = arith.subf %4283, %4281 : vector<8x128xf32>
    %4285 = arith.mulf %4284, %4183 : vector<8x128xf32>
    %4286 = arith.addf %4282, %4285 : vector<8x128xf32>
    %4287 = vector.broadcast %104 : f32 to vector<8x128xf32>
    %4288 = arith.mulf %2429, %4287 : vector<8x128xf32>
    %4289 = vector.broadcast %105 : f32 to vector<8x128xf32>
    %4290 = arith.addf %4288, %4289 : vector<8x128xf32>
    %4291 = arith.mulf %4281, %4183 : vector<8x128xf32>
    %cst_463 = arith.constant 1.000000e+00 : f32
    %4292 = vector.broadcast %cst_463 : f32 to vector<8x128xf32>
    %4293 = arith.subf %4292, %4290 : vector<8x128xf32>
    %4294 = arith.mulf %4293, %4192 : vector<8x128xf32>
    %4295 = arith.addf %4291, %4294 : vector<8x128xf32>
    %4296 = vector.broadcast %106 : f32 to vector<8x128xf32>
    %4297 = arith.mulf %2429, %4296 : vector<8x128xf32>
    %4298 = vector.broadcast %107 : f32 to vector<8x128xf32>
    %4299 = arith.addf %4297, %4298 : vector<8x128xf32>
    %4300 = arith.mulf %4290, %4192 : vector<8x128xf32>
    %cst_464 = arith.constant 1.000000e+00 : f32
    %4301 = vector.broadcast %cst_464 : f32 to vector<8x128xf32>
    %4302 = arith.subf %4301, %4299 : vector<8x128xf32>
    %4303 = arith.mulf %4302, %4201 : vector<8x128xf32>
    %4304 = arith.addf %4300, %4303 : vector<8x128xf32>
    %4305 = vector.broadcast %108 : f32 to vector<8x128xf32>
    %4306 = arith.mulf %2429, %4305 : vector<8x128xf32>
    %4307 = vector.broadcast %109 : f32 to vector<8x128xf32>
    %4308 = arith.addf %4306, %4307 : vector<8x128xf32>
    %4309 = arith.mulf %4299, %4201 : vector<8x128xf32>
    %cst_465 = arith.constant 1.000000e+00 : f32
    %4310 = vector.broadcast %cst_465 : f32 to vector<8x128xf32>
    %4311 = arith.subf %4310, %4308 : vector<8x128xf32>
    %4312 = arith.mulf %4311, %4210 : vector<8x128xf32>
    %4313 = arith.addf %4309, %4312 : vector<8x128xf32>
    %4314 = vector.broadcast %110 : f32 to vector<8x128xf32>
    %4315 = arith.mulf %2429, %4314 : vector<8x128xf32>
    %4316 = vector.broadcast %111 : f32 to vector<8x128xf32>
    %4317 = arith.addf %4315, %4316 : vector<8x128xf32>
    %4318 = vector.broadcast %112 : f32 to vector<8x128xf32>
    %4319 = arith.mulf %2429, %4318 : vector<8x128xf32>
    %4320 = vector.broadcast %113 : f32 to vector<8x128xf32>
    %4321 = arith.addf %4319, %4320 : vector<8x128xf32>
    %4322 = arith.mulf %4317, %4223 : vector<8x128xf32>
    %cst_466 = arith.constant 1.000000e+00 : f32
    %4323 = vector.broadcast %cst_466 : f32 to vector<8x128xf32>
    %4324 = arith.subf %4323, %4321 : vector<8x128xf32>
    %4325 = arith.mulf %4324, %4232 : vector<8x128xf32>
    %4326 = arith.addf %4322, %4325 : vector<8x128xf32>
    %4327 = vector.broadcast %114 : f32 to vector<8x128xf32>
    %4328 = arith.mulf %2429, %4327 : vector<8x128xf32>
    %4329 = vector.broadcast %115 : f32 to vector<8x128xf32>
    %4330 = arith.addf %4328, %4329 : vector<8x128xf32>
    %4331 = arith.mulf %4321, %4232 : vector<8x128xf32>
    %cst_467 = arith.constant 1.000000e+00 : f32
    %4332 = vector.broadcast %cst_467 : f32 to vector<8x128xf32>
    %4333 = arith.subf %4332, %4330 : vector<8x128xf32>
    %4334 = arith.mulf %4333, %4241 : vector<8x128xf32>
    %4335 = arith.addf %4331, %4334 : vector<8x128xf32>
    %4336 = vector.broadcast %116 : f32 to vector<8x128xf32>
    %4337 = arith.mulf %2429, %4336 : vector<8x128xf32>
    %4338 = vector.broadcast %117 : f32 to vector<8x128xf32>
    %4339 = arith.addf %4337, %4338 : vector<8x128xf32>
    %4340 = arith.mulf %4330, %4241 : vector<8x128xf32>
    %cst_468 = arith.constant 1.000000e+00 : f32
    %4341 = vector.broadcast %cst_468 : f32 to vector<8x128xf32>
    %4342 = arith.subf %4341, %4339 : vector<8x128xf32>
    %4343 = arith.mulf %4342, %4250 : vector<8x128xf32>
    %4344 = arith.addf %4340, %4343 : vector<8x128xf32>
    %4345 = vector.broadcast %118 : f32 to vector<8x128xf32>
    %4346 = arith.mulf %2429, %4345 : vector<8x128xf32>
    %4347 = vector.broadcast %119 : f32 to vector<8x128xf32>
    %4348 = arith.addf %4346, %4347 : vector<8x128xf32>
    %4349 = arith.mulf %4339, %4250 : vector<8x128xf32>
    %cst_469 = arith.constant 1.000000e+00 : f32
    %4350 = vector.broadcast %cst_469 : f32 to vector<8x128xf32>
    %4351 = arith.subf %4350, %4348 : vector<8x128xf32>
    %4352 = arith.mulf %4351, %4259 : vector<8x128xf32>
    %4353 = arith.addf %4349, %4352 : vector<8x128xf32>
    %4354 = vector.broadcast %120 : f32 to vector<8x128xf32>
    %4355 = arith.mulf %2429, %4354 : vector<8x128xf32>
    %4356 = vector.broadcast %121 : f32 to vector<8x128xf32>
    %4357 = arith.addf %4355, %4356 : vector<8x128xf32>
    %4358 = arith.mulf %4348, %4259 : vector<8x128xf32>
    %cst_470 = arith.constant 1.000000e+00 : f32
    %4359 = vector.broadcast %cst_470 : f32 to vector<8x128xf32>
    %4360 = arith.subf %4359, %4357 : vector<8x128xf32>
    %4361 = arith.mulf %4360, %4268 : vector<8x128xf32>
    %4362 = arith.addf %4358, %4361 : vector<8x128xf32>
    %4363 = vector.broadcast %122 : f32 to vector<8x128xf32>
    %4364 = arith.mulf %2429, %4363 : vector<8x128xf32>
    %4365 = vector.broadcast %123 : f32 to vector<8x128xf32>
    %4366 = arith.addf %4364, %4365 : vector<8x128xf32>
    %4367 = arith.mulf %4357, %4268 : vector<8x128xf32>
    %cst_471 = arith.constant 1.000000e+00 : f32
    %4368 = vector.broadcast %cst_471 : f32 to vector<8x128xf32>
    %4369 = arith.subf %4368, %4366 : vector<8x128xf32>
    %4370 = arith.mulf %4369, %4277 : vector<8x128xf32>
    %4371 = arith.addf %4367, %4370 : vector<8x128xf32>
    %4372 = vector.broadcast %124 : f32 to vector<8x128xf32>
    %4373 = arith.mulf %2429, %4372 : vector<8x128xf32>
    %4374 = vector.broadcast %125 : f32 to vector<8x128xf32>
    %4375 = arith.addf %4373, %4374 : vector<8x128xf32>
    %4376 = arith.mulf %4366, %4277 : vector<8x128xf32>
    %cst_472 = arith.constant 1.000000e+00 : f32
    %4377 = vector.broadcast %cst_472 : f32 to vector<8x128xf32>
    %4378 = arith.subf %4377, %4375 : vector<8x128xf32>
    %4379 = arith.mulf %4378, %4286 : vector<8x128xf32>
    %4380 = arith.addf %4376, %4379 : vector<8x128xf32>
    %4381 = vector.broadcast %126 : f32 to vector<8x128xf32>
    %4382 = arith.mulf %2429, %4381 : vector<8x128xf32>
    %4383 = vector.broadcast %127 : f32 to vector<8x128xf32>
    %4384 = arith.addf %4382, %4383 : vector<8x128xf32>
    %4385 = arith.mulf %4375, %4286 : vector<8x128xf32>
    %cst_473 = arith.constant 1.000000e+00 : f32
    %4386 = vector.broadcast %cst_473 : f32 to vector<8x128xf32>
    %4387 = arith.subf %4386, %4384 : vector<8x128xf32>
    %4388 = arith.mulf %4387, %4295 : vector<8x128xf32>
    %4389 = arith.addf %4385, %4388 : vector<8x128xf32>
    %4390 = vector.broadcast %128 : f32 to vector<8x128xf32>
    %4391 = arith.mulf %2429, %4390 : vector<8x128xf32>
    %4392 = vector.broadcast %129 : f32 to vector<8x128xf32>
    %4393 = arith.addf %4391, %4392 : vector<8x128xf32>
    %4394 = arith.mulf %4384, %4295 : vector<8x128xf32>
    %cst_474 = arith.constant 1.000000e+00 : f32
    %4395 = vector.broadcast %cst_474 : f32 to vector<8x128xf32>
    %4396 = arith.subf %4395, %4393 : vector<8x128xf32>
    %4397 = arith.mulf %4396, %4304 : vector<8x128xf32>
    %4398 = arith.addf %4394, %4397 : vector<8x128xf32>
    %4399 = vector.broadcast %130 : f32 to vector<8x128xf32>
    %4400 = arith.mulf %2429, %4399 : vector<8x128xf32>
    %4401 = vector.broadcast %131 : f32 to vector<8x128xf32>
    %4402 = arith.addf %4400, %4401 : vector<8x128xf32>
    %4403 = arith.mulf %4393, %4304 : vector<8x128xf32>
    %cst_475 = arith.constant 1.000000e+00 : f32
    %4404 = vector.broadcast %cst_475 : f32 to vector<8x128xf32>
    %4405 = arith.subf %4404, %4402 : vector<8x128xf32>
    %4406 = arith.mulf %4405, %4313 : vector<8x128xf32>
    %4407 = arith.addf %4403, %4406 : vector<8x128xf32>
    %cst_476 = arith.constant 0.000000e+00 : f32
    %4408 = vector.broadcast %cst_476 : f32 to vector<8x128xf32>
    %4409 = arith.subf %4408, %2429 : vector<8x128xf32>
    %4410 = math.exp %4409 : vector<8x128xf32>
    %cst_477 = arith.constant 1.000000e+00 : f32
    %4411 = vector.broadcast %cst_477 : f32 to vector<8x128xf32>
    %4412 = arith.addf %4411, %4410 : vector<8x128xf32>
    %cst_478 = arith.constant 1.000000e+00 : f32
    %4413 = vector.broadcast %cst_478 : f32 to vector<8x128xf32>
    %4414 = arith.divf %4413, %4412 : vector<8x128xf32>
    %4415 = arith.mulf %2429, %4414 : vector<8x128xf32>
    %c253 = arith.constant 253 : index
    %4416 = memref.load %arg1[%c253] : memref<264xf32, #tpu.memory_space<smem>>
    %4417 = vector.broadcast %4416 : f32 to vector<8x128xf32>
    %4418 = arith.mulf %4417, %4415 : vector<8x128xf32>
    %c254 = arith.constant 254 : index
    %4419 = memref.load %arg1[%c254] : memref<264xf32, #tpu.memory_space<smem>>
    %4420 = vector.broadcast %4419 : f32 to vector<8x128xf32>
    %4421 = arith.mulf %4420, %4326 : vector<8x128xf32>
    %4422 = arith.addf %4418, %4421 : vector<8x128xf32>
    %c255 = arith.constant 255 : index
    %4423 = memref.load %arg1[%c255] : memref<264xf32, #tpu.memory_space<smem>>
    %4424 = vector.broadcast %4423 : f32 to vector<8x128xf32>
    %4425 = arith.mulf %4424, %4335 : vector<8x128xf32>
    %4426 = arith.addf %4422, %4425 : vector<8x128xf32>
    %c256 = arith.constant 256 : index
    %4427 = memref.load %arg1[%c256] : memref<264xf32, #tpu.memory_space<smem>>
    %4428 = vector.broadcast %4427 : f32 to vector<8x128xf32>
    %4429 = arith.mulf %4428, %4344 : vector<8x128xf32>
    %4430 = arith.addf %4426, %4429 : vector<8x128xf32>
    %c257 = arith.constant 257 : index
    %4431 = memref.load %arg1[%c257] : memref<264xf32, #tpu.memory_space<smem>>
    %4432 = vector.broadcast %4431 : f32 to vector<8x128xf32>
    %4433 = arith.mulf %4432, %4353 : vector<8x128xf32>
    %4434 = arith.addf %4430, %4433 : vector<8x128xf32>
    %c258 = arith.constant 258 : index
    %4435 = memref.load %arg1[%c258] : memref<264xf32, #tpu.memory_space<smem>>
    %4436 = vector.broadcast %4435 : f32 to vector<8x128xf32>
    %4437 = arith.mulf %4436, %4362 : vector<8x128xf32>
    %4438 = arith.addf %4434, %4437 : vector<8x128xf32>
    %c259 = arith.constant 259 : index
    %4439 = memref.load %arg1[%c259] : memref<264xf32, #tpu.memory_space<smem>>
    %4440 = vector.broadcast %4439 : f32 to vector<8x128xf32>
    %4441 = arith.mulf %4440, %4371 : vector<8x128xf32>
    %4442 = arith.addf %4438, %4441 : vector<8x128xf32>
    %c260 = arith.constant 260 : index
    %4443 = memref.load %arg1[%c260] : memref<264xf32, #tpu.memory_space<smem>>
    %4444 = vector.broadcast %4443 : f32 to vector<8x128xf32>
    %4445 = arith.mulf %4444, %4380 : vector<8x128xf32>
    %4446 = arith.addf %4442, %4445 : vector<8x128xf32>
    %c261 = arith.constant 261 : index
    %4447 = memref.load %arg1[%c261] : memref<264xf32, #tpu.memory_space<smem>>
    %4448 = vector.broadcast %4447 : f32 to vector<8x128xf32>
    %4449 = arith.mulf %4448, %4389 : vector<8x128xf32>
    %4450 = arith.addf %4446, %4449 : vector<8x128xf32>
    %c262 = arith.constant 262 : index
    %4451 = memref.load %arg1[%c262] : memref<264xf32, #tpu.memory_space<smem>>
    %4452 = vector.broadcast %4451 : f32 to vector<8x128xf32>
    %4453 = arith.mulf %4452, %4398 : vector<8x128xf32>
    %4454 = arith.addf %4450, %4453 : vector<8x128xf32>
    %c263 = arith.constant 263 : index
    %4455 = memref.load %arg1[%c263] : memref<264xf32, #tpu.memory_space<smem>>
    %4456 = vector.broadcast %4455 : f32 to vector<8x128xf32>
    %4457 = arith.mulf %4456, %4407 : vector<8x128xf32>
    %4458 = arith.addf %4454, %4457 : vector<8x128xf32>
    %4459 = arith.addf %3782, %4458 : vector<8x128xf32>
    %c0_479 = arith.constant 0 : index
    %c0_480 = arith.constant 0 : index
    %c0_481 = arith.constant 0 : index
    %c0_482 = arith.constant 0 : index
    %4460 = vector.load %arg3[%c0_479, %c0_480, %c0_481, %c0_482] : memref<1x2x8x128xf32, #tpu.memory_space<vmem>>, vector<1x1x8x128xf32>
    %4461 = vector.shape_cast %4460 : vector<1x1x8x128xf32> to vector<8x128xf32>
    %4462 = vector.shape_cast %135 : vector<8x128xf32> to vector<1x1x8x128xf32>
    tpu.vector_store %arg3[%c0_479, %c0_480, %c0_481, %c0_482], %4462 {strides = array<i32>} : memref<1x2x8x128xf32, #tpu.memory_space<vmem>>, vector<1x1x8x128xf32>,
    %c0_483 = arith.constant 0 : index
    %c1_484 = arith.constant 1 : index
    %c0_485 = arith.constant 0 : index
    %c0_486 = arith.constant 0 : index
    %4463 = vector.load %arg3[%c0_483, %c1_484, %c0_485, %c0_486] : memref<1x2x8x128xf32, #tpu.memory_space<vmem>>, vector<1x1x8x128xf32>
    %4464 = vector.shape_cast %4463 : vector<1x1x8x128xf32> to vector<8x128xf32>
    %4465 = vector.shape_cast %4459 : vector<8x128xf32> to vector<1x1x8x128xf32>
    tpu.vector_store %arg3[%c0_483, %c1_484, %c0_485, %c0_486], %4465 {strides = array<i32>} : memref<1x2x8x128xf32, #tpu.memory_space<vmem>>, vector<1x1x8x128xf32>,
    return
  }
  func.func @transform_0(%arg0: i32) -> i32 {
    %c0_i32 = arith.constant 0 : i32
    %c0_i32_0 = arith.constant 0 : i32
    return %c0_i32 : i32
  }
  func.func @transform_1(%arg0: i32) -> (i32, i32, i32, i32) {
    %c0_i32 = arith.constant 0 : i32
    %c0_i32_0 = arith.constant 0 : i32
    %c0_i32_1 = arith.constant 0 : i32
    %c0_i32_2 = arith.constant 0 : i32
    return %arg0, %c0_i32, %c0_i32_0, %c0_i32_1 : i32, i32, i32, i32
  }
  func.func @transform_2(%arg0: i32) -> (i32, i32, i32, i32) {
    %c0_i32 = arith.constant 0 : i32
    %c0_i32_0 = arith.constant 0 : i32
    %c0_i32_1 = arith.constant 0 : i32
    %c0_i32_2 = arith.constant 0 : i32
    return %arg0, %c0_i32, %c0_i32_0, %c0_i32_1 : i32, i32, i32, i32
  }
}

</mosaic_0001>

<llo_original>
// kernel: kanode_forward_batch.1
$region0: #{kanode_forward_batch.1}
  #allocation0 [shape = 'u32[]', space=smem, size = 0x4, offset = 0x4, fixed_abs, tag = 'smem constant byte address 0x4 - core index']
  #allocation1 [shape = 'u32[144,128]{1,0:T(1,128)}', space=vmem, size = 0x12000, scoped, tag = 'internal scratch']
  %s0 = inlined_call_operand.vmem [shape: f32[264], index: 0, kind: input, shape index: {}]
  %s1 = inlined_call_operand.vmem [shape: f32[2,3,8,128], index: 1, kind: input, shape index: {}]
  %s2 = inlined_call_operand.vmem [shape: f32[2,2,8,128], index: 2, kind: output, shape index: {}]
  %s3 = sld [smem:[#allocation0]]
  $region45: #{kanode_forward_batch.1} parent=0
    _
  %s5 = ssub.s32 1, %s3
  %s6 = scalar_select 0, %s5, %s3
  $region1: #{kanode_forward_batch.1} parent=0
    #allocation2 [shape = 'u8[1536]{0}', space=smem, size = 0x600, scoped, tag = 'input window, operand 0, single buffered']
    #allocation3 [shape = 's32[2]{0}', space=sflag, size = 0x8, scoped, tag = 'scoped memory for kanode_forward_batch.1']
    %7 = vsyncpa [#allocation3], 0
    loop: start=0, step=1, limit=4
    $region2: #{kanode_forward_batch.1} parent=1 // loop_pre_header
      _
    $region3: #{kanode_forward_batch.1} parent=1 // loop_header
      %s9 = sphi 0, %s13
      %p10 = scmp.ge.s32.totalorder %s9, 4
      %s17 = sphi 0, %s17
      %s19 = sphi 0, %s17
      %s20 = sphi 0, %s19
      %s34 = sphi 0, %s20
      %s40 = sphi 0, %s42
      %s43 = sphi 0, %s40
      %s44 = sphi 0, %s43
      %s60 = sphi 0, %s44
      %s66 = sphi 0, %s68
      %s69 = sphi 0, %s66
      %s70 = sphi 0, %s69
      %s86 = sphi 0, %s70
    $region4: #{kanode_forward_batch.1} parent=1 // loop_header_branch
      %12 = sbr.rel (%p10) target = $region8
    $region5: #{kanode_forward_batch.1} parent=1 // loop_body
      %s14 = ssub.s32 %s9, 1
      %s15 = ssub.s32 %s9, 2
      %s16 = sadd.s32 %s9, 1
      %s18 = sadd.s32 %s17, 1
      %p21 = scmp.eq.s32.totalorder %s9, 1
      %p22 = scmp.ne.s32.totalorder %s17, %s19
      %p23 = scmp.eq.s32.totalorder %s9, 0
      %p24 = por %p22, %p23
      %p25 = scmp.ne.s32.totalorder %s17, %s19
      %p26 = scmp.eq.s32.totalorder %s14, 1
      %p27 = por %p25, %p26
      %p28 = scmp.ne.s32.totalorder %s19, %s20
      %p29 = scmp.eq.s32.totalorder %s14, 0
      %p30 = por %p28, %p29
      %p31 = scmp.ne.s32.totalorder %s19, %s20
      %p32 = scmp.eq.s32.totalorder %s15, 1
      %p33 = por %p31, %p32
      %p35 = scmp.ne.s32.totalorder %s20, %s34
      %p36 = scmp.eq.s32.totalorder %s15, 0
      %p37 = por %p35, %p36
      %s38 = ssub.s32 %s9, %s16
      %p39 = scmp.eq.s32.totalorder %s38, 0
      %s41 = sadd.s32 %s40, 1
      %s42 = scalar_select %p39, %s40, %s41
      %p45 = pneg %p39
      %p46 = scmp.eq.s32.totalorder %s9, 1
      %p47 = por %p45, %p46
      %p48 = scmp.ne.s32.totalorder %s40, %s43
      %p49 = scmp.eq.s32.totalorder %s9, 0
      %p50 = por %p48, %p49
      %p51 = scmp.ne.s32.totalorder %s40, %s43
      %p52 = scmp.eq.s32.totalorder %s14, 1
      %p53 = por %p51, %p52
      %p54 = scmp.ne.s32.totalorder %s43, %s44
      %p55 = scmp.eq.s32.totalorder %s14, 0
      %p56 = por %p54, %p55
      %p57 = scmp.ne.s32.totalorder %s43, %s44
      %p58 = scmp.eq.s32.totalorder %s15, 1
      %p59 = por %p57, %p58
      %p61 = scmp.ne.s32.totalorder %s44, %s60
      %p62 = scmp.eq.s32.totalorder %s15, 0
      %p63 = por %p61, %p62
      %s64 = ssub.s32 %s9, %s16
      %p65 = scmp.eq.s32.totalorder %s64, 0
      %s67 = sadd.s32 %s66, 1
      %s68 = scalar_select %p65, %s66, %s67
      %p71 = pneg %p65
      %p72 = scmp.eq.s32.totalorder %s9, 1
      %p73 = por %p71, %p72
      %p74 = scmp.ne.s32.totalorder %s66, %s69
      %p75 = scmp.eq.s32.totalorder %s9, 0
      %p76 = por %p74, %p75
      %p77 = scmp.ne.s32.totalorder %s66, %s69
      %p78 = scmp.eq.s32.totalorder %s14, 1
      %p79 = por %p77, %p78
      %p80 = scmp.ne.s32.totalorder %s69, %s70
      %p81 = scmp.eq.s32.totalorder %s14, 0
      %p82 = por %p80, %p81
      %p83 = scmp.ne.s32.totalorder %s69, %s70
      %p84 = scmp.eq.s32.totalorder %s15, 1
      %p85 = por %p83, %p84
      %p87 = scmp.ne.s32.totalorder %s70, %s86
      %p88 = scmp.eq.s32.totalorder %s15, 0
      %p89 = por %p87, %p88
      %p90 = scmp.le.s32.totalorder 1, %s9
      %p91 = scmp.lt.s32.totalorder %s9, 3
      %p92 = pnand %p90, %p91
      %p93 = pneg %p92
      // Predicated region
      $region9: #{kanode_forward_batch.1} parent=5 // pred_check
        _
      $region10: #{kanode_forward_batch.1} parent=5 // pred_check_branch
        %95 = sbr.rel (%p92) target = $region12
      $region11: #{kanode_forward_batch.1} parent=5 // pred_region
        %s96 = ssub.s32 %s9, 1
        // Predicated region
        $region13: #{kanode_forward_batch.1} parent=11 // pred_check
          %p97 = pneg %p30
        $region14: #{kanode_forward_batch.1} parent=11 // pred_check_branch
          %99 = sbr.rel (%p97) target = $region16
        $region15: #{kanode_forward_batch.1} parent=11 // pred_region
          %s101 = ssub.s32 48, 48
          %102 = vsyncadd [#allocation3], %s101
          %s104 = sshll.u32 %s0, 4
          %s105 = int_to_ptr.vmem [resolvable:$true] %s104
          %107 = dma.vmem_to_smem %s105, 48, [#allocation2], [#allocation3]
        $region16: #{kanode_forward_batch.1} parent=11 // pred_fallthru
          _
      $region12: #{kanode_forward_batch.1} parent=5 // pred_fallthru
        _
      %p108 = scmp.lt.s32.totalorder %s9, 2
      // Predicated region
      $region17: #{kanode_forward_batch.1} parent=5 // pred_check
        %p109 = pneg %p108
      $region18: #{kanode_forward_batch.1} parent=5 // pred_check_branch
        %111 = sbr.rel (%p109) target = $region20
      $region19: #{kanode_forward_batch.1} parent=5 // pred_region
        // Predicated region
        $region21: #{kanode_forward_batch.1} parent=19 // pred_check
          %p112 = pneg %p50
        $region22: #{kanode_forward_batch.1} parent=19 // pred_check_branch
          %114 = sbr.rel (%p112) target = $region24
        $region23: #{kanode_forward_batch.1} parent=19 // pred_region
          %p115 = scmp.lt.s32.totalorder %s9, 1
          %s116 = scalar_select %p115, %s9, 1
          %s117 = smul.addr %s116, 3
          %s118 = smul.addr %s117, 8
          %s119 = scalar_lea.vmem %s1, %s118
        $region24: #{kanode_forward_batch.1} parent=19 // pred_fallthru
          _
      $region20: #{kanode_forward_batch.1} parent=5 // pred_fallthru
        _
      %p120 = scmp.le.s32.totalorder 1, %s9
      %p121 = scmp.lt.s32.totalorder %s9, 3
      %p122 = pnand %p120, %p121
      %p123 = pneg %p122
      // Predicated region
      $region25: #{kanode_forward_batch.1} parent=5 // pred_check
        _
      $region26: #{kanode_forward_batch.1} parent=5 // pred_check_branch
        %125 = sbr.rel (%p122) target = $region28
      $region27: #{kanode_forward_batch.1} parent=5 // pred_region
        %s126 = ssub.s32 %s9, 1
        // Predicated region
        $region29: #{kanode_forward_batch.1} parent=27 // pred_check
          %p127 = pneg %p30
        $region30: #{kanode_forward_batch.1} parent=27 // pred_check_branch
          %129 = sbr.rel (%p127) target = $region32
        $region31: #{kanode_forward_batch.1} parent=27 // pred_region
          %130 = dma.done [#allocation3], 48
        $region32: #{kanode_forward_batch.1} parent=27 // pred_fallthru
          _
        %131 = sfence
        %p132 = pneg %p30
        %p133 = pneg %p27
        %p134 = scmp.lt.s32.totalorder %s14, 1
        %s135 = scalar_select %p134, %s14, 1
        %s136 = smul.addr %s135, 3
        %s137 = smul.addr %s136, 8
        %s138 = scalar_lea.vmem %s1, %s137
        %p139 = pneg %p56
        %p140 = pneg %p53
        %p141 = pneg %p82
        %p142 = pneg %p79
        %p143 = scmp.lt.s32.totalorder %s14, 1
        %s144 = scalar_select %p143, %s14, 1
        %s145 = smul.addr %s144, 2
        %s146 = smul.addr %s145, 8
        %s147 = scalar_lea.vmem %s2, %s146
        %p148 = scmp.lt.s32.totalorder %s14, 1
        %s149 = scalar_select %p148, %s14, 1
        %s150 = smul.addr %s149, 3
        %s151 = smul.addr %s150, 8
        %s152 = scalar_lea.vmem %s1, %s151
        %p153 = scmp.lt.s32.totalorder %s14, 1
        %s154 = scalar_select %p153, %s14, 1
        %s155 = smul.addr %s154, 2
        %s156 = smul.addr %s155, 8
        %s157 = scalar_lea.vmem %s2, %s156
        %s158 = sld [smem:[#allocation2]]
        %s159 = sld [smem:[#allocation2 + $0x1]]
        %s160 = sld [smem:[#allocation2 + $0x2]]
        %s161 = sld [smem:[#allocation2 + $0x3]]
        %s162 = sld [smem:[#allocation2 + $0x4]]
        %s163 = sld [smem:[#allocation2 + $0x5]]
        %s164 = sld [smem:[#allocation2 + $0x6]]
        %s165 = sld [smem:[#allocation2 + $0x7]]
        %s166 = sld [smem:[#allocation2 + $0x8]]
        %s167 = sld [smem:[#allocation2 + $0x9]]
        %s168 = sld [smem:[#allocation2 + $0xa]]
        %s169 = sld [smem:[#allocation2 + $0xb]]
        %s170 = sld [smem:[#allocation2 + $0xc]]
        %s171 = sld [smem:[#allocation2 + $0xd]]
        %s172 = sld [smem:[#allocation2 + $0xe]]
        %s173 = sld [smem:[#allocation2 + $0xf]]
        %s174 = sld [smem:[#allocation2 + $0x10]]
        %s175 = sld [smem:[#allocation2 + $0x11]]
        %s176 = sld [smem:[#allocation2 + $0x12]]
        %s177 = sld [smem:[#allocation2 + $0x13]]
        %s178 = sld [smem:[#allocation2 + $0x14]]
        %s179 = sld [smem:[#allocation2 + $0x15]]
        %s180 = sld [smem:[#allocation2 + $0x16]]
        %s181 = sld [smem:[#allocation2 + $0x17]]
        %s182 = sld [smem:[#allocation2 + $0x18]]
        %s183 = sld [smem:[#allocation2 + $0x19]]
        %s184 = sld [smem:[#allocation2 + $0x1a]]
        %s185 = sld [smem:[#allocation2 + $0x1b]]
        %s186 = sld [smem:[#allocation2 + $0x1c]]
        %s187 = sld [smem:[#allocation2 + $0x1d]]
        %s188 = sld [smem:[#allocation2 + $0x1e]]
        %s189 = sld [smem:[#allocation2 + $0x1f]]
        %s190 = sld [smem:[#allocation2 + $0x20]]
        %s191 = sld [smem:[#allocation2 + $0x21]]
        %s192 = sld [smem:[#allocation2 + $0x22]]
        %s193 = sld [smem:[#allocation2 + $0x23]]
        %s194 = sld [smem:[#allocation2 + $0x24]]
        %s195 = sld [smem:[#allocation2 + $0x25]]
        %s196 = sld [smem:[#allocation2 + $0x26]]
        %s197 = sld [smem:[#allocation2 + $0x27]]
        %s198 = sld [smem:[#allocation2 + $0x28]]
        %s199 = sld [smem:[#allocation2 + $0x29]]
        %s200 = sld [smem:[#allocation2 + $0x2a]]
        %s201 = sld [smem:[#allocation2 + $0x2b]]
        %s202 = sld [smem:[#allocation2 + $0x2c]]
        %s203 = sld [smem:[#allocation2 + $0x2d]]
        %s204 = sld [smem:[#allocation2 + $0x2e]]
        %s205 = sld [smem:[#allocation2 + $0x2f]]
        %s206 = sld [smem:[#allocation2 + $0x30]]
        %s207 = sld [smem:[#allocation2 + $0x31]]
        %s208 = sld [smem:[#allocation2 + $0x32]]
        %s209 = sld [smem:[#allocation2 + $0x33]]
        %s210 = sld [smem:[#allocation2 + $0x34]]
        %s211 = sld [smem:[#allocation2 + $0x35]]
        %s212 = sld [smem:[#allocation2 + $0x36]]
        %s213 = sld [smem:[#allocation2 + $0x37]]
        %s214 = sld [smem:[#allocation2 + $0x38]]
        %s215 = sld [smem:[#allocation2 + $0x39]]
        %s216 = sld [smem:[#allocation2 + $0x3a]]
        %s217 = sld [smem:[#allocation2 + $0x3b]]
        %s218 = sld [smem:[#allocation2 + $0x3c]]
        %s219 = sld [smem:[#allocation2 + $0x3d]]
        %s220 = sld [smem:[#allocation2 + $0x3e]]
        %s221 = sld [smem:[#allocation2 + $0x3f]]
        %s222 = sld [smem:[#allocation2 + $0x40]]
        %s223 = sld [smem:[#allocation2 + $0x41]]
        %s224 = sld [smem:[#allocation2 + $0x42]]
        %s225 = sld [smem:[#allocation2 + $0x43]]
        %s226 = sld [smem:[#allocation2 + $0x44]]
        %s227 = sld [smem:[#allocation2 + $0x45]]
        %s228 = sld [smem:[#allocation2 + $0x46]]
        %s229 = sld [smem:[#allocation2 + $0x47]]
        %s230 = sld [smem:[#allocation2 + $0x48]]
        %s231 = sld [smem:[#allocation2 + $0x49]]
        %s232 = sld [smem:[#allocation2 + $0x4a]]
        %s233 = sld [smem:[#allocation2 + $0x4b]]
        %s234 = sld [smem:[#allocation2 + $0x4c]]
        %s235 = sld [smem:[#allocation2 + $0x4d]]
        %s236 = sld [smem:[#allocation2 + $0x4e]]
        %s237 = sld [smem:[#allocation2 + $0x4f]]
        %s238 = sld [smem:[#allocation2 + $0x50]]
        %s239 = sld [smem:[#allocation2 + $0x51]]
        %s240 = sld [smem:[#allocation2 + $0x52]]
        %s241 = sld [smem:[#allocation2 + $0x53]]
        %s242 = sld [smem:[#allocation2 + $0x54]]
        %s243 = sld [smem:[#allocation2 + $0x55]]
        %s244 = sld [smem:[#allocation2 + $0x56]]
        %s245 = sld [smem:[#allocation2 + $0x57]]
        %s246 = sld [smem:[#allocation2 + $0x58]]
        %s247 = sld [smem:[#allocation2 + $0x59]]
        %s248 = sld [smem:[#allocation2 + $0x5a]]
        %s249 = sld [smem:[#allocation2 + $0x5b]]
        %s250 = sld [smem:[#allocation2 + $0x5c]]
        %s251 = sld [smem:[#allocation2 + $0x5d]]
        %s252 = sld [smem:[#allocation2 + $0x5e]]
        %s253 = sld [smem:[#allocation2 + $0x5f]]
        %s254 = sld [smem:[#allocation2 + $0x60]]
        %s255 = sld [smem:[#allocation2 + $0x61]]
        %s256 = sld [smem:[#allocation2 + $0x62]]
        %s257 = sld [smem:[#allocation2 + $0x63]]
        %s258 = sld [smem:[#allocation2 + $0x64]]
        %s259 = sld [smem:[#allocation2 + $0x65]]
        %s260 = sld [smem:[#allocation2 + $0x66]]
        %s261 = sld [smem:[#allocation2 + $0x67]]
        %s262 = sld [smem:[#allocation2 + $0x68]]
        %s263 = sld [smem:[#allocation2 + $0x69]]
        %s264 = sld [smem:[#allocation2 + $0x6a]]
        %s265 = sld [smem:[#allocation2 + $0x6b]]
        %s266 = sld [smem:[#allocation2 + $0x6c]]
        %s267 = sld [smem:[#allocation2 + $0x6d]]
        %s268 = sld [smem:[#allocation2 + $0x6e]]
        %s269 = sld [smem:[#allocation2 + $0x6f]]
        %s270 = sld [smem:[#allocation2 + $0x70]]
        %s271 = sld [smem:[#allocation2 + $0x71]]
        %s272 = sld [smem:[#allocation2 + $0x72]]
        %s273 = sld [smem:[#allocation2 + $0x73]]
        %s274 = sld [smem:[#allocation2 + $0x74]]
        %s275 = sld [smem:[#allocation2 + $0x75]]
        %s276 = sld [smem:[#allocation2 + $0x76]]
        %s277 = sld [smem:[#allocation2 + $0x77]]
        %s278 = sld [smem:[#allocation2 + $0x78]]
        %s279 = sld [smem:[#allocation2 + $0x79]]
        %s280 = sld [smem:[#allocation2 + $0x7a]]
        %s281 = sld [smem:[#allocation2 + $0x7b]]
        %s282 = sld [smem:[#allocation2 + $0x7c]]
        %s283 = sld [smem:[#allocation2 + $0x7d]]
        %s284 = sld [smem:[#allocation2 + $0x7e]]
        %s285 = sld [smem:[#allocation2 + $0x7f]]
        %s286 = sld [smem:[#allocation2 + $0x80]]
        %s287 = sld [smem:[#allocation2 + $0x81]]
        %s288 = sld [smem:[#allocation2 + $0x82]]
        %s289 = sld [smem:[#allocation2 + $0x83]]
        %v290 = vld [vmem:[%s152] sm:$0xff]
        %s291 = scalar_lea.vmem %s152, 8
        %v292 = vld [vmem:[%s291] sm:$0xff]
        %s293 = scalar_lea.vmem %s152, 16
        %v294 = vld [vmem:[%s293] sm:$0xff]
        %v295 = vstv %s158
        %v296 = vsub.f32 %v290, %v295
        %v297 = vstv %s159
        %v298 = vmul.f32 %v296, %v297
        %v299 = vfloor.f32 %v298
        %vm300 = vcmp.eq.f32.partialorder %v299, 0.0
        %v301 = vsel %vm300, 1, 0
        %v302 = vcvt.s32.f32 %v301
        %vm303 = vcmp.eq.f32.partialorder %v299, 1.0
        %v304 = vsel %vm303, 1, 0
        %v305 = vcvt.s32.f32 %v304
        %vm306 = vcmp.eq.f32.partialorder %v299, 2.0
        %v307 = vsel %vm306, 1, 0
        %v308 = vcvt.s32.f32 %v307
        %vm309 = vcmp.eq.f32.partialorder %v299, 3.0
        %v310 = vsel %vm309, 1, 0
        %v311 = vcvt.s32.f32 %v310
        %vm312 = vcmp.eq.f32.partialorder %v299, 4.0
        %v313 = vsel %vm312, 1, 0
        %v314 = vcvt.s32.f32 %v313
        %vm315 = vcmp.eq.f32.partialorder %v299, 5.0
        %v316 = vsel %vm315, 1, 0
        %v317 = vcvt.s32.f32 %v316
        %vm318 = vcmp.eq.f32.partialorder %v299, 6.0
        %v319 = vsel %vm318, 1, 0
        %v320 = vcvt.s32.f32 %v319
        %vm321 = vcmp.eq.f32.partialorder %v299, 7.0
        %v322 = vsel %vm321, 1, 0
        %v323 = vcvt.s32.f32 %v322
        %vm324 = vcmp.eq.f32.partialorder %v299, 8.0
        %v325 = vsel %vm324, 1, 0
        %v326 = vcvt.s32.f32 %v325
        %vm327 = vcmp.eq.f32.partialorder %v299, 9.0
        %v328 = vsel %vm327, 1, 0
        %v329 = vcvt.s32.f32 %v328
        %vm330 = vcmp.eq.f32.partialorder %v299, 10.0
        %v331 = vsel %vm330, 1, 0
        %v332 = vcvt.s32.f32 %v331
        %vm333 = vcmp.eq.f32.partialorder %v299, 11.0
        %v334 = vsel %vm333, 1, 0
        %v335 = vcvt.s32.f32 %v334
        %vm336 = vcmp.eq.f32.partialorder %v299, 12.0
        %v337 = vsel %vm336, 1, 0
        %v338 = vcvt.s32.f32 %v337
        %vm339 = vcmp.eq.f32.partialorder %v299, 13.0
        %v340 = vsel %vm339, 1, 0
        %v341 = vcvt.s32.f32 %v340
        %vm342 = vcmp.eq.f32.partialorder %v299, 14.0
        %v343 = vsel %vm342, 1, 0
        %v344 = vcvt.s32.f32 %v343
        %v345 = vstv %s160
        %v346 = vmul.f32 %v290, %v345
        %v347 = vstv %s161
        %v348 = vadd.f32 %v346, %v347
        %v349 = vstv %s162
        %v350 = vmul.f32 %v290, %v349
        %v351 = vstv %s163
        %v352 = vadd.f32 %v350, %v351
        %v353 = vmul.f32 %v348, %v302
        %v354 = vsub.f32 1.0, %v352
        %v355 = vmul.f32 %v354, %v305
        %v356 = vadd.f32 %v353, %v355
        %v357 = vstv %s164
        %v358 = vmul.f32 %v290, %v357
        %v359 = vstv %s165
        %v360 = vadd.f32 %v358, %v359
        %v361 = vmul.f32 %v352, %v305
        %v362 = vsub.f32 1.0, %v360
        %v363 = vmul.f32 %v362, %v308
        %v364 = vadd.f32 %v361, %v363
        %v365 = vstv %s166
        %v366 = vmul.f32 %v290, %v365
        %v367 = vstv %s167
        %v368 = vadd.f32 %v366, %v367
        %v369 = vmul.f32 %v360, %v308
        %v370 = vsub.f32 1.0, %v368
        %v371 = vmul.f32 %v370, %v311
        %v372 = vadd.f32 %v369, %v371
        %v373 = vstv %s168
        %v374 = vmul.f32 %v290, %v373
        %v375 = vstv %s169
        %v376 = vadd.f32 %v374, %v375
        %v377 = vmul.f32 %v368, %v311
        %v378 = vsub.f32 1.0, %v376
        %v379 = vmul.f32 %v378, %v314
        %v380 = vadd.f32 %v377, %v379
        %v381 = vstv %s170
        %v382 = vmul.f32 %v290, %v381
        %v383 = vstv %s171
        %v384 = vadd.f32 %v382, %v383
        %v385 = vmul.f32 %v376, %v314
        %v386 = vsub.f32 1.0, %v384
        %v387 = vmul.f32 %v386, %v317
        %v388 = vadd.f32 %v385, %v387
        %v389 = vstv %s172
        %v390 = vmul.f32 %v290, %v389
        %v391 = vstv %s173
        %v392 = vadd.f32 %v390, %v391
        %v393 = vmul.f32 %v384, %v317
        %v394 = vsub.f32 1.0, %v392
        %v395 = vmul.f32 %v394, %v320
        %v396 = vadd.f32 %v393, %v395
        %v397 = vstv %s174
        %v398 = vmul.f32 %v290, %v397
        %v399 = vstv %s175
        %v400 = vadd.f32 %v398, %v399
        %v401 = vmul.f32 %v392, %v320
        %v402 = vsub.f32 1.0, %v400
        %v403 = vmul.f32 %v402, %v323
        %v404 = vadd.f32 %v401, %v403
        %v405 = vstv %s176
        %v406 = vmul.f32 %v290, %v405
        %v407 = vstv %s177
        %v408 = vadd.f32 %v406, %v407
        %v409 = vmul.f32 %v400, %v323
        %v410 = vsub.f32 1.0, %v408
        %v411 = vmul.f32 %v410, %v326
        %v412 = vadd.f32 %v409, %v411
        %v413 = vstv %s178
        %v414 = vmul.f32 %v290, %v413
        %v415 = vstv %s179
        %v416 = vadd.f32 %v414, %v415
        %v417 = vmul.f32 %v408, %v326
        %v418 = vsub.f32 1.0, %v416
        %v419 = vmul.f32 %v418, %v329
        %v420 = vadd.f32 %v417, %v419
        %v421 = vstv %s180
        %v422 = vmul.f32 %v290, %v421
        %v423 = vstv %s181
        %v424 = vadd.f32 %v422, %v423
        %v425 = vmul.f32 %v416, %v329
        %v426 = vsub.f32 1.0, %v424
        %v427 = vmul.f32 %v426, %v332
        %v428 = vadd.f32 %v425, %v427
        %v429 = vstv %s182
        %v430 = vmul.f32 %v290, %v429
        %v431 = vstv %s183
        %v432 = vadd.f32 %v430, %v431
        %v433 = vmul.f32 %v424, %v332
        %v434 = vsub.f32 1.0, %v432
        %v435 = vmul.f32 %v434, %v335
        %v436 = vadd.f32 %v433, %v435
        %v437 = vstv %s184
        %v438 = vmul.f32 %v290, %v437
        %v439 = vstv %s185
        %v440 = vadd.f32 %v438, %v439
        %v441 = vmul.f32 %v432, %v335
        %v442 = vsub.f32 1.0, %v440
        %v443 = vmul.f32 %v442, %v338
        %v444 = vadd.f32 %v441, %v443
        %v445 = vstv %s186
        %v446 = vmul.f32 %v290, %v445
        %v447 = vstv %s187
        %v448 = vadd.f32 %v446, %v447
        %v449 = vmul.f32 %v440, %v338
        %v450 = vsub.f32 1.0, %v448
        %v451 = vmul.f32 %v450, %v341
        %v452 = vadd.f32 %v449, %v451
        %v453 = vstv %s188
        %v454 = vmul.f32 %v290, %v453
        %v455 = vstv %s189
        %v456 = vadd.f32 %v454, %v455
        %v457 = vmul.f32 %v448, %v341
        %v458 = vsub.f32 1.0, %v456
        %v459 = vmul.f32 %v458, %v344
        %v460 = vadd.f32 %v457, %v459
        %v461 = vstv %s190
        %v462 = vmul.f32 %v290, %v461
        %v463 = vstv %s191
        %v464 = vadd.f32 %v462, %v463
        %v465 = vstv %s192
        %v466 = vmul.f32 %v290, %v465
        %v467 = vstv %s193
        %v468 = vadd.f32 %v466, %v467
        %v469 = vmul.f32 %v464, %v356
        %v470 = vsub.f32 1.0, %v468
        %v471 = vmul.f32 %v470, %v364
        %v472 = vadd.f32 %v469, %v471
        %v473 = vstv %s194
        %v474 = vmul.f32 %v290, %v473
        %v475 = vstv %s195
        %v476 = vadd.f32 %v474, %v475
        %v477 = vmul.f32 %v468, %v364
        %v478 = vsub.f32 1.0, %v476
        %v479 = vmul.f32 %v478, %v372
        %v480 = vadd.f32 %v477, %v479
        %v481 = vstv %s196
        %v482 = vmul.f32 %v290, %v481
        %v483 = vstv %s197
        %v484 = vadd.f32 %v482, %v483
        %v485 = vmul.f32 %v476, %v372
        %v486 = vsub.f32 1.0, %v484
        %v487 = vmul.f32 %v486, %v380
        %v488 = vadd.f32 %v485, %v487
        %v489 = vstv %s198
        %v490 = vmul.f32 %v290, %v489
        %v491 = vstv %s199
        %v492 = vadd.f32 %v490, %v491
        %v493 = vmul.f32 %v484, %v380
        %v494 = vsub.f32 1.0, %v492
        %v495 = vmul.f32 %v494, %v388
        %v496 = vadd.f32 %v493, %v495
        %v497 = vstv %s200
        %v498 = vmul.f32 %v290, %v497
        %v499 = vstv %s201
        %v500 = vadd.f32 %v498, %v499
        %v501 = vmul.f32 %v492, %v388
        %v502 = vsub.f32 1.0, %v500
        %v503 = vmul.f32 %v502, %v396
        %v504 = vadd.f32 %v501, %v503
        %v505 = vstv %s202
        %v506 = vmul.f32 %v290, %v505
        %v507 = vstv %s203
        %v508 = vadd.f32 %v506, %v507
        %v509 = vmul.f32 %v500, %v396
        %v510 = vsub.f32 1.0, %v508
        %v511 = vmul.f32 %v510, %v404
        %v512 = vadd.f32 %v509, %v511
        %v513 = vstv %s204
        %v514 = vmul.f32 %v290, %v513
        %v515 = vstv %s205
        %v516 = vadd.f32 %v514, %v515
        %v517 = vmul.f32 %v508, %v404
        %v518 = vsub.f32 1.0, %v516
        %v519 = vmul.f32 %v518, %v412
        %v520 = vadd.f32 %v517, %v519
        %v521 = vstv %s206
        %v522 = vmul.f32 %v290, %v521
        %v523 = vstv %s207
        %v524 = vadd.f32 %v522, %v523
        %v525 = vmul.f32 %v516, %v412
        %v526 = vsub.f32 1.0, %v524
        %v527 = vmul.f32 %v526, %v420
        %v528 = vadd.f32 %v525, %v527
        %v529 = vstv %s208
        %v530 = vmul.f32 %v290, %v529
        %v531 = vstv %s209
        %v532 = vadd.f32 %v530, %v531
        %v533 = vmul.f32 %v524, %v420
        %v534 = vsub.f32 1.0, %v532
        %v535 = vmul.f32 %v534, %v428
        %v536 = vadd.f32 %v533, %v535
        %v537 = vstv %s210
        %v538 = vmul.f32 %v290, %v537
        %v539 = vstv %s211
        %v540 = vadd.f32 %v538, %v539
        %v541 = vmul.f32 %v532, %v428
        %v542 = vsub.f32 1.0, %v540
        %v543 = vmul.f32 %v542, %v436
        %v544 = vadd.f32 %v541, %v543
        %v545 = vstv %s212
        %v546 = vmul.f32 %v290, %v545
        %v547 = vstv %s213
        %v548 = vadd.f32 %v546, %v547
        %v549 = vmul.f32 %v540, %v436
        %v550 = vsub.f32 1.0, %v548
        %v551 = vmul.f32 %v550, %v444
        %v552 = vadd.f32 %v549, %v551
        %v553 = vstv %s214
        %v554 = vmul.f32 %v290, %v553
        %v555 = vstv %s215
        %v556 = vadd.f32 %v554, %v555
        %v557 = vmul.f32 %v548, %v444
        %v558 = vsub.f32 1.0, %v556
        %v559 = vmul.f32 %v558, %v452
        %v560 = vadd.f32 %v557, %v559
        %v561 = vstv %s216
        %v562 = vmul.f32 %v290, %v561
        %v563 = vstv %s217
        %v564 = vadd.f32 %v562, %v563
        %v565 = vmul.f32 %v556, %v452
        %v566 = vsub.f32 1.0, %v564
        %v567 = vmul.f32 %v566, %v460
        %v568 = vadd.f32 %v565, %v567
        %v569 = vstv %s218
        %v570 = vmul.f32 %v290, %v569
        %v571 = vstv %s219
        %v572 = vadd.f32 %v570, %v571
        %v573 = vstv %s220
        %v574 = vmul.f32 %v290, %v573
        %v575 = vstv %s221
        %v576 = vadd.f32 %v574, %v575
        %v577 = vmul.f32 %v572, %v472
        %v578 = vsub.f32 1.0, %v576
        %v579 = vmul.f32 %v578, %v480
        %v580 = vadd.f32 %v577, %v579
        %v581 = vstv %s222
        %v582 = vmul.f32 %v290, %v581
        %v583 = vstv %s223
        %v584 = vadd.f32 %v582, %v583
        %v585 = vmul.f32 %v576, %v480
        %v586 = vsub.f32 1.0, %v584
        %v587 = vmul.f32 %v586, %v488
        %v588 = vadd.f32 %v585, %v587
        %v589 = vstv %s224
        %v590 = vmul.f32 %v290, %v589
        %v591 = vstv %s225
        %v592 = vadd.f32 %v590, %v591
        %v593 = vmul.f32 %v584, %v488
        %v594 = vsub.f32 1.0, %v592
        %v595 = vmul.f32 %v594, %v496
        %v596 = vadd.f32 %v593, %v595
        %v597 = vstv %s226
        %v598 = vmul.f32 %v290, %v597
        %v599 = vstv %s227
        %v600 = vadd.f32 %v598, %v599
        %v601 = vmul.f32 %v592, %v496
        %v602 = vsub.f32 1.0, %v600
        %v603 = vmul.f32 %v602, %v504
        %v604 = vadd.f32 %v601, %v603
        %v605 = vstv %s228
        %v606 = vmul.f32 %v290, %v605
        %v607 = vstv %s229
        %v608 = vadd.f32 %v606, %v607
        %v609 = vmul.f32 %v600, %v504
        %v610 = vsub.f32 1.0, %v608
        %v611 = vmul.f32 %v610, %v512
        %v612 = vadd.f32 %v609, %v611
        %v613 = vstv %s230
        %v614 = vmul.f32 %v290, %v613
        %v615 = vstv %s231
        %v616 = vadd.f32 %v614, %v615
        %v617 = vmul.f32 %v608, %v512
        %v618 = vsub.f32 1.0, %v616
        %v619 = vmul.f32 %v618, %v520
        %v620 = vadd.f32 %v617, %v619
        %v621 = vstv %s232
        %v622 = vmul.f32 %v290, %v621
        %v623 = vstv %s233
        %v624 = vadd.f32 %v622, %v623
        %v625 = vmul.f32 %v616, %v520
        %v626 = vsub.f32 1.0, %v624
        %v627 = vmul.f32 %v626, %v528
        %v628 = vadd.f32 %v625, %v627
        %v629 = vstv %s234
        %v630 = vmul.f32 %v290, %v629
        %v631 = vstv %s235
        %v632 = vadd.f32 %v630, %v631
        %v633 = vmul.f32 %v624, %v528
        %v634 = vsub.f32 1.0, %v632
        %v635 = vmul.f32 %v634, %v536
        %v636 = vadd.f32 %v633, %v635
        %v637 = vstv %s236
        %v638 = vmul.f32 %v290, %v637
        %v639 = vstv %s237
        %v640 = vadd.f32 %v638, %v639
        %v641 = vmul.f32 %v632, %v536
        %v642 = vsub.f32 1.0, %v640
        %v643 = vmul.f32 %v642, %v544
        %v644 = vadd.f32 %v641, %v643
        %v645 = vstv %s238
        %v646 = vmul.f32 %v290, %v645
        %v647 = vstv %s239
        %v648 = vadd.f32 %v646, %v647
        %v649 = vmul.f32 %v640, %v544
        %v650 = vsub.f32 1.0, %v648
        %v651 = vmul.f32 %v650, %v552
        %v652 = vadd.f32 %v649, %v651
        %v653 = vstv %s240
        %v654 = vmul.f32 %v290, %v653
        %v655 = vstv %s241
        %v656 = vadd.f32 %v654, %v655
        %v657 = vmul.f32 %v648, %v552
        %v658 = vsub.f32 1.0, %v656
        %v659 = vmul.f32 %v658, %v560
        %v660 = vadd.f32 %v657, %v659
        %v661 = vstv %s242
        %v662 = vmul.f32 %v290, %v661
        %v663 = vstv %s243
        %v664 = vadd.f32 %v662, %v663
        %v665 = vmul.f32 %v656, %v560
        %v666 = vsub.f32 1.0, %v664
        %v667 = vmul.f32 %v666, %v568
        %v668 = vadd.f32 %v665, %v667
        %v669 = vstv %s244
        %v670 = vmul.f32 %v290, %v669
        %v671 = vstv %s245
        %v672 = vadd.f32 %v670, %v671
        %v673 = vstv %s246
        %v674 = vmul.f32 %v290, %v673
        %v675 = vstv %s247
        %v676 = vadd.f32 %v674, %v675
        %v677 = vmul.f32 %v672, %v580
        %v678 = vsub.f32 1.0, %v676
        %v679 = vmul.f32 %v678, %v588
        %v680 = vadd.f32 %v677, %v679
        %v681 = vstv %s248
        %v682 = vmul.f32 %v290, %v681
        %v683 = vstv %s249
        %v684 = vadd.f32 %v682, %v683
        %v685 = vmul.f32 %v676, %v588
        %v686 = vsub.f32 1.0, %v684
        %v687 = vmul.f32 %v686, %v596
        %v688 = vadd.f32 %v685, %v687
        %v689 = vstv %s250
        %v690 = vmul.f32 %v290, %v689
        %v691 = vstv %s251
        %v692 = vadd.f32 %v690, %v691
        %v693 = vmul.f32 %v684, %v596
        %v694 = vsub.f32 1.0, %v692
        %v695 = vmul.f32 %v694, %v604
        %v696 = vadd.f32 %v693, %v695
        %v697 = vstv %s252
        %v698 = vmul.f32 %v290, %v697
        %v699 = vstv %s253
        %v700 = vadd.f32 %v698, %v699
        %v701 = vmul.f32 %v692, %v604
        %v702 = vsub.f32 1.0, %v700
        %v703 = vmul.f32 %v702, %v612
        %v704 = vadd.f32 %v701, %v703
        %v705 = vstv %s254
        %v706 = vmul.f32 %v290, %v705
        %v707 = vstv %s255
        %v708 = vadd.f32 %v706, %v707
        %v709 = vmul.f32 %v700, %v612
        %v710 = vsub.f32 1.0, %v708
        %v711 = vmul.f32 %v710, %v620
        %v712 = vadd.f32 %v709, %v711
        %v713 = vstv %s256
        %v714 = vmul.f32 %v290, %v713
        %v715 = vstv %s257
        %v716 = vadd.f32 %v714, %v715
        %v717 = vmul.f32 %v708, %v620
        %v718 = vsub.f32 1.0, %v716
        %v719 = vmul.f32 %v718, %v628
        %v720 = vadd.f32 %v717, %v719
        %v721 = vstv %s258
        %v722 = vmul.f32 %v290, %v721
        %v723 = vstv %s259
        %v724 = vadd.f32 %v722, %v723
        %v725 = vmul.f32 %v716, %v628
        %v726 = vsub.f32 1.0, %v724
        %v727 = vmul.f32 %v726, %v636
        %v728 = vadd.f32 %v725, %v727
        %v729 = vstv %s260
        %v730 = vmul.f32 %v290, %v729
        %v731 = vstv %s261
        %v732 = vadd.f32 %v730, %v731
        %v733 = vmul.f32 %v724, %v636
        %v734 = vsub.f32 1.0, %v732
        %v735 = vmul.f32 %v734, %v644
        %v736 = vadd.f32 %v733, %v735
        %v737 = vstv %s262
        %v738 = vmul.f32 %v290, %v737
        %v739 = vstv %s263
        %v740 = vadd.f32 %v738, %v739
        %v741 = vmul.f32 %v732, %v644
        %v742 = vsub.f32 1.0, %v740
        %v743 = vmul.f32 %v742, %v652
        %v744 = vadd.f32 %v741, %v743
        %v745 = vstv %s264
        %v746 = vmul.f32 %v290, %v745
        %v747 = vstv %s265
        %v748 = vadd.f32 %v746, %v747
        %v749 = vmul.f32 %v740, %v652
        %v750 = vsub.f32 1.0, %v748
        %v751 = vmul.f32 %v750, %v660
        %v752 = vadd.f32 %v749, %v751
        %v753 = vstv %s266
        %v754 = vmul.f32 %v290, %v753
        %v755 = vstv %s267
        %v756 = vadd.f32 %v754, %v755
        %v757 = vmul.f32 %v748, %v660
        %v758 = vsub.f32 1.0, %v756
        %v759 = vmul.f32 %v758, %v668
        %v760 = vadd.f32 %v757, %v759
        %v761 = vstv %s268
        %v762 = vmul.f32 %v290, %v761
        %v763 = vstv %s269
        %v764 = vadd.f32 %v762, %v763
        %v765 = vstv %s270
        %v766 = vmul.f32 %v290, %v765
        %v767 = vstv %s271
        %v768 = vadd.f32 %v766, %v767
        %v769 = vmul.f32 %v764, %v680
        %v770 = vsub.f32 1.0, %v768
        %v771 = vmul.f32 %v770, %v688
        %v772 = vadd.f32 %v769, %v771
        %v773 = vstv %s272
        %v774 = vmul.f32 %v290, %v773
        %v775 = vstv %s273
        %v776 = vadd.f32 %v774, %v775
        %v777 = vmul.f32 %v768, %v688
        %v778 = vsub.f32 1.0, %v776
        %v779 = vmul.f32 %v778, %v696
        %v780 = vadd.f32 %v777, %v779
        %v781 = vstv %s274
        %v782 = vmul.f32 %v290, %v781
        %v783 = vstv %s275
        %v784 = vadd.f32 %v782, %v783
        %v785 = vmul.f32 %v776, %v696
        %v786 = vsub.f32 1.0, %v784
        %v787 = vmul.f32 %v786, %v704
        %v788 = vadd.f32 %v785, %v787
        %v789 = vstv %s276
        %v790 = vmul.f32 %v290, %v789
        %v791 = vstv %s277
        %v792 = vadd.f32 %v790, %v791
        %v793 = vmul.f32 %v784, %v704
        %v794 = vsub.f32 1.0, %v792
        %v795 = vmul.f32 %v794, %v712
        %v796 = vadd.f32 %v793, %v795
        %v797 = vstv %s278
        %v798 = vmul.f32 %v290, %v797
        %v799 = vstv %s279
        %v800 = vadd.f32 %v798, %v799
        %v801 = vmul.f32 %v792, %v712
        %v802 = vsub.f32 1.0, %v800
        %v803 = vmul.f32 %v802, %v720
        %v804 = vadd.f32 %v801, %v803
        %v805 = vstv %s280
        %v806 = vmul.f32 %v290, %v805
        %v807 = vstv %s281
        %v808 = vadd.f32 %v806, %v807
        %v809 = vmul.f32 %v800, %v720
        %v810 = vsub.f32 1.0, %v808
        %v811 = vmul.f32 %v810, %v728
        %v812 = vadd.f32 %v809, %v811
        %v813 = vstv %s282
        %v814 = vmul.f32 %v290, %v813
        %v815 = vstv %s283
        %v816 = vadd.f32 %v814, %v815
        %v817 = vmul.f32 %v808, %v728
        %v818 = vsub.f32 1.0, %v816
        %v819 = vmul.f32 %v818, %v736
        %v820 = vadd.f32 %v817, %v819
        %v821 = vstv %s284
        %v822 = vmul.f32 %v290, %v821
        %v823 = vstv %s285
        %v824 = vadd.f32 %v822, %v823
        %v825 = vmul.f32 %v816, %v736
        %v826 = vsub.f32 1.0, %v824
        %v827 = vmul.f32 %v826, %v744
        %v828 = vadd.f32 %v825, %v827
        %v829 = vstv %s286
        %v830 = vmul.f32 %v290, %v829
        %v831 = vstv %s287
        %v832 = vadd.f32 %v830, %v831
        %v833 = vmul.f32 %v824, %v744
        %v834 = vsub.f32 1.0, %v832
        %v835 = vmul.f32 %v834, %v752
        %v836 = vadd.f32 %v833, %v835
        %v837 = vstv %s288
        %v838 = vmul.f32 %v290, %v837
        %v839 = vstv %s289
        %v840 = vadd.f32 %v838, %v839
        %v841 = vmul.f32 %v832, %v752
        %v842 = vsub.f32 1.0, %v840
        %v843 = vmul.f32 %v842, %v760
        %v844 = vadd.f32 %v841, %v843
        %v845 = vsub.f32 0.0, %v290
        %v846 = vmul.f32 %v845, 1.442695
        %v847 = vpow.pop %v846
        %v848 = vadd.f32 %v847, 1.0
        %v849 = vrcp.pop %v848
        %v850 = vmul.f32 1.0, %v849
        %v851 = vmul.f32 %v290, %v850
        %s852 = sld [smem:[#allocation2 + $0x84]]
        %v853 = vstv %s852
        %v854 = vmul.f32 %v853, %v851
        %s855 = sld [smem:[#allocation2 + $0x85]]
        %v856 = vstv %s855
        %v857 = vmul.f32 %v856, %v772
        %v858 = vadd.f32 %v854, %v857
        %s859 = sld [smem:[#allocation2 + $0x86]]
        %v860 = vstv %s859
        %v861 = vmul.f32 %v860, %v780
        %v862 = vadd.f32 %v858, %v861
        %s863 = sld [smem:[#allocation2 + $0x87]]
        %v864 = vstv %s863
        %v865 = vmul.f32 %v864, %v788
        %v866 = vadd.f32 %v862, %v865
        %s867 = sld [smem:[#allocation2 + $0x88]]
        %v868 = vstv %s867
        %v869 = vmul.f32 %v868, %v796
        %v870 = vadd.f32 %v866, %v869
        %s871 = sld [smem:[#allocation2 + $0x89]]
        %v872 = vstv %s871
        %v873 = vmul.f32 %v872, %v804
        %v874 = vadd.f32 %v870, %v873
        %s875 = sld [smem:[#allocation2 + $0x8a]]
        %v876 = vstv %s875
        %v877 = vmul.f32 %v876, %v812
        %v878 = vadd.f32 %v874, %v877
        %s879 = sld [smem:[#allocation2 + $0x8b]]
        %v880 = vstv %s879
        %v881 = vmul.f32 %v880, %v820
        %v882 = vadd.f32 %v878, %v881
        %s883 = sld [smem:[#allocation2 + $0x8c]]
        %v884 = vstv %s883
        %v885 = vmul.f32 %v884, %v828
        %v886 = vadd.f32 %v882, %v885
        %s887 = sld [smem:[#allocation2 + $0x8d]]
        %v888 = vstv %s887
        %v889 = vmul.f32 %v888, %v836
        %v890 = vadd.f32 %v886, %v889
        %s891 = sld [smem:[#allocation2 + $0x8e]]
        %v892 = vstv %s891
        %v893 = vmul.f32 %v892, %v844
        %v894 = vadd.f32 %v890, %v893
        %s895 = sld [smem:[#allocation2 + $0x8f]]
        %v896 = vstv %s895
        %v897 = vmul.f32 %v896, %v851
        %s898 = sld [smem:[#allocation2 + $0x90]]
        %v899 = vstv %s898
        %v900 = vmul.f32 %v899, %v772
        %v901 = vadd.f32 %v897, %v900
        %s902 = sld [smem:[#allocation2 + $0x91]]
        %v903 = vstv %s902
        %v904 = vmul.f32 %v903, %v780
        %v905 = vadd.f32 %v901, %v904
        %s906 = sld [smem:[#allocation2 + $0x92]]
        %v907 = vstv %s906
        %v908 = vmul.f32 %v907, %v788
        %v909 = vadd.f32 %v905, %v908
        %s910 = sld [smem:[#allocation2 + $0x93]]
        %v911 = vstv %s910
        %v912 = vmul.f32 %v911, %v796
        %v913 = vadd.f32 %v909, %v912
        %s914 = sld [smem:[#allocation2 + $0x94]]
        %v915 = vstv %s914
        %v916 = vmul.f32 %v915, %v804
        %v917 = vadd.f32 %v913, %v916
        %s918 = sld [smem:[#allocation2 + $0x95]]
        %v919 = vstv %s918
        %v920 = vmul.f32 %v919, %v812
        %v921 = vadd.f32 %v917, %v920
        %s922 = sld [smem:[#allocation2 + $0x96]]
        %v923 = vstv %s922
        %v924 = vmul.f32 %v923, %v820
        %v925 = vadd.f32 %v921, %v924
        %s926 = sld [smem:[#allocation2 + $0x97]]
        %v927 = vstv %s926
        %v928 = vmul.f32 %v927, %v828
        %v929 = vadd.f32 %v925, %v928
        %s930 = sld [smem:[#allocation2 + $0x98]]
        %v931 = vstv %s930
        %v932 = vmul.f32 %v931, %v836
        %v933 = vadd.f32 %v929, %v932
        %s934 = sld [smem:[#allocation2 + $0x99]]
        %v935 = vstv %s934
        %v936 = vmul.f32 %v935, %v844
        %v937 = vadd.f32 %v933, %v936
        %s938 = sld [smem:[#allocation2 + $0x9a]]
        %v939 = vstv %s938
        %v940 = vmul.f32 %v939, %v851
        %s941 = sld [smem:[#allocation2 + $0x9b]]
        %v942 = vstv %s941
        %v943 = vmul.f32 %v942, %v772
        %v944 = vadd.f32 %v940, %v943
        %s945 = sld [smem:[#allocation2 + $0x9c]]
        %v946 = vstv %s945
        %v947 = vmul.f32 %v946, %v780
        %v948 = vadd.f32 %v944, %v947
        %s949 = sld [smem:[#allocation2 + $0x9d]]
        %v950 = vstv %s949
        %v951 = vmul.f32 %v950, %v788
        %v952 = vadd.f32 %v948, %v951
        %s953 = sld [smem:[#allocation2 + $0x9e]]
        %v954 = vstv %s953
        %v955 = vmul.f32 %v954, %v796
        %v956 = vadd.f32 %v952, %v955
        %s957 = sld [smem:[#allocation2 + $0x9f]]
        %v958 = vstv %s957
        %v959 = vmul.f32 %v958, %v804
        %v960 = vadd.f32 %v956, %v959
        %s961 = sld [smem:[#allocation2 + $0xa0]]
        %v962 = vstv %s961
        %v963 = vmul.f32 %v962, %v812
        %v964 = vadd.f32 %v960, %v963
        %s965 = sld [smem:[#allocation2 + $0xa1]]
        %v966 = vstv %s965
        %v967 = vmul.f32 %v966, %v820
        %v968 = vadd.f32 %v964, %v967
        %s969 = sld [smem:[#allocation2 + $0xa2]]
        %v970 = vstv %s969
        %v971 = vmul.f32 %v970, %v828
        %v972 = vadd.f32 %v968, %v971
        %s973 = sld [smem:[#allocation2 + $0xa3]]
        %v974 = vstv %s973
        %v975 = vmul.f32 %v974, %v836
        %v976 = vadd.f32 %v972, %v975
        %s977 = sld [smem:[#allocation2 + $0xa4]]
        %v978 = vstv %s977
        %v979 = vmul.f32 %v978, %v844
        %v980 = vadd.f32 %v976, %v979
        %v981 = vsub.f32 %v292, %v295
        %v982 = vmul.f32 %v981, %v297
        %v983 = vfloor.f32 %v982
        %vm984 = vcmp.eq.f32.partialorder %v983, 0.0
        %v985 = vsel %vm984, 1, 0
        %v986 = vcvt.s32.f32 %v985
        %vm987 = vcmp.eq.f32.partialorder %v983, 1.0
        %v988 = vsel %vm987, 1, 0
        %v989 = vcvt.s32.f32 %v988
        %vm990 = vcmp.eq.f32.partialorder %v983, 2.0
        %v991 = vsel %vm990, 1, 0
        %v992 = vcvt.s32.f32 %v991
        %vm993 = vcmp.eq.f32.partialorder %v983, 3.0
        %v994 = vsel %vm993, 1, 0
        %v995 = vcvt.s32.f32 %v994
        %vm996 = vcmp.eq.f32.partialorder %v983, 4.0
        %v997 = vsel %vm996, 1, 0
        %v998 = vcvt.s32.f32 %v997
        %vm999 = vcmp.eq.f32.partialorder %v983, 5.0
        %v1000 = vsel %vm999, 1, 0
        %v1001 = vcvt.s32.f32 %v1000
        %vm1002 = vcmp.eq.f32.partialorder %v983, 6.0
        %v1003 = vsel %vm1002, 1, 0
        %v1004 = vcvt.s32.f32 %v1003
        %vm1005 = vcmp.eq.f32.partialorder %v983, 7.0
        %v1006 = vsel %vm1005, 1, 0
        %v1007 = vcvt.s32.f32 %v1006
        %vm1008 = vcmp.eq.f32.partialorder %v983, 8.0
        %v1009 = vsel %vm1008, 1, 0
        %v1010 = vcvt.s32.f32 %v1009
        %vm1011 = vcmp.eq.f32.partialorder %v983, 9.0
        %v1012 = vsel %vm1011, 1, 0
        %v1013 = vcvt.s32.f32 %v1012
        %vm1014 = vcmp.eq.f32.partialorder %v983, 10.0
        %v1015 = vsel %vm1014, 1, 0
        %v1016 = vcvt.s32.f32 %v1015
        %vm1017 = vcmp.eq.f32.partialorder %v983, 11.0
        %v1018 = vsel %vm1017, 1, 0
        %v1019 = vcvt.s32.f32 %v1018
        %vm1020 = vcmp.eq.f32.partialorder %v983, 12.0
        %v1021 = vsel %vm1020, 1, 0
        %v1022 = vcvt.s32.f32 %v1021
        %vm1023 = vcmp.eq.f32.partialorder %v983, 13.0
        %v1024 = vsel %vm1023, 1, 0
        %v1025 = vcvt.s32.f32 %v1024
        %vm1026 = vcmp.eq.f32.partialorder %v983, 14.0
        %v1027 = vsel %vm1026, 1, 0
        %v1028 = vcvt.s32.f32 %v1027
        %v1029 = vmul.f32 %v292, %v345
        %v1030 = vadd.f32 %v1029, %v347
        %v1031 = vmul.f32 %v292, %v349
        %v1032 = vadd.f32 %v1031, %v351
        %v1033 = vmul.f32 %v1030, %v986
        %v1034 = vsub.f32 1.0, %v1032
        %v1035 = vmul.f32 %v1034, %v989
        %v1036 = vadd.f32 %v1033, %v1035
        %v1037 = vmul.f32 %v292, %v357
        %v1038 = vadd.f32 %v1037, %v359
        %v1039 = vmul.f32 %v1032, %v989
        %v1040 = vsub.f32 1.0, %v1038
        %v1041 = vmul.f32 %v1040, %v992
        %v1042 = vadd.f32 %v1039, %v1041
        %v1043 = vmul.f32 %v292, %v365
        %v1044 = vadd.f32 %v1043, %v367
        %v1045 = vmul.f32 %v1038, %v992
        %v1046 = vsub.f32 1.0, %v1044
        %v1047 = vmul.f32 %v1046, %v995
        %v1048 = vadd.f32 %v1045, %v1047
        %v1049 = vmul.f32 %v292, %v373
        %v1050 = vadd.f32 %v1049, %v375
        %v1051 = vmul.f32 %v1044, %v995
        %v1052 = vsub.f32 1.0, %v1050
        %v1053 = vmul.f32 %v1052, %v998
        %v1054 = vadd.f32 %v1051, %v1053
        %v1055 = vmul.f32 %v292, %v381
        %v1056 = vadd.f32 %v1055, %v383
        %v1057 = vmul.f32 %v1050, %v998
        %v1058 = vsub.f32 1.0, %v1056
        %v1059 = vmul.f32 %v1058, %v1001
        %v1060 = vadd.f32 %v1057, %v1059
        %v1061 = vmul.f32 %v292, %v389
        %v1062 = vadd.f32 %v1061, %v391
        %v1063 = vmul.f32 %v1056, %v1001
        %v1064 = vsub.f32 1.0, %v1062
        %v1065 = vmul.f32 %v1064, %v1004
        %v1066 = vadd.f32 %v1063, %v1065
        %v1067 = vmul.f32 %v292, %v397
        %v1068 = vadd.f32 %v1067, %v399
        %v1069 = vmul.f32 %v1062, %v1004
        %v1070 = vsub.f32 1.0, %v1068
        %v1071 = vmul.f32 %v1070, %v1007
        %v1072 = vadd.f32 %v1069, %v1071
        %v1073 = vmul.f32 %v292, %v405
        %v1074 = vadd.f32 %v1073, %v407
        %v1075 = vmul.f32 %v1068, %v1007
        %v1076 = vsub.f32 1.0, %v1074
        %v1077 = vmul.f32 %v1076, %v1010
        %v1078 = vadd.f32 %v1075, %v1077
        %v1079 = vmul.f32 %v292, %v413
        %v1080 = vadd.f32 %v1079, %v415
        %v1081 = vmul.f32 %v1074, %v1010
        %v1082 = vsub.f32 1.0, %v1080
        %v1083 = vmul.f32 %v1082, %v1013
        %v1084 = vadd.f32 %v1081, %v1083
        %v1085 = vmul.f32 %v292, %v421
        %v1086 = vadd.f32 %v1085, %v423
        %v1087 = vmul.f32 %v1080, %v1013
        %v1088 = vsub.f32 1.0, %v1086
        %v1089 = vmul.f32 %v1088, %v1016
        %v1090 = vadd.f32 %v1087, %v1089
        %v1091 = vmul.f32 %v292, %v429
        %v1092 = vadd.f32 %v1091, %v431
        %v1093 = vmul.f32 %v1086, %v1016
        %v1094 = vsub.f32 1.0, %v1092
        %v1095 = vmul.f32 %v1094, %v1019
        %v1096 = vadd.f32 %v1093, %v1095
        %v1097 = vmul.f32 %v292, %v437
        %v1098 = vadd.f32 %v1097, %v439
        %v1099 = vmul.f32 %v1092, %v1019
        %v1100 = vsub.f32 1.0, %v1098
        %v1101 = vmul.f32 %v1100, %v1022
        %v1102 = vadd.f32 %v1099, %v1101
        %v1103 = vmul.f32 %v292, %v445
        %v1104 = vadd.f32 %v1103, %v447
        %v1105 = vmul.f32 %v1098, %v1022
        %v1106 = vsub.f32 1.0, %v1104
        %v1107 = vmul.f32 %v1106, %v1025
        %v1108 = vadd.f32 %v1105, %v1107
        %v1109 = vmul.f32 %v292, %v453
        %v1110 = vadd.f32 %v1109, %v455
        %v1111 = vmul.f32 %v1104, %v1025
        %v1112 = vsub.f32 1.0, %v1110
        %v1113 = vmul.f32 %v1112, %v1028
        %v1114 = vadd.f32 %v1111, %v1113
        %v1115 = vmul.f32 %v292, %v461
        %v1116 = vadd.f32 %v1115, %v463
        %v1117 = vmul.f32 %v292, %v465
        %v1118 = vadd.f32 %v1117, %v467
        %v1119 = vmul.f32 %v1116, %v1036
        %v1120 = vsub.f32 1.0, %v1118
        %v1121 = vmul.f32 %v1120, %v1042
        %v1122 = vadd.f32 %v1119, %v1121
        %v1123 = vmul.f32 %v292, %v473
        %v1124 = vadd.f32 %v1123, %v475
        %v1125 = vmul.f32 %v1118, %v1042
        %v1126 = vsub.f32 1.0, %v1124
        %v1127 = vmul.f32 %v1126, %v1048
        %v1128 = vadd.f32 %v1125, %v1127
        %v1129 = vmul.f32 %v292, %v481
        %v1130 = vadd.f32 %v1129, %v483
        %v1131 = vmul.f32 %v1124, %v1048
        %v1132 = vsub.f32 1.0, %v1130
        %v1133 = vmul.f32 %v1132, %v1054
        %v1134 = vadd.f32 %v1131, %v1133
        %v1135 = vmul.f32 %v292, %v489
        %v1136 = vadd.f32 %v1135, %v491
        %v1137 = vmul.f32 %v1130, %v1054
        %v1138 = vsub.f32 1.0, %v1136
        %v1139 = vmul.f32 %v1138, %v1060
        %v1140 = vadd.f32 %v1137, %v1139
        %v1141 = vmul.f32 %v292, %v497
        %v1142 = vadd.f32 %v1141, %v499
        %v1143 = vmul.f32 %v1136, %v1060
        %v1144 = vsub.f32 1.0, %v1142
        %v1145 = vmul.f32 %v1144, %v1066
        %v1146 = vadd.f32 %v1143, %v1145
        %v1147 = vmul.f32 %v292, %v505
        %v1148 = vadd.f32 %v1147, %v507
        %v1149 = vmul.f32 %v1142, %v1066
        %v1150 = vsub.f32 1.0, %v1148
        %v1151 = vmul.f32 %v1150, %v1072
        %v1152 = vadd.f32 %v1149, %v1151
        %v1153 = vmul.f32 %v292, %v513
        %v1154 = vadd.f32 %v1153, %v515
        %v1155 = vmul.f32 %v1148, %v1072
        %v1156 = vsub.f32 1.0, %v1154
        %v1157 = vmul.f32 %v1156, %v1078
        %v1158 = vadd.f32 %v1155, %v1157
        %v1159 = vmul.f32 %v292, %v521
        %v1160 = vadd.f32 %v1159, %v523
        %v1161 = vmul.f32 %v1154, %v1078
        %v1162 = vsub.f32 1.0, %v1160
        %v1163 = vmul.f32 %v1162, %v1084
        %v1164 = vadd.f32 %v1161, %v1163
        %v1165 = vmul.f32 %v292, %v529
        %v1166 = vadd.f32 %v1165, %v531
        %v1167 = vmul.f32 %v1160, %v1084
        %v1168 = vsub.f32 1.0, %v1166
        %v1169 = vmul.f32 %v1168, %v1090
        %v1170 = vadd.f32 %v1167, %v1169
        %v1171 = vmul.f32 %v292, %v537
        %v1172 = vadd.f32 %v1171, %v539
        %v1173 = vmul.f32 %v1166, %v1090
        %v1174 = vsub.f32 1.0, %v1172
        %v1175 = vmul.f32 %v1174, %v1096
        %v1176 = vadd.f32 %v1173, %v1175
        %v1177 = vmul.f32 %v292, %v545
        %v1178 = vadd.f32 %v1177, %v547
        %v1179 = vmul.f32 %v1172, %v1096
        %v1180 = vsub.f32 1.0, %v1178
        %v1181 = vmul.f32 %v1180, %v1102
        %v1182 = vadd.f32 %v1179, %v1181
        %v1183 = vmul.f32 %v292, %v553
        %v1184 = vadd.f32 %v1183, %v555
        %v1185 = vmul.f32 %v1178, %v1102
        %v1186 = vsub.f32 1.0, %v1184
        %v1187 = vmul.f32 %v1186, %v1108
        %v1188 = vadd.f32 %v1185, %v1187
        %v1189 = vmul.f32 %v292, %v561
        %v1190 = vadd.f32 %v1189, %v563
        %v1191 = vmul.f32 %v1184, %v1108
        %v1192 = vsub.f32 1.0, %v1190
        %v1193 = vmul.f32 %v1192, %v1114
        %v1194 = vadd.f32 %v1191, %v1193
        %v1195 = vmul.f32 %v292, %v569
        %v1196 = vadd.f32 %v1195, %v571
        %v1197 = vmul.f32 %v292, %v573
        %v1198 = vadd.f32 %v1197, %v575
        %v1199 = vmul.f32 %v1196, %v1122
        %v1200 = vsub.f32 1.0, %v1198
        %v1201 = vmul.f32 %v1200, %v1128
        %v1202 = vadd.f32 %v1199, %v1201
        %v1203 = vmul.f32 %v292, %v581
        %v1204 = vadd.f32 %v1203, %v583
        %v1205 = vmul.f32 %v1198, %v1128
        %v1206 = vsub.f32 1.0, %v1204
        %v1207 = vmul.f32 %v1206, %v1134
        %v1208 = vadd.f32 %v1205, %v1207
        %v1209 = vmul.f32 %v292, %v589
        %v1210 = vadd.f32 %v1209, %v591
        %v1211 = vmul.f32 %v1204, %v1134
        %v1212 = vsub.f32 1.0, %v1210
        %v1213 = vmul.f32 %v1212, %v1140
        %v1214 = vadd.f32 %v1211, %v1213
        %v1215 = vmul.f32 %v292, %v597
        %v1216 = vadd.f32 %v1215, %v599
        %v1217 = vmul.f32 %v1210, %v1140
        %v1218 = vsub.f32 1.0, %v1216
        %v1219 = vmul.f32 %v1218, %v1146
        %v1220 = vadd.f32 %v1217, %v1219
        %v1221 = vmul.f32 %v292, %v605
        %v1222 = vadd.f32 %v1221, %v607
        %v1223 = vmul.f32 %v1216, %v1146
        %v1224 = vsub.f32 1.0, %v1222
        %v1225 = vmul.f32 %v1224, %v1152
        %v1226 = vadd.f32 %v1223, %v1225
        %v1227 = vmul.f32 %v292, %v613
        %v1228 = vadd.f32 %v1227, %v615
        %v1229 = vmul.f32 %v1222, %v1152
        %v1230 = vsub.f32 1.0, %v1228
        %v1231 = vmul.f32 %v1230, %v1158
        %v1232 = vadd.f32 %v1229, %v1231
        %v1233 = vmul.f32 %v292, %v621
        %v1234 = vadd.f32 %v1233, %v623
        %v1235 = vmul.f32 %v1228, %v1158
        %v1236 = vsub.f32 1.0, %v1234
        %v1237 = vmul.f32 %v1236, %v1164
        %v1238 = vadd.f32 %v1235, %v1237
        %v1239 = vmul.f32 %v292, %v629
        %v1240 = vadd.f32 %v1239, %v631
        %v1241 = vmul.f32 %v1234, %v1164
        %v1242 = vsub.f32 1.0, %v1240
        %v1243 = vmul.f32 %v1242, %v1170
        %v1244 = vadd.f32 %v1241, %v1243
        %v1245 = vmul.f32 %v292, %v637
        %v1246 = vadd.f32 %v1245, %v639
        %v1247 = vmul.f32 %v1240, %v1170
        %v1248 = vsub.f32 1.0, %v1246
        %v1249 = vmul.f32 %v1248, %v1176
        %v1250 = vadd.f32 %v1247, %v1249
        %v1251 = vmul.f32 %v292, %v645
        %v1252 = vadd.f32 %v1251, %v647
        %v1253 = vmul.f32 %v1246, %v1176
        %v1254 = vsub.f32 1.0, %v1252
        %v1255 = vmul.f32 %v1254, %v1182
        %v1256 = vadd.f32 %v1253, %v1255
        %v1257 = vmul.f32 %v292, %v653
        %v1258 = vadd.f32 %v1257, %v655
        %v1259 = vmul.f32 %v1252, %v1182
        %v1260 = vsub.f32 1.0, %v1258
        %v1261 = vmul.f32 %v1260, %v1188
        %v1262 = vadd.f32 %v1259, %v1261
        %v1263 = vmul.f32 %v292, %v661
        %v1264 = vadd.f32 %v1263, %v663
        %v1265 = vmul.f32 %v1258, %v1188
        %v1266 = vsub.f32 1.0, %v1264
        %v1267 = vmul.f32 %v1266, %v1194
        %v1268 = vadd.f32 %v1265, %v1267
        %v1269 = vmul.f32 %v292, %v669
        %v1270 = vadd.f32 %v1269, %v671
        %v1271 = vmul.f32 %v292, %v673
        %v1272 = vadd.f32 %v1271, %v675
        %v1273 = vmul.f32 %v1270, %v1202
        %v1274 = vsub.f32 1.0, %v1272
        %v1275 = vmul.f32 %v1274, %v1208
        %v1276 = vadd.f32 %v1273, %v1275
        %v1277 = vmul.f32 %v292, %v681
        %v1278 = vadd.f32 %v1277, %v683
        %v1279 = vmul.f32 %v1272, %v1208
        %v1280 = vsub.f32 1.0, %v1278
        %v1281 = vmul.f32 %v1280, %v1214
        %v1282 = vadd.f32 %v1279, %v1281
        %v1283 = vmul.f32 %v292, %v689
        %v1284 = vadd.f32 %v1283, %v691
        %v1285 = vmul.f32 %v1278, %v1214
        %v1286 = vsub.f32 1.0, %v1284
        %v1287 = vmul.f32 %v1286, %v1220
        %v1288 = vadd.f32 %v1285, %v1287
        %v1289 = vmul.f32 %v292, %v697
        %v1290 = vadd.f32 %v1289, %v699
        %v1291 = vmul.f32 %v1284, %v1220
        %v1292 = vsub.f32 1.0, %v1290
        %v1293 = vmul.f32 %v1292, %v1226
        %v1294 = vadd.f32 %v1291, %v1293
        %v1295 = vmul.f32 %v292, %v705
        %v1296 = vadd.f32 %v1295, %v707
        %v1297 = vmul.f32 %v1290, %v1226
        %v1298 = vsub.f32 1.0, %v1296
        %v1299 = vmul.f32 %v1298, %v1232
        %v1300 = vadd.f32 %v1297, %v1299
        %v1301 = vmul.f32 %v292, %v713
        %v1302 = vadd.f32 %v1301, %v715
        %v1303 = vmul.f32 %v1296, %v1232
        %v1304 = vsub.f32 1.0, %v1302
        %v1305 = vmul.f32 %v1304, %v1238
        %v1306 = vadd.f32 %v1303, %v1305
        %v1307 = vmul.f32 %v292, %v721
        %v1308 = vadd.f32 %v1307, %v723
        %v1309 = vmul.f32 %v1302, %v1238
        %v1310 = vsub.f32 1.0, %v1308
        %v1311 = vmul.f32 %v1310, %v1244
        %v1312 = vadd.f32 %v1309, %v1311
        %v1313 = vmul.f32 %v292, %v729
        %v1314 = vadd.f32 %v1313, %v731
        %v1315 = vmul.f32 %v1308, %v1244
        %v1316 = vsub.f32 1.0, %v1314
        %v1317 = vmul.f32 %v1316, %v1250
        %v1318 = vadd.f32 %v1315, %v1317
        %v1319 = vmul.f32 %v292, %v737
        %v1320 = vadd.f32 %v1319, %v739
        %v1321 = vmul.f32 %v1314, %v1250
        %v1322 = vsub.f32 1.0, %v1320
        %v1323 = vmul.f32 %v1322, %v1256
        %v1324 = vadd.f32 %v1321, %v1323
        %v1325 = vmul.f32 %v292, %v745
        %v1326 = vadd.f32 %v1325, %v747
        %v1327 = vmul.f32 %v1320, %v1256
        %v1328 = vsub.f32 1.0, %v1326
        %v1329 = vmul.f32 %v1328, %v1262
        %v1330 = vadd.f32 %v1327, %v1329
        %v1331 = vmul.f32 %v292, %v753
        %v1332 = vadd.f32 %v1331, %v755
        %v1333 = vmul.f32 %v1326, %v1262
        %v1334 = vsub.f32 1.0, %v1332
        %v1335 = vmul.f32 %v1334, %v1268
        %v1336 = vadd.f32 %v1333, %v1335
        %v1337 = vmul.f32 %v292, %v761
        %v1338 = vadd.f32 %v1337, %v763
        %v1339 = vmul.f32 %v292, %v765
        %v1340 = vadd.f32 %v1339, %v767
        %v1341 = vmul.f32 %v1338, %v1276
        %v1342 = vsub.f32 1.0, %v1340
        %v1343 = vmul.f32 %v1342, %v1282
        %v1344 = vadd.f32 %v1341, %v1343
        %v1345 = vmul.f32 %v292, %v773
        %v1346 = vadd.f32 %v1345, %v775
        %v1347 = vmul.f32 %v1340, %v1282
        %v1348 = vsub.f32 1.0, %v1346
        %v1349 = vmul.f32 %v1348, %v1288
        %v1350 = vadd.f32 %v1347, %v1349
        %v1351 = vmul.f32 %v292, %v781
        %v1352 = vadd.f32 %v1351, %v783
        %v1353 = vmul.f32 %v1346, %v1288
        %v1354 = vsub.f32 1.0, %v1352
        %v1355 = vmul.f32 %v1354, %v1294
        %v1356 = vadd.f32 %v1353, %v1355
        %v1357 = vmul.f32 %v292, %v789
        %v1358 = vadd.f32 %v1357, %v791
        %v1359 = vmul.f32 %v1352, %v1294
        %v1360 = vsub.f32 1.0, %v1358
        %v1361 = vmul.f32 %v1360, %v1300
        %v1362 = vadd.f32 %v1359, %v1361
        %v1363 = vmul.f32 %v292, %v797
        %v1364 = vadd.f32 %v1363, %v799
        %v1365 = vmul.f32 %v1358, %v1300
        %v1366 = vsub.f32 1.0, %v1364
        %v1367 = vmul.f32 %v1366, %v1306
        %v1368 = vadd.f32 %v1365, %v1367
        %v1369 = vmul.f32 %v292, %v805
        %v1370 = vadd.f32 %v1369, %v807
        %v1371 = vmul.f32 %v1364, %v1306
        %v1372 = vsub.f32 1.0, %v1370
        %v1373 = vmul.f32 %v1372, %v1312
        %v1374 = vadd.f32 %v1371, %v1373
        %v1375 = vmul.f32 %v292, %v813
        %v1376 = vadd.f32 %v1375, %v815
        %v1377 = vmul.f32 %v1370, %v1312
        %v1378 = vsub.f32 1.0, %v1376
        %v1379 = vmul.f32 %v1378, %v1318
        %v1380 = vadd.f32 %v1377, %v1379
        %v1381 = vmul.f32 %v292, %v821
        %v1382 = vadd.f32 %v1381, %v823
        %v1383 = vmul.f32 %v1376, %v1318
        %v1384 = vsub.f32 1.0, %v1382
        %v1385 = vmul.f32 %v1384, %v1324
        %v1386 = vadd.f32 %v1383, %v1385
        %v1387 = vmul.f32 %v292, %v829
        %v1388 = vadd.f32 %v1387, %v831
        %v1389 = vmul.f32 %v1382, %v1324
        %v1390 = vsub.f32 1.0, %v1388
        %v1391 = vmul.f32 %v1390, %v1330
        %v1392 = vadd.f32 %v1389, %v1391
        %v1393 = vmul.f32 %v292, %v837
        %v1394 = vadd.f32 %v1393, %v839
        %v1395 = vmul.f32 %v1388, %v1330
        %v1396 = vsub.f32 1.0, %v1394
        %v1397 = vmul.f32 %v1396, %v1336
        %v1398 = vadd.f32 %v1395, %v1397
        %v1399 = vsub.f32 0.0, %v292
        %v1400 = vmul.f32 %v1399, 1.442695
        %v1401 = vpow.pop %v1400
        %v1402 = vadd.f32 %v1401, 1.0
        %v1403 = vrcp.pop %v1402
        %v1404 = vmul.f32 1.0, %v1403
        %v1405 = vmul.f32 %v292, %v1404
        %s1406 = sld [smem:[#allocation2 + $0xa5]]
        %v1407 = vstv %s1406
        %v1408 = vmul.f32 %v1407, %v1405
        %s1409 = sld [smem:[#allocation2 + $0xa6]]
        %v1410 = vstv %s1409
        %v1411 = vmul.f32 %v1410, %v1344
        %v1412 = vadd.f32 %v1408, %v1411
        %s1413 = sld [smem:[#allocation2 + $0xa7]]
        %v1414 = vstv %s1413
        %v1415 = vmul.f32 %v1414, %v1350
        %v1416 = vadd.f32 %v1412, %v1415
        %s1417 = sld [smem:[#allocation2 + $0xa8]]
        %v1418 = vstv %s1417
        %v1419 = vmul.f32 %v1418, %v1356
        %v1420 = vadd.f32 %v1416, %v1419
        %s1421 = sld [smem:[#allocation2 + $0xa9]]
        %v1422 = vstv %s1421
        %v1423 = vmul.f32 %v1422, %v1362
        %v1424 = vadd.f32 %v1420, %v1423
        %s1425 = sld [smem:[#allocation2 + $0xaa]]
        %v1426 = vstv %s1425
        %v1427 = vmul.f32 %v1426, %v1368
        %v1428 = vadd.f32 %v1424, %v1427
        %s1429 = sld [smem:[#allocation2 + $0xab]]
        %v1430 = vstv %s1429
        %v1431 = vmul.f32 %v1430, %v1374
        %v1432 = vadd.f32 %v1428, %v1431
        %s1433 = sld [smem:[#allocation2 + $0xac]]
        %v1434 = vstv %s1433
        %v1435 = vmul.f32 %v1434, %v1380
        %v1436 = vadd.f32 %v1432, %v1435
        %s1437 = sld [smem:[#allocation2 + $0xad]]
        %v1438 = vstv %s1437
        %v1439 = vmul.f32 %v1438, %v1386
        %v1440 = vadd.f32 %v1436, %v1439
        %s1441 = sld [smem:[#allocation2 + $0xae]]
        %v1442 = vstv %s1441
        %v1443 = vmul.f32 %v1442, %v1392
        %v1444 = vadd.f32 %v1440, %v1443
        %s1445 = sld [smem:[#allocation2 + $0xaf]]
        %v1446 = vstv %s1445
        %v1447 = vmul.f32 %v1446, %v1398
        %v1448 = vadd.f32 %v1444, %v1447
        %v1449 = vadd.f32 %v894, %v1448
        %s1450 = sld [smem:[#allocation2 + $0xb0]]
        %v1451 = vstv %s1450
        %v1452 = vmul.f32 %v1451, %v1405
        %s1453 = sld [smem:[#allocation2 + $0xb1]]
        %v1454 = vstv %s1453
        %v1455 = vmul.f32 %v1454, %v1344
        %v1456 = vadd.f32 %v1452, %v1455
        %s1457 = sld [smem:[#allocation2 + $0xb2]]
        %v1458 = vstv %s1457
        %v1459 = vmul.f32 %v1458, %v1350
        %v1460 = vadd.f32 %v1456, %v1459
        %s1461 = sld [smem:[#allocation2 + $0xb3]]
        %v1462 = vstv %s1461
        %v1463 = vmul.f32 %v1462, %v1356
        %v1464 = vadd.f32 %v1460, %v1463
        %s1465 = sld [smem:[#allocation2 + $0xb4]]
        %v1466 = vstv %s1465
        %v1467 = vmul.f32 %v1466, %v1362
        %v1468 = vadd.f32 %v1464, %v1467
        %s1469 = sld [smem:[#allocation2 + $0xb5]]
        %v1470 = vstv %s1469
        %v1471 = vmul.f32 %v1470, %v1368
        %v1472 = vadd.f32 %v1468, %v1471
        %s1473 = sld [smem:[#allocation2 + $0xb6]]
        %v1474 = vstv %s1473
        %v1475 = vmul.f32 %v1474, %v1374
        %v1476 = vadd.f32 %v1472, %v1475
        %s1477 = sld [smem:[#allocation2 + $0xb7]]
        %v1478 = vstv %s1477
        %v1479 = vmul.f32 %v1478, %v1380
        %v1480 = vadd.f32 %v1476, %v1479
        %s1481 = sld [smem:[#allocation2 + $0xb8]]
        %v1482 = vstv %s1481
        %v1483 = vmul.f32 %v1482, %v1386
        %v1484 = vadd.f32 %v1480, %v1483
        %s1485 = sld [smem:[#allocation2 + $0xb9]]
        %v1486 = vstv %s1485
        %v1487 = vmul.f32 %v1486, %v1392
        %v1488 = vadd.f32 %v1484, %v1487
        %s1489 = sld [smem:[#allocation2 + $0xba]]
        %v1490 = vstv %s1489
        %v1491 = vmul.f32 %v1490, %v1398
        %v1492 = vadd.f32 %v1488, %v1491
        %v1493 = vadd.f32 %v937, %v1492
        %s1494 = sld [smem:[#allocation2 + $0xbb]]
        %v1495 = vstv %s1494
        %v1496 = vmul.f32 %v1495, %v1405
        %s1497 = sld [smem:[#allocation2 + $0xbc]]
        %v1498 = vstv %s1497
        %v1499 = vmul.f32 %v1498, %v1344
        %v1500 = vadd.f32 %v1496, %v1499
        %s1501 = sld [smem:[#allocation2 + $0xbd]]
        %v1502 = vstv %s1501
        %v1503 = vmul.f32 %v1502, %v1350
        %v1504 = vadd.f32 %v1500, %v1503
        %s1505 = sld [smem:[#allocation2 + $0xbe]]
        %v1506 = vstv %s1505
        %v1507 = vmul.f32 %v1506, %v1356
        %v1508 = vadd.f32 %v1504, %v1507
        %s1509 = sld [smem:[#allocation2 + $0xbf]]
        %v1510 = vstv %s1509
        %v1511 = vmul.f32 %v1510, %v1362
        %v1512 = vadd.f32 %v1508, %v1511
        %s1513 = sld [smem:[#allocation2 + $0xc0]]
        %v1514 = vstv %s1513
        %v1515 = vmul.f32 %v1514, %v1368
        %v1516 = vadd.f32 %v1512, %v1515
        %s1517 = sld [smem:[#allocation2 + $0xc1]]
        %v1518 = vstv %s1517
        %v1519 = vmul.f32 %v1518, %v1374
        %v1520 = vadd.f32 %v1516, %v1519
        %s1521 = sld [smem:[#allocation2 + $0xc2]]
        %v1522 = vstv %s1521
        %v1523 = vmul.f32 %v1522, %v1380
        %v1524 = vadd.f32 %v1520, %v1523
        %s1525 = sld [smem:[#allocation2 + $0xc3]]
        %v1526 = vstv %s1525
        %v1527 = vmul.f32 %v1526, %v1386
        %v1528 = vadd.f32 %v1524, %v1527
        %s1529 = sld [smem:[#allocation2 + $0xc4]]
        %v1530 = vstv %s1529
        %v1531 = vmul.f32 %v1530, %v1392
        %v1532 = vadd.f32 %v1528, %v1531
        %s1533 = sld [smem:[#allocation2 + $0xc5]]
        %v1534 = vstv %s1533
        %v1535 = vmul.f32 %v1534, %v1398
        %v1536 = vadd.f32 %v1532, %v1535
        %v1537 = vadd.f32 %v980, %v1536
        %v1538 = vsub.f32 %v294, %v295
        %v1539 = vmul.f32 %v1538, %v297
        %v1540 = vfloor.f32 %v1539
        %vm1541 = vcmp.eq.f32.partialorder %v1540, 0.0
        %v1542 = vsel %vm1541, 1, 0
        %v1543 = vcvt.s32.f32 %v1542
        %vm1544 = vcmp.eq.f32.partialorder %v1540, 1.0
        %v1545 = vsel %vm1544, 1, 0
        %v1546 = vcvt.s32.f32 %v1545
        %vm1547 = vcmp.eq.f32.partialorder %v1540, 2.0
        %v1548 = vsel %vm1547, 1, 0
        %v1549 = vcvt.s32.f32 %v1548
        %vm1550 = vcmp.eq.f32.partialorder %v1540, 3.0
        %v1551 = vsel %vm1550, 1, 0
        %v1552 = vcvt.s32.f32 %v1551
        %vm1553 = vcmp.eq.f32.partialorder %v1540, 4.0
        %v1554 = vsel %vm1553, 1, 0
        %v1555 = vcvt.s32.f32 %v1554
        %vm1556 = vcmp.eq.f32.partialorder %v1540, 5.0
        %v1557 = vsel %vm1556, 1, 0
        %v1558 = vcvt.s32.f32 %v1557
        %vm1559 = vcmp.eq.f32.partialorder %v1540, 6.0
        %v1560 = vsel %vm1559, 1, 0
        %v1561 = vcvt.s32.f32 %v1560
        %vm1562 = vcmp.eq.f32.partialorder %v1540, 7.0
        %v1563 = vsel %vm1562, 1, 0
        %v1564 = vcvt.s32.f32 %v1563
        %vm1565 = vcmp.eq.f32.partialorder %v1540, 8.0
        %v1566 = vsel %vm1565, 1, 0
        %v1567 = vcvt.s32.f32 %v1566
        %vm1568 = vcmp.eq.f32.partialorder %v1540, 9.0
        %v1569 = vsel %vm1568, 1, 0
        %v1570 = vcvt.s32.f32 %v1569
        %vm1571 = vcmp.eq.f32.partialorder %v1540, 10.0
        %v1572 = vsel %vm1571, 1, 0
        %v1573 = vcvt.s32.f32 %v1572
        %vm1574 = vcmp.eq.f32.partialorder %v1540, 11.0
        %v1575 = vsel %vm1574, 1, 0
        %v1576 = vcvt.s32.f32 %v1575
        %vm1577 = vcmp.eq.f32.partialorder %v1540, 12.0
        %v1578 = vsel %vm1577, 1, 0
        %v1579 = vcvt.s32.f32 %v1578
        %vm1580 = vcmp.eq.f32.partialorder %v1540, 13.0
        %v1581 = vsel %vm1580, 1, 0
        %v1582 = vcvt.s32.f32 %v1581
        %vm1583 = vcmp.eq.f32.partialorder %v1540, 14.0
        %v1584 = vsel %vm1583, 1, 0
        %v1585 = vcvt.s32.f32 %v1584
        %v1586 = vmul.f32 %v294, %v345
        %v1587 = vadd.f32 %v1586, %v347
        %v1588 = vmul.f32 %v294, %v349
        %v1589 = vadd.f32 %v1588, %v351
        %v1590 = vmul.f32 %v1587, %v1543
        %v1591 = vsub.f32 1.0, %v1589
        %v1592 = vmul.f32 %v1591, %v1546
        %v1593 = vadd.f32 %v1590, %v1592
        %v1594 = vmul.f32 %v294, %v357
        %v1595 = vadd.f32 %v1594, %v359
        %v1596 = vmul.f32 %v1589, %v1546
        %v1597 = vsub.f32 1.0, %v1595
        %v1598 = vmul.f32 %v1597, %v1549
        %v1599 = vadd.f32 %v1596, %v1598
        %v1600 = vmul.f32 %v294, %v365
        %v1601 = vadd.f32 %v1600, %v367
        %v1602 = vmul.f32 %v1595, %v1549
        %v1603 = vsub.f32 1.0, %v1601
        %v1604 = vmul.f32 %v1603, %v1552
        %v1605 = vadd.f32 %v1602, %v1604
        %v1606 = vmul.f32 %v294, %v373
        %v1607 = vadd.f32 %v1606, %v375
        %v1608 = vmul.f32 %v1601, %v1552
        %v1609 = vsub.f32 1.0, %v1607
        %v1610 = vmul.f32 %v1609, %v1555
        %v1611 = vadd.f32 %v1608, %v1610
        %v1612 = vmul.f32 %v294, %v381
        %v1613 = vadd.f32 %v1612, %v383
        %v1614 = vmul.f32 %v1607, %v1555
        %v1615 = vsub.f32 1.0, %v1613
        %v1616 = vmul.f32 %v1615, %v1558
        %v1617 = vadd.f32 %v1614, %v1616
        %v1618 = vmul.f32 %v294, %v389
        %v1619 = vadd.f32 %v1618, %v391
        %v1620 = vmul.f32 %v1613, %v1558
        %v1621 = vsub.f32 1.0, %v1619
        %v1622 = vmul.f32 %v1621, %v1561
        %v1623 = vadd.f32 %v1620, %v1622
        %v1624 = vmul.f32 %v294, %v397
        %v1625 = vadd.f32 %v1624, %v399
        %v1626 = vmul.f32 %v1619, %v1561
        %v1627 = vsub.f32 1.0, %v1625
        %v1628 = vmul.f32 %v1627, %v1564
        %v1629 = vadd.f32 %v1626, %v1628
        %v1630 = vmul.f32 %v294, %v405
        %v1631 = vadd.f32 %v1630, %v407
        %v1632 = vmul.f32 %v1625, %v1564
        %v1633 = vsub.f32 1.0, %v1631
        %v1634 = vmul.f32 %v1633, %v1567
        %v1635 = vadd.f32 %v1632, %v1634
        %v1636 = vmul.f32 %v294, %v413
        %v1637 = vadd.f32 %v1636, %v415
        %v1638 = vmul.f32 %v1631, %v1567
        %v1639 = vsub.f32 1.0, %v1637
        %v1640 = vmul.f32 %v1639, %v1570
        %v1641 = vadd.f32 %v1638, %v1640
        %v1642 = vmul.f32 %v294, %v421
        %v1643 = vadd.f32 %v1642, %v423
        %v1644 = vmul.f32 %v1637, %v1570
        %v1645 = vsub.f32 1.0, %v1643
        %v1646 = vmul.f32 %v1645, %v1573
        %v1647 = vadd.f32 %v1644, %v1646
        %v1648 = vmul.f32 %v294, %v429
        %v1649 = vadd.f32 %v1648, %v431
        %v1650 = vmul.f32 %v1643, %v1573
        %v1651 = vsub.f32 1.0, %v1649
        %v1652 = vmul.f32 %v1651, %v1576
        %v1653 = vadd.f32 %v1650, %v1652
        %v1654 = vmul.f32 %v294, %v437
        %v1655 = vadd.f32 %v1654, %v439
        %v1656 = vmul.f32 %v1649, %v1576
        %v1657 = vsub.f32 1.0, %v1655
        %v1658 = vmul.f32 %v1657, %v1579
        %v1659 = vadd.f32 %v1656, %v1658
        %v1660 = vmul.f32 %v294, %v445
        %v1661 = vadd.f32 %v1660, %v447
        %v1662 = vmul.f32 %v1655, %v1579
        %v1663 = vsub.f32 1.0, %v1661
        %v1664 = vmul.f32 %v1663, %v1582
        %v1665 = vadd.f32 %v1662, %v1664
        %v1666 = vmul.f32 %v294, %v453
        %v1667 = vadd.f32 %v1666, %v455
        %v1668 = vmul.f32 %v1661, %v1582
        %v1669 = vsub.f32 1.0, %v1667
        %v1670 = vmul.f32 %v1669, %v1585
        %v1671 = vadd.f32 %v1668, %v1670
        %v1672 = vmul.f32 %v294, %v461
        %v1673 = vadd.f32 %v1672, %v463
        %v1674 = vmul.f32 %v294, %v465
        %v1675 = vadd.f32 %v1674, %v467
        %v1676 = vmul.f32 %v1673, %v1593
        %v1677 = vsub.f32 1.0, %v1675
        %v1678 = vmul.f32 %v1677, %v1599
        %v1679 = vadd.f32 %v1676, %v1678
        %v1680 = vmul.f32 %v294, %v473
        %v1681 = vadd.f32 %v1680, %v475
        %v1682 = vmul.f32 %v1675, %v1599
        %v1683 = vsub.f32 1.0, %v1681
        %v1684 = vmul.f32 %v1683, %v1605
        %v1685 = vadd.f32 %v1682, %v1684
        %v1686 = vmul.f32 %v294, %v481
        %v1687 = vadd.f32 %v1686, %v483
        %v1688 = vmul.f32 %v1681, %v1605
        %v1689 = vsub.f32 1.0, %v1687
        %v1690 = vmul.f32 %v1689, %v1611
        %v1691 = vadd.f32 %v1688, %v1690
        %v1692 = vmul.f32 %v294, %v489
        %v1693 = vadd.f32 %v1692, %v491
        %v1694 = vmul.f32 %v1687, %v1611
        %v1695 = vsub.f32 1.0, %v1693
        %v1696 = vmul.f32 %v1695, %v1617
        %v1697 = vadd.f32 %v1694, %v1696
        %v1698 = vmul.f32 %v294, %v497
        %v1699 = vadd.f32 %v1698, %v499
        %v1700 = vmul.f32 %v1693, %v1617
        %v1701 = vsub.f32 1.0, %v1699
        %v1702 = vmul.f32 %v1701, %v1623
        %v1703 = vadd.f32 %v1700, %v1702
        %v1704 = vmul.f32 %v294, %v505
        %v1705 = vadd.f32 %v1704, %v507
        %v1706 = vmul.f32 %v1699, %v1623
        %v1707 = vsub.f32 1.0, %v1705
        %v1708 = vmul.f32 %v1707, %v1629
        %v1709 = vadd.f32 %v1706, %v1708
        %v1710 = vmul.f32 %v294, %v513
        %v1711 = vadd.f32 %v1710, %v515
        %v1712 = vmul.f32 %v1705, %v1629
        %v1713 = vsub.f32 1.0, %v1711
        %v1714 = vmul.f32 %v1713, %v1635
        %v1715 = vadd.f32 %v1712, %v1714
        %v1716 = vmul.f32 %v294, %v521
        %v1717 = vadd.f32 %v1716, %v523
        %v1718 = vmul.f32 %v1711, %v1635
        %v1719 = vsub.f32 1.0, %v1717
        %v1720 = vmul.f32 %v1719, %v1641
        %v1721 = vadd.f32 %v1718, %v1720
        %v1722 = vmul.f32 %v294, %v529
        %v1723 = vadd.f32 %v1722, %v531
        %v1724 = vmul.f32 %v1717, %v1641
        %v1725 = vsub.f32 1.0, %v1723
        %v1726 = vmul.f32 %v1725, %v1647
        %v1727 = vadd.f32 %v1724, %v1726
        %v1728 = vmul.f32 %v294, %v537
        %v1729 = vadd.f32 %v1728, %v539
        %v1730 = vmul.f32 %v1723, %v1647
        %v1731 = vsub.f32 1.0, %v1729
        %v1732 = vmul.f32 %v1731, %v1653
        %v1733 = vadd.f32 %v1730, %v1732
        %v1734 = vmul.f32 %v294, %v545
        %v1735 = vadd.f32 %v1734, %v547
        %v1736 = vmul.f32 %v1729, %v1653
        %v1737 = vsub.f32 1.0, %v1735
        %v1738 = vmul.f32 %v1737, %v1659
        %v1739 = vadd.f32 %v1736, %v1738
        %v1740 = vmul.f32 %v294, %v553
        %v1741 = vadd.f32 %v1740, %v555
        %v1742 = vmul.f32 %v1735, %v1659
        %v1743 = vsub.f32 1.0, %v1741
        %v1744 = vmul.f32 %v1743, %v1665
        %v1745 = vadd.f32 %v1742, %v1744
        %v1746 = vmul.f32 %v294, %v561
        %v1747 = vadd.f32 %v1746, %v563
        %v1748 = vmul.f32 %v1741, %v1665
        %v1749 = vsub.f32 1.0, %v1747
        %v1750 = vmul.f32 %v1749, %v1671
        %v1751 = vadd.f32 %v1748, %v1750
        %v1752 = vmul.f32 %v294, %v569
        %v1753 = vadd.f32 %v1752, %v571
        %v1754 = vmul.f32 %v294, %v573
        %v1755 = vadd.f32 %v1754, %v575
        %v1756 = vmul.f32 %v1753, %v1679
        %v1757 = vsub.f32 1.0, %v1755
        %v1758 = vmul.f32 %v1757, %v1685
        %v1759 = vadd.f32 %v1756, %v1758
        %v1760 = vmul.f32 %v294, %v581
        %v1761 = vadd.f32 %v1760, %v583
        %v1762 = vmul.f32 %v1755, %v1685
        %v1763 = vsub.f32 1.0, %v1761
        %v1764 = vmul.f32 %v1763, %v1691
        %v1765 = vadd.f32 %v1762, %v1764
        %v1766 = vmul.f32 %v294, %v589
        %v1767 = vadd.f32 %v1766, %v591
        %v1768 = vmul.f32 %v1761, %v1691
        %v1769 = vsub.f32 1.0, %v1767
        %v1770 = vmul.f32 %v1769, %v1697
        %v1771 = vadd.f32 %v1768, %v1770
        %v1772 = vmul.f32 %v294, %v597
        %v1773 = vadd.f32 %v1772, %v599
        %v1774 = vmul.f32 %v1767, %v1697
        %v1775 = vsub.f32 1.0, %v1773
        %v1776 = vmul.f32 %v1775, %v1703
        %v1777 = vadd.f32 %v1774, %v1776
        %v1778 = vmul.f32 %v294, %v605
        %v1779 = vadd.f32 %v1778, %v607
        %v1780 = vmul.f32 %v1773, %v1703
        %v1781 = vsub.f32 1.0, %v1779
        %v1782 = vmul.f32 %v1781, %v1709
        %v1783 = vadd.f32 %v1780, %v1782
        %v1784 = vmul.f32 %v294, %v613
        %v1785 = vadd.f32 %v1784, %v615
        %v1786 = vmul.f32 %v1779, %v1709
        %v1787 = vsub.f32 1.0, %v1785
        %v1788 = vmul.f32 %v1787, %v1715
        %v1789 = vadd.f32 %v1786, %v1788
        %v1790 = vmul.f32 %v294, %v621
        %v1791 = vadd.f32 %v1790, %v623
        %v1792 = vmul.f32 %v1785, %v1715
        %v1793 = vsub.f32 1.0, %v1791
        %v1794 = vmul.f32 %v1793, %v1721
        %v1795 = vadd.f32 %v1792, %v1794
        %v1796 = vmul.f32 %v294, %v629
        %v1797 = vadd.f32 %v1796, %v631
        %v1798 = vmul.f32 %v1791, %v1721
        %v1799 = vsub.f32 1.0, %v1797
        %v1800 = vmul.f32 %v1799, %v1727
        %v1801 = vadd.f32 %v1798, %v1800
        %v1802 = vmul.f32 %v294, %v637
        %v1803 = vadd.f32 %v1802, %v639
        %v1804 = vmul.f32 %v1797, %v1727
        %v1805 = vsub.f32 1.0, %v1803
        %v1806 = vmul.f32 %v1805, %v1733
        %v1807 = vadd.f32 %v1804, %v1806
        %v1808 = vmul.f32 %v294, %v645
        %v1809 = vadd.f32 %v1808, %v647
        %v1810 = vmul.f32 %v1803, %v1733
        %v1811 = vsub.f32 1.0, %v1809
        %v1812 = vmul.f32 %v1811, %v1739
        %v1813 = vadd.f32 %v1810, %v1812
        %v1814 = vmul.f32 %v294, %v653
        %v1815 = vadd.f32 %v1814, %v655
        %v1816 = vmul.f32 %v1809, %v1739
        %v1817 = vsub.f32 1.0, %v1815
        %v1818 = vmul.f32 %v1817, %v1745
        %v1819 = vadd.f32 %v1816, %v1818
        %v1820 = vmul.f32 %v294, %v661
        %v1821 = vadd.f32 %v1820, %v663
        %v1822 = vmul.f32 %v1815, %v1745
        %v1823 = vsub.f32 1.0, %v1821
        %v1824 = vmul.f32 %v1823, %v1751
        %v1825 = vadd.f32 %v1822, %v1824
        %v1826 = vmul.f32 %v294, %v669
        %v1827 = vadd.f32 %v1826, %v671
        %v1828 = vmul.f32 %v294, %v673
        %v1829 = vadd.f32 %v1828, %v675
        %v1830 = vmul.f32 %v1827, %v1759
        %v1831 = vsub.f32 1.0, %v1829
        %v1832 = vmul.f32 %v1831, %v1765
        %v1833 = vadd.f32 %v1830, %v1832
        %v1834 = vmul.f32 %v294, %v681
        %v1835 = vadd.f32 %v1834, %v683
        %v1836 = vmul.f32 %v1829, %v1765
        %v1837 = vsub.f32 1.0, %v1835
        %v1838 = vmul.f32 %v1837, %v1771
        %v1839 = vadd.f32 %v1836, %v1838
        %v1840 = vmul.f32 %v294, %v689
        %v1841 = vadd.f32 %v1840, %v691
        %v1842 = vmul.f32 %v1835, %v1771
        %v1843 = vsub.f32 1.0, %v1841
        %v1844 = vmul.f32 %v1843, %v1777
        %v1845 = vadd.f32 %v1842, %v1844
        %v1846 = vmul.f32 %v294, %v697
        %v1847 = vadd.f32 %v1846, %v699
        %v1848 = vmul.f32 %v1841, %v1777
        %v1849 = vsub.f32 1.0, %v1847
        %v1850 = vmul.f32 %v1849, %v1783
        %v1851 = vadd.f32 %v1848, %v1850
        %v1852 = vmul.f32 %v294, %v705
        %v1853 = vadd.f32 %v1852, %v707
        %v1854 = vmul.f32 %v1847, %v1783
        %v1855 = vsub.f32 1.0, %v1853
        %v1856 = vmul.f32 %v1855, %v1789
        %v1857 = vadd.f32 %v1854, %v1856
        %v1858 = vmul.f32 %v294, %v713
        %v1859 = vadd.f32 %v1858, %v715
        %v1860 = vmul.f32 %v1853, %v1789
        %v1861 = vsub.f32 1.0, %v1859
        %v1862 = vmul.f32 %v1861, %v1795
        %v1863 = vadd.f32 %v1860, %v1862
        %v1864 = vmul.f32 %v294, %v721
        %v1865 = vadd.f32 %v1864, %v723
        %v1866 = vmul.f32 %v1859, %v1795
        %v1867 = vsub.f32 1.0, %v1865
        %v1868 = vmul.f32 %v1867, %v1801
        %v1869 = vadd.f32 %v1866, %v1868
        %v1870 = vmul.f32 %v294, %v729
        %v1871 = vadd.f32 %v1870, %v731
        %v1872 = vmul.f32 %v1865, %v1801
        %v1873 = vsub.f32 1.0, %v1871
        %v1874 = vmul.f32 %v1873, %v1807
        %v1875 = vadd.f32 %v1872, %v1874
        %v1876 = vmul.f32 %v294, %v737
        %v1877 = vadd.f32 %v1876, %v739
        %v1878 = vmul.f32 %v1871, %v1807
        %v1879 = vsub.f32 1.0, %v1877
        %v1880 = vmul.f32 %v1879, %v1813
        %v1881 = vadd.f32 %v1878, %v1880
        %v1882 = vmul.f32 %v294, %v745
        %v1883 = vadd.f32 %v1882, %v747
        %v1884 = vmul.f32 %v1877, %v1813
        %v1885 = vsub.f32 1.0, %v1883
        %v1886 = vmul.f32 %v1885, %v1819
        %v1887 = vadd.f32 %v1884, %v1886
        %v1888 = vmul.f32 %v294, %v753
        %v1889 = vadd.f32 %v1888, %v755
        %v1890 = vmul.f32 %v1883, %v1819
        %v1891 = vsub.f32 1.0, %v1889
        %v1892 = vmul.f32 %v1891, %v1825
        %v1893 = vadd.f32 %v1890, %v1892
        %v1894 = vmul.f32 %v294, %v761
        %v1895 = vadd.f32 %v1894, %v763
        %v1896 = vmul.f32 %v294, %v765
        %v1897 = vadd.f32 %v1896, %v767
        %v1898 = vmul.f32 %v1895, %v1833
        %v1899 = vsub.f32 1.0, %v1897
        %v1900 = vmul.f32 %v1899, %v1839
        %v1901 = vadd.f32 %v1898, %v1900
        %v1902 = vmul.f32 %v294, %v773
        %v1903 = vadd.f32 %v1902, %v775
        %v1904 = vmul.f32 %v1897, %v1839
        %v1905 = vsub.f32 1.0, %v1903
        %v1906 = vmul.f32 %v1905, %v1845
        %v1907 = vadd.f32 %v1904, %v1906
        %v1908 = vmul.f32 %v294, %v781
        %v1909 = vadd.f32 %v1908, %v783
        %v1910 = vmul.f32 %v1903, %v1845
        %v1911 = vsub.f32 1.0, %v1909
        %v1912 = vmul.f32 %v1911, %v1851
        %v1913 = vadd.f32 %v1910, %v1912
        %v1914 = vmul.f32 %v294, %v789
        %v1915 = vadd.f32 %v1914, %v791
        %v1916 = vmul.f32 %v1909, %v1851
        %v1917 = vsub.f32 1.0, %v1915
        %v1918 = vmul.f32 %v1917, %v1857
        %v1919 = vadd.f32 %v1916, %v1918
        %v1920 = vmul.f32 %v294, %v797
        %v1921 = vadd.f32 %v1920, %v799
        %v1922 = vmul.f32 %v1915, %v1857
        %v1923 = vsub.f32 1.0, %v1921
        %v1924 = vmul.f32 %v1923, %v1863
        %v1925 = vadd.f32 %v1922, %v1924
        %v1926 = vmul.f32 %v294, %v805
        %v1927 = vadd.f32 %v1926, %v807
        %v1928 = vmul.f32 %v1921, %v1863
        %v1929 = vsub.f32 1.0, %v1927
        %v1930 = vmul.f32 %v1929, %v1869
        %v1931 = vadd.f32 %v1928, %v1930
        %v1932 = vmul.f32 %v294, %v813
        %v1933 = vadd.f32 %v1932, %v815
        %v1934 = vmul.f32 %v1927, %v1869
        %v1935 = vsub.f32 1.0, %v1933
        %v1936 = vmul.f32 %v1935, %v1875
        %v1937 = vadd.f32 %v1934, %v1936
        %v1938 = vmul.f32 %v294, %v821
        %v1939 = vadd.f32 %v1938, %v823
        %v1940 = vmul.f32 %v1933, %v1875
        %v1941 = vsub.f32 1.0, %v1939
        %v1942 = vmul.f32 %v1941, %v1881
        %v1943 = vadd.f32 %v1940, %v1942
        %v1944 = vmul.f32 %v294, %v829
        %v1945 = vadd.f32 %v1944, %v831
        %v1946 = vmul.f32 %v1939, %v1881
        %v1947 = vsub.f32 1.0, %v1945
        %v1948 = vmul.f32 %v1947, %v1887
        %v1949 = vadd.f32 %v1946, %v1948
        %v1950 = vmul.f32 %v294, %v837
        %v1951 = vadd.f32 %v1950, %v839
        %v1952 = vmul.f32 %v1945, %v1887
        %v1953 = vsub.f32 1.0, %v1951
        %v1954 = vmul.f32 %v1953, %v1893
        %v1955 = vadd.f32 %v1952, %v1954
        %v1956 = vsub.f32 0.0, %v294
        %v1957 = vmul.f32 %v1956, 1.442695
        %v1958 = vpow.pop %v1957
        %v1959 = vadd.f32 %v1958, 1.0
        %v1960 = vrcp.pop %v1959
        %v1961 = vmul.f32 1.0, %v1960
        %v1962 = vmul.f32 %v294, %v1961
        %s1963 = sld [smem:[#allocation2 + $0xc6]]
        %v1964 = vstv %s1963
        %v1965 = vmul.f32 %v1964, %v1962
        %s1966 = sld [smem:[#allocation2 + $0xc7]]
        %v1967 = vstv %s1966
        %v1968 = vmul.f32 %v1967, %v1901
        %v1969 = vadd.f32 %v1965, %v1968
        %s1970 = sld [smem:[#allocation2 + $0xc8]]
        %v1971 = vstv %s1970
        %v1972 = vmul.f32 %v1971, %v1907
        %v1973 = vadd.f32 %v1969, %v1972
        %s1974 = sld [smem:[#allocation2 + $0xc9]]
        %v1975 = vstv %s1974
        %v1976 = vmul.f32 %v1975, %v1913
        %v1977 = vadd.f32 %v1973, %v1976
        %s1978 = sld [smem:[#allocation2 + $0xca]]
        %v1979 = vstv %s1978
        %v1980 = vmul.f32 %v1979, %v1919
        %v1981 = vadd.f32 %v1977, %v1980
        %s1982 = sld [smem:[#allocation2 + $0xcb]]
        %v1983 = vstv %s1982
        %v1984 = vmul.f32 %v1983, %v1925
        %v1985 = vadd.f32 %v1981, %v1984
        %s1986 = sld [smem:[#allocation2 + $0xcc]]
        %v1987 = vstv %s1986
        %v1988 = vmul.f32 %v1987, %v1931
        %v1989 = vadd.f32 %v1985, %v1988
        %s1990 = sld [smem:[#allocation2 + $0xcd]]
        %v1991 = vstv %s1990
        %v1992 = vmul.f32 %v1991, %v1937
        %v1993 = vadd.f32 %v1989, %v1992
        %s1994 = sld [smem:[#allocation2 + $0xce]]
        %v1995 = vstv %s1994
        %v1996 = vmul.f32 %v1995, %v1943
        %v1997 = vadd.f32 %v1993, %v1996
        %s1998 = sld [smem:[#allocation2 + $0xcf]]
        %v1999 = vstv %s1998
        %v2000 = vmul.f32 %v1999, %v1949
        %v2001 = vadd.f32 %v1997, %v2000
        %s2002 = sld [smem:[#allocation2 + $0xd0]]
        %v2003 = vstv %s2002
        %v2004 = vmul.f32 %v2003, %v1955
        %v2005 = vadd.f32 %v2001, %v2004
        %v2006 = vadd.f32 %v1449, %v2005
        %s2007 = sld [smem:[#allocation2 + $0xd1]]
        %v2008 = vstv %s2007
        %v2009 = vmul.f32 %v2008, %v1962
        %s2010 = sld [smem:[#allocation2 + $0xd2]]
        %v2011 = vstv %s2010
        %v2012 = vmul.f32 %v2011, %v1901
        %v2013 = vadd.f32 %v2009, %v2012
        %s2014 = sld [smem:[#allocation2 + $0xd3]]
        %v2015 = vstv %s2014
        %v2016 = vmul.f32 %v2015, %v1907
        %v2017 = vadd.f32 %v2013, %v2016
        %s2018 = sld [smem:[#allocation2 + $0xd4]]
        %v2019 = vstv %s2018
        %v2020 = vmul.f32 %v2019, %v1913
        %v2021 = vadd.f32 %v2017, %v2020
        %s2022 = sld [smem:[#allocation2 + $0xd5]]
        %v2023 = vstv %s2022
        %v2024 = vmul.f32 %v2023, %v1919
        %v2025 = vadd.f32 %v2021, %v2024
        %s2026 = sld [smem:[#allocation2 + $0xd6]]
        %v2027 = vstv %s2026
        %v2028 = vmul.f32 %v2027, %v1925
        %v2029 = vadd.f32 %v2025, %v2028
        %s2030 = sld [smem:[#allocation2 + $0xd7]]
        %v2031 = vstv %s2030
        %v2032 = vmul.f32 %v2031, %v1931
        %v2033 = vadd.f32 %v2029, %v2032
        %s2034 = sld [smem:[#allocation2 + $0xd8]]
        %v2035 = vstv %s2034
        %v2036 = vmul.f32 %v2035, %v1937
        %v2037 = vadd.f32 %v2033, %v2036
        %s2038 = sld [smem:[#allocation2 + $0xd9]]
        %v2039 = vstv %s2038
        %v2040 = vmul.f32 %v2039, %v1943
        %v2041 = vadd.f32 %v2037, %v2040
        %s2042 = sld [smem:[#allocation2 + $0xda]]
        %v2043 = vstv %s2042
        %v2044 = vmul.f32 %v2043, %v1949
        %v2045 = vadd.f32 %v2041, %v2044
        %s2046 = sld [smem:[#allocation2 + $0xdb]]
        %v2047 = vstv %s2046
        %v2048 = vmul.f32 %v2047, %v1955
        %v2049 = vadd.f32 %v2045, %v2048
        %v2050 = vadd.f32 %v1493, %v2049
        %s2051 = sld [smem:[#allocation2 + $0xdc]]
        %v2052 = vstv %s2051
        %v2053 = vmul.f32 %v2052, %v1962
        %s2054 = sld [smem:[#allocation2 + $0xdd]]
        %v2055 = vstv %s2054
        %v2056 = vmul.f32 %v2055, %v1901
        %v2057 = vadd.f32 %v2053, %v2056
        %s2058 = sld [smem:[#allocation2 + $0xde]]
        %v2059 = vstv %s2058
        %v2060 = vmul.f32 %v2059, %v1907
        %v2061 = vadd.f32 %v2057, %v2060
        %s2062 = sld [smem:[#allocation2 + $0xdf]]
        %v2063 = vstv %s2062
        %v2064 = vmul.f32 %v2063, %v1913
        %v2065 = vadd.f32 %v2061, %v2064
        %s2066 = sld [smem:[#allocation2 + $0xe0]]
        %v2067 = vstv %s2066
        %v2068 = vmul.f32 %v2067, %v1919
        %v2069 = vadd.f32 %v2065, %v2068
        %s2070 = sld [smem:[#allocation2 + $0xe1]]
        %v2071 = vstv %s2070
        %v2072 = vmul.f32 %v2071, %v1925
        %v2073 = vadd.f32 %v2069, %v2072
        %s2074 = sld [smem:[#allocation2 + $0xe2]]
        %v2075 = vstv %s2074
        %v2076 = vmul.f32 %v2075, %v1931
        %v2077 = vadd.f32 %v2073, %v2076
        %s2078 = sld [smem:[#allocation2 + $0xe3]]
        %v2079 = vstv %s2078
        %v2080 = vmul.f32 %v2079, %v1937
        %v2081 = vadd.f32 %v2077, %v2080
        %s2082 = sld [smem:[#allocation2 + $0xe4]]
        %v2083 = vstv %s2082
        %v2084 = vmul.f32 %v2083, %v1943
        %v2085 = vadd.f32 %v2081, %v2084
        %s2086 = sld [smem:[#allocation2 + $0xe5]]
        %v2087 = vstv %s2086
        %v2088 = vmul.f32 %v2087, %v1949
        %v2089 = vadd.f32 %v2085, %v2088
        %s2090 = sld [smem:[#allocation2 + $0xe6]]
        %v2091 = vstv %s2090
        %v2092 = vmul.f32 %v2091, %v1955
        %v2093 = vadd.f32 %v2089, %v2092
        %v2094 = vadd.f32 %v1537, %v2093
        %v2095 = vsub.f32 %v2006, %v295
        %v2096 = vmul.f32 %v2095, %v297
        %v2097 = vfloor.f32 %v2096
        %vm2098 = vcmp.eq.f32.partialorder %v2097, 0.0
        %v2099 = vsel %vm2098, 1, 0
        %v2100 = vcvt.s32.f32 %v2099
        %vm2101 = vcmp.eq.f32.partialorder %v2097, 1.0
        %v2102 = vsel %vm2101, 1, 0
        %v2103 = vcvt.s32.f32 %v2102
        %vm2104 = vcmp.eq.f32.partialorder %v2097, 2.0
        %v2105 = vsel %vm2104, 1, 0
        %v2106 = vcvt.s32.f32 %v2105
        %vm2107 = vcmp.eq.f32.partialorder %v2097, 3.0
        %v2108 = vsel %vm2107, 1, 0
        %v2109 = vcvt.s32.f32 %v2108
        %vm2110 = vcmp.eq.f32.partialorder %v2097, 4.0
        %v2111 = vsel %vm2110, 1, 0
        %v2112 = vcvt.s32.f32 %v2111
        %vm2113 = vcmp.eq.f32.partialorder %v2097, 5.0
        %v2114 = vsel %vm2113, 1, 0
        %v2115 = vcvt.s32.f32 %v2114
        %vm2116 = vcmp.eq.f32.partialorder %v2097, 6.0
        %v2117 = vsel %vm2116, 1, 0
        %v2118 = vcvt.s32.f32 %v2117
        %vm2119 = vcmp.eq.f32.partialorder %v2097, 7.0
        %v2120 = vsel %vm2119, 1, 0
        %v2121 = vcvt.s32.f32 %v2120
        %vm2122 = vcmp.eq.f32.partialorder %v2097, 8.0
        %v2123 = vsel %vm2122, 1, 0
        %v2124 = vcvt.s32.f32 %v2123
        %vm2125 = vcmp.eq.f32.partialorder %v2097, 9.0
        %v2126 = vsel %vm2125, 1, 0
        %v2127 = vcvt.s32.f32 %v2126
        %vm2128 = vcmp.eq.f32.partialorder %v2097, 10.0
        %v2129 = vsel %vm2128, 1, 0
        %v2130 = vcvt.s32.f32 %v2129
        %vm2131 = vcmp.eq.f32.partialorder %v2097, 11.0
        %v2132 = vsel %vm2131, 1, 0
        %v2133 = vcvt.s32.f32 %v2132
        %vm2134 = vcmp.eq.f32.partialorder %v2097, 12.0
        %v2135 = vsel %vm2134, 1, 0
        %v2136 = vcvt.s32.f32 %v2135
        %vm2137 = vcmp.eq.f32.partialorder %v2097, 13.0
        %v2138 = vsel %vm2137, 1, 0
        %v2139 = vcvt.s32.f32 %v2138
        %vm2140 = vcmp.eq.f32.partialorder %v2097, 14.0
        %v2141 = vsel %vm2140, 1, 0
        %v2142 = vcvt.s32.f32 %v2141
        %v2143 = vmul.f32 %v2006, %v345
        %v2144 = vadd.f32 %v2143, %v347
        %v2145 = vmul.f32 %v2006, %v349
        %v2146 = vadd.f32 %v2145, %v351
        %v2147 = vmul.f32 %v2144, %v2100
        %v2148 = vsub.f32 1.0, %v2146
        %v2149 = vmul.f32 %v2148, %v2103
        %v2150 = vadd.f32 %v2147, %v2149
        %v2151 = vmul.f32 %v2006, %v357
        %v2152 = vadd.f32 %v2151, %v359
        %v2153 = vmul.f32 %v2146, %v2103
        %v2154 = vsub.f32 1.0, %v2152
        %v2155 = vmul.f32 %v2154, %v2106
        %v2156 = vadd.f32 %v2153, %v2155
        %v2157 = vmul.f32 %v2006, %v365
        %v2158 = vadd.f32 %v2157, %v367
        %v2159 = vmul.f32 %v2152, %v2106
        %v2160 = vsub.f32 1.0, %v2158
        %v2161 = vmul.f32 %v2160, %v2109
        %v2162 = vadd.f32 %v2159, %v2161
        %v2163 = vmul.f32 %v2006, %v373
        %v2164 = vadd.f32 %v2163, %v375
        %v2165 = vmul.f32 %v2158, %v2109
        %v2166 = vsub.f32 1.0, %v2164
        %v2167 = vmul.f32 %v2166, %v2112
        %v2168 = vadd.f32 %v2165, %v2167
        %v2169 = vmul.f32 %v2006, %v381
        %v2170 = vadd.f32 %v2169, %v383
        %v2171 = vmul.f32 %v2164, %v2112
        %v2172 = vsub.f32 1.0, %v2170
        %v2173 = vmul.f32 %v2172, %v2115
        %v2174 = vadd.f32 %v2171, %v2173
        %v2175 = vmul.f32 %v2006, %v389
        %v2176 = vadd.f32 %v2175, %v391
        %v2177 = vmul.f32 %v2170, %v2115
        %v2178 = vsub.f32 1.0, %v2176
        %v2179 = vmul.f32 %v2178, %v2118
        %v2180 = vadd.f32 %v2177, %v2179
        %v2181 = vmul.f32 %v2006, %v397
        %v2182 = vadd.f32 %v2181, %v399
        %v2183 = vmul.f32 %v2176, %v2118
        %v2184 = vsub.f32 1.0, %v2182
        %v2185 = vmul.f32 %v2184, %v2121
        %v2186 = vadd.f32 %v2183, %v2185
        %v2187 = vmul.f32 %v2006, %v405
        %v2188 = vadd.f32 %v2187, %v407
        %v2189 = vmul.f32 %v2182, %v2121
        %v2190 = vsub.f32 1.0, %v2188
        %v2191 = vmul.f32 %v2190, %v2124
        %v2192 = vadd.f32 %v2189, %v2191
        %v2193 = vmul.f32 %v2006, %v413
        %v2194 = vadd.f32 %v2193, %v415
        %v2195 = vmul.f32 %v2188, %v2124
        %v2196 = vsub.f32 1.0, %v2194
        %v2197 = vmul.f32 %v2196, %v2127
        %v2198 = vadd.f32 %v2195, %v2197
        %v2199 = vmul.f32 %v2006, %v421
        %v2200 = vadd.f32 %v2199, %v423
        %v2201 = vmul.f32 %v2194, %v2127
        %v2202 = vsub.f32 1.0, %v2200
        %v2203 = vmul.f32 %v2202, %v2130
        %v2204 = vadd.f32 %v2201, %v2203
        %v2205 = vmul.f32 %v2006, %v429
        %v2206 = vadd.f32 %v2205, %v431
        %v2207 = vmul.f32 %v2200, %v2130
        %v2208 = vsub.f32 1.0, %v2206
        %v2209 = vmul.f32 %v2208, %v2133
        %v2210 = vadd.f32 %v2207, %v2209
        %v2211 = vmul.f32 %v2006, %v437
        %v2212 = vadd.f32 %v2211, %v439
        %v2213 = vmul.f32 %v2206, %v2133
        %v2214 = vsub.f32 1.0, %v2212
        %v2215 = vmul.f32 %v2214, %v2136
        %v2216 = vadd.f32 %v2213, %v2215
        %v2217 = vmul.f32 %v2006, %v445
        %v2218 = vadd.f32 %v2217, %v447
        %v2219 = vmul.f32 %v2212, %v2136
        %v2220 = vsub.f32 1.0, %v2218
        %v2221 = vmul.f32 %v2220, %v2139
        %v2222 = vadd.f32 %v2219, %v2221
        %v2223 = vmul.f32 %v2006, %v453
        %v2224 = vadd.f32 %v2223, %v455
        %v2225 = vmul.f32 %v2218, %v2139
        %v2226 = vsub.f32 1.0, %v2224
        %v2227 = vmul.f32 %v2226, %v2142
        %v2228 = vadd.f32 %v2225, %v2227
        %v2229 = vmul.f32 %v2006, %v461
        %v2230 = vadd.f32 %v2229, %v463
        %v2231 = vmul.f32 %v2006, %v465
        %v2232 = vadd.f32 %v2231, %v467
        %v2233 = vmul.f32 %v2230, %v2150
        %v2234 = vsub.f32 1.0, %v2232
        %v2235 = vmul.f32 %v2234, %v2156
        %v2236 = vadd.f32 %v2233, %v2235
        %v2237 = vmul.f32 %v2006, %v473
        %v2238 = vadd.f32 %v2237, %v475
        %v2239 = vmul.f32 %v2232, %v2156
        %v2240 = vsub.f32 1.0, %v2238
        %v2241 = vmul.f32 %v2240, %v2162
        %v2242 = vadd.f32 %v2239, %v2241
        %v2243 = vmul.f32 %v2006, %v481
        %v2244 = vadd.f32 %v2243, %v483
        %v2245 = vmul.f32 %v2238, %v2162
        %v2246 = vsub.f32 1.0, %v2244
        %v2247 = vmul.f32 %v2246, %v2168
        %v2248 = vadd.f32 %v2245, %v2247
        %v2249 = vmul.f32 %v2006, %v489
        %v2250 = vadd.f32 %v2249, %v491
        %v2251 = vmul.f32 %v2244, %v2168
        %v2252 = vsub.f32 1.0, %v2250
        %v2253 = vmul.f32 %v2252, %v2174
        %v2254 = vadd.f32 %v2251, %v2253
        %v2255 = vmul.f32 %v2006, %v497
        %v2256 = vadd.f32 %v2255, %v499
        %v2257 = vmul.f32 %v2250, %v2174
        %v2258 = vsub.f32 1.0, %v2256
        %v2259 = vmul.f32 %v2258, %v2180
        %v2260 = vadd.f32 %v2257, %v2259
        %v2261 = vmul.f32 %v2006, %v505
        %v2262 = vadd.f32 %v2261, %v507
        %v2263 = vmul.f32 %v2256, %v2180
        %v2264 = vsub.f32 1.0, %v2262
        %v2265 = vmul.f32 %v2264, %v2186
        %v2266 = vadd.f32 %v2263, %v2265
        %v2267 = vmul.f32 %v2006, %v513
        %v2268 = vadd.f32 %v2267, %v515
        %v2269 = vmul.f32 %v2262, %v2186
        %v2270 = vsub.f32 1.0, %v2268
        %v2271 = vmul.f32 %v2270, %v2192
        %v2272 = vadd.f32 %v2269, %v2271
        %v2273 = vmul.f32 %v2006, %v521
        %v2274 = vadd.f32 %v2273, %v523
        %v2275 = vmul.f32 %v2268, %v2192
        %v2276 = vsub.f32 1.0, %v2274
        %v2277 = vmul.f32 %v2276, %v2198
        %v2278 = vadd.f32 %v2275, %v2277
        %v2279 = vmul.f32 %v2006, %v529
        %v2280 = vadd.f32 %v2279, %v531
        %v2281 = vmul.f32 %v2274, %v2198
        %v2282 = vsub.f32 1.0, %v2280
        %v2283 = vmul.f32 %v2282, %v2204
        %v2284 = vadd.f32 %v2281, %v2283
        %v2285 = vmul.f32 %v2006, %v537
        %v2286 = vadd.f32 %v2285, %v539
        %v2287 = vmul.f32 %v2280, %v2204
        %v2288 = vsub.f32 1.0, %v2286
        %v2289 = vmul.f32 %v2288, %v2210
        %v2290 = vadd.f32 %v2287, %v2289
        %v2291 = vmul.f32 %v2006, %v545
        %v2292 = vadd.f32 %v2291, %v547
        %v2293 = vmul.f32 %v2286, %v2210
        %v2294 = vsub.f32 1.0, %v2292
        %v2295 = vmul.f32 %v2294, %v2216
        %v2296 = vadd.f32 %v2293, %v2295
        %v2297 = vmul.f32 %v2006, %v553
        %v2298 = vadd.f32 %v2297, %v555
        %v2299 = vmul.f32 %v2292, %v2216
        %v2300 = vsub.f32 1.0, %v2298
        %v2301 = vmul.f32 %v2300, %v2222
        %v2302 = vadd.f32 %v2299, %v2301
        %v2303 = vmul.f32 %v2006, %v561
        %v2304 = vadd.f32 %v2303, %v563
        %v2305 = vmul.f32 %v2298, %v2222
        %v2306 = vsub.f32 1.0, %v2304
        %v2307 = vmul.f32 %v2306, %v2228
        %v2308 = vadd.f32 %v2305, %v2307
        %v2309 = vmul.f32 %v2006, %v569
        %v2310 = vadd.f32 %v2309, %v571
        %v2311 = vmul.f32 %v2006, %v573
        %v2312 = vadd.f32 %v2311, %v575
        %v2313 = vmul.f32 %v2310, %v2236
        %v2314 = vsub.f32 1.0, %v2312
        %v2315 = vmul.f32 %v2314, %v2242
        %v2316 = vadd.f32 %v2313, %v2315
        %v2317 = vmul.f32 %v2006, %v581
        %v2318 = vadd.f32 %v2317, %v583
        %v2319 = vmul.f32 %v2312, %v2242
        %v2320 = vsub.f32 1.0, %v2318
        %v2321 = vmul.f32 %v2320, %v2248
        %v2322 = vadd.f32 %v2319, %v2321
        %v2323 = vmul.f32 %v2006, %v589
        %v2324 = vadd.f32 %v2323, %v591
        %v2325 = vmul.f32 %v2318, %v2248
        %v2326 = vsub.f32 1.0, %v2324
        %v2327 = vmul.f32 %v2326, %v2254
        %v2328 = vadd.f32 %v2325, %v2327
        %v2329 = vmul.f32 %v2006, %v597
        %v2330 = vadd.f32 %v2329, %v599
        %v2331 = vmul.f32 %v2324, %v2254
        %v2332 = vsub.f32 1.0, %v2330
        %v2333 = vmul.f32 %v2332, %v2260
        %v2334 = vadd.f32 %v2331, %v2333
        %v2335 = vmul.f32 %v2006, %v605
        %v2336 = vadd.f32 %v2335, %v607
        %v2337 = vmul.f32 %v2330, %v2260
        %v2338 = vsub.f32 1.0, %v2336
        %v2339 = vmul.f32 %v2338, %v2266
        %v2340 = vadd.f32 %v2337, %v2339
        %v2341 = vmul.f32 %v2006, %v613
        %v2342 = vadd.f32 %v2341, %v615
        %v2343 = vmul.f32 %v2336, %v2266
        %v2344 = vsub.f32 1.0, %v2342
        %v2345 = vmul.f32 %v2344, %v2272
        %v2346 = vadd.f32 %v2343, %v2345
        %v2347 = vmul.f32 %v2006, %v621
        %v2348 = vadd.f32 %v2347, %v623
        %v2349 = vmul.f32 %v2342, %v2272
        %v2350 = vsub.f32 1.0, %v2348
        %v2351 = vmul.f32 %v2350, %v2278
        %v2352 = vadd.f32 %v2349, %v2351
        %v2353 = vmul.f32 %v2006, %v629
        %v2354 = vadd.f32 %v2353, %v631
        %v2355 = vmul.f32 %v2348, %v2278
        %v2356 = vsub.f32 1.0, %v2354
        %v2357 = vmul.f32 %v2356, %v2284
        %v2358 = vadd.f32 %v2355, %v2357
        %v2359 = vmul.f32 %v2006, %v637
        %v2360 = vadd.f32 %v2359, %v639
        %v2361 = vmul.f32 %v2354, %v2284
        %v2362 = vsub.f32 1.0, %v2360
        %v2363 = vmul.f32 %v2362, %v2290
        %v2364 = vadd.f32 %v2361, %v2363
        %v2365 = vmul.f32 %v2006, %v645
        %v2366 = vadd.f32 %v2365, %v647
        %v2367 = vmul.f32 %v2360, %v2290
        %v2368 = vsub.f32 1.0, %v2366
        %v2369 = vmul.f32 %v2368, %v2296
        %v2370 = vadd.f32 %v2367, %v2369
        %v2371 = vmul.f32 %v2006, %v653
        %v2372 = vadd.f32 %v2371, %v655
        %v2373 = vmul.f32 %v2366, %v2296
        %v2374 = vsub.f32 1.0, %v2372
        %v2375 = vmul.f32 %v2374, %v2302
        %v2376 = vadd.f32 %v2373, %v2375
        %v2377 = vmul.f32 %v2006, %v661
        %v2378 = vadd.f32 %v2377, %v663
        %v2379 = vmul.f32 %v2372, %v2302
        %v2380 = vsub.f32 1.0, %v2378
        %v2381 = vmul.f32 %v2380, %v2308
        %v2382 = vadd.f32 %v2379, %v2381
        %v2383 = vmul.f32 %v2006, %v669
        %v2384 = vadd.f32 %v2383, %v671
        %v2385 = vmul.f32 %v2006, %v673
        %v2386 = vadd.f32 %v2385, %v675
        %v2387 = vmul.f32 %v2384, %v2316
        %v2388 = vsub.f32 1.0, %v2386
        %v2389 = vmul.f32 %v2388, %v2322
        %v2390 = vadd.f32 %v2387, %v2389
        %v2391 = vmul.f32 %v2006, %v681
        %v2392 = vadd.f32 %v2391, %v683
        %v2393 = vmul.f32 %v2386, %v2322
        %v2394 = vsub.f32 1.0, %v2392
        %v2395 = vmul.f32 %v2394, %v2328
        %v2396 = vadd.f32 %v2393, %v2395
        %v2397 = vmul.f32 %v2006, %v689
        %v2398 = vadd.f32 %v2397, %v691
        %v2399 = vmul.f32 %v2392, %v2328
        %v2400 = vsub.f32 1.0, %v2398
        %v2401 = vmul.f32 %v2400, %v2334
        %v2402 = vadd.f32 %v2399, %v2401
        %v2403 = vmul.f32 %v2006, %v697
        %v2404 = vadd.f32 %v2403, %v699
        %v2405 = vmul.f32 %v2398, %v2334
        %v2406 = vsub.f32 1.0, %v2404
        %v2407 = vmul.f32 %v2406, %v2340
        %v2408 = vadd.f32 %v2405, %v2407
        %v2409 = vmul.f32 %v2006, %v705
        %v2410 = vadd.f32 %v2409, %v707
        %v2411 = vmul.f32 %v2404, %v2340
        %v2412 = vsub.f32 1.0, %v2410
        %v2413 = vmul.f32 %v2412, %v2346
        %v2414 = vadd.f32 %v2411, %v2413
        %v2415 = vmul.f32 %v2006, %v713
        %v2416 = vadd.f32 %v2415, %v715
        %v2417 = vmul.f32 %v2410, %v2346
        %v2418 = vsub.f32 1.0, %v2416
        %v2419 = vmul.f32 %v2418, %v2352
        %v2420 = vadd.f32 %v2417, %v2419
        %v2421 = vmul.f32 %v2006, %v721
        %v2422 = vadd.f32 %v2421, %v723
        %v2423 = vmul.f32 %v2416, %v2352
        %v2424 = vsub.f32 1.0, %v2422
        %v2425 = vmul.f32 %v2424, %v2358
        %v2426 = vadd.f32 %v2423, %v2425
        %v2427 = vmul.f32 %v2006, %v729
        %v2428 = vadd.f32 %v2427, %v731
        %v2429 = vmul.f32 %v2422, %v2358
        %v2430 = vsub.f32 1.0, %v2428
        %v2431 = vmul.f32 %v2430, %v2364
        %v2432 = vadd.f32 %v2429, %v2431
        %v2433 = vmul.f32 %v2006, %v737
        %v2434 = vadd.f32 %v2433, %v739
        %v2435 = vmul.f32 %v2428, %v2364
        %v2436 = vsub.f32 1.0, %v2434
        %v2437 = vmul.f32 %v2436, %v2370
        %v2438 = vadd.f32 %v2435, %v2437
        %v2439 = vmul.f32 %v2006, %v745
        %v2440 = vadd.f32 %v2439, %v747
        %v2441 = vmul.f32 %v2434, %v2370
        %v2442 = vsub.f32 1.0, %v2440
        %v2443 = vmul.f32 %v2442, %v2376
        %v2444 = vadd.f32 %v2441, %v2443
        %v2445 = vmul.f32 %v2006, %v753
        %v2446 = vadd.f32 %v2445, %v755
        %v2447 = vmul.f32 %v2440, %v2376
        %v2448 = vsub.f32 1.0, %v2446
        %v2449 = vmul.f32 %v2448, %v2382
        %v2450 = vadd.f32 %v2447, %v2449
        %v2451 = vmul.f32 %v2006, %v761
        %v2452 = vadd.f32 %v2451, %v763
        %v2453 = vmul.f32 %v2006, %v765
        %v2454 = vadd.f32 %v2453, %v767
        %v2455 = vmul.f32 %v2452, %v2390
        %v2456 = vsub.f32 1.0, %v2454
        %v2457 = vmul.f32 %v2456, %v2396
        %v2458 = vadd.f32 %v2455, %v2457
        %v2459 = vmul.f32 %v2006, %v773
        %v2460 = vadd.f32 %v2459, %v775
        %v2461 = vmul.f32 %v2454, %v2396
        %v2462 = vsub.f32 1.0, %v2460
        %v2463 = vmul.f32 %v2462, %v2402
        %v2464 = vadd.f32 %v2461, %v2463
        %v2465 = vmul.f32 %v2006, %v781
        %v2466 = vadd.f32 %v2465, %v783
        %v2467 = vmul.f32 %v2460, %v2402
        %v2468 = vsub.f32 1.0, %v2466
        %v2469 = vmul.f32 %v2468, %v2408
        %v2470 = vadd.f32 %v2467, %v2469
        %v2471 = vmul.f32 %v2006, %v789
        %v2472 = vadd.f32 %v2471, %v791
        %v2473 = vmul.f32 %v2466, %v2408
        %v2474 = vsub.f32 1.0, %v2472
        %v2475 = vmul.f32 %v2474, %v2414
        %v2476 = vadd.f32 %v2473, %v2475
        %v2477 = vmul.f32 %v2006, %v797
        %v2478 = vadd.f32 %v2477, %v799
        %v2479 = vmul.f32 %v2472, %v2414
        %v2480 = vsub.f32 1.0, %v2478
        %v2481 = vmul.f32 %v2480, %v2420
        %v2482 = vadd.f32 %v2479, %v2481
        %v2483 = vmul.f32 %v2006, %v805
        %v2484 = vadd.f32 %v2483, %v807
        %v2485 = vmul.f32 %v2478, %v2420
        %v2486 = vsub.f32 1.0, %v2484
        %v2487 = vmul.f32 %v2486, %v2426
        %v2488 = vadd.f32 %v2485, %v2487
        %v2489 = vmul.f32 %v2006, %v813
        %v2490 = vadd.f32 %v2489, %v815
        %v2491 = vmul.f32 %v2484, %v2426
        %v2492 = vsub.f32 1.0, %v2490
        %v2493 = vmul.f32 %v2492, %v2432
        %v2494 = vadd.f32 %v2491, %v2493
        %v2495 = vmul.f32 %v2006, %v821
        %v2496 = vadd.f32 %v2495, %v823
        %v2497 = vmul.f32 %v2490, %v2432
        %v2498 = vsub.f32 1.0, %v2496
        %v2499 = vmul.f32 %v2498, %v2438
        %v2500 = vadd.f32 %v2497, %v2499
        %v2501 = vmul.f32 %v2006, %v829
        %v2502 = vadd.f32 %v2501, %v831
        %v2503 = vmul.f32 %v2496, %v2438
        %v2504 = vsub.f32 1.0, %v2502
        %v2505 = vmul.f32 %v2504, %v2444
        %v2506 = vadd.f32 %v2503, %v2505
        %v2507 = vmul.f32 %v2006, %v837
        %v2508 = vadd.f32 %v2507, %v839
        %v2509 = vmul.f32 %v2502, %v2444
        %v2510 = vsub.f32 1.0, %v2508
        %v2511 = vmul.f32 %v2510, %v2450
        %v2512 = vadd.f32 %v2509, %v2511
        %v2513 = vsub.f32 0.0, %v2006
        %v2514 = vmul.f32 %v2513, 1.442695
        %v2515 = vpow.pop %v2514
        %v2516 = vadd.f32 %v2515, 1.0
        %v2517 = vrcp.pop %v2516
        %v2518 = vmul.f32 1.0, %v2517
        %v2519 = vmul.f32 %v2006, %v2518
        %s2520 = sld [smem:[#allocation2 + $0xe7]]
        %v2521 = vstv %s2520
        %v2522 = vmul.f32 %v2521, %v2519
        %s2523 = sld [smem:[#allocation2 + $0xe8]]
        %v2524 = vstv %s2523
        %v2525 = vmul.f32 %v2524, %v2458
        %v2526 = vadd.f32 %v2522, %v2525
        %s2527 = sld [smem:[#allocation2 + $0xe9]]
        %v2528 = vstv %s2527
        %v2529 = vmul.f32 %v2528, %v2464
        %v2530 = vadd.f32 %v2526, %v2529
        %s2531 = sld [smem:[#allocation2 + $0xea]]
        %v2532 = vstv %s2531
        %v2533 = vmul.f32 %v2532, %v2470
        %v2534 = vadd.f32 %v2530, %v2533
        %s2535 = sld [smem:[#allocation2 + $0xeb]]
        %v2536 = vstv %s2535
        %v2537 = vmul.f32 %v2536, %v2476
        %v2538 = vadd.f32 %v2534, %v2537
        %s2539 = sld [smem:[#allocation2 + $0xec]]
        %v2540 = vstv %s2539
        %v2541 = vmul.f32 %v2540, %v2482
        %v2542 = vadd.f32 %v2538, %v2541
        %s2543 = sld [smem:[#allocation2 + $0xed]]
        %v2544 = vstv %s2543
        %v2545 = vmul.f32 %v2544, %v2488
        %v2546 = vadd.f32 %v2542, %v2545
        %s2547 = sld [smem:[#allocation2 + $0xee]]
        %v2548 = vstv %s2547
        %v2549 = vmul.f32 %v2548, %v2494
        %v2550 = vadd.f32 %v2546, %v2549
        %s2551 = sld [smem:[#allocation2 + $0xef]]
        %v2552 = vstv %s2551
        %v2553 = vmul.f32 %v2552, %v2500
        %v2554 = vadd.f32 %v2550, %v2553
        %s2555 = sld [smem:[#allocation2 + $0xf0]]
        %v2556 = vstv %s2555
        %v2557 = vmul.f32 %v2556, %v2506
        %v2558 = vadd.f32 %v2554, %v2557
        %s2559 = sld [smem:[#allocation2 + $0xf1]]
        %v2560 = vstv %s2559
        %v2561 = vmul.f32 %v2560, %v2512
        %v2562 = vadd.f32 %v2558, %v2561
        %v2563 = vsub.f32 %v2050, %v295
        %v2564 = vmul.f32 %v2563, %v297
        %v2565 = vfloor.f32 %v2564
        %vm2566 = vcmp.eq.f32.partialorder %v2565, 0.0
        %v2567 = vsel %vm2566, 1, 0
        %v2568 = vcvt.s32.f32 %v2567
        %vm2569 = vcmp.eq.f32.partialorder %v2565, 1.0
        %v2570 = vsel %vm2569, 1, 0
        %v2571 = vcvt.s32.f32 %v2570
        %vm2572 = vcmp.eq.f32.partialorder %v2565, 2.0
        %v2573 = vsel %vm2572, 1, 0
        %v2574 = vcvt.s32.f32 %v2573
        %vm2575 = vcmp.eq.f32.partialorder %v2565, 3.0
        %v2576 = vsel %vm2575, 1, 0
        %v2577 = vcvt.s32.f32 %v2576
        %vm2578 = vcmp.eq.f32.partialorder %v2565, 4.0
        %v2579 = vsel %vm2578, 1, 0
        %v2580 = vcvt.s32.f32 %v2579
        %vm2581 = vcmp.eq.f32.partialorder %v2565, 5.0
        %v2582 = vsel %vm2581, 1, 0
        %v2583 = vcvt.s32.f32 %v2582
        %vm2584 = vcmp.eq.f32.partialorder %v2565, 6.0
        %v2585 = vsel %vm2584, 1, 0
        %v2586 = vcvt.s32.f32 %v2585
        %vm2587 = vcmp.eq.f32.partialorder %v2565, 7.0
        %v2588 = vsel %vm2587, 1, 0
        %v2589 = vcvt.s32.f32 %v2588
        %vm2590 = vcmp.eq.f32.partialorder %v2565, 8.0
        %v2591 = vsel %vm2590, 1, 0
        %v2592 = vcvt.s32.f32 %v2591
        %vm2593 = vcmp.eq.f32.partialorder %v2565, 9.0
        %v2594 = vsel %vm2593, 1, 0
        %v2595 = vcvt.s32.f32 %v2594
        %vm2596 = vcmp.eq.f32.partialorder %v2565, 10.0
        %v2597 = vsel %vm2596, 1, 0
        %v2598 = vcvt.s32.f32 %v2597
        %vm2599 = vcmp.eq.f32.partialorder %v2565, 11.0
        %v2600 = vsel %vm2599, 1, 0
        %v2601 = vcvt.s32.f32 %v2600
        %vm2602 = vcmp.eq.f32.partialorder %v2565, 12.0
        %v2603 = vsel %vm2602, 1, 0
        %v2604 = vcvt.s32.f32 %v2603
        %vm2605 = vcmp.eq.f32.partialorder %v2565, 13.0
        %v2606 = vsel %vm2605, 1, 0
        %v2607 = vcvt.s32.f32 %v2606
        %vm2608 = vcmp.eq.f32.partialorder %v2565, 14.0
        %v2609 = vsel %vm2608, 1, 0
        %v2610 = vcvt.s32.f32 %v2609
        %v2611 = vmul.f32 %v2050, %v345
        %v2612 = vadd.f32 %v2611, %v347
        %v2613 = vmul.f32 %v2050, %v349
        %v2614 = vadd.f32 %v2613, %v351
        %v2615 = vmul.f32 %v2612, %v2568
        %v2616 = vsub.f32 1.0, %v2614
        %v2617 = vmul.f32 %v2616, %v2571
        %v2618 = vadd.f32 %v2615, %v2617
        %v2619 = vmul.f32 %v2050, %v357
        %v2620 = vadd.f32 %v2619, %v359
        %v2621 = vmul.f32 %v2614, %v2571
        %v2622 = vsub.f32 1.0, %v2620
        %v2623 = vmul.f32 %v2622, %v2574
        %v2624 = vadd.f32 %v2621, %v2623
        %v2625 = vmul.f32 %v2050, %v365
        %v2626 = vadd.f32 %v2625, %v367
        %v2627 = vmul.f32 %v2620, %v2574
        %v2628 = vsub.f32 1.0, %v2626
        %v2629 = vmul.f32 %v2628, %v2577
        %v2630 = vadd.f32 %v2627, %v2629
        %v2631 = vmul.f32 %v2050, %v373
        %v2632 = vadd.f32 %v2631, %v375
        %v2633 = vmul.f32 %v2626, %v2577
        %v2634 = vsub.f32 1.0, %v2632
        %v2635 = vmul.f32 %v2634, %v2580
        %v2636 = vadd.f32 %v2633, %v2635
        %v2637 = vmul.f32 %v2050, %v381
        %v2638 = vadd.f32 %v2637, %v383
        %v2639 = vmul.f32 %v2632, %v2580
        %v2640 = vsub.f32 1.0, %v2638
        %v2641 = vmul.f32 %v2640, %v2583
        %v2642 = vadd.f32 %v2639, %v2641
        %v2643 = vmul.f32 %v2050, %v389
        %v2644 = vadd.f32 %v2643, %v391
        %v2645 = vmul.f32 %v2638, %v2583
        %v2646 = vsub.f32 1.0, %v2644
        %v2647 = vmul.f32 %v2646, %v2586
        %v2648 = vadd.f32 %v2645, %v2647
        %v2649 = vmul.f32 %v2050, %v397
        %v2650 = vadd.f32 %v2649, %v399
        %v2651 = vmul.f32 %v2644, %v2586
        %v2652 = vsub.f32 1.0, %v2650
        %v2653 = vmul.f32 %v2652, %v2589
        %v2654 = vadd.f32 %v2651, %v2653
        %v2655 = vmul.f32 %v2050, %v405
        %v2656 = vadd.f32 %v2655, %v407
        %v2657 = vmul.f32 %v2650, %v2589
        %v2658 = vsub.f32 1.0, %v2656
        %v2659 = vmul.f32 %v2658, %v2592
        %v2660 = vadd.f32 %v2657, %v2659
        %v2661 = vmul.f32 %v2050, %v413
        %v2662 = vadd.f32 %v2661, %v415
        %v2663 = vmul.f32 %v2656, %v2592
        %v2664 = vsub.f32 1.0, %v2662
        %v2665 = vmul.f32 %v2664, %v2595
        %v2666 = vadd.f32 %v2663, %v2665
        %v2667 = vmul.f32 %v2050, %v421
        %v2668 = vadd.f32 %v2667, %v423
        %v2669 = vmul.f32 %v2662, %v2595
        %v2670 = vsub.f32 1.0, %v2668
        %v2671 = vmul.f32 %v2670, %v2598
        %v2672 = vadd.f32 %v2669, %v2671
        %v2673 = vmul.f32 %v2050, %v429
        %v2674 = vadd.f32 %v2673, %v431
        %v2675 = vmul.f32 %v2668, %v2598
        %v2676 = vsub.f32 1.0, %v2674
        %v2677 = vmul.f32 %v2676, %v2601
        %v2678 = vadd.f32 %v2675, %v2677
        %v2679 = vmul.f32 %v2050, %v437
        %v2680 = vadd.f32 %v2679, %v439
        %v2681 = vmul.f32 %v2674, %v2601
        %v2682 = vsub.f32 1.0, %v2680
        %v2683 = vmul.f32 %v2682, %v2604
        %v2684 = vadd.f32 %v2681, %v2683
        %v2685 = vmul.f32 %v2050, %v445
        %v2686 = vadd.f32 %v2685, %v447
        %v2687 = vmul.f32 %v2680, %v2604
        %v2688 = vsub.f32 1.0, %v2686
        %v2689 = vmul.f32 %v2688, %v2607
        %v2690 = vadd.f32 %v2687, %v2689
        %v2691 = vmul.f32 %v2050, %v453
        %v2692 = vadd.f32 %v2691, %v455
        %v2693 = vmul.f32 %v2686, %v2607
        %v2694 = vsub.f32 1.0, %v2692
        %v2695 = vmul.f32 %v2694, %v2610
        %v2696 = vadd.f32 %v2693, %v2695
        %v2697 = vmul.f32 %v2050, %v461
        %v2698 = vadd.f32 %v2697, %v463
        %v2699 = vmul.f32 %v2050, %v465
        %v2700 = vadd.f32 %v2699, %v467
        %v2701 = vmul.f32 %v2698, %v2618
        %v2702 = vsub.f32 1.0, %v2700
        %v2703 = vmul.f32 %v2702, %v2624
        %v2704 = vadd.f32 %v2701, %v2703
        %v2705 = vmul.f32 %v2050, %v473
        %v2706 = vadd.f32 %v2705, %v475
        %v2707 = vmul.f32 %v2700, %v2624
        %v2708 = vsub.f32 1.0, %v2706
        %v2709 = vmul.f32 %v2708, %v2630
        %v2710 = vadd.f32 %v2707, %v2709
        %v2711 = vmul.f32 %v2050, %v481
        %v2712 = vadd.f32 %v2711, %v483
        %v2713 = vmul.f32 %v2706, %v2630
        %v2714 = vsub.f32 1.0, %v2712
        %v2715 = vmul.f32 %v2714, %v2636
        %v2716 = vadd.f32 %v2713, %v2715
        %v2717 = vmul.f32 %v2050, %v489
        %v2718 = vadd.f32 %v2717, %v491
        %v2719 = vmul.f32 %v2712, %v2636
        %v2720 = vsub.f32 1.0, %v2718
        %v2721 = vmul.f32 %v2720, %v2642
        %v2722 = vadd.f32 %v2719, %v2721
        %v2723 = vmul.f32 %v2050, %v497
        %v2724 = vadd.f32 %v2723, %v499
        %v2725 = vmul.f32 %v2718, %v2642
        %v2726 = vsub.f32 1.0, %v2724
        %v2727 = vmul.f32 %v2726, %v2648
        %v2728 = vadd.f32 %v2725, %v2727
        %v2729 = vmul.f32 %v2050, %v505
        %v2730 = vadd.f32 %v2729, %v507
        %v2731 = vmul.f32 %v2724, %v2648
        %v2732 = vsub.f32 1.0, %v2730
        %v2733 = vmul.f32 %v2732, %v2654
        %v2734 = vadd.f32 %v2731, %v2733
        %v2735 = vmul.f32 %v2050, %v513
        %v2736 = vadd.f32 %v2735, %v515
        %v2737 = vmul.f32 %v2730, %v2654
        %v2738 = vsub.f32 1.0, %v2736
        %v2739 = vmul.f32 %v2738, %v2660
        %v2740 = vadd.f32 %v2737, %v2739
        %v2741 = vmul.f32 %v2050, %v521
        %v2742 = vadd.f32 %v2741, %v523
        %v2743 = vmul.f32 %v2736, %v2660
        %v2744 = vsub.f32 1.0, %v2742
        %v2745 = vmul.f32 %v2744, %v2666
        %v2746 = vadd.f32 %v2743, %v2745
        %v2747 = vmul.f32 %v2050, %v529
        %v2748 = vadd.f32 %v2747, %v531
        %v2749 = vmul.f32 %v2742, %v2666
        %v2750 = vsub.f32 1.0, %v2748
        %v2751 = vmul.f32 %v2750, %v2672
        %v2752 = vadd.f32 %v2749, %v2751
        %v2753 = vmul.f32 %v2050, %v537
        %v2754 = vadd.f32 %v2753, %v539
        %v2755 = vmul.f32 %v2748, %v2672
        %v2756 = vsub.f32 1.0, %v2754
        %v2757 = vmul.f32 %v2756, %v2678
        %v2758 = vadd.f32 %v2755, %v2757
        %v2759 = vmul.f32 %v2050, %v545
        %v2760 = vadd.f32 %v2759, %v547
        %v2761 = vmul.f32 %v2754, %v2678
        %v2762 = vsub.f32 1.0, %v2760
        %v2763 = vmul.f32 %v2762, %v2684
        %v2764 = vadd.f32 %v2761, %v2763
        %v2765 = vmul.f32 %v2050, %v553
        %v2766 = vadd.f32 %v2765, %v555
        %v2767 = vmul.f32 %v2760, %v2684
        %v2768 = vsub.f32 1.0, %v2766
        %v2769 = vmul.f32 %v2768, %v2690
        %v2770 = vadd.f32 %v2767, %v2769
        %v2771 = vmul.f32 %v2050, %v561
        %v2772 = vadd.f32 %v2771, %v563
        %v2773 = vmul.f32 %v2766, %v2690
        %v2774 = vsub.f32 1.0, %v2772
        %v2775 = vmul.f32 %v2774, %v2696
        %v2776 = vadd.f32 %v2773, %v2775
        %v2777 = vmul.f32 %v2050, %v569
        %v2778 = vadd.f32 %v2777, %v571
        %v2779 = vmul.f32 %v2050, %v573
        %v2780 = vadd.f32 %v2779, %v575
        %v2781 = vmul.f32 %v2778, %v2704
        %v2782 = vsub.f32 1.0, %v2780
        %v2783 = vmul.f32 %v2782, %v2710
        %v2784 = vadd.f32 %v2781, %v2783
        %v2785 = vmul.f32 %v2050, %v581
        %v2786 = vadd.f32 %v2785, %v583
        %v2787 = vmul.f32 %v2780, %v2710
        %v2788 = vsub.f32 1.0, %v2786
        %v2789 = vmul.f32 %v2788, %v2716
        %v2790 = vadd.f32 %v2787, %v2789
        %v2791 = vmul.f32 %v2050, %v589
        %v2792 = vadd.f32 %v2791, %v591
        %v2793 = vmul.f32 %v2786, %v2716
        %v2794 = vsub.f32 1.0, %v2792
        %v2795 = vmul.f32 %v2794, %v2722
        %v2796 = vadd.f32 %v2793, %v2795
        %v2797 = vmul.f32 %v2050, %v597
        %v2798 = vadd.f32 %v2797, %v599
        %v2799 = vmul.f32 %v2792, %v2722
        %v2800 = vsub.f32 1.0, %v2798
        %v2801 = vmul.f32 %v2800, %v2728
        %v2802 = vadd.f32 %v2799, %v2801
        %v2803 = vmul.f32 %v2050, %v605
        %v2804 = vadd.f32 %v2803, %v607
        %v2805 = vmul.f32 %v2798, %v2728
        %v2806 = vsub.f32 1.0, %v2804
        %v2807 = vmul.f32 %v2806, %v2734
        %v2808 = vadd.f32 %v2805, %v2807
        %v2809 = vmul.f32 %v2050, %v613
        %v2810 = vadd.f32 %v2809, %v615
        %v2811 = vmul.f32 %v2804, %v2734
        %v2812 = vsub.f32 1.0, %v2810
        %v2813 = vmul.f32 %v2812, %v2740
        %v2814 = vadd.f32 %v2811, %v2813
        %v2815 = vmul.f32 %v2050, %v621
        %v2816 = vadd.f32 %v2815, %v623
        %v2817 = vmul.f32 %v2810, %v2740
        %v2818 = vsub.f32 1.0, %v2816
        %v2819 = vmul.f32 %v2818, %v2746
        %v2820 = vadd.f32 %v2817, %v2819
        %v2821 = vmul.f32 %v2050, %v629
        %v2822 = vadd.f32 %v2821, %v631
        %v2823 = vmul.f32 %v2816, %v2746
        %v2824 = vsub.f32 1.0, %v2822
        %v2825 = vmul.f32 %v2824, %v2752
        %v2826 = vadd.f32 %v2823, %v2825
        %v2827 = vmul.f32 %v2050, %v637
        %v2828 = vadd.f32 %v2827, %v639
        %v2829 = vmul.f32 %v2822, %v2752
        %v2830 = vsub.f32 1.0, %v2828
        %v2831 = vmul.f32 %v2830, %v2758
        %v2832 = vadd.f32 %v2829, %v2831
        %v2833 = vmul.f32 %v2050, %v645
        %v2834 = vadd.f32 %v2833, %v647
        %v2835 = vmul.f32 %v2828, %v2758
        %v2836 = vsub.f32 1.0, %v2834
        %v2837 = vmul.f32 %v2836, %v2764
        %v2838 = vadd.f32 %v2835, %v2837
        %v2839 = vmul.f32 %v2050, %v653
        %v2840 = vadd.f32 %v2839, %v655
        %v2841 = vmul.f32 %v2834, %v2764
        %v2842 = vsub.f32 1.0, %v2840
        %v2843 = vmul.f32 %v2842, %v2770
        %v2844 = vadd.f32 %v2841, %v2843
        %v2845 = vmul.f32 %v2050, %v661
        %v2846 = vadd.f32 %v2845, %v663
        %v2847 = vmul.f32 %v2840, %v2770
        %v2848 = vsub.f32 1.0, %v2846
        %v2849 = vmul.f32 %v2848, %v2776
        %v2850 = vadd.f32 %v2847, %v2849
        %v2851 = vmul.f32 %v2050, %v669
        %v2852 = vadd.f32 %v2851, %v671
        %v2853 = vmul.f32 %v2050, %v673
        %v2854 = vadd.f32 %v2853, %v675
        %v2855 = vmul.f32 %v2852, %v2784
        %v2856 = vsub.f32 1.0, %v2854
        %v2857 = vmul.f32 %v2856, %v2790
        %v2858 = vadd.f32 %v2855, %v2857
        %v2859 = vmul.f32 %v2050, %v681
        %v2860 = vadd.f32 %v2859, %v683
        %v2861 = vmul.f32 %v2854, %v2790
        %v2862 = vsub.f32 1.0, %v2860
        %v2863 = vmul.f32 %v2862, %v2796
        %v2864 = vadd.f32 %v2861, %v2863
        %v2865 = vmul.f32 %v2050, %v689
        %v2866 = vadd.f32 %v2865, %v691
        %v2867 = vmul.f32 %v2860, %v2796
        %v2868 = vsub.f32 1.0, %v2866
        %v2869 = vmul.f32 %v2868, %v2802
        %v2870 = vadd.f32 %v2867, %v2869
        %v2871 = vmul.f32 %v2050, %v697
        %v2872 = vadd.f32 %v2871, %v699
        %v2873 = vmul.f32 %v2866, %v2802
        %v2874 = vsub.f32 1.0, %v2872
        %v2875 = vmul.f32 %v2874, %v2808
        %v2876 = vadd.f32 %v2873, %v2875
        %v2877 = vmul.f32 %v2050, %v705
        %v2878 = vadd.f32 %v2877, %v707
        %v2879 = vmul.f32 %v2872, %v2808
        %v2880 = vsub.f32 1.0, %v2878
        %v2881 = vmul.f32 %v2880, %v2814
        %v2882 = vadd.f32 %v2879, %v2881
        %v2883 = vmul.f32 %v2050, %v713
        %v2884 = vadd.f32 %v2883, %v715
        %v2885 = vmul.f32 %v2878, %v2814
        %v2886 = vsub.f32 1.0, %v2884
        %v2887 = vmul.f32 %v2886, %v2820
        %v2888 = vadd.f32 %v2885, %v2887
        %v2889 = vmul.f32 %v2050, %v721
        %v2890 = vadd.f32 %v2889, %v723
        %v2891 = vmul.f32 %v2884, %v2820
        %v2892 = vsub.f32 1.0, %v2890
        %v2893 = vmul.f32 %v2892, %v2826
        %v2894 = vadd.f32 %v2891, %v2893
        %v2895 = vmul.f32 %v2050, %v729
        %v2896 = vadd.f32 %v2895, %v731
        %v2897 = vmul.f32 %v2890, %v2826
        %v2898 = vsub.f32 1.0, %v2896
        %v2899 = vmul.f32 %v2898, %v2832
        %v2900 = vadd.f32 %v2897, %v2899
        %v2901 = vmul.f32 %v2050, %v737
        %v2902 = vadd.f32 %v2901, %v739
        %v2903 = vmul.f32 %v2896, %v2832
        %v2904 = vsub.f32 1.0, %v2902
        %v2905 = vmul.f32 %v2904, %v2838
        %v2906 = vadd.f32 %v2903, %v2905
        %v2907 = vmul.f32 %v2050, %v745
        %v2908 = vadd.f32 %v2907, %v747
        %v2909 = vmul.f32 %v2902, %v2838
        %v2910 = vsub.f32 1.0, %v2908
        %v2911 = vmul.f32 %v2910, %v2844
        %v2912 = vadd.f32 %v2909, %v2911
        %v2913 = vmul.f32 %v2050, %v753
        %v2914 = vadd.f32 %v2913, %v755
        %v2915 = vmul.f32 %v2908, %v2844
        %v2916 = vsub.f32 1.0, %v2914
        %v2917 = vmul.f32 %v2916, %v2850
        %v2918 = vadd.f32 %v2915, %v2917
        %v2919 = vmul.f32 %v2050, %v761
        %v2920 = vadd.f32 %v2919, %v763
        %v2921 = vmul.f32 %v2050, %v765
        %v2922 = vadd.f32 %v2921, %v767
        %v2923 = vmul.f32 %v2920, %v2858
        %v2924 = vsub.f32 1.0, %v2922
        %v2925 = vmul.f32 %v2924, %v2864
        %v2926 = vadd.f32 %v2923, %v2925
        %v2927 = vmul.f32 %v2050, %v773
        %v2928 = vadd.f32 %v2927, %v775
        %v2929 = vmul.f32 %v2922, %v2864
        %v2930 = vsub.f32 1.0, %v2928
        %v2931 = vmul.f32 %v2930, %v2870
        %v2932 = vadd.f32 %v2929, %v2931
        %v2933 = vmul.f32 %v2050, %v781
        %v2934 = vadd.f32 %v2933, %v783
        %v2935 = vmul.f32 %v2928, %v2870
        %v2936 = vsub.f32 1.0, %v2934
        %v2937 = vmul.f32 %v2936, %v2876
        %v2938 = vadd.f32 %v2935, %v2937
        %v2939 = vmul.f32 %v2050, %v789
        %v2940 = vadd.f32 %v2939, %v791
        %v2941 = vmul.f32 %v2934, %v2876
        %v2942 = vsub.f32 1.0, %v2940
        %v2943 = vmul.f32 %v2942, %v2882
        %v2944 = vadd.f32 %v2941, %v2943
        %v2945 = vmul.f32 %v2050, %v797
        %v2946 = vadd.f32 %v2945, %v799
        %v2947 = vmul.f32 %v2940, %v2882
        %v2948 = vsub.f32 1.0, %v2946
        %v2949 = vmul.f32 %v2948, %v2888
        %v2950 = vadd.f32 %v2947, %v2949
        %v2951 = vmul.f32 %v2050, %v805
        %v2952 = vadd.f32 %v2951, %v807
        %v2953 = vmul.f32 %v2946, %v2888
        %v2954 = vsub.f32 1.0, %v2952
        %v2955 = vmul.f32 %v2954, %v2894
        %v2956 = vadd.f32 %v2953, %v2955
        %v2957 = vmul.f32 %v2050, %v813
        %v2958 = vadd.f32 %v2957, %v815
        %v2959 = vmul.f32 %v2952, %v2894
        %v2960 = vsub.f32 1.0, %v2958
        %v2961 = vmul.f32 %v2960, %v2900
        %v2962 = vadd.f32 %v2959, %v2961
        %v2963 = vmul.f32 %v2050, %v821
        %v2964 = vadd.f32 %v2963, %v823
        %v2965 = vmul.f32 %v2958, %v2900
        %v2966 = vsub.f32 1.0, %v2964
        %v2967 = vmul.f32 %v2966, %v2906
        %v2968 = vadd.f32 %v2965, %v2967
        %v2969 = vmul.f32 %v2050, %v829
        %v2970 = vadd.f32 %v2969, %v831
        %v2971 = vmul.f32 %v2964, %v2906
        %v2972 = vsub.f32 1.0, %v2970
        %v2973 = vmul.f32 %v2972, %v2912
        %v2974 = vadd.f32 %v2971, %v2973
        %v2975 = vmul.f32 %v2050, %v837
        %v2976 = vadd.f32 %v2975, %v839
        %v2977 = vmul.f32 %v2970, %v2912
        %v2978 = vsub.f32 1.0, %v2976
        %v2979 = vmul.f32 %v2978, %v2918
        %v2980 = vadd.f32 %v2977, %v2979
        %v2981 = vsub.f32 0.0, %v2050
        %v2982 = vmul.f32 %v2981, 1.442695
        %v2983 = vpow.pop %v2982
        %v2984 = vadd.f32 %v2983, 1.0
        %v2985 = vrcp.pop %v2984
        %v2986 = vmul.f32 1.0, %v2985
        %v2987 = vmul.f32 %v2050, %v2986
        %s2988 = sld [smem:[#allocation2 + $0xf2]]
        %v2989 = vstv %s2988
        %v2990 = vmul.f32 %v2989, %v2987
        %s2991 = sld [smem:[#allocation2 + $0xf3]]
        %v2992 = vstv %s2991
        %v2993 = vmul.f32 %v2992, %v2926
        %v2994 = vadd.f32 %v2990, %v2993
        %s2995 = sld [smem:[#allocation2 + $0xf4]]
        %v2996 = vstv %s2995
        %v2997 = vmul.f32 %v2996, %v2932
        %v2998 = vadd.f32 %v2994, %v2997
        %s2999 = sld [smem:[#allocation2 + $0xf5]]
        %v3000 = vstv %s2999
        %v3001 = vmul.f32 %v3000, %v2938
        %v3002 = vadd.f32 %v2998, %v3001
        %s3003 = sld [smem:[#allocation2 + $0xf6]]
        %v3004 = vstv %s3003
        %v3005 = vmul.f32 %v3004, %v2944
        %v3006 = vadd.f32 %v3002, %v3005
        %s3007 = sld [smem:[#allocation2 + $0xf7]]
        %v3008 = vstv %s3007
        %v3009 = vmul.f32 %v3008, %v2950
        %v3010 = vadd.f32 %v3006, %v3009
        %s3011 = sld [smem:[#allocation2 + $0xf8]]
        %v3012 = vstv %s3011
        %v3013 = vmul.f32 %v3012, %v2956
        %v3014 = vadd.f32 %v3010, %v3013
        %s3015 = sld [smem:[#allocation2 + $0xf9]]
        %v3016 = vstv %s3015
        %v3017 = vmul.f32 %v3016, %v2962
        %v3018 = vadd.f32 %v3014, %v3017
        %s3019 = sld [smem:[#allocation2 + $0xfa]]
        %v3020 = vstv %s3019
        %v3021 = vmul.f32 %v3020, %v2968
        %v3022 = vadd.f32 %v3018, %v3021
        %s3023 = sld [smem:[#allocation2 + $0xfb]]
        %v3024 = vstv %s3023
        %v3025 = vmul.f32 %v3024, %v2974
        %v3026 = vadd.f32 %v3022, %v3025
        %s3027 = sld [smem:[#allocation2 + $0xfc]]
        %v3028 = vstv %s3027
        %v3029 = vmul.f32 %v3028, %v2980
        %v3030 = vadd.f32 %v3026, %v3029
        %v3031 = vadd.f32 %v2562, %v3030
        %v3032 = vsub.f32 %v2094, %v295
        %v3033 = vmul.f32 %v3032, %v297
        %v3034 = vfloor.f32 %v3033
        %vm3035 = vcmp.eq.f32.partialorder %v3034, 0.0
        %v3036 = vsel %vm3035, 1, 0
        %v3037 = vcvt.s32.f32 %v3036
        %vm3038 = vcmp.eq.f32.partialorder %v3034, 1.0
        %v3039 = vsel %vm3038, 1, 0
        %v3040 = vcvt.s32.f32 %v3039
        %vm3041 = vcmp.eq.f32.partialorder %v3034, 2.0
        %v3042 = vsel %vm3041, 1, 0
        %v3043 = vcvt.s32.f32 %v3042
        %vm3044 = vcmp.eq.f32.partialorder %v3034, 3.0
        %v3045 = vsel %vm3044, 1, 0
        %v3046 = vcvt.s32.f32 %v3045
        %vm3047 = vcmp.eq.f32.partialorder %v3034, 4.0
        %v3048 = vsel %vm3047, 1, 0
        %v3049 = vcvt.s32.f32 %v3048
        %vm3050 = vcmp.eq.f32.partialorder %v3034, 5.0
        %v3051 = vsel %vm3050, 1, 0
        %v3052 = vcvt.s32.f32 %v3051
        %vm3053 = vcmp.eq.f32.partialorder %v3034, 6.0
        %v3054 = vsel %vm3053, 1, 0
        %v3055 = vcvt.s32.f32 %v3054
        %vm3056 = vcmp.eq.f32.partialorder %v3034, 7.0
        %v3057 = vsel %vm3056, 1, 0
        %v3058 = vcvt.s32.f32 %v3057
        %vm3059 = vcmp.eq.f32.partialorder %v3034, 8.0
        %v3060 = vsel %vm3059, 1, 0
        %v3061 = vcvt.s32.f32 %v3060
        %vm3062 = vcmp.eq.f32.partialorder %v3034, 9.0
        %v3063 = vsel %vm3062, 1, 0
        %v3064 = vcvt.s32.f32 %v3063
        %vm3065 = vcmp.eq.f32.partialorder %v3034, 10.0
        %v3066 = vsel %vm3065, 1, 0
        %v3067 = vcvt.s32.f32 %v3066
        %vm3068 = vcmp.eq.f32.partialorder %v3034, 11.0
        %v3069 = vsel %vm3068, 1, 0
        %v3070 = vcvt.s32.f32 %v3069
        %vm3071 = vcmp.eq.f32.partialorder %v3034, 12.0
        %v3072 = vsel %vm3071, 1, 0
        %v3073 = vcvt.s32.f32 %v3072
        %vm3074 = vcmp.eq.f32.partialorder %v3034, 13.0
        %v3075 = vsel %vm3074, 1, 0
        %v3076 = vcvt.s32.f32 %v3075
        %vm3077 = vcmp.eq.f32.partialorder %v3034, 14.0
        %v3078 = vsel %vm3077, 1, 0
        %v3079 = vcvt.s32.f32 %v3078
        %v3080 = vmul.f32 %v2094, %v345
        %v3081 = vadd.f32 %v3080, %v347
        %v3082 = vmul.f32 %v2094, %v349
        %v3083 = vadd.f32 %v3082, %v351
        %v3084 = vmul.f32 %v3081, %v3037
        %v3085 = vsub.f32 1.0, %v3083
        %v3086 = vmul.f32 %v3085, %v3040
        %v3087 = vadd.f32 %v3084, %v3086
        %v3088 = vmul.f32 %v2094, %v357
        %v3089 = vadd.f32 %v3088, %v359
        %v3090 = vmul.f32 %v3083, %v3040
        %v3091 = vsub.f32 1.0, %v3089
        %v3092 = vmul.f32 %v3091, %v3043
        %v3093 = vadd.f32 %v3090, %v3092
        %v3094 = vmul.f32 %v2094, %v365
        %v3095 = vadd.f32 %v3094, %v367
        %v3096 = vmul.f32 %v3089, %v3043
        %v3097 = vsub.f32 1.0, %v3095
        %v3098 = vmul.f32 %v3097, %v3046
        %v3099 = vadd.f32 %v3096, %v3098
        %v3100 = vmul.f32 %v2094, %v373
        %v3101 = vadd.f32 %v3100, %v375
        %v3102 = vmul.f32 %v3095, %v3046
        %v3103 = vsub.f32 1.0, %v3101
        %v3104 = vmul.f32 %v3103, %v3049
        %v3105 = vadd.f32 %v3102, %v3104
        %v3106 = vmul.f32 %v2094, %v381
        %v3107 = vadd.f32 %v3106, %v383
        %v3108 = vmul.f32 %v3101, %v3049
        %v3109 = vsub.f32 1.0, %v3107
        %v3110 = vmul.f32 %v3109, %v3052
        %v3111 = vadd.f32 %v3108, %v3110
        %v3112 = vmul.f32 %v2094, %v389
        %v3113 = vadd.f32 %v3112, %v391
        %v3114 = vmul.f32 %v3107, %v3052
        %v3115 = vsub.f32 1.0, %v3113
        %v3116 = vmul.f32 %v3115, %v3055
        %v3117 = vadd.f32 %v3114, %v3116
        %v3118 = vmul.f32 %v2094, %v397
        %v3119 = vadd.f32 %v3118, %v399
        %v3120 = vmul.f32 %v3113, %v3055
        %v3121 = vsub.f32 1.0, %v3119
        %v3122 = vmul.f32 %v3121, %v3058
        %v3123 = vadd.f32 %v3120, %v3122
        %v3124 = vmul.f32 %v2094, %v405
        %v3125 = vadd.f32 %v3124, %v407
        %v3126 = vmul.f32 %v3119, %v3058
        %v3127 = vsub.f32 1.0, %v3125
        %v3128 = vmul.f32 %v3127, %v3061
        %v3129 = vadd.f32 %v3126, %v3128
        %v3130 = vmul.f32 %v2094, %v413
        %v3131 = vadd.f32 %v3130, %v415
        %v3132 = vmul.f32 %v3125, %v3061
        %v3133 = vsub.f32 1.0, %v3131
        %v3134 = vmul.f32 %v3133, %v3064
        %v3135 = vadd.f32 %v3132, %v3134
        %v3136 = vmul.f32 %v2094, %v421
        %v3137 = vadd.f32 %v3136, %v423
        %v3138 = vmul.f32 %v3131, %v3064
        %v3139 = vsub.f32 1.0, %v3137
        %v3140 = vmul.f32 %v3139, %v3067
        %v3141 = vadd.f32 %v3138, %v3140
        %v3142 = vmul.f32 %v2094, %v429
        %v3143 = vadd.f32 %v3142, %v431
        %v3144 = vmul.f32 %v3137, %v3067
        %v3145 = vsub.f32 1.0, %v3143
        %v3146 = vmul.f32 %v3145, %v3070
        %v3147 = vadd.f32 %v3144, %v3146
        %v3148 = vmul.f32 %v2094, %v437
        %v3149 = vadd.f32 %v3148, %v439
        %v3150 = vmul.f32 %v3143, %v3070
        %v3151 = vsub.f32 1.0, %v3149
        %v3152 = vmul.f32 %v3151, %v3073
        %v3153 = vadd.f32 %v3150, %v3152
        %v3154 = vmul.f32 %v2094, %v445
        %v3155 = vadd.f32 %v3154, %v447
        %v3156 = vmul.f32 %v3149, %v3073
        %v3157 = vsub.f32 1.0, %v3155
        %v3158 = vmul.f32 %v3157, %v3076
        %v3159 = vadd.f32 %v3156, %v3158
        %v3160 = vmul.f32 %v2094, %v453
        %v3161 = vadd.f32 %v3160, %v455
        %v3162 = vmul.f32 %v3155, %v3076
        %v3163 = vsub.f32 1.0, %v3161
        %v3164 = vmul.f32 %v3163, %v3079
        %v3165 = vadd.f32 %v3162, %v3164
        %v3166 = vmul.f32 %v2094, %v461
        %v3167 = vadd.f32 %v3166, %v463
        %v3168 = vmul.f32 %v2094, %v465
        %v3169 = vadd.f32 %v3168, %v467
        %v3170 = vmul.f32 %v3167, %v3087
        %v3171 = vsub.f32 1.0, %v3169
        %v3172 = vmul.f32 %v3171, %v3093
        %v3173 = vadd.f32 %v3170, %v3172
        %v3174 = vmul.f32 %v2094, %v473
        %v3175 = vadd.f32 %v3174, %v475
        %v3176 = vmul.f32 %v3169, %v3093
        %v3177 = vsub.f32 1.0, %v3175
        %v3178 = vmul.f32 %v3177, %v3099
        %v3179 = vadd.f32 %v3176, %v3178
        %v3180 = vmul.f32 %v2094, %v481
        %v3181 = vadd.f32 %v3180, %v483
        %v3182 = vmul.f32 %v3175, %v3099
        %v3183 = vsub.f32 1.0, %v3181
        %v3184 = vmul.f32 %v3183, %v3105
        %v3185 = vadd.f32 %v3182, %v3184
        %v3186 = vmul.f32 %v2094, %v489
        %v3187 = vadd.f32 %v3186, %v491
        %v3188 = vmul.f32 %v3181, %v3105
        %v3189 = vsub.f32 1.0, %v3187
        %v3190 = vmul.f32 %v3189, %v3111
        %v3191 = vadd.f32 %v3188, %v3190
        %v3192 = vmul.f32 %v2094, %v497
        %v3193 = vadd.f32 %v3192, %v499
        %v3194 = vmul.f32 %v3187, %v3111
        %v3195 = vsub.f32 1.0, %v3193
        %v3196 = vmul.f32 %v3195, %v3117
        %v3197 = vadd.f32 %v3194, %v3196
        %v3198 = vmul.f32 %v2094, %v505
        %v3199 = vadd.f32 %v3198, %v507
        %v3200 = vmul.f32 %v3193, %v3117
        %v3201 = vsub.f32 1.0, %v3199
        %v3202 = vmul.f32 %v3201, %v3123
        %v3203 = vadd.f32 %v3200, %v3202
        %v3204 = vmul.f32 %v2094, %v513
        %v3205 = vadd.f32 %v3204, %v515
        %v3206 = vmul.f32 %v3199, %v3123
        %v3207 = vsub.f32 1.0, %v3205
        %v3208 = vmul.f32 %v3207, %v3129
        %v3209 = vadd.f32 %v3206, %v3208
        %v3210 = vmul.f32 %v2094, %v521
        %v3211 = vadd.f32 %v3210, %v523
        %v3212 = vmul.f32 %v3205, %v3129
        %v3213 = vsub.f32 1.0, %v3211
        %v3214 = vmul.f32 %v3213, %v3135
        %v3215 = vadd.f32 %v3212, %v3214
        %v3216 = vmul.f32 %v2094, %v529
        %v3217 = vadd.f32 %v3216, %v531
        %v3218 = vmul.f32 %v3211, %v3135
        %v3219 = vsub.f32 1.0, %v3217
        %v3220 = vmul.f32 %v3219, %v3141
        %v3221 = vadd.f32 %v3218, %v3220
        %v3222 = vmul.f32 %v2094, %v537
        %v3223 = vadd.f32 %v3222, %v539
        %v3224 = vmul.f32 %v3217, %v3141
        %v3225 = vsub.f32 1.0, %v3223
        %v3226 = vmul.f32 %v3225, %v3147
        %v3227 = vadd.f32 %v3224, %v3226
        %v3228 = vmul.f32 %v2094, %v545
        %v3229 = vadd.f32 %v3228, %v547
        %v3230 = vmul.f32 %v3223, %v3147
        %v3231 = vsub.f32 1.0, %v3229
        %v3232 = vmul.f32 %v3231, %v3153
        %v3233 = vadd.f32 %v3230, %v3232
        %v3234 = vmul.f32 %v2094, %v553
        %v3235 = vadd.f32 %v3234, %v555
        %v3236 = vmul.f32 %v3229, %v3153
        %v3237 = vsub.f32 1.0, %v3235
        %v3238 = vmul.f32 %v3237, %v3159
        %v3239 = vadd.f32 %v3236, %v3238
        %v3240 = vmul.f32 %v2094, %v561
        %v3241 = vadd.f32 %v3240, %v563
        %v3242 = vmul.f32 %v3235, %v3159
        %v3243 = vsub.f32 1.0, %v3241
        %v3244 = vmul.f32 %v3243, %v3165
        %v3245 = vadd.f32 %v3242, %v3244
        %v3246 = vmul.f32 %v2094, %v569
        %v3247 = vadd.f32 %v3246, %v571
        %v3248 = vmul.f32 %v2094, %v573
        %v3249 = vadd.f32 %v3248, %v575
        %v3250 = vmul.f32 %v3247, %v3173
        %v3251 = vsub.f32 1.0, %v3249
        %v3252 = vmul.f32 %v3251, %v3179
        %v3253 = vadd.f32 %v3250, %v3252
        %v3254 = vmul.f32 %v2094, %v581
        %v3255 = vadd.f32 %v3254, %v583
        %v3256 = vmul.f32 %v3249, %v3179
        %v3257 = vsub.f32 1.0, %v3255
        %v3258 = vmul.f32 %v3257, %v3185
        %v3259 = vadd.f32 %v3256, %v3258
        %v3260 = vmul.f32 %v2094, %v589
        %v3261 = vadd.f32 %v3260, %v591
        %v3262 = vmul.f32 %v3255, %v3185
        %v3263 = vsub.f32 1.0, %v3261
        %v3264 = vmul.f32 %v3263, %v3191
        %v3265 = vadd.f32 %v3262, %v3264
        %v3266 = vmul.f32 %v2094, %v597
        %v3267 = vadd.f32 %v3266, %v599
        %v3268 = vmul.f32 %v3261, %v3191
        %v3269 = vsub.f32 1.0, %v3267
        %v3270 = vmul.f32 %v3269, %v3197
        %v3271 = vadd.f32 %v3268, %v3270
        %v3272 = vmul.f32 %v2094, %v605
        %v3273 = vadd.f32 %v3272, %v607
        %v3274 = vmul.f32 %v3267, %v3197
        %v3275 = vsub.f32 1.0, %v3273
        %v3276 = vmul.f32 %v3275, %v3203
        %v3277 = vadd.f32 %v3274, %v3276
        %v3278 = vmul.f32 %v2094, %v613
        %v3279 = vadd.f32 %v3278, %v615
        %v3280 = vmul.f32 %v3273, %v3203
        %v3281 = vsub.f32 1.0, %v3279
        %v3282 = vmul.f32 %v3281, %v3209
        %v3283 = vadd.f32 %v3280, %v3282
        %v3284 = vmul.f32 %v2094, %v621
        %v3285 = vadd.f32 %v3284, %v623
        %v3286 = vmul.f32 %v3279, %v3209
        %v3287 = vsub.f32 1.0, %v3285
        %v3288 = vmul.f32 %v3287, %v3215
        %v3289 = vadd.f32 %v3286, %v3288
        %v3290 = vmul.f32 %v2094, %v629
        %v3291 = vadd.f32 %v3290, %v631
        %v3292 = vmul.f32 %v3285, %v3215
        %v3293 = vsub.f32 1.0, %v3291
        %v3294 = vmul.f32 %v3293, %v3221
        %v3295 = vadd.f32 %v3292, %v3294
        %v3296 = vmul.f32 %v2094, %v637
        %v3297 = vadd.f32 %v3296, %v639
        %v3298 = vmul.f32 %v3291, %v3221
        %v3299 = vsub.f32 1.0, %v3297
        %v3300 = vmul.f32 %v3299, %v3227
        %v3301 = vadd.f32 %v3298, %v3300
        %v3302 = vmul.f32 %v2094, %v645
        %v3303 = vadd.f32 %v3302, %v647
        %v3304 = vmul.f32 %v3297, %v3227
        %v3305 = vsub.f32 1.0, %v3303
        %v3306 = vmul.f32 %v3305, %v3233
        %v3307 = vadd.f32 %v3304, %v3306
        %v3308 = vmul.f32 %v2094, %v653
        %v3309 = vadd.f32 %v3308, %v655
        %v3310 = vmul.f32 %v3303, %v3233
        %v3311 = vsub.f32 1.0, %v3309
        %v3312 = vmul.f32 %v3311, %v3239
        %v3313 = vadd.f32 %v3310, %v3312
        %v3314 = vmul.f32 %v2094, %v661
        %v3315 = vadd.f32 %v3314, %v663
        %v3316 = vmul.f32 %v3309, %v3239
        %v3317 = vsub.f32 1.0, %v3315
        %v3318 = vmul.f32 %v3317, %v3245
        %v3319 = vadd.f32 %v3316, %v3318
        %v3320 = vmul.f32 %v2094, %v669
        %v3321 = vadd.f32 %v3320, %v671
        %v3322 = vmul.f32 %v2094, %v673
        %v3323 = vadd.f32 %v3322, %v675
        %v3324 = vmul.f32 %v3321, %v3253
        %v3325 = vsub.f32 1.0, %v3323
        %v3326 = vmul.f32 %v3325, %v3259
        %v3327 = vadd.f32 %v3324, %v3326
        %v3328 = vmul.f32 %v2094, %v681
        %v3329 = vadd.f32 %v3328, %v683
        %v3330 = vmul.f32 %v3323, %v3259
        %v3331 = vsub.f32 1.0, %v3329
        %v3332 = vmul.f32 %v3331, %v3265
        %v3333 = vadd.f32 %v3330, %v3332
        %v3334 = vmul.f32 %v2094, %v689
        %v3335 = vadd.f32 %v3334, %v691
        %v3336 = vmul.f32 %v3329, %v3265
        %v3337 = vsub.f32 1.0, %v3335
        %v3338 = vmul.f32 %v3337, %v3271
        %v3339 = vadd.f32 %v3336, %v3338
        %v3340 = vmul.f32 %v2094, %v697
        %v3341 = vadd.f32 %v3340, %v699
        %v3342 = vmul.f32 %v3335, %v3271
        %v3343 = vsub.f32 1.0, %v3341
        %v3344 = vmul.f32 %v3343, %v3277
        %v3345 = vadd.f32 %v3342, %v3344
        %v3346 = vmul.f32 %v2094, %v705
        %v3347 = vadd.f32 %v3346, %v707
        %v3348 = vmul.f32 %v3341, %v3277
        %v3349 = vsub.f32 1.0, %v3347
        %v3350 = vmul.f32 %v3349, %v3283
        %v3351 = vadd.f32 %v3348, %v3350
        %v3352 = vmul.f32 %v2094, %v713
        %v3353 = vadd.f32 %v3352, %v715
        %v3354 = vmul.f32 %v3347, %v3283
        %v3355 = vsub.f32 1.0, %v3353
        %v3356 = vmul.f32 %v3355, %v3289
        %v3357 = vadd.f32 %v3354, %v3356
        %v3358 = vmul.f32 %v2094, %v721
        %v3359 = vadd.f32 %v3358, %v723
        %v3360 = vmul.f32 %v3353, %v3289
        %v3361 = vsub.f32 1.0, %v3359
        %v3362 = vmul.f32 %v3361, %v3295
        %v3363 = vadd.f32 %v3360, %v3362
        %v3364 = vmul.f32 %v2094, %v729
        %v3365 = vadd.f32 %v3364, %v731
        %v3366 = vmul.f32 %v3359, %v3295
        %v3367 = vsub.f32 1.0, %v3365
        %v3368 = vmul.f32 %v3367, %v3301
        %v3369 = vadd.f32 %v3366, %v3368
        %v3370 = vmul.f32 %v2094, %v737
        %v3371 = vadd.f32 %v3370, %v739
        %v3372 = vmul.f32 %v3365, %v3301
        %v3373 = vsub.f32 1.0, %v3371
        %v3374 = vmul.f32 %v3373, %v3307
        %v3375 = vadd.f32 %v3372, %v3374
        %v3376 = vmul.f32 %v2094, %v745
        %v3377 = vadd.f32 %v3376, %v747
        %v3378 = vmul.f32 %v3371, %v3307
        %v3379 = vsub.f32 1.0, %v3377
        %v3380 = vmul.f32 %v3379, %v3313
        %v3381 = vadd.f32 %v3378, %v3380
        %v3382 = vmul.f32 %v2094, %v753
        %v3383 = vadd.f32 %v3382, %v755
        %v3384 = vmul.f32 %v3377, %v3313
        %v3385 = vsub.f32 1.0, %v3383
        %v3386 = vmul.f32 %v3385, %v3319
        %v3387 = vadd.f32 %v3384, %v3386
        %v3388 = vmul.f32 %v2094, %v761
        %v3389 = vadd.f32 %v3388, %v763
        %v3390 = vmul.f32 %v2094, %v765
        %v3391 = vadd.f32 %v3390, %v767
        %v3392 = vmul.f32 %v3389, %v3327
        %v3393 = vsub.f32 1.0, %v3391
        %v3394 = vmul.f32 %v3393, %v3333
        %v3395 = vadd.f32 %v3392, %v3394
        %v3396 = vmul.f32 %v2094, %v773
        %v3397 = vadd.f32 %v3396, %v775
        %v3398 = vmul.f32 %v3391, %v3333
        %v3399 = vsub.f32 1.0, %v3397
        %v3400 = vmul.f32 %v3399, %v3339
        %v3401 = vadd.f32 %v3398, %v3400
        %v3402 = vmul.f32 %v2094, %v781
        %v3403 = vadd.f32 %v3402, %v783
        %v3404 = vmul.f32 %v3397, %v3339
        %v3405 = vsub.f32 1.0, %v3403
        %v3406 = vmul.f32 %v3405, %v3345
        %v3407 = vadd.f32 %v3404, %v3406
        %v3408 = vmul.f32 %v2094, %v789
        %v3409 = vadd.f32 %v3408, %v791
        %v3410 = vmul.f32 %v3403, %v3345
        %v3411 = vsub.f32 1.0, %v3409
        %v3412 = vmul.f32 %v3411, %v3351
        %v3413 = vadd.f32 %v3410, %v3412
        %v3414 = vmul.f32 %v2094, %v797
        %v3415 = vadd.f32 %v3414, %v799
        %v3416 = vmul.f32 %v3409, %v3351
        %v3417 = vsub.f32 1.0, %v3415
        %v3418 = vmul.f32 %v3417, %v3357
        %v3419 = vadd.f32 %v3416, %v3418
        %v3420 = vmul.f32 %v2094, %v805
        %v3421 = vadd.f32 %v3420, %v807
        %v3422 = vmul.f32 %v3415, %v3357
        %v3423 = vsub.f32 1.0, %v3421
        %v3424 = vmul.f32 %v3423, %v3363
        %v3425 = vadd.f32 %v3422, %v3424
        %v3426 = vmul.f32 %v2094, %v813
        %v3427 = vadd.f32 %v3426, %v815
        %v3428 = vmul.f32 %v3421, %v3363
        %v3429 = vsub.f32 1.0, %v3427
        %v3430 = vmul.f32 %v3429, %v3369
        %v3431 = vadd.f32 %v3428, %v3430
        %v3432 = vmul.f32 %v2094, %v821
        %v3433 = vadd.f32 %v3432, %v823
        %v3434 = vmul.f32 %v3427, %v3369
        %v3435 = vsub.f32 1.0, %v3433
        %v3436 = vmul.f32 %v3435, %v3375
        %v3437 = vadd.f32 %v3434, %v3436
        %v3438 = vmul.f32 %v2094, %v829
        %v3439 = vadd.f32 %v3438, %v831
        %v3440 = vmul.f32 %v3433, %v3375
        %v3441 = vsub.f32 1.0, %v3439
        %v3442 = vmul.f32 %v3441, %v3381
        %v3443 = vadd.f32 %v3440, %v3442
        %v3444 = vmul.f32 %v2094, %v837
        %v3445 = vadd.f32 %v3444, %v839
        %v3446 = vmul.f32 %v3439, %v3381
        %v3447 = vsub.f32 1.0, %v3445
        %v3448 = vmul.f32 %v3447, %v3387
        %v3449 = vadd.f32 %v3446, %v3448
        %v3450 = vsub.f32 0.0, %v2094
        %v3451 = vmul.f32 %v3450, 1.442695
        %v3452 = vpow.pop %v3451
        %v3453 = vadd.f32 %v3452, 1.0
        %v3454 = vrcp.pop %v3453
        %v3455 = vmul.f32 1.0, %v3454
        %v3456 = vmul.f32 %v2094, %v3455
        %s3457 = sld [smem:[#allocation2 + $0xfd]]
        %v3458 = vstv %s3457
        %v3459 = vmul.f32 %v3458, %v3456
        %s3460 = sld [smem:[#allocation2 + $0xfe]]
        %v3461 = vstv %s3460
        %v3462 = vmul.f32 %v3461, %v3395
        %v3463 = vadd.f32 %v3459, %v3462
        %s3464 = sld [smem:[#allocation2 + $0xff]]
        %v3465 = vstv %s3464
        %v3466 = vmul.f32 %v3465, %v3401
        %v3467 = vadd.f32 %v3463, %v3466
        %s3468 = sld [smem:[#allocation2 + $0x100]]
        %v3469 = vstv %s3468
        %v3470 = vmul.f32 %v3469, %v3407
        %v3471 = vadd.f32 %v3467, %v3470
        %s3472 = sld [smem:[#allocation2 + $0x101]]
        %v3473 = vstv %s3472
        %v3474 = vmul.f32 %v3473, %v3413
        %v3475 = vadd.f32 %v3471, %v3474
        %s3476 = sld [smem:[#allocation2 + $0x102]]
        %v3477 = vstv %s3476
        %v3478 = vmul.f32 %v3477, %v3419
        %v3479 = vadd.f32 %v3475, %v3478
        %s3480 = sld [smem:[#allocation2 + $0x103]]
        %v3481 = vstv %s3480
        %v3482 = vmul.f32 %v3481, %v3425
        %v3483 = vadd.f32 %v3479, %v3482
        %s3484 = sld [smem:[#allocation2 + $0x104]]
        %v3485 = vstv %s3484
        %v3486 = vmul.f32 %v3485, %v3431
        %v3487 = vadd.f32 %v3483, %v3486
        %s3488 = sld [smem:[#allocation2 + $0x105]]
        %v3489 = vstv %s3488
        %v3490 = vmul.f32 %v3489, %v3437
        %v3491 = vadd.f32 %v3487, %v3490
        %s3492 = sld [smem:[#allocation2 + $0x106]]
        %v3493 = vstv %s3492
        %v3494 = vmul.f32 %v3493, %v3443
        %v3495 = vadd.f32 %v3491, %v3494
        %s3496 = sld [smem:[#allocation2 + $0x107]]
        %v3497 = vstv %s3496
        %v3498 = vmul.f32 %v3497, %v3449
        %v3499 = vadd.f32 %v3495, %v3498
        %v3500 = vadd.f32 %v3031, %v3499
        %3501 = vst [vmem:[%s157] sm:$0xff] %v292
        %s3502 = scalar_lea.vmem %s157, 8
        %3503 = vst [vmem:[%s3502] sm:$0xff] %v3500
        %p3504 = scmp.lt.s32.totalorder %s14, 1
        %s3505 = scalar_select %p3504, %s14, 1
        %s3506 = smul.addr %s3505, 2
        %s3507 = smul.addr %s3506, 8
        %s3508 = scalar_lea.vmem %s2, %s3507
        // Predicated region
        $region33: #{kanode_forward_batch.1} parent=27 // pred_check
          %p3509 = pneg %p79
        $region34: #{kanode_forward_batch.1} parent=27 // pred_check_branch
          %3511 = sbr.rel (%p3509) target = $region36
        $region35: #{kanode_forward_batch.1} parent=27 // pred_region
          _
        $region36: #{kanode_forward_batch.1} parent=27 // pred_fallthru
          _
      $region28: #{kanode_forward_batch.1} parent=5 // pred_fallthru
        _
      %p3512 = scmp.le.s32.totalorder 2, %s9
      // Predicated region
      $region37: #{kanode_forward_batch.1} parent=5 // pred_check
        %p3513 = pneg %p3512
      $region38: #{kanode_forward_batch.1} parent=5 // pred_check_branch
        %3515 = sbr.rel (%p3513) target = $region40
      $region39: #{kanode_forward_batch.1} parent=5 // pred_region
        %s3516 = ssub.s32 %s9, 2
        // Predicated region
        $region41: #{kanode_forward_batch.1} parent=39 // pred_check
          %p3517 = pneg %p85
        $region42: #{kanode_forward_batch.1} parent=39 // pred_check_branch
          %3519 = sbr.rel (%p3517) target = $region44
        $region43: #{kanode_forward_batch.1} parent=39 // pred_region
          %p3520 = scmp.lt.s32.totalorder %s15, 1
          %s3521 = scalar_select %p3520, %s15, 1
          %s3522 = smul.addr %s3521, 2
          %s3523 = smul.addr %s3522, 8
          %s3524 = scalar_lea.vmem %s2, %s3523
        $region44: #{kanode_forward_batch.1} parent=39 // pred_fallthru
          _
      $region40: #{kanode_forward_batch.1} parent=5 // pred_fallthru
        _
    $region6: #{kanode_forward_batch.1} parent=1 // loop_footer
      %s13 = sadd.s32 1, %s9
    $region7: #{kanode_forward_batch.1} parent=1 // loop_footer_branch
      %8 = sbr.rel target = $region3
    $region8: #{kanode_forward_batch.1} parent=1 // loop_exit
      _
    %3525 = vsyncpa [#allocation3], 1
    %s3526 = scalar_lea.sflag [#allocation3], 1
    %3527 = vsyncpa %s3526, 1

</llo_original>
